<compile_context>
chip_gen: v7x
topology: tpu7x:2x2x1
jax: 0.10.0
libtpu: 0.0.40
codegen_flags: <defaults>
</compile_context>

<pallas_src>
import functools

import jax
import jax.numpy as jnp
from jax import lax
from jax.experimental import pallas as pl
from jax.experimental.pallas import tpu as pltpu

# ---- model dimensions (faithful to the PyTorch module) ----
NFFT = 512
WIN = 512
HOP = 128
FREQ = 512            # spectral feature dim fed to nn.Linear(512, 400)
HID = 400             # true encoder / GRU hidden size
HIDP = 512            # padded to a lane multiple
DEC = 600             # true decoder hidden size
DECP = 640            # padded to a lane multiple
LN_EPS = 1e-5
LOG10 = 2.302585092994046
TBLK = 32             # timesteps per grid block (raise to 64-128 on v5e/v6e)

F32 = jnp.float32
BF16 = jnp.bfloat16


def _round_up(x, m):
    return (x + m - 1) // m * m


# ----------------------------- kernel helpers -----------------------------
def _prelu(x, a_row):
    return jnp.where(x >= 0, x, a_row * x)


def _lane_mask(d, n_true):
    lane = lax.broadcasted_iota(jnp.int32, (1, d), 1)
    return (lane < n_true).astype(F32)


def _masked_layernorm(x, g, b, mask, n_true):
    # x's padded lanes are exactly zero (guaranteed by zero-padded weights),
    # so sums over all lanes == sums over the true lanes; only (x - m) needs
    # an explicit lane mask for the variance.
    inv_n = 1.0 / float(n_true)
    m = jnp.sum(x, axis=-1, keepdims=True) * inv_n
    xc = (x - m) * mask
    v = jnp.sum(xc * xc, axis=-1, keepdims=True) * inv_n
    return xc * lax.rsqrt(v + LN_EPS) * g + b


# -------------------- Pass A: DFT + log-power + encoder --------------------
def ffa_kernel(frames_ref, wcs_ref,
               we_ref, be_ref, lng_ref, lnb_ref, aenc_ref,
               spec_ref, enc_ref):
    # fused windowed DFT: [RB, WIN] x [WIN, 2*FREQ] -> [RB, 2*FREQ] (re | im)
    spec = jnp.dot(frames_ref[...], wcs_ref[...], preferred_element_type=F32)
    spec_ref[...] = spec.astype(BF16)

    real = spec[:, :FREQ]
    imag = spec[:, FREQ:]
    pw = jnp.maximum(real * real + imag * imag, 1e-12)
    log_pow = jnp.log(pw) * (1.0 / LOG10)

    enc = jnp.dot(log_pow.astype(BF16), we_ref[...],
                  preferred_element_type=F32) + be_ref[...]
    enc = _prelu(enc, aenc_ref[...])
    enc = _masked_layernorm(enc, lng_ref[...], lnb_ref[...],
                            _lane_mask(HIDP, HID), HID)
    enc_ref[...] = enc.astype(BF16)


# ----------------------- Pass B: 2-layer GRU recurrence ---------------------
def gru_kernel(enc_ref,
               wih0_ref, whh0_ref, bx0_ref, bhn0_ref,
               wih1_ref, whh1_ref, bx1_ref, bhn1_ref,
               rnn_ref,
               xg_ref, h1seq_ref, acc_ref, h1_ref, h2_ref,
               *, n_steps, bp):
    @pl.when(pl.program_id(0) == 0)
    def _():
        h1_ref[...] = jnp.zeros_like(h1_ref)
        h2_ref[...] = jnp.zeros_like(h2_ref)

    def split_gates(pre):  # torch GRU gate order (r, z, n)
        return (pre[:, 0:HIDP], pre[:, HIDP:2 * HIDP], pre[:, 2 * HIDP:3 * HIDP])

    # ---- layer 0: hoisted input-side gates (one full-M matmul per block) ----
    xg_ref[...] = (jnp.dot(enc_ref[...], wih0_ref[...],
                           preferred_element_type=F32) + bx0_ref[...])

    @pl.loop(0, n_steps)
    def _(t):
        row0 = pl.multiple_of(t * bp, bp)
        h1 = h1_ref[...]
        xr, xz, xn = split_gates(xg_ref[pl.ds(row0, bp), :])
        hg = jnp.dot(h1.astype(BF16), whh0_ref[...], preferred_element_type=F32)
        hr, hz, hn = split_gates(hg)
        r = jax.nn.sigmoid(xr + hr)
        z = jax.nn.sigmoid(xz + hz)
        n = jnp.tanh(xn + r * (hn + bhn0_ref[...]))
        h1n = (1.0 - z) * n + z * h1
        h1seq_ref[pl.ds(row0, bp), :] = h1n
        h1_ref[...] = h1n

    # ---- layer 1: hoist ALL input-side gates over the h1 sequence ----------
    # (reuses the same xg scratch; layer-0 gates are fully consumed above)
    xg_ref[...] = (jnp.dot(h1seq_ref[...].astype(BF16), wih1_ref[...],
                           preferred_element_type=F32) + bx1_ref[...])

    @pl.loop(0, n_steps)
    def _(t):
        row0 = pl.multiple_of(t * bp, bp)
        h2 = h2_ref[...]
        xr, xz, xn = split_gates(xg_ref[pl.ds(row0, bp), :])
        hg = jnp.dot(h2.astype(BF16), whh1_ref[...], preferred_element_type=F32)
        hr, hz, hn = split_gates(hg)
        r = jax.nn.sigmoid(xr + hr)
        z = jax.nn.sigmoid(xz + hz)
        n = jnp.tanh(xn + r * (hn + bhn1_ref[...]))
        h2n = (1.0 - z) * n + z * h2
        acc_ref[pl.ds(row0, bp), :] = h2n
        h2_ref[...] = h2n

    # single lane-dense bf16 store of the whole block
    rnn_ref[...] = acc_ref[...].astype(BF16)


# ------------------ Pass C: decoder + mask + inverse DFT --------------------
def ffc_kernel(rnn_ref, spec_ref, wct_ref, wst_ref,
               wd1_ref, bd1_ref, ln1g_ref, ln1b_ref, a1_ref,
               wd2_ref, bd2_ref, ln2g_ref, ln2b_ref, a2_ref,
               wd3_ref, bd3_ref,
               out_ref):
    dec_mask = _lane_mask(DECP, DEC)

    d = jnp.dot(rnn_ref[...], wd1_ref[...],
                preferred_element_type=F32) + bd1_ref[...]
    d = _prelu(_masked_layernorm(d, ln1g_ref[...], ln1b_ref[...],
                                 dec_mask, DEC), a1_ref[...])
    d = jnp.dot(d.astype(BF16), wd2_ref[...],
                preferred_element_type=F32) + bd2_ref[...]
    d = _prelu(_masked_layernorm(d, ln2g_ref[...], ln2b_ref[...],
                                 dec_mask, DEC), a2_ref[...])
    mask = jax.nn.sigmoid(jnp.dot(d.astype(BF16), wd3_ref[...],
                                  preferred_element_type=F32) + bd3_ref[...])

    spec = spec_ref[...]
    real_m = (spec[:, :FREQ].astype(F32) * mask).astype(BF16)
    imag_m = (spec[:, FREQ:].astype(F32) * mask).astype(BF16)
    # inverse DFT: synthesis matrices are pre-transposed host-side
    rec = (jnp.dot(real_m, wct_ref[...], preferred_element_type=F32)
           + jnp.dot(imag_m, wst_ref[...], preferred_element_type=F32))
    out_ref[...] = rec * (1.0 / NFFT)


# ------------------------------ JAX glue -----------------------------------
def hann_window(n):
    i = jnp.arange(n, dtype=F32)
    return 0.5 - 0.5 * jnp.cos(2.0 * jnp.pi * i / n)


def frame_signal(x, win_len, hop):
    _, n = x.shape
    t = 1 + (n - win_len) // hop
    idx = jnp.arange(t)[:, None] * hop + jnp.arange(win_len)[None, :]
    return x[:, idx]


def overlap_add(frames, win, hop, n_out):
    # vectorized WOLA: single scatter-add instead of a trace-time Python loop
    b, t, w = frames.shape
    idx = jnp.arange(t)[:, None] * hop + jnp.arange(w)[None, :]        # [t, w]
    acc = jnp.zeros((n_out, b), F32).at[idx].add(frames.transpose(1, 2, 0))
    norm = jnp.zeros((n_out,), F32).at[idx].add(
        jnp.broadcast_to(win * win, (t, w)))
    return acc.T / jnp.maximum(norm, 1e-8)[None, :]


def _pad_to(x, shape):
    out = jnp.zeros(shape, x.dtype)
    return out.at[tuple(slice(0, s) for s in x.shape)].set(x)


def init_params(key):
    keys = iter(jax.random.split(key, 40))

    def w(shape, fan_in):
        return (jax.random.normal(next(keys), shape, F32)
                / jnp.sqrt(jnp.float32(fan_in)))

    p = {}
    # encoder: Linear(512, 400) -> PReLU -> LayerNorm(400), padded to 512 lanes
    p['we'] = _pad_to(w((FREQ, HID), FREQ), (FREQ, HIDP)).astype(BF16)
    p['be'] = _pad_to(w((1, HID), FREQ), (1, HIDP))
    p['lne_g'] = _pad_to(jnp.ones((1, HID), F32), (1, HIDP))
    p['lne_b'] = jnp.zeros((1, HIDP), F32)
    # 2-layer GRU(400 -> 400): fused gate weights [HIDP, 3*HIDP], order (r,z,n)
    # biases folded: bx = [b_ir+b_hr | b_iz+b_hz | b_in],  bhn = b_hn
    for l in range(2):
        wih = [_pad_to(w((HID, HID), HID), (HIDP, HIDP)) for _ in range(3)]
        whh = [_pad_to(w((HID, HID), HID), (HIDP, HIDP)) for _ in range(3)]
        bih = [_pad_to(w((1, HID), HID), (1, HIDP)) for _ in range(3)]
        bhh = [_pad_to(w((1, HID), HID), (1, HIDP)) for _ in range(3)]
        p[f'wih{l}'] = jnp.concatenate(wih, axis=1).astype(BF16)
        p[f'whh{l}'] = jnp.concatenate(whh, axis=1).astype(BF16)
        p[f'bx{l}'] = jnp.concatenate(
            [bih[0] + bhh[0], bih[1] + bhh[1], bih[2]], axis=1)
        p[f'bhn{l}'] = bhh[2]
    # decoder, 600 padded to 640 lanes
    p['wd1'] = _pad_to(w((HID, DEC), HID), (HIDP, DECP)).astype(BF16)
    p['bd1'] = _pad_to(w((1, DEC), HID), (1, DECP))
    p['ln1_g'] = _pad_to(jnp.ones((1, DEC), F32), (1, DECP))
    p['ln1_b'] = jnp.zeros((1, DECP), F32)
    p['wd2'] = _pad_to(w((DEC, DEC), DEC), (DECP, DECP)).astype(BF16)
    p['bd2'] = _pad_to(w((1, DEC), DEC), (1, DECP))
    p['ln2_g'] = _pad_to(jnp.ones((1, DEC), F32), (1, DECP))
    p['ln2_b'] = jnp.zeros((1, DECP), F32)
    p['wd3'] = _pad_to(w((DEC, FREQ), DEC), (DECP, FREQ)).astype(BF16)
    p['bd3'] = w((1, FREQ), DEC)
    # PReLU alphas (torch default 0.25) as broadcastable row vectors
    p['a_enc'] = jnp.full((1, HIDP), 0.25, F32)
    p['a_d1'] = jnp.full((1, DECP), 0.25, F32)
    p['a_d2'] = jnp.full((1, DECP), 0.25, F32)
    return p


def nsnet2_forward(x, params, tblk=TBLK):
    B, N = x.shape
    frames = frame_signal(x, WIN, HOP)                   # [B, T, WIN]
    T = frames.shape[1]

    BP = _round_up(max(B, 8), 8)                         # batch padded to sublanes
    Tpad = _round_up(T, tblk)                            # time padded to block size
    frames = jnp.pad(frames, ((0, BP - B), (0, Tpad - T), (0, 0)))
    rows = Tpad * BP
    RB = tblk * BP                                       # rows per grid block
    nb = Tpad // tblk                                    # number of time blocks
    frames_tb = (frames.transpose(1, 0, 2)
                 .reshape(rows, WIN).astype(BF16))       # time-major rows, bf16

    # window-folded DFT matrices (bf16): fused analysis [WIN, 2*FREQ],
    # pre-transposed synthesis [FREQ, WIN] each.
    win = hann_window(WIN)
    n = jnp.arange(WIN, dtype=F32)
    k = jnp.arange(FREQ, dtype=F32)
    ang = 2.0 * jnp.pi * jnp.outer(n, k) / NFFT          # [WIN, FREQ]
    wcos = win[:, None] * jnp.cos(ang)                   # analysis real
    wsin = win[:, None] * -jnp.sin(ang)                  # analysis imag
    wcs = jnp.concatenate([wcos, wsin], axis=1).astype(BF16)   # [WIN, 2*FREQ]
    wct = wcos.T.astype(BF16)                            # [FREQ, WIN]
    wst = wsin.T.astype(BF16)

    # safe on v7x's 64 MiB physical VMEM; on v5e/v6e (128 MiB) this can be
    # raised to ~96 MiB together with a larger tblk.
    vmem_lim = 48 * 1024 * 1024

    # ---------------- Pass A: fused DFT + log-power + encoder ----------------
    spec, enc = pl.pallas_call(
        ffa_kernel,
        out_shape=(jax.ShapeDtypeStruct((rows, 2 * FREQ), BF16),
                   jax.ShapeDtypeStruct((rows, HIDP), BF16)),
        grid_spec=pltpu.PrefetchScalarGridSpec(
            num_scalar_prefetch=0, grid=(nb,),
            in_specs=[
                pl.BlockSpec((RB, WIN), lambda i: (i, 0)),        # frames (bf16)
                pl.BlockSpec((WIN, 2 * FREQ), lambda i: (0, 0)),  # wcs
                pl.BlockSpec((FREQ, HIDP), lambda i: (0, 0)),     # we
                pl.BlockSpec((1, HIDP), lambda i: (0, 0)),        # be
                pl.BlockSpec((1, HIDP), lambda i: (0, 0)),        # lne_g
                pl.BlockSpec((1, HIDP), lambda i: (0, 0)),        # lne_b
                pl.BlockSpec((1, HIDP), lambda i: (0, 0)),        # a_enc
            ],
            out_specs=[
                pl.BlockSpec((RB, 2 * FREQ), lambda i: (i, 0)),
                pl.BlockSpec((RB, HIDP), lambda i: (i, 0)),
            ]),
        compiler_params=pltpu.CompilerParams(
            dimension_semantics=("parallel",), vmem_limit_bytes=vmem_lim),
    )(frames_tb, wcs, params['we'], params['be'],
      params['lne_g'], params['lne_b'], params['a_enc'])

    # ---------------- Pass B: 2-layer GRU recurrence ----------------
    rnn = pl.pallas_call(
        functools.partial(gru_kernel, n_steps=tblk, bp=BP),
        out_shape=jax.ShapeDtypeStruct((rows, HIDP), BF16),
        grid_spec=pltpu.PrefetchScalarGridSpec(
            num_scalar_prefetch=0, grid=(nb,),
            in_specs=[
                pl.BlockSpec((RB, HIDP), lambda i: (i, 0)),          # enc (bf16)
                pl.BlockSpec((HIDP, 3 * HIDP), lambda i: (0, 0)),    # wih0
                pl.BlockSpec((HIDP, 3 * HIDP), lambda i: (0, 0)),    # whh0
                pl.BlockSpec((1, 3 * HIDP), lambda i: (0, 0)),       # bx0
                pl.BlockSpec((1, HIDP), lambda i: (0, 0)),           # bhn0
                pl.BlockSpec((HIDP, 3 * HIDP), lambda i: (0, 0)),    # wih1
                pl.BlockSpec((HIDP, 3 * HIDP), lambda i: (0, 0)),    # whh1
                pl.BlockSpec((1, 3 * HIDP), lambda i: (0, 0)),       # bx1
                pl.BlockSpec((1, HIDP), lambda i: (0, 0)),           # bhn1
            ],
            out_specs=pl.BlockSpec((RB, HIDP), lambda i: (i, 0)),
            scratch_shapes=[
                pltpu.VMEM((RB, 3 * HIDP), F32),   # hoisted x-gates (reused l0/l1)
                pltpu.VMEM((RB, HIDP), F32),       # layer-0 hidden-state sequence
                pltpu.VMEM((RB, HIDP), F32),       # layer-1 output accumulator
                pltpu.VMEM((BP, HIDP), F32),       # h1 (persists across blocks)
                pltpu.VMEM((BP, HIDP), F32),       # h2
            ]),
        compiler_params=pltpu.CompilerParams(
            dimension_semantics=("arbitrary",), vmem_limit_bytes=vmem_lim),
    )(enc, params['wih0'], params['whh0'], params['bx0'], params['bhn0'],
      params['wih1'], params['whh1'], params['bx1'], params['bhn1'])

    # ---------------- Pass C: decoder + mask + inverse DFT ----------------
    out_frames = pl.pallas_call(
        ffc_kernel,
        out_shape=jax.ShapeDtypeStruct((rows, WIN), F32),
        grid_spec=pltpu.PrefetchScalarGridSpec(
            num_scalar_prefetch=0, grid=(nb,),
            in_specs=[
                pl.BlockSpec((RB, HIDP), lambda i: (i, 0)),       # rnn (bf16)
                pl.BlockSpec((RB, 2 * FREQ), lambda i: (i, 0)),   # spec (bf16)
                pl.BlockSpec((FREQ, WIN), lambda i: (0, 0)),      # wct
                pl.BlockSpec((FREQ, WIN), lambda i: (0, 0)),      # wst
                pl.BlockSpec((HIDP, DECP), lambda i: (0, 0)),     # wd1
                pl.BlockSpec((1, DECP), lambda i: (0, 0)),        # bd1
                pl.BlockSpec((1, DECP), lambda i: (0, 0)),        # ln1_g
                pl.BlockSpec((1, DECP), lambda i: (0, 0)),        # ln1_b
                pl.BlockSpec((1, DECP), lambda i: (0, 0)),        # a_d1
                pl.BlockSpec((DECP, DECP), lambda i: (0, 0)),     # wd2
                pl.BlockSpec((1, DECP), lambda i: (0, 0)),        # bd2
                pl.BlockSpec((1, DECP), lambda i: (0, 0)),        # ln2_g
                pl.BlockSpec((1, DECP), lambda i: (0, 0)),        # ln2_b
                pl.BlockSpec((1, DECP), lambda i: (0, 0)),        # a_d2
                pl.BlockSpec((DECP, FREQ), lambda i: (0, 0)),     # wd3
                pl.BlockSpec((1, FREQ), lambda i: (0, 0)),        # bd3
            ],
            out_specs=pl.BlockSpec((RB, WIN), lambda i: (i, 0))),
        compiler_params=pltpu.CompilerParams(
            dimension_semantics=("parallel",), vmem_limit_bytes=vmem_lim),
    )(rnn, spec, wct, wst,
      params['wd1'], params['bd1'], params['ln1_g'], params['ln1_b'], params['a_d1'],
      params['wd2'], params['bd2'], params['ln2_g'], params['ln2_b'], params['a_d2'],
      params['wd3'], params['bd3'])

    out_frames = out_frames.reshape(Tpad, BP, WIN)[:T, :B].transpose(1, 0, 2)
    wav = overlap_add(out_frames, win, HOP, N)                      # [B, N]
    return wav


if __name__ == "__main__":
    key = jax.random.PRNGKey(0)
    k_param, k_x = jax.random.split(key)
    params = init_params(k_param)

    B = 2
    T = 8
    N = WIN + (T - 1) * HOP          # 1408 samples -> 8 STFT frames
    x = jax.random.normal(k_x, (B, N), F32)

    wav = jax.block_until_ready(nsnet2_forward(x, params))

    assert wav.shape == (B, N), wav.shape
    assert bool(jnp.all(jnp.isfinite(wav)))
    print("KERNEL_OK")
</pallas_src>

<mosaic_0001>
module attributes {stable_mosaic.version = 11 : i64} {
  func.func @ffa_kernel(%arg0: i32, %arg1: memref<256x512xbf16, #tpu.memory_space<vmem>>, %arg2: memref<512x1024xbf16, #tpu.memory_space<vmem>>, %arg3: memref<512x512xbf16, #tpu.memory_space<vmem>>, %arg4: memref<1x512xf32, #tpu.memory_space<vmem>>, %arg5: memref<1x512xf32, #tpu.memory_space<vmem>>, %arg6: memref<1x512xf32, #tpu.memory_space<vmem>>, %arg7: memref<1x512xf32, #tpu.memory_space<vmem>>, %arg8: memref<256x1024xbf16, #tpu.memory_space<vmem>>, %arg9: memref<256x512xbf16, #tpu.memory_space<vmem>>) attributes {dimension_semantics = [#tpu.dimension_semantics<parallel>], iteration_bounds = array<i64: 1>, scalar_prefetch = 0 : i64, scratch_operands = 0 : i64, tpu.core_type = #tpu.core_type<tc>, window_params = [{transform_indices = @transform_0, window_bounds = array<i64: 256, 512>}, {pipeline_mode = #tpu.pipeline_mode<synchronous>, transform_indices = @transform_1, window_bounds = array<i64: 512, 1024>}, {pipeline_mode = #tpu.pipeline_mode<synchronous>, transform_indices = @transform_2, window_bounds = array<i64: 512, 512>}, {pipeline_mode = #tpu.pipeline_mode<synchronous>, transform_indices = @transform_3, window_bounds = array<i64: 1, 512>}, {pipeline_mode = #tpu.pipeline_mode<synchronous>, transform_indices = @transform_4, window_bounds = array<i64: 1, 512>}, {pipeline_mode = #tpu.pipeline_mode<synchronous>, transform_indices = @transform_5, window_bounds = array<i64: 1, 512>}, {pipeline_mode = #tpu.pipeline_mode<synchronous>, transform_indices = @transform_6, window_bounds = array<i64: 1, 512>}, {transform_indices = @transform_7, window_bounds = array<i64: 256, 1024>}, {transform_indices = @transform_8, window_bounds = array<i64: 256, 512>}]} {
    %c0 = arith.constant 0 : index
    %c0_0 = arith.constant 0 : index
    %0 = vector.load %arg1[%c0, %c0_0] : memref<256x512xbf16, #tpu.memory_space<vmem>>, vector<256x512xbf16>
    %c0_1 = arith.constant 0 : index
    %c0_2 = arith.constant 0 : index
    %1 = vector.load %arg2[%c0_1, %c0_2] : memref<512x1024xbf16, #tpu.memory_space<vmem>>, vector<512x1024xbf16>
    %cst = arith.constant dense<0.000000e+00> : vector<256x1024xf32>
    %2 = tpu.matmul %0, %1, %cst {dimension_numbers = #tpu.dot_dimension_numbers<[1], [0], [0], [1], [0, 0, 1, 1], [], []>} : vector<256x512xbf16>, vector<512x1024xbf16>, vector<256x1024xf32> -> vector<256x1024xf32>
    %3 = arith.truncf %2 : vector<256x1024xf32> to vector<256x1024xbf16>
    %c0_3 = arith.constant 0 : index
    %c0_4 = arith.constant 0 : index
    %4 = vector.load %arg8[%c0_3, %c0_4] : memref<256x1024xbf16, #tpu.memory_space<vmem>>, vector<256x1024xbf16>
    tpu.vector_store %arg8[%c0_3, %c0_4], %3 {strides = array<i32>} : memref<256x1024xbf16, #tpu.memory_space<vmem>>, vector<256x1024xbf16>,
    %5 = vector.extract_strided_slice %2 {offsets = [0, 0], sizes = [256, 512], strides = [1, 1]} : vector<256x1024xf32> to vector<256x512xf32>
    %6 = vector.extract_strided_slice %2 {offsets = [0, 512], sizes = [256, 512], strides = [1, 1]} : vector<256x1024xf32> to vector<256x512xf32>
    %7 = arith.mulf %5, %5 : vector<256x512xf32>
    %8 = arith.mulf %6, %6 : vector<256x512xf32>
    %9 = arith.addf %7, %8 : vector<256x512xf32>
    %cst_5 = arith.constant 9.99999996E-13 : f32
    %10 = vector.broadcast %cst_5 : f32 to vector<256x512xf32>
    %11 = arith.maximumf %9, %10 : vector<256x512xf32>
    %12 = math.log %11 : vector<256x512xf32>
    %cst_6 = arith.constant 0.434294492 : f32
    %13 = vector.broadcast %cst_6 : f32 to vector<256x512xf32>
    %14 = arith.mulf %12, %13 : vector<256x512xf32>
    %15 = arith.truncf %14 : vector<256x512xf32> to vector<256x512xbf16>
    %c0_7 = arith.constant 0 : index
    %c0_8 = arith.constant 0 : index
    %16 = vector.load %arg3[%c0_7, %c0_8] : memref<512x512xbf16, #tpu.memory_space<vmem>>, vector<512x512xbf16>
    %cst_9 = arith.constant dense<0.000000e+00> : vector<256x512xf32>
    %17 = tpu.matmul %15, %16, %cst_9 {dimension_numbers = #tpu.dot_dimension_numbers<[1], [0], [0], [1], [0, 0, 1, 1], [], []>} : vector<256x512xbf16>, vector<512x512xbf16>, vector<256x512xf32> -> vector<256x512xf32>
    %c0_10 = arith.constant 0 : index
    %c0_11 = arith.constant 0 : index
    %18 = vector.load %arg4[%c0_10, %c0_11] : memref<1x512xf32, #tpu.memory_space<vmem>>, vector<1x512xf32>
    %19 = vector.broadcast %18 : vector<1x512xf32> to vector<256x512xf32>
    %20 = arith.addf %17, %19 : vector<256x512xf32>
    %c0_12 = arith.constant 0 : index
    %c0_13 = arith.constant 0 : index
    %21 = vector.load %arg7[%c0_12, %c0_13] : memref<1x512xf32, #tpu.memory_space<vmem>>, vector<1x512xf32>
    %cst_14 = arith.constant 0.000000e+00 : f32
    %22 = vector.broadcast %cst_14 : f32 to vector<256x512xf32>
    %23 = arith.cmpf oge, %20, %22 : vector<256x512xf32>
    %24 = vector.broadcast %21 : vector<1x512xf32> to vector<256x512xf32>
    %25 = arith.mulf %24, %20 : vector<256x512xf32>
    %26 = arith.select %23, %20, %25 : vector<256x512xi1>, vector<256x512xf32>
    %c0_15 = arith.constant 0 : index
    %c0_16 = arith.constant 0 : index
    %27 = vector.load %arg5[%c0_15, %c0_16] : memref<1x512xf32, #tpu.memory_space<vmem>>, vector<1x512xf32>
    %c0_17 = arith.constant 0 : index
    %c0_18 = arith.constant 0 : index
    %28 = vector.load %arg6[%c0_17, %c0_18] : memref<1x512xf32, #tpu.memory_space<vmem>>, vector<1x512xf32>
    %29 = tpu.iota {dimensions = array<i32: 1>} : vector<1x512xi32>
    %c400_i32 = arith.constant 400 : i32
    %30 = vector.broadcast %c400_i32 : i32 to vector<1x512xi32>
    %31 = arith.cmpi slt, %29, %30 : vector<1x512xi32>
    %32 = arith.extui %31 : vector<1x512xi1> to vector<1x512xi32>
    %33 = arith.sitofp %32 : vector<1x512xi32> to vector<1x512xf32>
    %cst_19 = arith.constant dense<0.000000e+00> : vector<256xf32>
    %34 = vector.multi_reduction <add>, %26, %cst_19 [1] : vector<256x512xf32> to vector<256xf32>
    %35 = vector.shape_cast %34 : vector<256xf32> to vector<256x1xf32>
    %cst_20 = arith.constant 2.500000e-03 : f32
    %36 = vector.broadcast %cst_20 : f32 to vector<256x1xf32>
    %37 = arith.mulf %35, %36 : vector<256x1xf32>
    %38 = vector.broadcast %37 : vector<256x1xf32> to vector<256x512xf32>
    %39 = arith.subf %26, %38 : vector<256x512xf32>
    %40 = vector.broadcast %33 : vector<1x512xf32> to vector<256x512xf32>
    %41 = arith.mulf %39, %40 : vector<256x512xf32>
    %42 = arith.mulf %41, %41 : vector<256x512xf32>
    %cst_21 = arith.constant dense<0.000000e+00> : vector<256xf32>
    %43 = vector.multi_reduction <add>, %42, %cst_21 [1] : vector<256x512xf32> to vector<256xf32>
    %44 = vector.shape_cast %43 : vector<256xf32> to vector<256x1xf32>
    %cst_22 = arith.constant 2.500000e-03 : f32
    %45 = vector.broadcast %cst_22 : f32 to vector<256x1xf32>
    %46 = arith.mulf %44, %45 : vector<256x1xf32>
    %cst_23 = arith.constant 9.99999974E-6 : f32
    %47 = vector.broadcast %cst_23 : f32 to vector<256x1xf32>
    %48 = arith.addf %46, %47 : vector<256x1xf32>
    %49 = math.rsqrt %48 : vector<256x1xf32>
    %50 = vector.broadcast %49 : vector<256x1xf32> to vector<256x512xf32>
    %51 = arith.mulf %41, %50 : vector<256x512xf32>
    %52 = vector.broadcast %27 : vector<1x512xf32> to vector<256x512xf32>
    %53 = arith.mulf %51, %52 : vector<256x512xf32>
    %54 = vector.broadcast %28 : vector<1x512xf32> to vector<256x512xf32>
    %55 = arith.addf %53, %54 : vector<256x512xf32>
    %56 = arith.truncf %55 : vector<256x512xf32> to vector<256x512xbf16>
    %c0_24 = arith.constant 0 : index
    %c0_25 = arith.constant 0 : index
    %57 = vector.load %arg9[%c0_24, %c0_25] : memref<256x512xbf16, #tpu.memory_space<vmem>>, vector<256x512xbf16>
    tpu.vector_store %arg9[%c0_24, %c0_25], %56 {strides = array<i32>} : memref<256x512xbf16, #tpu.memory_space<vmem>>, vector<256x512xbf16>,
    return
  }
  func.func @transform_0(%arg0: i32) -> (i32, i32) {
    %c0_i32 = arith.constant 0 : i32
    %c0_i32_0 = arith.constant 0 : i32
    return %arg0, %c0_i32 : i32, i32
  }
  func.func @transform_1(%arg0: i32) -> (i32, i32) {
    %c0_i32 = arith.constant 0 : i32
    %c0_i32_0 = arith.constant 0 : i32
    %c0_i32_1 = arith.constant 0 : i32
    return %c0_i32, %c0_i32_0 : i32, i32
  }
  func.func @transform_2(%arg0: i32) -> (i32, i32) {
    %c0_i32 = arith.constant 0 : i32
    %c0_i32_0 = arith.constant 0 : i32
    %c0_i32_1 = arith.constant 0 : i32
    return %c0_i32, %c0_i32_0 : i32, i32
  }
  func.func @transform_3(%arg0: i32) -> (i32, i32) {
    %c0_i32 = arith.constant 0 : i32
    %c0_i32_0 = arith.constant 0 : i32
    %c0_i32_1 = arith.constant 0 : i32
    return %c0_i32, %c0_i32_0 : i32, i32
  }
  func.func @transform_4(%arg0: i32) -> (i32, i32) {
    %c0_i32 = arith.constant 0 : i32
    %c0_i32_0 = arith.constant 0 : i32
    %c0_i32_1 = arith.constant 0 : i32
    return %c0_i32, %c0_i32_0 : i32, i32
  }
  func.func @transform_5(%arg0: i32) -> (i32, i32) {
    %c0_i32 = arith.constant 0 : i32
    %c0_i32_0 = arith.constant 0 : i32
    %c0_i32_1 = arith.constant 0 : i32
    return %c0_i32, %c0_i32_0 : i32, i32
  }
  func.func @transform_6(%arg0: i32) -> (i32, i32) {
    %c0_i32 = arith.constant 0 : i32
    %c0_i32_0 = arith.constant 0 : i32
    %c0_i32_1 = arith.constant 0 : i32
    return %c0_i32, %c0_i32_0 : i32, i32
  }
  func.func @transform_7(%arg0: i32) -> (i32, i32) {
    %c0_i32 = arith.constant 0 : i32
    %c0_i32_0 = arith.constant 0 : i32
    return %arg0, %c0_i32 : i32, i32
  }
  func.func @transform_8(%arg0: i32) -> (i32, i32) {
    %c0_i32 = arith.constant 0 : i32
    %c0_i32_0 = arith.constant 0 : i32
    return %arg0, %c0_i32 : i32, i32
  }
}

</mosaic_0001>

<llo_original>
// kernel: tpu_custom_call.1
$region0: #{tpu_custom_call.1}
  #allocation0 [shape = 'u32[]', space=smem, size = 0x4, offset = 0x4, fixed_abs, tag = 'smem constant byte address 0x4 - core index']
  #allocation1 [shape = 'u32[144,128]{1,0:T(1,128)}', space=vmem, size = 0x12000, scoped, tag = 'internal scratch']
  %s0 = inlined_call_operand.hbm [shape: bf16[256,512], index: 0, kind: input, shape index: {}]
  %s1 = inlined_call_operand.hbm [shape: bf16[512,1024], index: 1, kind: input, shape index: {}]
  %s2 = inlined_call_operand.hbm [shape: bf16[512,512], index: 2, kind: input, shape index: {}]
  %s3 = inlined_call_operand.vmem [shape: f32[1,512], index: 3, kind: input, shape index: {}]
  %s4 = inlined_call_operand.vmem [shape: f32[1,512], index: 4, kind: input, shape index: {}]
  %s5 = inlined_call_operand.vmem [shape: f32[1,512], index: 5, kind: input, shape index: {}]
  %s6 = inlined_call_operand.vmem [shape: f32[1,512], index: 6, kind: input, shape index: {}]
  %s7 = inlined_call_operand.hbm [shape: bf16[256,1024], index: 7, kind: output, shape index: {0}]
  %s8 = inlined_call_operand.hbm [shape: bf16[256,512], index: 8, kind: output, shape index: {1}]
  %9 = xla_tuple %s7, %s8
  %s10 = sld [smem:[#allocation0]]
  $region58: #{tpu_custom_call.1} parent=0
    _
  %s12 = ssub.s32 1, %s10
  %s13 = scalar_select 0, %s12, %s10
  $region1: #{tpu_custom_call.1} parent=0
    #allocation2 [shape = 'u8[262144]{0}', space=vmem, size = 0x40000, scoped, tag = 'input window, operand 0, single buffered']
    #allocation3 [shape = 's32[1]{0}', space=sflag, size = 0x4, scoped, tag = 'scoped memory for tpu_custom_call.1']
    #allocation4 [shape = 's32[1]{0}', space=sflag, size = 0x4, scoped, tag = 'scoped memory for tpu_custom_call.1']
    #allocation5 [shape = 'u8[1048576]{0}', space=vmem, size = 0x100000, scoped, tag = 'input window, operand 1, single buffered']
    #allocation6 [shape = 's32[1]{0}', space=sflag, size = 0x4, scoped, tag = 'scoped memory for tpu_custom_call.1']
    #allocation7 [shape = 'u8[524288]{0}', space=vmem, size = 0x80000, scoped, tag = 'input window, operand 2, single buffered']
    #allocation8 [shape = 'u8[524288]{0}', space=vmem, size = 0x80000, scoped, tag = 'output window, operand 0, single buffered']
    #allocation9 [shape = 'u8[262144]{0}', space=vmem, size = 0x40000, scoped, tag = 'output window, operand 1, single buffered']
    #allocation10 [shape = 's32[1]{0}', space=sflag, size = 0x4, scoped, tag = 'scoped memory for tpu_custom_call.1']
    %14 = vsyncpa [#allocation3], 0
    %15 = vsyncpa [#allocation6], 0
    %16 = vsyncpa [#allocation4], 0
    %17 = vsyncpa [#allocation10], 0
    // Predicated region
    $region2: #{tpu_custom_call.1} parent=1 // pred_check
      _
    $region3: #{tpu_custom_call.1} parent=1 // pred_check_branch
      %19 = sbr.rel (0) target = $region5
    $region4: #{tpu_custom_call.1} parent=1 // pred_region
      %s21 = ssub.s32 8192, 8192
      %22 = vsyncadd [#allocation3], %s21
      %s23 = sshll.u32 [#allocation2], 4
      %s24 = int_to_ptr.vmem [resolvable:$true] %s23
      %29 = dma.hbm_to_vmem [thread:$0]  %s0, 8192, %s24, [#allocation3], 256, 256, 16
    $region5: #{tpu_custom_call.1} parent=1 // pred_fallthru
      _
    // Predicated region
    $region6: #{tpu_custom_call.1} parent=1 // pred_check
      _
    $region7: #{tpu_custom_call.1} parent=1 // pred_check_branch
      %31 = sbr.rel (0) target = $region9
    $region8: #{tpu_custom_call.1} parent=1 // pred_region
      %s33 = ssub.s32 32768, 32768
      %34 = vsyncadd [#allocation6], %s33
      %s35 = sshll.u32 [#allocation5], 4
      %s36 = int_to_ptr.vmem [resolvable:$true] %s35
      %41 = dma.hbm_to_vmem [thread:$0]  %s1, 32768, %s36, [#allocation6], 512, 512, 32
    $region9: #{tpu_custom_call.1} parent=1 // pred_fallthru
      _
    // Predicated region
    $region10: #{tpu_custom_call.1} parent=1 // pred_check
      _
    $region11: #{tpu_custom_call.1} parent=1 // pred_check_branch
      %43 = sbr.rel (0) target = $region13
    $region12: #{tpu_custom_call.1} parent=1 // pred_region
      %s45 = ssub.s32 16384, 16384
      %46 = vsyncadd [#allocation6], %s45
      %s47 = sshll.u32 [#allocation7], 4
      %s48 = int_to_ptr.vmem [resolvable:$true] %s47
      %53 = dma.hbm_to_vmem [thread:$0]  %s2, 16384, %s48, [#allocation6], 256, 256, 16
    $region13: #{tpu_custom_call.1} parent=1 // pred_fallthru
      _
    // Predicated region
    $region14: #{tpu_custom_call.1} parent=1 // pred_check
      _
    $region15: #{tpu_custom_call.1} parent=1 // pred_check_branch
      %55 = sbr.rel (0) target = $region17
    $region16: #{tpu_custom_call.1} parent=1 // pred_region
      _
    $region17: #{tpu_custom_call.1} parent=1 // pred_fallthru
      _
    // Predicated region
    $region18: #{tpu_custom_call.1} parent=1 // pred_check
      _
    $region19: #{tpu_custom_call.1} parent=1 // pred_check_branch
      %57 = sbr.rel (0) target = $region21
    $region20: #{tpu_custom_call.1} parent=1 // pred_region
      _
    $region21: #{tpu_custom_call.1} parent=1 // pred_fallthru
      _
    // Predicated region
    $region22: #{tpu_custom_call.1} parent=1 // pred_check
      _
    $region23: #{tpu_custom_call.1} parent=1 // pred_check_branch
      %59 = sbr.rel (0) target = $region25
    $region24: #{tpu_custom_call.1} parent=1 // pred_region
      _
    $region25: #{tpu_custom_call.1} parent=1 // pred_fallthru
      _
    // Predicated region
    $region26: #{tpu_custom_call.1} parent=1 // pred_check
      _
    $region27: #{tpu_custom_call.1} parent=1 // pred_check_branch
      %61 = sbr.rel (0) target = $region29
    $region28: #{tpu_custom_call.1} parent=1 // pred_region
      _
    $region29: #{tpu_custom_call.1} parent=1 // pred_fallthru
      _
    // Predicated region
    $region30: #{tpu_custom_call.1} parent=1 // pred_check
      _
    $region31: #{tpu_custom_call.1} parent=1 // pred_check_branch
      %63 = sbr.rel (0) target = $region33
    $region32: #{tpu_custom_call.1} parent=1 // pred_region
      %64 = dma.done [#allocation3], 8192
    $region33: #{tpu_custom_call.1} parent=1 // pred_fallthru
      _
    // Predicated region
    $region34: #{tpu_custom_call.1} parent=1 // pred_check
      _
    $region35: #{tpu_custom_call.1} parent=1 // pred_check_branch
      %66 = sbr.rel (0) target = $region37
    $region36: #{tpu_custom_call.1} parent=1 // pred_region
      %67 = dma.done [#allocation6], 32768
    $region37: #{tpu_custom_call.1} parent=1 // pred_fallthru
      _
    // Predicated region
    $region38: #{tpu_custom_call.1} parent=1 // pred_check
      _
    $region39: #{tpu_custom_call.1} parent=1 // pred_check_branch
      %69 = sbr.rel (0) target = $region41
    $region40: #{tpu_custom_call.1} parent=1 // pred_region
      %70 = dma.done [#allocation6], 16384
    $region41: #{tpu_custom_call.1} parent=1 // pred_fallthru
      _
    %v71 = vld [vmem:[#allocation2] sm:$0xff]
    %v72 = vld [vmem:[#allocation2 + $0x8] sm:$0xff]
    %v73 = vld [vmem:[#allocation2 + $0x10] sm:$0xff]
    %v74 = vld [vmem:[#allocation2 + $0x18] sm:$0xff]
    %v75 = vld [vmem:[#allocation2 + $0x20] sm:$0xff]
    %v76 = vld [vmem:[#allocation2 + $0x28] sm:$0xff]
    %v77 = vld [vmem:[#allocation2 + $0x30] sm:$0xff]
    %v78 = vld [vmem:[#allocation2 + $0x38] sm:$0xff]
    %v79 = vld [vmem:[#allocation2 + $0x40] sm:$0xff]
    %v80 = vld [vmem:[#allocation2 + $0x48] sm:$0xff]
    %v81 = vld [vmem:[#allocation2 + $0x50] sm:$0xff]
    %v82 = vld [vmem:[#allocation2 + $0x58] sm:$0xff]
    %v83 = vld [vmem:[#allocation2 + $0x60] sm:$0xff]
    %v84 = vld [vmem:[#allocation2 + $0x68] sm:$0xff]
    %v85 = vld [vmem:[#allocation2 + $0x70] sm:$0xff]
    %v86 = vld [vmem:[#allocation2 + $0x78] sm:$0xff]
    %v87 = vld [vmem:[#allocation2 + $0x80] sm:$0xff]
    %v88 = vld [vmem:[#allocation2 + $0x88] sm:$0xff]
    %v89 = vld [vmem:[#allocation2 + $0x90] sm:$0xff]
    %v90 = vld [vmem:[#allocation2 + $0x98] sm:$0xff]
    %v91 = vld [vmem:[#allocation2 + $0xa0] sm:$0xff]
    %v92 = vld [vmem:[#allocation2 + $0xa8] sm:$0xff]
    %v93 = vld [vmem:[#allocation2 + $0xb0] sm:$0xff]
    %v94 = vld [vmem:[#allocation2 + $0xb8] sm:$0xff]
    %v95 = vld [vmem:[#allocation2 + $0xc0] sm:$0xff]
    %v96 = vld [vmem:[#allocation2 + $0xc8] sm:$0xff]
    %v97 = vld [vmem:[#allocation2 + $0xd0] sm:$0xff]
    %v98 = vld [vmem:[#allocation2 + $0xd8] sm:$0xff]
    %v99 = vld [vmem:[#allocation2 + $0xe0] sm:$0xff]
    %v100 = vld [vmem:[#allocation2 + $0xe8] sm:$0xff]
    %v101 = vld [vmem:[#allocation2 + $0xf0] sm:$0xff]
    %v102 = vld [vmem:[#allocation2 + $0xf8] sm:$0xff]
    %v103 = vld [vmem:[#allocation2 + $0x100] sm:$0xff]
    %v104 = vld [vmem:[#allocation2 + $0x108] sm:$0xff]
    %v105 = vld [vmem:[#allocation2 + $0x110] sm:$0xff]
    %v106 = vld [vmem:[#allocation2 + $0x118] sm:$0xff]
    %v107 = vld [vmem:[#allocation2 + $0x120] sm:$0xff]
    %v108 = vld [vmem:[#allocation2 + $0x128] sm:$0xff]
    %v109 = vld [vmem:[#allocation2 + $0x130] sm:$0xff]
    %v110 = vld [vmem:[#allocation2 + $0x138] sm:$0xff]
    %v111 = vld [vmem:[#allocation2 + $0x140] sm:$0xff]
    %v112 = vld [vmem:[#allocation2 + $0x148] sm:$0xff]
    %v113 = vld [vmem:[#allocation2 + $0x150] sm:$0xff]
    %v114 = vld [vmem:[#allocation2 + $0x158] sm:$0xff]
    %v115 = vld [vmem:[#allocation2 + $0x160] sm:$0xff]
    %v116 = vld [vmem:[#allocation2 + $0x168] sm:$0xff]
    %v117 = vld [vmem:[#allocation2 + $0x170] sm:$0xff]
    %v118 = vld [vmem:[#allocation2 + $0x178] sm:$0xff]
    %v119 = vld [vmem:[#allocation2 + $0x180] sm:$0xff]
    %v120 = vld [vmem:[#allocation2 + $0x188] sm:$0xff]
    %v121 = vld [vmem:[#allocation2 + $0x190] sm:$0xff]
    %v122 = vld [vmem:[#allocation2 + $0x198] sm:$0xff]
    %v123 = vld [vmem:[#allocation2 + $0x1a0] sm:$0xff]
    %v124 = vld [vmem:[#allocation2 + $0x1a8] sm:$0xff]
    %v125 = vld [vmem:[#allocation2 + $0x1b0] sm:$0xff]
    %v126 = vld [vmem:[#allocation2 + $0x1b8] sm:$0xff]
    %v127 = vld [vmem:[#allocation2 + $0x1c0] sm:$0xff]
    %v128 = vld [vmem:[#allocation2 + $0x1c8] sm:$0xff]
    %v129 = vld [vmem:[#allocation2 + $0x1d0] sm:$0xff]
    %v130 = vld [vmem:[#allocation2 + $0x1d8] sm:$0xff]
    %v131 = vld [vmem:[#allocation2 + $0x1e0] sm:$0xff]
    %v132 = vld [vmem:[#allocation2 + $0x1e8] sm:$0xff]
    %v133 = vld [vmem:[#allocation2 + $0x1f0] sm:$0xff]
    %v134 = vld [vmem:[#allocation2 + $0x1f8] sm:$0xff]
    %v135 = vld [vmem:[#allocation5] sm:$0xff]
    %v136 = vld [vmem:[#allocation5 + $0x8] sm:$0xff]
    %v137 = vld [vmem:[#allocation5 + $0x10] sm:$0xff]
    %v138 = vld [vmem:[#allocation5 + $0x18] sm:$0xff]
    %v139 = vld [vmem:[#allocation5 + $0x20] sm:$0xff]
    %v140 = vld [vmem:[#allocation5 + $0x28] sm:$0xff]
    %v141 = vld [vmem:[#allocation5 + $0x30] sm:$0xff]
    %v142 = vld [vmem:[#allocation5 + $0x38] sm:$0xff]
    %v143 = vld [vmem:[#allocation5 + $0x40] sm:$0xff]
    %v144 = vld [vmem:[#allocation5 + $0x48] sm:$0xff]
    %v145 = vld [vmem:[#allocation5 + $0x50] sm:$0xff]
    %v146 = vld [vmem:[#allocation5 + $0x58] sm:$0xff]
    %v147 = vld [vmem:[#allocation5 + $0x60] sm:$0xff]
    %v148 = vld [vmem:[#allocation5 + $0x68] sm:$0xff]
    %v149 = vld [vmem:[#allocation5 + $0x70] sm:$0xff]
    %v150 = vld [vmem:[#allocation5 + $0x78] sm:$0xff]
    %v151 = vld [vmem:[#allocation5 + $0x80] sm:$0xff]
    %v152 = vld [vmem:[#allocation5 + $0x88] sm:$0xff]
    %v153 = vld [vmem:[#allocation5 + $0x90] sm:$0xff]
    %v154 = vld [vmem:[#allocation5 + $0x98] sm:$0xff]
    %v155 = vld [vmem:[#allocation5 + $0xa0] sm:$0xff]
    %v156 = vld [vmem:[#allocation5 + $0xa8] sm:$0xff]
    %v157 = vld [vmem:[#allocation5 + $0xb0] sm:$0xff]
    %v158 = vld [vmem:[#allocation5 + $0xb8] sm:$0xff]
    %v159 = vld [vmem:[#allocation5 + $0xc0] sm:$0xff]
    %v160 = vld [vmem:[#allocation5 + $0xc8] sm:$0xff]
    %v161 = vld [vmem:[#allocation5 + $0xd0] sm:$0xff]
    %v162 = vld [vmem:[#allocation5 + $0xd8] sm:$0xff]
    %v163 = vld [vmem:[#allocation5 + $0xe0] sm:$0xff]
    %v164 = vld [vmem:[#allocation5 + $0xe8] sm:$0xff]
    %v165 = vld [vmem:[#allocation5 + $0xf0] sm:$0xff]
    %v166 = vld [vmem:[#allocation5 + $0xf8] sm:$0xff]
    %v167 = vld [vmem:[#allocation5 + $0x100] sm:$0xff]
    %v168 = vld [vmem:[#allocation5 + $0x108] sm:$0xff]
    %v169 = vld [vmem:[#allocation5 + $0x110] sm:$0xff]
    %v170 = vld [vmem:[#allocation5 + $0x118] sm:$0xff]
    %v171 = vld [vmem:[#allocation5 + $0x120] sm:$0xff]
    %v172 = vld [vmem:[#allocation5 + $0x128] sm:$0xff]
    %v173 = vld [vmem:[#allocation5 + $0x130] sm:$0xff]
    %v174 = vld [vmem:[#allocation5 + $0x138] sm:$0xff]
    %v175 = vld [vmem:[#allocation5 + $0x140] sm:$0xff]
    %v176 = vld [vmem:[#allocation5 + $0x148] sm:$0xff]
    %v177 = vld [vmem:[#allocation5 + $0x150] sm:$0xff]
    %v178 = vld [vmem:[#allocation5 + $0x158] sm:$0xff]
    %v179 = vld [vmem:[#allocation5 + $0x160] sm:$0xff]
    %v180 = vld [vmem:[#allocation5 + $0x168] sm:$0xff]
    %v181 = vld [vmem:[#allocation5 + $0x170] sm:$0xff]
    %v182 = vld [vmem:[#allocation5 + $0x178] sm:$0xff]
    %v183 = vld [vmem:[#allocation5 + $0x180] sm:$0xff]
    %v184 = vld [vmem:[#allocation5 + $0x188] sm:$0xff]
    %v185 = vld [vmem:[#allocation5 + $0x190] sm:$0xff]
    %v186 = vld [vmem:[#allocation5 + $0x198] sm:$0xff]
    %v187 = vld [vmem:[#allocation5 + $0x1a0] sm:$0xff]
    %v188 = vld [vmem:[#allocation5 + $0x1a8] sm:$0xff]
    %v189 = vld [vmem:[#allocation5 + $0x1b0] sm:$0xff]
    %v190 = vld [vmem:[#allocation5 + $0x1b8] sm:$0xff]
    %v191 = vld [vmem:[#allocation5 + $0x1c0] sm:$0xff]
    %v192 = vld [vmem:[#allocation5 + $0x1c8] sm:$0xff]
    %v193 = vld [vmem:[#allocation5 + $0x1d0] sm:$0xff]
    %v194 = vld [vmem:[#allocation5 + $0x1d8] sm:$0xff]
    %v195 = vld [vmem:[#allocation5 + $0x1e0] sm:$0xff]
    %v196 = vld [vmem:[#allocation5 + $0x1e8] sm:$0xff]
    %v197 = vld [vmem:[#allocation5 + $0x1f0] sm:$0xff]
    %v198 = vld [vmem:[#allocation5 + $0x1f8] sm:$0xff]
    %v199 = vld [vmem:[#allocation5 + $0x200] sm:$0xff]
    %v200 = vld [vmem:[#allocation5 + $0x208] sm:$0xff]
    %v201 = vld [vmem:[#allocation5 + $0x210] sm:$0xff]
    %v202 = vld [vmem:[#allocation5 + $0x218] sm:$0xff]
    %v203 = vld [vmem:[#allocation5 + $0x220] sm:$0xff]
    %v204 = vld [vmem:[#allocation5 + $0x228] sm:$0xff]
    %v205 = vld [vmem:[#allocation5 + $0x230] sm:$0xff]
    %v206 = vld [vmem:[#allocation5 + $0x238] sm:$0xff]
    %v207 = vld [vmem:[#allocation5 + $0x240] sm:$0xff]
    %v208 = vld [vmem:[#allocation5 + $0x248] sm:$0xff]
    %v209 = vld [vmem:[#allocation5 + $0x250] sm:$0xff]
    %v210 = vld [vmem:[#allocation5 + $0x258] sm:$0xff]
    %v211 = vld [vmem:[#allocation5 + $0x260] sm:$0xff]
    %v212 = vld [vmem:[#allocation5 + $0x268] sm:$0xff]
    %v213 = vld [vmem:[#allocation5 + $0x270] sm:$0xff]
    %v214 = vld [vmem:[#allocation5 + $0x278] sm:$0xff]
    %v215 = vld [vmem:[#allocation5 + $0x280] sm:$0xff]
    %v216 = vld [vmem:[#allocation5 + $0x288] sm:$0xff]
    %v217 = vld [vmem:[#allocation5 + $0x290] sm:$0xff]
    %v218 = vld [vmem:[#allocation5 + $0x298] sm:$0xff]
    %v219 = vld [vmem:[#allocation5 + $0x2a0] sm:$0xff]
    %v220 = vld [vmem:[#allocation5 + $0x2a8] sm:$0xff]
    %v221 = vld [vmem:[#allocation5 + $0x2b0] sm:$0xff]
    %v222 = vld [vmem:[#allocation5 + $0x2b8] sm:$0xff]
    %v223 = vld [vmem:[#allocation5 + $0x2c0] sm:$0xff]
    %v224 = vld [vmem:[#allocation5 + $0x2c8] sm:$0xff]
    %v225 = vld [vmem:[#allocation5 + $0x2d0] sm:$0xff]
    %v226 = vld [vmem:[#allocation5 + $0x2d8] sm:$0xff]
    %v227 = vld [vmem:[#allocation5 + $0x2e0] sm:$0xff]
    %v228 = vld [vmem:[#allocation5 + $0x2e8] sm:$0xff]
    %v229 = vld [vmem:[#allocation5 + $0x2f0] sm:$0xff]
    %v230 = vld [vmem:[#allocation5 + $0x2f8] sm:$0xff]
    %v231 = vld [vmem:[#allocation5 + $0x300] sm:$0xff]
    %v232 = vld [vmem:[#allocation5 + $0x308] sm:$0xff]
    %v233 = vld [vmem:[#allocation5 + $0x310] sm:$0xff]
    %v234 = vld [vmem:[#allocation5 + $0x318] sm:$0xff]
    %v235 = vld [vmem:[#allocation5 + $0x320] sm:$0xff]
    %v236 = vld [vmem:[#allocation5 + $0x328] sm:$0xff]
    %v237 = vld [vmem:[#allocation5 + $0x330] sm:$0xff]
    %v238 = vld [vmem:[#allocation5 + $0x338] sm:$0xff]
    %v239 = vld [vmem:[#allocation5 + $0x340] sm:$0xff]
    %v240 = vld [vmem:[#allocation5 + $0x348] sm:$0xff]
    %v241 = vld [vmem:[#allocation5 + $0x350] sm:$0xff]
    %v242 = vld [vmem:[#allocation5 + $0x358] sm:$0xff]
    %v243 = vld [vmem:[#allocation5 + $0x360] sm:$0xff]
    %v244 = vld [vmem:[#allocation5 + $0x368] sm:$0xff]
    %v245 = vld [vmem:[#allocation5 + $0x370] sm:$0xff]
    %v246 = vld [vmem:[#allocation5 + $0x378] sm:$0xff]
    %v247 = vld [vmem:[#allocation5 + $0x380] sm:$0xff]
    %v248 = vld [vmem:[#allocation5 + $0x388] sm:$0xff]
    %v249 = vld [vmem:[#allocation5 + $0x390] sm:$0xff]
    %v250 = vld [vmem:[#allocation5 + $0x398] sm:$0xff]
    %v251 = vld [vmem:[#allocation5 + $0x3a0] sm:$0xff]
    %v252 = vld [vmem:[#allocation5 + $0x3a8] sm:$0xff]
    %v253 = vld [vmem:[#allocation5 + $0x3b0] sm:$0xff]
    %v254 = vld [vmem:[#allocation5 + $0x3b8] sm:$0xff]
    %v255 = vld [vmem:[#allocation5 + $0x3c0] sm:$0xff]
    %v256 = vld [vmem:[#allocation5 + $0x3c8] sm:$0xff]
    %v257 = vld [vmem:[#allocation5 + $0x3d0] sm:$0xff]
    %v258 = vld [vmem:[#allocation5 + $0x3d8] sm:$0xff]
    %v259 = vld [vmem:[#allocation5 + $0x3e0] sm:$0xff]
    %v260 = vld [vmem:[#allocation5 + $0x3e8] sm:$0xff]
    %v261 = vld [vmem:[#allocation5 + $0x3f0] sm:$0xff]
    %v262 = vld [vmem:[#allocation5 + $0x3f8] sm:$0xff]
    %v263 = vld [vmem:[#allocation5 + $0x400] sm:$0xff]
    %v264 = vld [vmem:[#allocation5 + $0x408] sm:$0xff]
    %v265 = vld [vmem:[#allocation5 + $0x410] sm:$0xff]
    %v266 = vld [vmem:[#allocation5 + $0x418] sm:$0xff]
    %v267 = vld [vmem:[#allocation5 + $0x420] sm:$0xff]
    %v268 = vld [vmem:[#allocation5 + $0x428] sm:$0xff]
    %v269 = vld [vmem:[#allocation5 + $0x430] sm:$0xff]
    %v270 = vld [vmem:[#allocation5 + $0x438] sm:$0xff]
    %v271 = vld [vmem:[#allocation5 + $0x440] sm:$0xff]
    %v272 = vld [vmem:[#allocation5 + $0x448] sm:$0xff]
    %v273 = vld [vmem:[#allocation5 + $0x450] sm:$0xff]
    %v274 = vld [vmem:[#allocation5 + $0x458] sm:$0xff]
    %v275 = vld [vmem:[#allocation5 + $0x460] sm:$0xff]
    %v276 = vld [vmem:[#allocation5 + $0x468] sm:$0xff]
    %v277 = vld [vmem:[#allocation5 + $0x470] sm:$0xff]
    %v278 = vld [vmem:[#allocation5 + $0x478] sm:$0xff]
    %v279 = vld [vmem:[#allocation5 + $0x480] sm:$0xff]
    %v280 = vld [vmem:[#allocation5 + $0x488] sm:$0xff]
    %v281 = vld [vmem:[#allocation5 + $0x490] sm:$0xff]
    %v282 = vld [vmem:[#allocation5 + $0x498] sm:$0xff]
    %v283 = vld [vmem:[#allocation5 + $0x4a0] sm:$0xff]
    %v284 = vld [vmem:[#allocation5 + $0x4a8] sm:$0xff]
    %v285 = vld [vmem:[#allocation5 + $0x4b0] sm:$0xff]
    %v286 = vld [vmem:[#allocation5 + $0x4b8] sm:$0xff]
    %v287 = vld [vmem:[#allocation5 + $0x4c0] sm:$0xff]
    %v288 = vld [vmem:[#allocation5 + $0x4c8] sm:$0xff]
    %v289 = vld [vmem:[#allocation5 + $0x4d0] sm:$0xff]
    %v290 = vld [vmem:[#allocation5 + $0x4d8] sm:$0xff]
    %v291 = vld [vmem:[#allocation5 + $0x4e0] sm:$0xff]
    %v292 = vld [vmem:[#allocation5 + $0x4e8] sm:$0xff]
    %v293 = vld [vmem:[#allocation5 + $0x4f0] sm:$0xff]
    %v294 = vld [vmem:[#allocation5 + $0x4f8] sm:$0xff]
    %v295 = vld [vmem:[#allocation5 + $0x500] sm:$0xff]
    %v296 = vld [vmem:[#allocation5 + $0x508] sm:$0xff]
    %v297 = vld [vmem:[#allocation5 + $0x510] sm:$0xff]
    %v298 = vld [vmem:[#allocation5 + $0x518] sm:$0xff]
    %v299 = vld [vmem:[#allocation5 + $0x520] sm:$0xff]
    %v300 = vld [vmem:[#allocation5 + $0x528] sm:$0xff]
    %v301 = vld [vmem:[#allocation5 + $0x530] sm:$0xff]
    %v302 = vld [vmem:[#allocation5 + $0x538] sm:$0xff]
    %v303 = vld [vmem:[#allocation5 + $0x540] sm:$0xff]
    %v304 = vld [vmem:[#allocation5 + $0x548] sm:$0xff]
    %v305 = vld [vmem:[#allocation5 + $0x550] sm:$0xff]
    %v306 = vld [vmem:[#allocation5 + $0x558] sm:$0xff]
    %v307 = vld [vmem:[#allocation5 + $0x560] sm:$0xff]
    %v308 = vld [vmem:[#allocation5 + $0x568] sm:$0xff]
    %v309 = vld [vmem:[#allocation5 + $0x570] sm:$0xff]
    %v310 = vld [vmem:[#allocation5 + $0x578] sm:$0xff]
    %v311 = vld [vmem:[#allocation5 + $0x580] sm:$0xff]
    %v312 = vld [vmem:[#allocation5 + $0x588] sm:$0xff]
    %v313 = vld [vmem:[#allocation5 + $0x590] sm:$0xff]
    %v314 = vld [vmem:[#allocation5 + $0x598] sm:$0xff]
    %v315 = vld [vmem:[#allocation5 + $0x5a0] sm:$0xff]
    %v316 = vld [vmem:[#allocation5 + $0x5a8] sm:$0xff]
    %v317 = vld [vmem:[#allocation5 + $0x5b0] sm:$0xff]
    %v318 = vld [vmem:[#allocation5 + $0x5b8] sm:$0xff]
    %v319 = vld [vmem:[#allocation5 + $0x5c0] sm:$0xff]
    %v320 = vld [vmem:[#allocation5 + $0x5c8] sm:$0xff]
    %v321 = vld [vmem:[#allocation5 + $0x5d0] sm:$0xff]
    %v322 = vld [vmem:[#allocation5 + $0x5d8] sm:$0xff]
    %v323 = vld [vmem:[#allocation5 + $0x5e0] sm:$0xff]
    %v324 = vld [vmem:[#allocation5 + $0x5e8] sm:$0xff]
    %v325 = vld [vmem:[#allocation5 + $0x5f0] sm:$0xff]
    %v326 = vld [vmem:[#allocation5 + $0x5f8] sm:$0xff]
    %v327 = vld [vmem:[#allocation5 + $0x600] sm:$0xff]
    %v328 = vld [vmem:[#allocation5 + $0x608] sm:$0xff]
    %v329 = vld [vmem:[#allocation5 + $0x610] sm:$0xff]
    %v330 = vld [vmem:[#allocation5 + $0x618] sm:$0xff]
    %v331 = vld [vmem:[#allocation5 + $0x620] sm:$0xff]
    %v332 = vld [vmem:[#allocation5 + $0x628] sm:$0xff]
    %v333 = vld [vmem:[#allocation5 + $0x630] sm:$0xff]
    %v334 = vld [vmem:[#allocation5 + $0x638] sm:$0xff]
    %v335 = vld [vmem:[#allocation5 + $0x640] sm:$0xff]
    %v336 = vld [vmem:[#allocation5 + $0x648] sm:$0xff]
    %v337 = vld [vmem:[#allocation5 + $0x650] sm:$0xff]
    %v338 = vld [vmem:[#allocation5 + $0x658] sm:$0xff]
    %v339 = vld [vmem:[#allocation5 + $0x660] sm:$0xff]
    %v340 = vld [vmem:[#allocation5 + $0x668] sm:$0xff]
    %v341 = vld [vmem:[#allocation5 + $0x670] sm:$0xff]
    %v342 = vld [vmem:[#allocation5 + $0x678] sm:$0xff]
    %v343 = vld [vmem:[#allocation5 + $0x680] sm:$0xff]
    %v344 = vld [vmem:[#allocation5 + $0x688] sm:$0xff]
    %v345 = vld [vmem:[#allocation5 + $0x690] sm:$0xff]
    %v346 = vld [vmem:[#allocation5 + $0x698] sm:$0xff]
    %v347 = vld [vmem:[#allocation5 + $0x6a0] sm:$0xff]
    %v348 = vld [vmem:[#allocation5 + $0x6a8] sm:$0xff]
    %v349 = vld [vmem:[#allocation5 + $0x6b0] sm:$0xff]
    %v350 = vld [vmem:[#allocation5 + $0x6b8] sm:$0xff]
    %v351 = vld [vmem:[#allocation5 + $0x6c0] sm:$0xff]
    %v352 = vld [vmem:[#allocation5 + $0x6c8] sm:$0xff]
    %v353 = vld [vmem:[#allocation5 + $0x6d0] sm:$0xff]
    %v354 = vld [vmem:[#allocation5 + $0x6d8] sm:$0xff]
    %v355 = vld [vmem:[#allocation5 + $0x6e0] sm:$0xff]
    %v356 = vld [vmem:[#allocation5 + $0x6e8] sm:$0xff]
    %v357 = vld [vmem:[#allocation5 + $0x6f0] sm:$0xff]
    %v358 = vld [vmem:[#allocation5 + $0x6f8] sm:$0xff]
    %v359 = vld [vmem:[#allocation5 + $0x700] sm:$0xff]
    %v360 = vld [vmem:[#allocation5 + $0x708] sm:$0xff]
    %v361 = vld [vmem:[#allocation5 + $0x710] sm:$0xff]
    %v362 = vld [vmem:[#allocation5 + $0x718] sm:$0xff]
    %v363 = vld [vmem:[#allocation5 + $0x720] sm:$0xff]
    %v364 = vld [vmem:[#allocation5 + $0x728] sm:$0xff]
    %v365 = vld [vmem:[#allocation5 + $0x730] sm:$0xff]
    %v366 = vld [vmem:[#allocation5 + $0x738] sm:$0xff]
    %v367 = vld [vmem:[#allocation5 + $0x740] sm:$0xff]
    %v368 = vld [vmem:[#allocation5 + $0x748] sm:$0xff]
    %v369 = vld [vmem:[#allocation5 + $0x750] sm:$0xff]
    %v370 = vld [vmem:[#allocation5 + $0x758] sm:$0xff]
    %v371 = vld [vmem:[#allocation5 + $0x760] sm:$0xff]
    %v372 = vld [vmem:[#allocation5 + $0x768] sm:$0xff]
    %v373 = vld [vmem:[#allocation5 + $0x770] sm:$0xff]
    %v374 = vld [vmem:[#allocation5 + $0x778] sm:$0xff]
    %v375 = vld [vmem:[#allocation5 + $0x780] sm:$0xff]
    %v376 = vld [vmem:[#allocation5 + $0x788] sm:$0xff]
    %v377 = vld [vmem:[#allocation5 + $0x790] sm:$0xff]
    %v378 = vld [vmem:[#allocation5 + $0x798] sm:$0xff]
    %v379 = vld [vmem:[#allocation5 + $0x7a0] sm:$0xff]
    %v380 = vld [vmem:[#allocation5 + $0x7a8] sm:$0xff]
    %v381 = vld [vmem:[#allocation5 + $0x7b0] sm:$0xff]
    %v382 = vld [vmem:[#allocation5 + $0x7b8] sm:$0xff]
    %v383 = vld [vmem:[#allocation5 + $0x7c0] sm:$0xff]
    %v384 = vld [vmem:[#allocation5 + $0x7c8] sm:$0xff]
    %v385 = vld [vmem:[#allocation5 + $0x7d0] sm:$0xff]
    %v386 = vld [vmem:[#allocation5 + $0x7d8] sm:$0xff]
    %v387 = vld [vmem:[#allocation5 + $0x7e0] sm:$0xff]
    %v388 = vld [vmem:[#allocation5 + $0x7e8] sm:$0xff]
    %v389 = vld [vmem:[#allocation5 + $0x7f0] sm:$0xff]
    %v390 = vld [vmem:[#allocation5 + $0x7f8] sm:$0xff]
    %v455 = vunpack.c.l.b16 %v71
    %v456 = vunpack.c.h.b16 %v71
    %v457 = vunpack.c.l.b16 %v72
    %v458 = vunpack.c.h.b16 %v72
    %v459 = vunpack.c.l.b16 %v73
    %v460 = vunpack.c.h.b16 %v73
    %v461 = vunpack.c.l.b16 %v74
    %v462 = vunpack.c.h.b16 %v74
    %v463 = vunpack.c.l.b16 %v75
    %v464 = vunpack.c.h.b16 %v75
    %v465 = vunpack.c.l.b16 %v76
    %v466 = vunpack.c.h.b16 %v76
    %v467 = vunpack.c.l.b16 %v77
    %v468 = vunpack.c.h.b16 %v77
    %v469 = vunpack.c.l.b16 %v78
    %v470 = vunpack.c.h.b16 %v78
    %v471 = vunpack.c.l.b16 %v79
    %v472 = vunpack.c.h.b16 %v79
    %v473 = vunpack.c.l.b16 %v80
    %v474 = vunpack.c.h.b16 %v80
    %v475 = vunpack.c.l.b16 %v81
    %v476 = vunpack.c.h.b16 %v81
    %v477 = vunpack.c.l.b16 %v82
    %v478 = vunpack.c.h.b16 %v82
    %v479 = vunpack.c.l.b16 %v83
    %v480 = vunpack.c.h.b16 %v83
    %v481 = vunpack.c.l.b16 %v84
    %v482 = vunpack.c.h.b16 %v84
    %v483 = vunpack.c.l.b16 %v85
    %v484 = vunpack.c.h.b16 %v85
    %v485 = vunpack.c.l.b16 %v86
    %v486 = vunpack.c.h.b16 %v86
    %v487 = vunpack.c.l.b16 %v87
    %v488 = vunpack.c.h.b16 %v87
    %v489 = vunpack.c.l.b16 %v88
    %v490 = vunpack.c.h.b16 %v88
    %v491 = vunpack.c.l.b16 %v89
    %v492 = vunpack.c.h.b16 %v89
    %v493 = vunpack.c.l.b16 %v90
    %v494 = vunpack.c.h.b16 %v90
    %v495 = vunpack.c.l.b16 %v91
    %v496 = vunpack.c.h.b16 %v91
    %v497 = vunpack.c.l.b16 %v92
    %v498 = vunpack.c.h.b16 %v92
    %v499 = vunpack.c.l.b16 %v93
    %v500 = vunpack.c.h.b16 %v93
    %v501 = vunpack.c.l.b16 %v94
    %v502 = vunpack.c.h.b16 %v94
    %v503 = vunpack.c.l.b16 %v95
    %v504 = vunpack.c.h.b16 %v95
    %v505 = vunpack.c.l.b16 %v96
    %v506 = vunpack.c.h.b16 %v96
    %v507 = vunpack.c.l.b16 %v97
    %v508 = vunpack.c.h.b16 %v97
    %v509 = vunpack.c.l.b16 %v98
    %v510 = vunpack.c.h.b16 %v98
    %v511 = vunpack.c.l.b16 %v99
    %v512 = vunpack.c.h.b16 %v99
    %v513 = vunpack.c.l.b16 %v100
    %v514 = vunpack.c.h.b16 %v100
    %v515 = vunpack.c.l.b16 %v101
    %v516 = vunpack.c.h.b16 %v101
    %v517 = vunpack.c.l.b16 %v102
    %v518 = vunpack.c.h.b16 %v102
    %v519 = vunpack.c.l.b16 %v103
    %v520 = vunpack.c.h.b16 %v103
    %v521 = vunpack.c.l.b16 %v104
    %v522 = vunpack.c.h.b16 %v104
    %v523 = vunpack.c.l.b16 %v105
    %v524 = vunpack.c.h.b16 %v105
    %v525 = vunpack.c.l.b16 %v106
    %v526 = vunpack.c.h.b16 %v106
    %v527 = vunpack.c.l.b16 %v107
    %v528 = vunpack.c.h.b16 %v107
    %v529 = vunpack.c.l.b16 %v108
    %v530 = vunpack.c.h.b16 %v108
    %v531 = vunpack.c.l.b16 %v109
    %v532 = vunpack.c.h.b16 %v109
    %v533 = vunpack.c.l.b16 %v110
    %v534 = vunpack.c.h.b16 %v110
    %v535 = vunpack.c.l.b16 %v111
    %v536 = vunpack.c.h.b16 %v111
    %v537 = vunpack.c.l.b16 %v112
    %v538 = vunpack.c.h.b16 %v112
    %v539 = vunpack.c.l.b16 %v113
    %v540 = vunpack.c.h.b16 %v113
    %v541 = vunpack.c.l.b16 %v114
    %v542 = vunpack.c.h.b16 %v114
    %v543 = vunpack.c.l.b16 %v115
    %v544 = vunpack.c.h.b16 %v115
    %v545 = vunpack.c.l.b16 %v116
    %v546 = vunpack.c.h.b16 %v116
    %v547 = vunpack.c.l.b16 %v117
    %v548 = vunpack.c.h.b16 %v117
    %v549 = vunpack.c.l.b16 %v118
    %v550 = vunpack.c.h.b16 %v118
    %v551 = vunpack.c.l.b16 %v119
    %v552 = vunpack.c.h.b16 %v119
    %v553 = vunpack.c.l.b16 %v120
    %v554 = vunpack.c.h.b16 %v120
    %v555 = vunpack.c.l.b16 %v121
    %v556 = vunpack.c.h.b16 %v121
    %v557 = vunpack.c.l.b16 %v122
    %v558 = vunpack.c.h.b16 %v122
    %v559 = vunpack.c.l.b16 %v123
    %v560 = vunpack.c.h.b16 %v123
    %v561 = vunpack.c.l.b16 %v124
    %v562 = vunpack.c.h.b16 %v124
    %v563 = vunpack.c.l.b16 %v125
    %v564 = vunpack.c.h.b16 %v125
    %v565 = vunpack.c.l.b16 %v126
    %v566 = vunpack.c.h.b16 %v126
    %v567 = vunpack.c.l.b16 %v127
    %v568 = vunpack.c.h.b16 %v127
    %v569 = vunpack.c.l.b16 %v128
    %v570 = vunpack.c.h.b16 %v128
    %v571 = vunpack.c.l.b16 %v129
    %v572 = vunpack.c.h.b16 %v129
    %v573 = vunpack.c.l.b16 %v130
    %v574 = vunpack.c.h.b16 %v130
    %v575 = vunpack.c.l.b16 %v131
    %v576 = vunpack.c.h.b16 %v131
    %v577 = vunpack.c.l.b16 %v132
    %v578 = vunpack.c.h.b16 %v132
    %v579 = vunpack.c.l.b16 %v133
    %v580 = vunpack.c.h.b16 %v133
    %v581 = vunpack.c.l.b16 %v134
    %v582 = vunpack.c.h.b16 %v134
    %v583 = vpack.c.b16 %v459, %v455
    %v584 = vpack.c.b16 %v460, %v456
    %v585 = vpack.c.b16 %v461, %v457
    %v586 = vpack.c.b16 %v462, %v458
    %v587 = vpack.c.b16 %v467, %v463
    %v588 = vpack.c.b16 %v468, %v464
    %v589 = vpack.c.b16 %v469, %v465
    %v590 = vpack.c.b16 %v470, %v466
    %v591 = vpack.c.b16 %v475, %v471
    %v592 = vpack.c.b16 %v476, %v472
    %v593 = vpack.c.b16 %v477, %v473
    %v594 = vpack.c.b16 %v478, %v474
    %v595 = vpack.c.b16 %v483, %v479
    %v596 = vpack.c.b16 %v484, %v480
    %v597 = vpack.c.b16 %v485, %v481
    %v598 = vpack.c.b16 %v486, %v482
    %v599 = vpack.c.b16 %v491, %v487
    %v600 = vpack.c.b16 %v492, %v488
    %v601 = vpack.c.b16 %v493, %v489
    %v602 = vpack.c.b16 %v494, %v490
    %v603 = vpack.c.b16 %v499, %v495
    %v604 = vpack.c.b16 %v500, %v496
    %v605 = vpack.c.b16 %v501, %v497
    %v606 = vpack.c.b16 %v502, %v498
    %v607 = vpack.c.b16 %v507, %v503
    %v608 = vpack.c.b16 %v508, %v504
    %v609 = vpack.c.b16 %v509, %v505
    %v610 = vpack.c.b16 %v510, %v506
    %v611 = vpack.c.b16 %v515, %v511
    %v612 = vpack.c.b16 %v516, %v512
    %v613 = vpack.c.b16 %v517, %v513
    %v614 = vpack.c.b16 %v518, %v514
    %v615 = vpack.c.b16 %v523, %v519
    %v616 = vpack.c.b16 %v524, %v520
    %v617 = vpack.c.b16 %v525, %v521
    %v618 = vpack.c.b16 %v526, %v522
    %v619 = vpack.c.b16 %v531, %v527
    %v620 = vpack.c.b16 %v532, %v528
    %v621 = vpack.c.b16 %v533, %v529
    %v622 = vpack.c.b16 %v534, %v530
    %v623 = vpack.c.b16 %v539, %v535
    %v624 = vpack.c.b16 %v540, %v536
    %v625 = vpack.c.b16 %v541, %v537
    %v626 = vpack.c.b16 %v542, %v538
    %v627 = vpack.c.b16 %v547, %v543
    %v628 = vpack.c.b16 %v548, %v544
    %v629 = vpack.c.b16 %v549, %v545
    %v630 = vpack.c.b16 %v550, %v546
    %v631 = vpack.c.b16 %v555, %v551
    %v632 = vpack.c.b16 %v556, %v552
    %v633 = vpack.c.b16 %v557, %v553
    %v634 = vpack.c.b16 %v558, %v554
    %v635 = vpack.c.b16 %v563, %v559
    %v636 = vpack.c.b16 %v564, %v560
    %v637 = vpack.c.b16 %v565, %v561
    %v638 = vpack.c.b16 %v566, %v562
    %v639 = vpack.c.b16 %v571, %v567
    %v640 = vpack.c.b16 %v572, %v568
    %v641 = vpack.c.b16 %v573, %v569
    %v642 = vpack.c.b16 %v574, %v570
    %v643 = vpack.c.b16 %v579, %v575
    %v644 = vpack.c.b16 %v580, %v576
    %v645 = vpack.c.b16 %v581, %v577
    %v646 = vpack.c.b16 %v582, %v578
    %v967 = vunpack.c.l.b16 %v135
    %v968 = vunpack.c.h.b16 %v135
    %v969 = vunpack.c.l.b16 %v136
    %v970 = vunpack.c.h.b16 %v136
    %v971 = vunpack.c.l.b16 %v137
    %v972 = vunpack.c.h.b16 %v137
    %v973 = vunpack.c.l.b16 %v138
    %v974 = vunpack.c.h.b16 %v138
    %v975 = vunpack.c.l.b16 %v139
    %v976 = vunpack.c.h.b16 %v139
    %v977 = vunpack.c.l.b16 %v140
    %v978 = vunpack.c.h.b16 %v140
    %v979 = vunpack.c.l.b16 %v141
    %v980 = vunpack.c.h.b16 %v141
    %v981 = vunpack.c.l.b16 %v142
    %v982 = vunpack.c.h.b16 %v142
    %v983 = vunpack.c.l.b16 %v143
    %v984 = vunpack.c.h.b16 %v143
    %v985 = vunpack.c.l.b16 %v144
    %v986 = vunpack.c.h.b16 %v144
    %v987 = vunpack.c.l.b16 %v145
    %v988 = vunpack.c.h.b16 %v145
    %v989 = vunpack.c.l.b16 %v146
    %v990 = vunpack.c.h.b16 %v146
    %v991 = vunpack.c.l.b16 %v147
    %v992 = vunpack.c.h.b16 %v147
    %v993 = vunpack.c.l.b16 %v148
    %v994 = vunpack.c.h.b16 %v148
    %v995 = vunpack.c.l.b16 %v149
    %v996 = vunpack.c.h.b16 %v149
    %v997 = vunpack.c.l.b16 %v150
    %v998 = vunpack.c.h.b16 %v150
    %v999 = vunpack.c.l.b16 %v151
    %v1000 = vunpack.c.h.b16 %v151
    %v1001 = vunpack.c.l.b16 %v152
    %v1002 = vunpack.c.h.b16 %v152
    %v1003 = vunpack.c.l.b16 %v153
    %v1004 = vunpack.c.h.b16 %v153
    %v1005 = vunpack.c.l.b16 %v154
    %v1006 = vunpack.c.h.b16 %v154
    %v1007 = vunpack.c.l.b16 %v155
    %v1008 = vunpack.c.h.b16 %v155
    %v1009 = vunpack.c.l.b16 %v156
    %v1010 = vunpack.c.h.b16 %v156
    %v1011 = vunpack.c.l.b16 %v157
    %v1012 = vunpack.c.h.b16 %v157
    %v1013 = vunpack.c.l.b16 %v158
    %v1014 = vunpack.c.h.b16 %v158
    %v1015 = vunpack.c.l.b16 %v159
    %v1016 = vunpack.c.h.b16 %v159
    %v1017 = vunpack.c.l.b16 %v160
    %v1018 = vunpack.c.h.b16 %v160
    %v1019 = vunpack.c.l.b16 %v161
    %v1020 = vunpack.c.h.b16 %v161
    %v1021 = vunpack.c.l.b16 %v162
    %v1022 = vunpack.c.h.b16 %v162
    %v1023 = vunpack.c.l.b16 %v163
    %v1024 = vunpack.c.h.b16 %v163
    %v1025 = vunpack.c.l.b16 %v164
    %v1026 = vunpack.c.h.b16 %v164
    %v1027 = vunpack.c.l.b16 %v165
    %v1028 = vunpack.c.h.b16 %v165
    %v1029 = vunpack.c.l.b16 %v166
    %v1030 = vunpack.c.h.b16 %v166
    %v1031 = vunpack.c.l.b16 %v167
    %v1032 = vunpack.c.h.b16 %v167
    %v1033 = vunpack.c.l.b16 %v168
    %v1034 = vunpack.c.h.b16 %v168
    %v1035 = vunpack.c.l.b16 %v169
    %v1036 = vunpack.c.h.b16 %v169
    %v1037 = vunpack.c.l.b16 %v170
    %v1038 = vunpack.c.h.b16 %v170
    %v1039 = vunpack.c.l.b16 %v171
    %v1040 = vunpack.c.h.b16 %v171
    %v1041 = vunpack.c.l.b16 %v172
    %v1042 = vunpack.c.h.b16 %v172
    %v1043 = vunpack.c.l.b16 %v173
    %v1044 = vunpack.c.h.b16 %v173
    %v1045 = vunpack.c.l.b16 %v174
    %v1046 = vunpack.c.h.b16 %v174
    %v1047 = vunpack.c.l.b16 %v175
    %v1048 = vunpack.c.h.b16 %v175
    %v1049 = vunpack.c.l.b16 %v176
    %v1050 = vunpack.c.h.b16 %v176
    %v1051 = vunpack.c.l.b16 %v177
    %v1052 = vunpack.c.h.b16 %v177
    %v1053 = vunpack.c.l.b16 %v178
    %v1054 = vunpack.c.h.b16 %v178
    %v1055 = vunpack.c.l.b16 %v179
    %v1056 = vunpack.c.h.b16 %v179
    %v1057 = vunpack.c.l.b16 %v180
    %v1058 = vunpack.c.h.b16 %v180
    %v1059 = vunpack.c.l.b16 %v181
    %v1060 = vunpack.c.h.b16 %v181
    %v1061 = vunpack.c.l.b16 %v182
    %v1062 = vunpack.c.h.b16 %v182
    %v1063 = vunpack.c.l.b16 %v183
    %v1064 = vunpack.c.h.b16 %v183
    %v1065 = vunpack.c.l.b16 %v184
    %v1066 = vunpack.c.h.b16 %v184
    %v1067 = vunpack.c.l.b16 %v185
    %v1068 = vunpack.c.h.b16 %v185
    %v1069 = vunpack.c.l.b16 %v186
    %v1070 = vunpack.c.h.b16 %v186
    %v1071 = vunpack.c.l.b16 %v187
    %v1072 = vunpack.c.h.b16 %v187
    %v1073 = vunpack.c.l.b16 %v188
    %v1074 = vunpack.c.h.b16 %v188
    %v1075 = vunpack.c.l.b16 %v189
    %v1076 = vunpack.c.h.b16 %v189
    %v1077 = vunpack.c.l.b16 %v190
    %v1078 = vunpack.c.h.b16 %v190
    %v1079 = vunpack.c.l.b16 %v191
    %v1080 = vunpack.c.h.b16 %v191
    %v1081 = vunpack.c.l.b16 %v192
    %v1082 = vunpack.c.h.b16 %v192
    %v1083 = vunpack.c.l.b16 %v193
    %v1084 = vunpack.c.h.b16 %v193
    %v1085 = vunpack.c.l.b16 %v194
    %v1086 = vunpack.c.h.b16 %v194
    %v1087 = vunpack.c.l.b16 %v195
    %v1088 = vunpack.c.h.b16 %v195
    %v1089 = vunpack.c.l.b16 %v196
    %v1090 = vunpack.c.h.b16 %v196
    %v1091 = vunpack.c.l.b16 %v197
    %v1092 = vunpack.c.h.b16 %v197
    %v1093 = vunpack.c.l.b16 %v198
    %v1094 = vunpack.c.h.b16 %v198
    %v1095 = vunpack.c.l.b16 %v199
    %v1096 = vunpack.c.h.b16 %v199
    %v1097 = vunpack.c.l.b16 %v200
    %v1098 = vunpack.c.h.b16 %v200
    %v1099 = vunpack.c.l.b16 %v201
    %v1100 = vunpack.c.h.b16 %v201
    %v1101 = vunpack.c.l.b16 %v202
    %v1102 = vunpack.c.h.b16 %v202
    %v1103 = vunpack.c.l.b16 %v203
    %v1104 = vunpack.c.h.b16 %v203
    %v1105 = vunpack.c.l.b16 %v204
    %v1106 = vunpack.c.h.b16 %v204
    %v1107 = vunpack.c.l.b16 %v205
    %v1108 = vunpack.c.h.b16 %v205
    %v1109 = vunpack.c.l.b16 %v206
    %v1110 = vunpack.c.h.b16 %v206
    %v1111 = vunpack.c.l.b16 %v207
    %v1112 = vunpack.c.h.b16 %v207
    %v1113 = vunpack.c.l.b16 %v208
    %v1114 = vunpack.c.h.b16 %v208
    %v1115 = vunpack.c.l.b16 %v209
    %v1116 = vunpack.c.h.b16 %v209
    %v1117 = vunpack.c.l.b16 %v210
    %v1118 = vunpack.c.h.b16 %v210
    %v1119 = vunpack.c.l.b16 %v211
    %v1120 = vunpack.c.h.b16 %v211
    %v1121 = vunpack.c.l.b16 %v212
    %v1122 = vunpack.c.h.b16 %v212
    %v1123 = vunpack.c.l.b16 %v213
    %v1124 = vunpack.c.h.b16 %v213
    %v1125 = vunpack.c.l.b16 %v214
    %v1126 = vunpack.c.h.b16 %v214
    %v1127 = vunpack.c.l.b16 %v215
    %v1128 = vunpack.c.h.b16 %v215
    %v1129 = vunpack.c.l.b16 %v216
    %v1130 = vunpack.c.h.b16 %v216
    %v1131 = vunpack.c.l.b16 %v217
    %v1132 = vunpack.c.h.b16 %v217
    %v1133 = vunpack.c.l.b16 %v218
    %v1134 = vunpack.c.h.b16 %v218
    %v1135 = vunpack.c.l.b16 %v219
    %v1136 = vunpack.c.h.b16 %v219
    %v1137 = vunpack.c.l.b16 %v220
    %v1138 = vunpack.c.h.b16 %v220
    %v1139 = vunpack.c.l.b16 %v221
    %v1140 = vunpack.c.h.b16 %v221
    %v1141 = vunpack.c.l.b16 %v222
    %v1142 = vunpack.c.h.b16 %v222
    %v1143 = vunpack.c.l.b16 %v223
    %v1144 = vunpack.c.h.b16 %v223
    %v1145 = vunpack.c.l.b16 %v224
    %v1146 = vunpack.c.h.b16 %v224
    %v1147 = vunpack.c.l.b16 %v225
    %v1148 = vunpack.c.h.b16 %v225
    %v1149 = vunpack.c.l.b16 %v226
    %v1150 = vunpack.c.h.b16 %v226
    %v1151 = vunpack.c.l.b16 %v227
    %v1152 = vunpack.c.h.b16 %v227
    %v1153 = vunpack.c.l.b16 %v228
    %v1154 = vunpack.c.h.b16 %v228
    %v1155 = vunpack.c.l.b16 %v229
    %v1156 = vunpack.c.h.b16 %v229
    %v1157 = vunpack.c.l.b16 %v230
    %v1158 = vunpack.c.h.b16 %v230
    %v1159 = vunpack.c.l.b16 %v231
    %v1160 = vunpack.c.h.b16 %v231
    %v1161 = vunpack.c.l.b16 %v232
    %v1162 = vunpack.c.h.b16 %v232
    %v1163 = vunpack.c.l.b16 %v233
    %v1164 = vunpack.c.h.b16 %v233
    %v1165 = vunpack.c.l.b16 %v234
    %v1166 = vunpack.c.h.b16 %v234
    %v1167 = vunpack.c.l.b16 %v235
    %v1168 = vunpack.c.h.b16 %v235
    %v1169 = vunpack.c.l.b16 %v236
    %v1170 = vunpack.c.h.b16 %v236
    %v1171 = vunpack.c.l.b16 %v237
    %v1172 = vunpack.c.h.b16 %v237
    %v1173 = vunpack.c.l.b16 %v238
    %v1174 = vunpack.c.h.b16 %v238
    %v1175 = vunpack.c.l.b16 %v239
    %v1176 = vunpack.c.h.b16 %v239
    %v1177 = vunpack.c.l.b16 %v240
    %v1178 = vunpack.c.h.b16 %v240
    %v1179 = vunpack.c.l.b16 %v241
    %v1180 = vunpack.c.h.b16 %v241
    %v1181 = vunpack.c.l.b16 %v242
    %v1182 = vunpack.c.h.b16 %v242
    %v1183 = vunpack.c.l.b16 %v243
    %v1184 = vunpack.c.h.b16 %v243
    %v1185 = vunpack.c.l.b16 %v244
    %v1186 = vunpack.c.h.b16 %v244
    %v1187 = vunpack.c.l.b16 %v245
    %v1188 = vunpack.c.h.b16 %v245
    %v1189 = vunpack.c.l.b16 %v246
    %v1190 = vunpack.c.h.b16 %v246
    %v1191 = vunpack.c.l.b16 %v247
    %v1192 = vunpack.c.h.b16 %v247
    %v1193 = vunpack.c.l.b16 %v248
    %v1194 = vunpack.c.h.b16 %v248
    %v1195 = vunpack.c.l.b16 %v249
    %v1196 = vunpack.c.h.b16 %v249
    %v1197 = vunpack.c.l.b16 %v250
    %v1198 = vunpack.c.h.b16 %v250
    %v1199 = vunpack.c.l.b16 %v251
    %v1200 = vunpack.c.h.b16 %v251
    %v1201 = vunpack.c.l.b16 %v252
    %v1202 = vunpack.c.h.b16 %v252
    %v1203 = vunpack.c.l.b16 %v253
    %v1204 = vunpack.c.h.b16 %v253
    %v1205 = vunpack.c.l.b16 %v254
    %v1206 = vunpack.c.h.b16 %v254
    %v1207 = vunpack.c.l.b16 %v255
    %v1208 = vunpack.c.h.b16 %v255
    %v1209 = vunpack.c.l.b16 %v256
    %v1210 = vunpack.c.h.b16 %v256
    %v1211 = vunpack.c.l.b16 %v257
    %v1212 = vunpack.c.h.b16 %v257
    %v1213 = vunpack.c.l.b16 %v258
    %v1214 = vunpack.c.h.b16 %v258
    %v1215 = vunpack.c.l.b16 %v259
    %v1216 = vunpack.c.h.b16 %v259
    %v1217 = vunpack.c.l.b16 %v260
    %v1218 = vunpack.c.h.b16 %v260
    %v1219 = vunpack.c.l.b16 %v261
    %v1220 = vunpack.c.h.b16 %v261
    %v1221 = vunpack.c.l.b16 %v262
    %v1222 = vunpack.c.h.b16 %v262
    %v1223 = vunpack.c.l.b16 %v263
    %v1224 = vunpack.c.h.b16 %v263
    %v1225 = vunpack.c.l.b16 %v264
    %v1226 = vunpack.c.h.b16 %v264
    %v1227 = vunpack.c.l.b16 %v265
    %v1228 = vunpack.c.h.b16 %v265
    %v1229 = vunpack.c.l.b16 %v266
    %v1230 = vunpack.c.h.b16 %v266
    %v1231 = vunpack.c.l.b16 %v267
    %v1232 = vunpack.c.h.b16 %v267
    %v1233 = vunpack.c.l.b16 %v268
    %v1234 = vunpack.c.h.b16 %v268
    %v1235 = vunpack.c.l.b16 %v269
    %v1236 = vunpack.c.h.b16 %v269
    %v1237 = vunpack.c.l.b16 %v270
    %v1238 = vunpack.c.h.b16 %v270
    %v1239 = vunpack.c.l.b16 %v271
    %v1240 = vunpack.c.h.b16 %v271
    %v1241 = vunpack.c.l.b16 %v272
    %v1242 = vunpack.c.h.b16 %v272
    %v1243 = vunpack.c.l.b16 %v273
    %v1244 = vunpack.c.h.b16 %v273
    %v1245 = vunpack.c.l.b16 %v274
    %v1246 = vunpack.c.h.b16 %v274
    %v1247 = vunpack.c.l.b16 %v275
    %v1248 = vunpack.c.h.b16 %v275
    %v1249 = vunpack.c.l.b16 %v276
    %v1250 = vunpack.c.h.b16 %v276
    %v1251 = vunpack.c.l.b16 %v277
    %v1252 = vunpack.c.h.b16 %v277
    %v1253 = vunpack.c.l.b16 %v278
    %v1254 = vunpack.c.h.b16 %v278
    %v1255 = vunpack.c.l.b16 %v279
    %v1256 = vunpack.c.h.b16 %v279
    %v1257 = vunpack.c.l.b16 %v280
    %v1258 = vunpack.c.h.b16 %v280
    %v1259 = vunpack.c.l.b16 %v281
    %v1260 = vunpack.c.h.b16 %v281
    %v1261 = vunpack.c.l.b16 %v282
    %v1262 = vunpack.c.h.b16 %v282
    %v1263 = vunpack.c.l.b16 %v283
    %v1264 = vunpack.c.h.b16 %v283
    %v1265 = vunpack.c.l.b16 %v284
    %v1266 = vunpack.c.h.b16 %v284
    %v1267 = vunpack.c.l.b16 %v285
    %v1268 = vunpack.c.h.b16 %v285
    %v1269 = vunpack.c.l.b16 %v286
    %v1270 = vunpack.c.h.b16 %v286
    %v1271 = vunpack.c.l.b16 %v287
    %v1272 = vunpack.c.h.b16 %v287
    %v1273 = vunpack.c.l.b16 %v288
    %v1274 = vunpack.c.h.b16 %v288
    %v1275 = vunpack.c.l.b16 %v289
    %v1276 = vunpack.c.h.b16 %v289
    %v1277 = vunpack.c.l.b16 %v290
    %v1278 = vunpack.c.h.b16 %v290
    %v1279 = vunpack.c.l.b16 %v291
    %v1280 = vunpack.c.h.b16 %v291
    %v1281 = vunpack.c.l.b16 %v292
    %v1282 = vunpack.c.h.b16 %v292
    %v1283 = vunpack.c.l.b16 %v293
    %v1284 = vunpack.c.h.b16 %v293
    %v1285 = vunpack.c.l.b16 %v294
    %v1286 = vunpack.c.h.b16 %v294
    %v1287 = vunpack.c.l.b16 %v295
    %v1288 = vunpack.c.h.b16 %v295
    %v1289 = vunpack.c.l.b16 %v296
    %v1290 = vunpack.c.h.b16 %v296
    %v1291 = vunpack.c.l.b16 %v297
    %v1292 = vunpack.c.h.b16 %v297
    %v1293 = vunpack.c.l.b16 %v298
    %v1294 = vunpack.c.h.b16 %v298
    %v1295 = vunpack.c.l.b16 %v299
    %v1296 = vunpack.c.h.b16 %v299
    %v1297 = vunpack.c.l.b16 %v300
    %v1298 = vunpack.c.h.b16 %v300
    %v1299 = vunpack.c.l.b16 %v301
    %v1300 = vunpack.c.h.b16 %v301
    %v1301 = vunpack.c.l.b16 %v302
    %v1302 = vunpack.c.h.b16 %v302
    %v1303 = vunpack.c.l.b16 %v303
    %v1304 = vunpack.c.h.b16 %v303
    %v1305 = vunpack.c.l.b16 %v304
    %v1306 = vunpack.c.h.b16 %v304
    %v1307 = vunpack.c.l.b16 %v305
    %v1308 = vunpack.c.h.b16 %v305
    %v1309 = vunpack.c.l.b16 %v306
    %v1310 = vunpack.c.h.b16 %v306
    %v1311 = vunpack.c.l.b16 %v307
    %v1312 = vunpack.c.h.b16 %v307
    %v1313 = vunpack.c.l.b16 %v308
    %v1314 = vunpack.c.h.b16 %v308
    %v1315 = vunpack.c.l.b16 %v309
    %v1316 = vunpack.c.h.b16 %v309
    %v1317 = vunpack.c.l.b16 %v310
    %v1318 = vunpack.c.h.b16 %v310
    %v1319 = vunpack.c.l.b16 %v311
    %v1320 = vunpack.c.h.b16 %v311
    %v1321 = vunpack.c.l.b16 %v312
    %v1322 = vunpack.c.h.b16 %v312
    %v1323 = vunpack.c.l.b16 %v313
    %v1324 = vunpack.c.h.b16 %v313
    %v1325 = vunpack.c.l.b16 %v314
    %v1326 = vunpack.c.h.b16 %v314
    %v1327 = vunpack.c.l.b16 %v315
    %v1328 = vunpack.c.h.b16 %v315
    %v1329 = vunpack.c.l.b16 %v316
    %v1330 = vunpack.c.h.b16 %v316
    %v1331 = vunpack.c.l.b16 %v317
    %v1332 = vunpack.c.h.b16 %v317
    %v1333 = vunpack.c.l.b16 %v318
    %v1334 = vunpack.c.h.b16 %v318
    %v1335 = vunpack.c.l.b16 %v319
    %v1336 = vunpack.c.h.b16 %v319
    %v1337 = vunpack.c.l.b16 %v320
    %v1338 = vunpack.c.h.b16 %v320
    %v1339 = vunpack.c.l.b16 %v321
    %v1340 = vunpack.c.h.b16 %v321
    %v1341 = vunpack.c.l.b16 %v322
    %v1342 = vunpack.c.h.b16 %v322
    %v1343 = vunpack.c.l.b16 %v323
    %v1344 = vunpack.c.h.b16 %v323
    %v1345 = vunpack.c.l.b16 %v324
    %v1346 = vunpack.c.h.b16 %v324
    %v1347 = vunpack.c.l.b16 %v325
    %v1348 = vunpack.c.h.b16 %v325
    %v1349 = vunpack.c.l.b16 %v326
    %v1350 = vunpack.c.h.b16 %v326
    %v1351 = vunpack.c.l.b16 %v327
    %v1352 = vunpack.c.h.b16 %v327
    %v1353 = vunpack.c.l.b16 %v328
    %v1354 = vunpack.c.h.b16 %v328
    %v1355 = vunpack.c.l.b16 %v329
    %v1356 = vunpack.c.h.b16 %v329
    %v1357 = vunpack.c.l.b16 %v330
    %v1358 = vunpack.c.h.b16 %v330
    %v1359 = vunpack.c.l.b16 %v331
    %v1360 = vunpack.c.h.b16 %v331
    %v1361 = vunpack.c.l.b16 %v332
    %v1362 = vunpack.c.h.b16 %v332
    %v1363 = vunpack.c.l.b16 %v333
    %v1364 = vunpack.c.h.b16 %v333
    %v1365 = vunpack.c.l.b16 %v334
    %v1366 = vunpack.c.h.b16 %v334
    %v1367 = vunpack.c.l.b16 %v335
    %v1368 = vunpack.c.h.b16 %v335
    %v1369 = vunpack.c.l.b16 %v336
    %v1370 = vunpack.c.h.b16 %v336
    %v1371 = vunpack.c.l.b16 %v337
    %v1372 = vunpack.c.h.b16 %v337
    %v1373 = vunpack.c.l.b16 %v338
    %v1374 = vunpack.c.h.b16 %v338
    %v1375 = vunpack.c.l.b16 %v339
    %v1376 = vunpack.c.h.b16 %v339
    %v1377 = vunpack.c.l.b16 %v340
    %v1378 = vunpack.c.h.b16 %v340
    %v1379 = vunpack.c.l.b16 %v341
    %v1380 = vunpack.c.h.b16 %v341
    %v1381 = vunpack.c.l.b16 %v342
    %v1382 = vunpack.c.h.b16 %v342
    %v1383 = vunpack.c.l.b16 %v343
    %v1384 = vunpack.c.h.b16 %v343
    %v1385 = vunpack.c.l.b16 %v344
    %v1386 = vunpack.c.h.b16 %v344
    %v1387 = vunpack.c.l.b16 %v345
    %v1388 = vunpack.c.h.b16 %v345
    %v1389 = vunpack.c.l.b16 %v346
    %v1390 = vunpack.c.h.b16 %v346
    %v1391 = vunpack.c.l.b16 %v347
    %v1392 = vunpack.c.h.b16 %v347
    %v1393 = vunpack.c.l.b16 %v348
    %v1394 = vunpack.c.h.b16 %v348
    %v1395 = vunpack.c.l.b16 %v349
    %v1396 = vunpack.c.h.b16 %v349
    %v1397 = vunpack.c.l.b16 %v350
    %v1398 = vunpack.c.h.b16 %v350
    %v1399 = vunpack.c.l.b16 %v351
    %v1400 = vunpack.c.h.b16 %v351
    %v1401 = vunpack.c.l.b16 %v352
    %v1402 = vunpack.c.h.b16 %v352
    %v1403 = vunpack.c.l.b16 %v353
    %v1404 = vunpack.c.h.b16 %v353
    %v1405 = vunpack.c.l.b16 %v354
    %v1406 = vunpack.c.h.b16 %v354
    %v1407 = vunpack.c.l.b16 %v355
    %v1408 = vunpack.c.h.b16 %v355
    %v1409 = vunpack.c.l.b16 %v356
    %v1410 = vunpack.c.h.b16 %v356
    %v1411 = vunpack.c.l.b16 %v357
    %v1412 = vunpack.c.h.b16 %v357
    %v1413 = vunpack.c.l.b16 %v358
    %v1414 = vunpack.c.h.b16 %v358
    %v1415 = vunpack.c.l.b16 %v359
    %v1416 = vunpack.c.h.b16 %v359
    %v1417 = vunpack.c.l.b16 %v360
    %v1418 = vunpack.c.h.b16 %v360
    %v1419 = vunpack.c.l.b16 %v361
    %v1420 = vunpack.c.h.b16 %v361
    %v1421 = vunpack.c.l.b16 %v362
    %v1422 = vunpack.c.h.b16 %v362
    %v1423 = vunpack.c.l.b16 %v363
    %v1424 = vunpack.c.h.b16 %v363
    %v1425 = vunpack.c.l.b16 %v364
    %v1426 = vunpack.c.h.b16 %v364
    %v1427 = vunpack.c.l.b16 %v365
    %v1428 = vunpack.c.h.b16 %v365
    %v1429 = vunpack.c.l.b16 %v366
    %v1430 = vunpack.c.h.b16 %v366
    %v1431 = vunpack.c.l.b16 %v367
    %v1432 = vunpack.c.h.b16 %v367
    %v1433 = vunpack.c.l.b16 %v368
    %v1434 = vunpack.c.h.b16 %v368
    %v1435 = vunpack.c.l.b16 %v369
    %v1436 = vunpack.c.h.b16 %v369
    %v1437 = vunpack.c.l.b16 %v370
    %v1438 = vunpack.c.h.b16 %v370
    %v1439 = vunpack.c.l.b16 %v371
    %v1440 = vunpack.c.h.b16 %v371
    %v1441 = vunpack.c.l.b16 %v372
    %v1442 = vunpack.c.h.b16 %v372
    %v1443 = vunpack.c.l.b16 %v373
    %v1444 = vunpack.c.h.b16 %v373
    %v1445 = vunpack.c.l.b16 %v374
    %v1446 = vunpack.c.h.b16 %v374
    %v1447 = vunpack.c.l.b16 %v375
    %v1448 = vunpack.c.h.b16 %v375
    %v1449 = vunpack.c.l.b16 %v376
    %v1450 = vunpack.c.h.b16 %v376
    %v1451 = vunpack.c.l.b16 %v377
    %v1452 = vunpack.c.h.b16 %v377
    %v1453 = vunpack.c.l.b16 %v378
    %v1454 = vunpack.c.h.b16 %v378
    %v1455 = vunpack.c.l.b16 %v379
    %v1456 = vunpack.c.h.b16 %v379
    %v1457 = vunpack.c.l.b16 %v380
    %v1458 = vunpack.c.h.b16 %v380
    %v1459 = vunpack.c.l.b16 %v381
    %v1460 = vunpack.c.h.b16 %v381
    %v1461 = vunpack.c.l.b16 %v382
    %v1462 = vunpack.c.h.b16 %v382
    %v1463 = vunpack.c.l.b16 %v383
    %v1464 = vunpack.c.h.b16 %v383
    %v1465 = vunpack.c.l.b16 %v384
    %v1466 = vunpack.c.h.b16 %v384
    %v1467 = vunpack.c.l.b16 %v385
    %v1468 = vunpack.c.h.b16 %v385
    %v1469 = vunpack.c.l.b16 %v386
    %v1470 = vunpack.c.h.b16 %v386
    %v1471 = vunpack.c.l.b16 %v387
    %v1472 = vunpack.c.h.b16 %v387
    %v1473 = vunpack.c.l.b16 %v388
    %v1474 = vunpack.c.h.b16 %v388
    %v1475 = vunpack.c.l.b16 %v389
    %v1476 = vunpack.c.h.b16 %v389
    %v1477 = vunpack.c.l.b16 %v390
    %v1478 = vunpack.c.h.b16 %v390
    %v1479 = vpack.c.b16 %v975, %v967
    %v1480 = vpack.c.b16 %v976, %v968
    %v1481 = vpack.c.b16 %v977, %v969
    %v1482 = vpack.c.b16 %v978, %v970
    %v1483 = vpack.c.b16 %v979, %v971
    %v1484 = vpack.c.b16 %v980, %v972
    %v1485 = vpack.c.b16 %v981, %v973
    %v1486 = vpack.c.b16 %v982, %v974
    %v1487 = vpack.c.b16 %v991, %v983
    %v1488 = vpack.c.b16 %v992, %v984
    %v1489 = vpack.c.b16 %v993, %v985
    %v1490 = vpack.c.b16 %v994, %v986
    %v1491 = vpack.c.b16 %v995, %v987
    %v1492 = vpack.c.b16 %v996, %v988
    %v1493 = vpack.c.b16 %v997, %v989
    %v1494 = vpack.c.b16 %v998, %v990
    %v1495 = vpack.c.b16 %v1007, %v999
    %v1496 = vpack.c.b16 %v1008, %v1000
    %v1497 = vpack.c.b16 %v1009, %v1001
    %v1498 = vpack.c.b16 %v1010, %v1002
    %v1499 = vpack.c.b16 %v1011, %v1003
    %v1500 = vpack.c.b16 %v1012, %v1004
    %v1501 = vpack.c.b16 %v1013, %v1005
    %v1502 = vpack.c.b16 %v1014, %v1006
    %v1503 = vpack.c.b16 %v1023, %v1015
    %v1504 = vpack.c.b16 %v1024, %v1016
    %v1505 = vpack.c.b16 %v1025, %v1017
    %v1506 = vpack.c.b16 %v1026, %v1018
    %v1507 = vpack.c.b16 %v1027, %v1019
    %v1508 = vpack.c.b16 %v1028, %v1020
    %v1509 = vpack.c.b16 %v1029, %v1021
    %v1510 = vpack.c.b16 %v1030, %v1022
    %v1511 = vpack.c.b16 %v1039, %v1031
    %v1512 = vpack.c.b16 %v1040, %v1032
    %v1513 = vpack.c.b16 %v1041, %v1033
    %v1514 = vpack.c.b16 %v1042, %v1034
    %v1515 = vpack.c.b16 %v1043, %v1035
    %v1516 = vpack.c.b16 %v1044, %v1036
    %v1517 = vpack.c.b16 %v1045, %v1037
    %v1518 = vpack.c.b16 %v1046, %v1038
    %v1519 = vpack.c.b16 %v1055, %v1047
    %v1520 = vpack.c.b16 %v1056, %v1048
    %v1521 = vpack.c.b16 %v1057, %v1049
    %v1522 = vpack.c.b16 %v1058, %v1050
    %v1523 = vpack.c.b16 %v1059, %v1051
    %v1524 = vpack.c.b16 %v1060, %v1052
    %v1525 = vpack.c.b16 %v1061, %v1053
    %v1526 = vpack.c.b16 %v1062, %v1054
    %v1527 = vpack.c.b16 %v1071, %v1063
    %v1528 = vpack.c.b16 %v1072, %v1064
    %v1529 = vpack.c.b16 %v1073, %v1065
    %v1530 = vpack.c.b16 %v1074, %v1066
    %v1531 = vpack.c.b16 %v1075, %v1067
    %v1532 = vpack.c.b16 %v1076, %v1068
    %v1533 = vpack.c.b16 %v1077, %v1069
    %v1534 = vpack.c.b16 %v1078, %v1070
    %v1535 = vpack.c.b16 %v1087, %v1079
    %v1536 = vpack.c.b16 %v1088, %v1080
    %v1537 = vpack.c.b16 %v1089, %v1081
    %v1538 = vpack.c.b16 %v1090, %v1082
    %v1539 = vpack.c.b16 %v1091, %v1083
    %v1540 = vpack.c.b16 %v1092, %v1084
    %v1541 = vpack.c.b16 %v1093, %v1085
    %v1542 = vpack.c.b16 %v1094, %v1086
    %v1543 = vpack.c.b16 %v1103, %v1095
    %v1544 = vpack.c.b16 %v1104, %v1096
    %v1545 = vpack.c.b16 %v1105, %v1097
    %v1546 = vpack.c.b16 %v1106, %v1098
    %v1547 = vpack.c.b16 %v1107, %v1099
    %v1548 = vpack.c.b16 %v1108, %v1100
    %v1549 = vpack.c.b16 %v1109, %v1101
    %v1550 = vpack.c.b16 %v1110, %v1102
    %v1551 = vpack.c.b16 %v1119, %v1111
    %v1552 = vpack.c.b16 %v1120, %v1112
    %v1553 = vpack.c.b16 %v1121, %v1113
    %v1554 = vpack.c.b16 %v1122, %v1114
    %v1555 = vpack.c.b16 %v1123, %v1115
    %v1556 = vpack.c.b16 %v1124, %v1116
    %v1557 = vpack.c.b16 %v1125, %v1117
    %v1558 = vpack.c.b16 %v1126, %v1118
    %v1559 = vpack.c.b16 %v1135, %v1127
    %v1560 = vpack.c.b16 %v1136, %v1128
    %v1561 = vpack.c.b16 %v1137, %v1129
    %v1562 = vpack.c.b16 %v1138, %v1130
    %v1563 = vpack.c.b16 %v1139, %v1131
    %v1564 = vpack.c.b16 %v1140, %v1132
    %v1565 = vpack.c.b16 %v1141, %v1133
    %v1566 = vpack.c.b16 %v1142, %v1134
    %v1567 = vpack.c.b16 %v1151, %v1143
    %v1568 = vpack.c.b16 %v1152, %v1144
    %v1569 = vpack.c.b16 %v1153, %v1145
    %v1570 = vpack.c.b16 %v1154, %v1146
    %v1571 = vpack.c.b16 %v1155, %v1147
    %v1572 = vpack.c.b16 %v1156, %v1148
    %v1573 = vpack.c.b16 %v1157, %v1149
    %v1574 = vpack.c.b16 %v1158, %v1150
    %v1575 = vpack.c.b16 %v1167, %v1159
    %v1576 = vpack.c.b16 %v1168, %v1160
    %v1577 = vpack.c.b16 %v1169, %v1161
    %v1578 = vpack.c.b16 %v1170, %v1162
    %v1579 = vpack.c.b16 %v1171, %v1163
    %v1580 = vpack.c.b16 %v1172, %v1164
    %v1581 = vpack.c.b16 %v1173, %v1165
    %v1582 = vpack.c.b16 %v1174, %v1166
    %v1583 = vpack.c.b16 %v1183, %v1175
    %v1584 = vpack.c.b16 %v1184, %v1176
    %v1585 = vpack.c.b16 %v1185, %v1177
    %v1586 = vpack.c.b16 %v1186, %v1178
    %v1587 = vpack.c.b16 %v1187, %v1179
    %v1588 = vpack.c.b16 %v1188, %v1180
    %v1589 = vpack.c.b16 %v1189, %v1181
    %v1590 = vpack.c.b16 %v1190, %v1182
    %v1591 = vpack.c.b16 %v1199, %v1191
    %v1592 = vpack.c.b16 %v1200, %v1192
    %v1593 = vpack.c.b16 %v1201, %v1193
    %v1594 = vpack.c.b16 %v1202, %v1194
    %v1595 = vpack.c.b16 %v1203, %v1195
    %v1596 = vpack.c.b16 %v1204, %v1196
    %v1597 = vpack.c.b16 %v1205, %v1197
    %v1598 = vpack.c.b16 %v1206, %v1198
    %v1599 = vpack.c.b16 %v1215, %v1207
    %v1600 = vpack.c.b16 %v1216, %v1208
    %v1601 = vpack.c.b16 %v1217, %v1209
    %v1602 = vpack.c.b16 %v1218, %v1210
    %v1603 = vpack.c.b16 %v1219, %v1211
    %v1604 = vpack.c.b16 %v1220, %v1212
    %v1605 = vpack.c.b16 %v1221, %v1213
    %v1606 = vpack.c.b16 %v1222, %v1214
    %v1607 = vpack.c.b16 %v1231, %v1223
    %v1608 = vpack.c.b16 %v1232, %v1224
    %v1609 = vpack.c.b16 %v1233, %v1225
    %v1610 = vpack.c.b16 %v1234, %v1226
    %v1611 = vpack.c.b16 %v1235, %v1227
    %v1612 = vpack.c.b16 %v1236, %v1228
    %v1613 = vpack.c.b16 %v1237, %v1229
    %v1614 = vpack.c.b16 %v1238, %v1230
    %v1615 = vpack.c.b16 %v1247, %v1239
    %v1616 = vpack.c.b16 %v1248, %v1240
    %v1617 = vpack.c.b16 %v1249, %v1241
    %v1618 = vpack.c.b16 %v1250, %v1242
    %v1619 = vpack.c.b16 %v1251, %v1243
    %v1620 = vpack.c.b16 %v1252, %v1244
    %v1621 = vpack.c.b16 %v1253, %v1245
    %v1622 = vpack.c.b16 %v1254, %v1246
    %v1623 = vpack.c.b16 %v1263, %v1255
    %v1624 = vpack.c.b16 %v1264, %v1256
    %v1625 = vpack.c.b16 %v1265, %v1257
    %v1626 = vpack.c.b16 %v1266, %v1258
    %v1627 = vpack.c.b16 %v1267, %v1259
    %v1628 = vpack.c.b16 %v1268, %v1260
    %v1629 = vpack.c.b16 %v1269, %v1261
    %v1630 = vpack.c.b16 %v1270, %v1262
    %v1631 = vpack.c.b16 %v1279, %v1271
    %v1632 = vpack.c.b16 %v1280, %v1272
    %v1633 = vpack.c.b16 %v1281, %v1273
    %v1634 = vpack.c.b16 %v1282, %v1274
    %v1635 = vpack.c.b16 %v1283, %v1275
    %v1636 = vpack.c.b16 %v1284, %v1276
    %v1637 = vpack.c.b16 %v1285, %v1277
    %v1638 = vpack.c.b16 %v1286, %v1278
    %v1639 = vpack.c.b16 %v1295, %v1287
    %v1640 = vpack.c.b16 %v1296, %v1288
    %v1641 = vpack.c.b16 %v1297, %v1289
    %v1642 = vpack.c.b16 %v1298, %v1290
    %v1643 = vpack.c.b16 %v1299, %v1291
    %v1644 = vpack.c.b16 %v1300, %v1292
    %v1645 = vpack.c.b16 %v1301, %v1293
    %v1646 = vpack.c.b16 %v1302, %v1294
    %v1647 = vpack.c.b16 %v1311, %v1303
    %v1648 = vpack.c.b16 %v1312, %v1304
    %v1649 = vpack.c.b16 %v1313, %v1305
    %v1650 = vpack.c.b16 %v1314, %v1306
    %v1651 = vpack.c.b16 %v1315, %v1307
    %v1652 = vpack.c.b16 %v1316, %v1308
    %v1653 = vpack.c.b16 %v1317, %v1309
    %v1654 = vpack.c.b16 %v1318, %v1310
    %v1655 = vpack.c.b16 %v1327, %v1319
    %v1656 = vpack.c.b16 %v1328, %v1320
    %v1657 = vpack.c.b16 %v1329, %v1321
    %v1658 = vpack.c.b16 %v1330, %v1322
    %v1659 = vpack.c.b16 %v1331, %v1323
    %v1660 = vpack.c.b16 %v1332, %v1324
    %v1661 = vpack.c.b16 %v1333, %v1325
    %v1662 = vpack.c.b16 %v1334, %v1326
    %v1663 = vpack.c.b16 %v1343, %v1335
    %v1664 = vpack.c.b16 %v1344, %v1336
    %v1665 = vpack.c.b16 %v1345, %v1337
    %v1666 = vpack.c.b16 %v1346, %v1338
    %v1667 = vpack.c.b16 %v1347, %v1339
    %v1668 = vpack.c.b16 %v1348, %v1340
    %v1669 = vpack.c.b16 %v1349, %v1341
    %v1670 = vpack.c.b16 %v1350, %v1342
    %v1671 = vpack.c.b16 %v1359, %v1351
    %v1672 = vpack.c.b16 %v1360, %v1352
    %v1673 = vpack.c.b16 %v1361, %v1353
    %v1674 = vpack.c.b16 %v1362, %v1354
    %v1675 = vpack.c.b16 %v1363, %v1355
    %v1676 = vpack.c.b16 %v1364, %v1356
    %v1677 = vpack.c.b16 %v1365, %v1357
    %v1678 = vpack.c.b16 %v1366, %v1358
    %v1679 = vpack.c.b16 %v1375, %v1367
    %v1680 = vpack.c.b16 %v1376, %v1368
    %v1681 = vpack.c.b16 %v1377, %v1369
    %v1682 = vpack.c.b16 %v1378, %v1370
    %v1683 = vpack.c.b16 %v1379, %v1371
    %v1684 = vpack.c.b16 %v1380, %v1372
    %v1685 = vpack.c.b16 %v1381, %v1373
    %v1686 = vpack.c.b16 %v1382, %v1374
    %v1687 = vpack.c.b16 %v1391, %v1383
    %v1688 = vpack.c.b16 %v1392, %v1384
    %v1689 = vpack.c.b16 %v1393, %v1385
    %v1690 = vpack.c.b16 %v1394, %v1386
    %v1691 = vpack.c.b16 %v1395, %v1387
    %v1692 = vpack.c.b16 %v1396, %v1388
    %v1693 = vpack.c.b16 %v1397, %v1389
    %v1694 = vpack.c.b16 %v1398, %v1390
    %v1695 = vpack.c.b16 %v1407, %v1399
    %v1696 = vpack.c.b16 %v1408, %v1400
    %v1697 = vpack.c.b16 %v1409, %v1401
    %v1698 = vpack.c.b16 %v1410, %v1402
    %v1699 = vpack.c.b16 %v1411, %v1403
    %v1700 = vpack.c.b16 %v1412, %v1404
    %v1701 = vpack.c.b16 %v1413, %v1405
    %v1702 = vpack.c.b16 %v1414, %v1406
    %v1703 = vpack.c.b16 %v1423, %v1415
    %v1704 = vpack.c.b16 %v1424, %v1416
    %v1705 = vpack.c.b16 %v1425, %v1417
    %v1706 = vpack.c.b16 %v1426, %v1418
    %v1707 = vpack.c.b16 %v1427, %v1419
    %v1708 = vpack.c.b16 %v1428, %v1420
    %v1709 = vpack.c.b16 %v1429, %v1421
    %v1710 = vpack.c.b16 %v1430, %v1422
    %v1711 = vpack.c.b16 %v1439, %v1431
    %v1712 = vpack.c.b16 %v1440, %v1432
    %v1713 = vpack.c.b16 %v1441, %v1433
    %v1714 = vpack.c.b16 %v1442, %v1434
    %v1715 = vpack.c.b16 %v1443, %v1435
    %v1716 = vpack.c.b16 %v1444, %v1436
    %v1717 = vpack.c.b16 %v1445, %v1437
    %v1718 = vpack.c.b16 %v1446, %v1438
    %v1719 = vpack.c.b16 %v1455, %v1447
    %v1720 = vpack.c.b16 %v1456, %v1448
    %v1721 = vpack.c.b16 %v1457, %v1449
    %v1722 = vpack.c.b16 %v1458, %v1450
    %v1723 = vpack.c.b16 %v1459, %v1451
    %v1724 = vpack.c.b16 %v1460, %v1452
    %v1725 = vpack.c.b16 %v1461, %v1453
    %v1726 = vpack.c.b16 %v1462, %v1454
    %v1727 = vpack.c.b16 %v1471, %v1463
    %v1728 = vpack.c.b16 %v1472, %v1464
    %v1729 = vpack.c.b16 %v1473, %v1465
    %v1730 = vpack.c.b16 %v1474, %v1466
    %v1731 = vpack.c.b16 %v1475, %v1467
    %v1732 = vpack.c.b16 %v1476, %v1468
    %v1733 = vpack.c.b16 %v1477, %v1469
    %v1734 = vpack.c.b16 %v1478, %v1470
    %1991 = vmatprep.subr.bf16.mxu0 %v1480
    %1992 = vmatpush1.bf16.msra.mxu0 %v1479
    %1993 = vmatprep.subr.bf16.mxu0 %v1488
    %1994 = vmatpush1.bf16.msra.mxu0 %v1487
    %1995 = vmatprep.subr.bf16.mxu0 %v1496
    %1996 = vmatpush1.bf16.msra.mxu0 %v1495
    %1997 = vmatprep.subr.bf16.mxu0 %v1504
    %1998 = vmatpush1.bf16.msra.mxu0 %v1503
    %1999 = vmatprep.subr.bf16.mxu0 %v1512
    %2000 = vmatpush1.bf16.msra.mxu0 %v1511
    %2001 = vmatprep.subr.bf16.mxu0 %v1520
    %2002 = vmatpush1.bf16.msra.mxu0 %v1519
    %2003 = vmatprep.subr.bf16.mxu0 %v1528
    %2004 = vmatpush1.bf16.msra.mxu0 %v1527
    %2005 = vmatprep.subr.bf16.mxu0 %v1536
    %2006 = vmatpush1.bf16.msra.mxu0 %v1535
    %2007 = vmatprep.subr.bf16.mxu0 %v1544
    %2008 = vmatpush1.bf16.msra.mxu0 %v1543
    %2009 = vmatprep.subr.bf16.mxu0 %v1552
    %2010 = vmatpush1.bf16.msra.mxu0 %v1551
    %2011 = vmatprep.subr.bf16.mxu0 %v1560
    %2012 = vmatpush1.bf16.msra.mxu0 %v1559
    %2013 = vmatprep.subr.bf16.mxu0 %v1568
    %2014 = vmatpush1.bf16.msra.mxu0 %v1567
    %2015 = vmatprep.subr.bf16.mxu0 %v1576
    %2016 = vmatpush1.bf16.msra.mxu0 %v1575
    %2017 = vmatprep.subr.bf16.mxu0 %v1584
    %2018 = vmatpush1.bf16.msra.mxu0 %v1583
    %2019 = vmatprep.subr.bf16.mxu0 %v1592
    %2020 = vmatpush1.bf16.msra.mxu0 %v1591
    %2021 = vmatprep.subr.bf16.mxu0 %v1600
    %2022 = vmatpush1.bf16.msra.mxu0 %v1599
    %2023 = vmatprep.mubr.bf16.mxu0 %v584
    %2024 = vmatmul.mubr.bf16.gmra.mrb[0].mxu0 %v583
    %v2025 = vpop.f32.mrb[0].mxu0
    %v2026 = vadd.f32 0.0, %v2025
    %v2027 = vpop.f32.mrb[0].mxu0
    %v2028 = vadd.f32 0.0, %v2027
    %v2029 = vpop.f32.mrb[0].mxu0
    %v2030 = vadd.f32 0.0, %v2029
    %v2031 = vpop.f32.mrb[0].mxu0
    %v2032 = vadd.f32 0.0, %v2031
    %2033 = vmatprep.mubr.bf16.mxu0 %v588
    %2034 = vmatmul.mubr.bf16.gmra.mrb[0].mxu0 %v587
    %v2035 = vpop.f32.mrb[0].mxu0
    %v2036 = vadd.f32 0.0, %v2035
    %v2037 = vpop.f32.mrb[0].mxu0
    %v2038 = vadd.f32 0.0, %v2037
    %v2039 = vpop.f32.mrb[0].mxu0
    %v2040 = vadd.f32 0.0, %v2039
    %v2041 = vpop.f32.mrb[0].mxu0
    %v2042 = vadd.f32 0.0, %v2041
    %2043 = vmatprep.mubr.bf16.mxu0 %v592
    %2044 = vmatmul.mubr.bf16.gmra.mrb[0].mxu0 %v591
    %v2045 = vpop.f32.mrb[0].mxu0
    %v2046 = vadd.f32 0.0, %v2045
    %v2047 = vpop.f32.mrb[0].mxu0
    %v2048 = vadd.f32 0.0, %v2047
    %v2049 = vpop.f32.mrb[0].mxu0
    %v2050 = vadd.f32 0.0, %v2049
    %v2051 = vpop.f32.mrb[0].mxu0
    %v2052 = vadd.f32 0.0, %v2051
    %2053 = vmatprep.mubr.bf16.mxu0 %v596
    %2054 = vmatmul.mubr.bf16.gmra.mrb[0].mxu0 %v595
    %v2055 = vpop.f32.mrb[0].mxu0
    %v2056 = vadd.f32 0.0, %v2055
    %v2057 = vpop.f32.mrb[0].mxu0
    %v2058 = vadd.f32 0.0, %v2057
    %v2059 = vpop.f32.mrb[0].mxu0
    %v2060 = vadd.f32 0.0, %v2059
    %v2061 = vpop.f32.mrb[0].mxu0
    %v2062 = vadd.f32 0.0, %v2061
    %2063 = vmatprep.mubr.bf16.mxu0 %v600
    %2064 = vmatmul.mubr.bf16.gmra.mrb[0].mxu0 %v599
    %v2065 = vpop.f32.mrb[0].mxu0
    %v2066 = vadd.f32 0.0, %v2065
    %v2067 = vpop.f32.mrb[0].mxu0
    %v2068 = vadd.f32 0.0, %v2067
    %v2069 = vpop.f32.mrb[0].mxu0
    %v2070 = vadd.f32 0.0, %v2069
    %v2071 = vpop.f32.mrb[0].mxu0
    %v2072 = vadd.f32 0.0, %v2071
    %2073 = vmatprep.mubr.bf16.mxu0 %v604
    %2074 = vmatmul.mubr.bf16.gmra.mrb[0].mxu0 %v603
    %v2075 = vpop.f32.mrb[0].mxu0
    %v2076 = vadd.f32 0.0, %v2075
    %v2077 = vpop.f32.mrb[0].mxu0
    %v2078 = vadd.f32 0.0, %v2077
    %v2079 = vpop.f32.mrb[0].mxu0
    %v2080 = vadd.f32 0.0, %v2079
    %v2081 = vpop.f32.mrb[0].mxu0
    %v2082 = vadd.f32 0.0, %v2081
    %2083 = vmatprep.mubr.bf16.mxu0 %v608
    %2084 = vmatmul.mubr.bf16.gmra.mrb[0].mxu0 %v607
    %v2085 = vpop.f32.mrb[0].mxu0
    %v2086 = vadd.f32 0.0, %v2085
    %v2087 = vpop.f32.mrb[0].mxu0
    %v2088 = vadd.f32 0.0, %v2087
    %v2089 = vpop.f32.mrb[0].mxu0
    %v2090 = vadd.f32 0.0, %v2089
    %v2091 = vpop.f32.mrb[0].mxu0
    %v2092 = vadd.f32 0.0, %v2091
    %2093 = vmatprep.mubr.bf16.mxu0 %v612
    %2094 = vmatmul.mubr.bf16.gmra.mrb[0].mxu0 %v611
    %v2095 = vpop.f32.mrb[0].mxu0
    %v2096 = vadd.f32 0.0, %v2095
    %v2097 = vpop.f32.mrb[0].mxu0
    %v2098 = vadd.f32 0.0, %v2097
    %v2099 = vpop.f32.mrb[0].mxu0
    %v2100 = vadd.f32 0.0, %v2099
    %v2101 = vpop.f32.mrb[0].mxu0
    %v2102 = vadd.f32 0.0, %v2101
    %2103 = vmatprep.mubr.bf16.mxu0 %v616
    %2104 = vmatmul.mubr.bf16.gmra.mrb[0].mxu0 %v615
    %v2105 = vpop.f32.mrb[0].mxu0
    %v2106 = vadd.f32 0.0, %v2105
    %v2107 = vpop.f32.mrb[0].mxu0
    %v2108 = vadd.f32 0.0, %v2107
    %v2109 = vpop.f32.mrb[0].mxu0
    %v2110 = vadd.f32 0.0, %v2109
    %v2111 = vpop.f32.mrb[0].mxu0
    %v2112 = vadd.f32 0.0, %v2111
    %2113 = vmatprep.mubr.bf16.mxu0 %v620
    %2114 = vmatmul.mubr.bf16.gmra.mrb[0].mxu0 %v619
    %v2115 = vpop.f32.mrb[0].mxu0
    %v2116 = vadd.f32 0.0, %v2115
    %v2117 = vpop.f32.mrb[0].mxu0
    %v2118 = vadd.f32 0.0, %v2117
    %v2119 = vpop.f32.mrb[0].mxu0
    %v2120 = vadd.f32 0.0, %v2119
    %v2121 = vpop.f32.mrb[0].mxu0
    %v2122 = vadd.f32 0.0, %v2121
    %2123 = vmatprep.mubr.bf16.mxu0 %v624
    %2124 = vmatmul.mubr.bf16.gmra.mrb[0].mxu0 %v623
    %v2125 = vpop.f32.mrb[0].mxu0
    %v2126 = vadd.f32 0.0, %v2125
    %v2127 = vpop.f32.mrb[0].mxu0
    %v2128 = vadd.f32 0.0, %v2127
    %v2129 = vpop.f32.mrb[0].mxu0
    %v2130 = vadd.f32 0.0, %v2129
    %v2131 = vpop.f32.mrb[0].mxu0
    %v2132 = vadd.f32 0.0, %v2131
    %2133 = vmatprep.mubr.bf16.mxu0 %v628
    %2134 = vmatmul.mubr.bf16.gmra.mrb[0].mxu0 %v627
    %v2135 = vpop.f32.mrb[0].mxu0
    %v2136 = vadd.f32 0.0, %v2135
    %v2137 = vpop.f32.mrb[0].mxu0
    %v2138 = vadd.f32 0.0, %v2137
    %v2139 = vpop.f32.mrb[0].mxu0
    %v2140 = vadd.f32 0.0, %v2139
    %v2141 = vpop.f32.mrb[0].mxu0
    %v2142 = vadd.f32 0.0, %v2141
    %2143 = vmatprep.mubr.bf16.mxu0 %v632
    %2144 = vmatmul.mubr.bf16.gmra.mrb[0].mxu0 %v631
    %v2145 = vpop.f32.mrb[0].mxu0
    %v2146 = vadd.f32 0.0, %v2145
    %v2147 = vpop.f32.mrb[0].mxu0
    %v2148 = vadd.f32 0.0, %v2147
    %v2149 = vpop.f32.mrb[0].mxu0
    %v2150 = vadd.f32 0.0, %v2149
    %v2151 = vpop.f32.mrb[0].mxu0
    %v2152 = vadd.f32 0.0, %v2151
    %2153 = vmatprep.mubr.bf16.mxu0 %v636
    %2154 = vmatmul.mubr.bf16.gmra.mrb[0].mxu0 %v635
    %v2155 = vpop.f32.mrb[0].mxu0
    %v2156 = vadd.f32 0.0, %v2155
    %v2157 = vpop.f32.mrb[0].mxu0
    %v2158 = vadd.f32 0.0, %v2157
    %v2159 = vpop.f32.mrb[0].mxu0
    %v2160 = vadd.f32 0.0, %v2159
    %v2161 = vpop.f32.mrb[0].mxu0
    %v2162 = vadd.f32 0.0, %v2161
    %2163 = vmatprep.mubr.bf16.mxu0 %v640
    %2164 = vmatmul.mubr.bf16.gmra.mrb[0].mxu0 %v639
    %v2165 = vpop.f32.mrb[0].mxu0
    %v2166 = vadd.f32 0.0, %v2165
    %v2167 = vpop.f32.mrb[0].mxu0
    %v2168 = vadd.f32 0.0, %v2167
    %v2169 = vpop.f32.mrb[0].mxu0
    %v2170 = vadd.f32 0.0, %v2169
    %v2171 = vpop.f32.mrb[0].mxu0
    %v2172 = vadd.f32 0.0, %v2171
    %2173 = vmatprep.mubr.bf16.mxu0 %v644
    %2174 = vmatmul.mubr.bf16.gmra.mrb[0].mxu0 %v643
    %v2175 = vpop.f32.mrb[0].mxu0
    %v2176 = vadd.f32 0.0, %v2175
    %v2177 = vpop.f32.mrb[0].mxu0
    %v2178 = vadd.f32 0.0, %v2177
    %v2179 = vpop.f32.mrb[0].mxu0
    %v2180 = vadd.f32 0.0, %v2179
    %v2181 = vpop.f32.mrb[0].mxu0
    %v2182 = vadd.f32 0.0, %v2181
    %2183 = vdwg.mxu0
    %2184 = vmatprep.subr.bf16.mxu0 %v1608
    %2185 = vmatpush1.bf16.msra.mxu0 %v1607
    %2186 = vmatprep.subr.bf16.mxu0 %v1616
    %2187 = vmatpush1.bf16.msra.mxu0 %v1615
    %2188 = vmatprep.subr.bf16.mxu0 %v1624
    %2189 = vmatpush1.bf16.msra.mxu0 %v1623
    %2190 = vmatprep.subr.bf16.mxu0 %v1632
    %2191 = vmatpush1.bf16.msra.mxu0 %v1631
    %2192 = vmatprep.subr.bf16.mxu0 %v1640
    %2193 = vmatpush1.bf16.msra.mxu0 %v1639
    %2194 = vmatprep.subr.bf16.mxu0 %v1648
    %2195 = vmatpush1.bf16.msra.mxu0 %v1647
    %2196 = vmatprep.subr.bf16.mxu0 %v1656
    %2197 = vmatpush1.bf16.msra.mxu0 %v1655
    %2198 = vmatprep.subr.bf16.mxu0 %v1664
    %2199 = vmatpush1.bf16.msra.mxu0 %v1663
    %2200 = vmatprep.subr.bf16.mxu0 %v1672
    %2201 = vmatpush1.bf16.msra.mxu0 %v1671
    %2202 = vmatprep.subr.bf16.mxu0 %v1680
    %2203 = vmatpush1.bf16.msra.mxu0 %v1679
    %2204 = vmatprep.subr.bf16.mxu0 %v1688
    %2205 = vmatpush1.bf16.msra.mxu0 %v1687
    %2206 = vmatprep.subr.bf16.mxu0 %v1696
    %2207 = vmatpush1.bf16.msra.mxu0 %v1695
    %2208 = vmatprep.subr.bf16.mxu0 %v1704
    %2209 = vmatpush1.bf16.msra.mxu0 %v1703
    %2210 = vmatprep.subr.bf16.mxu0 %v1712
    %2211 = vmatpush1.bf16.msra.mxu0 %v1711
    %2212 = vmatprep.subr.bf16.mxu0 %v1720
    %2213 = vmatpush1.bf16.msra.mxu0 %v1719
    %2214 = vmatprep.subr.bf16.mxu0 %v1728
    %2215 = vmatpush1.bf16.msra.mxu0 %v1727
    %2216 = vmatprep.mubr.bf16.mxu0 %v586
    %2217 = vmatmul.mubr.bf16.gmra.mrb[0].mxu0 %v585
    %v2218 = vpop.f32.mrb[0].mxu0
    %v2219 = vadd.f32 %v2026, %v2218
    %v2220 = vpop.f32.mrb[0].mxu0
    %v2221 = vadd.f32 %v2028, %v2220
    %v2222 = vpop.f32.mrb[0].mxu0
    %v2223 = vadd.f32 %v2030, %v2222
    %v2224 = vpop.f32.mrb[0].mxu0
    %v2225 = vadd.f32 %v2032, %v2224
    %2226 = vmatprep.mubr.bf16.mxu0 %v590
    %2227 = vmatmul.mubr.bf16.gmra.mrb[0].mxu0 %v589
    %v2228 = vpop.f32.mrb[0].mxu0
    %v2229 = vadd.f32 %v2036, %v2228
    %v2230 = vpop.f32.mrb[0].mxu0
    %v2231 = vadd.f32 %v2038, %v2230
    %v2232 = vpop.f32.mrb[0].mxu0
    %v2233 = vadd.f32 %v2040, %v2232
    %v2234 = vpop.f32.mrb[0].mxu0
    %v2235 = vadd.f32 %v2042, %v2234
    %2236 = vmatprep.mubr.bf16.mxu0 %v594
    %2237 = vmatmul.mubr.bf16.gmra.mrb[0].mxu0 %v593
    %v2238 = vpop.f32.mrb[0].mxu0
    %v2239 = vadd.f32 %v2046, %v2238
    %v2240 = vpop.f32.mrb[0].mxu0
    %v2241 = vadd.f32 %v2048, %v2240
    %v2242 = vpop.f32.mrb[0].mxu0
    %v2243 = vadd.f32 %v2050, %v2242
    %v2244 = vpop.f32.mrb[0].mxu0
    %v2245 = vadd.f32 %v2052, %v2244
    %2246 = vmatprep.mubr.bf16.mxu0 %v598
    %2247 = vmatmul.mubr.bf16.gmra.mrb[0].mxu0 %v597
    %v2248 = vpop.f32.mrb[0].mxu0
    %v2249 = vadd.f32 %v2056, %v2248
    %v2250 = vpop.f32.mrb[0].mxu0
    %v2251 = vadd.f32 %v2058, %v2250
    %v2252 = vpop.f32.mrb[0].mxu0
    %v2253 = vadd.f32 %v2060, %v2252
    %v2254 = vpop.f32.mrb[0].mxu0
    %v2255 = vadd.f32 %v2062, %v2254
    %2256 = vmatprep.mubr.bf16.mxu0 %v602
    %2257 = vmatmul.mubr.bf16.gmra.mrb[0].mxu0 %v601
    %v2258 = vpop.f32.mrb[0].mxu0
    %v2259 = vadd.f32 %v2066, %v2258
    %v2260 = vpop.f32.mrb[0].mxu0
    %v2261 = vadd.f32 %v2068, %v2260
    %v2262 = vpop.f32.mrb[0].mxu0
    %v2263 = vadd.f32 %v2070, %v2262
    %v2264 = vpop.f32.mrb[0].mxu0
    %v2265 = vadd.f32 %v2072, %v2264
    %2266 = vmatprep.mubr.bf16.mxu0 %v606
    %2267 = vmatmul.mubr.bf16.gmra.mrb[0].mxu0 %v605
    %v2268 = vpop.f32.mrb[0].mxu0
    %v2269 = vadd.f32 %v2076, %v2268
    %v2270 = vpop.f32.mrb[0].mxu0
    %v2271 = vadd.f32 %v2078, %v2270
    %v2272 = vpop.f32.mrb[0].mxu0
    %v2273 = vadd.f32 %v2080, %v2272
    %v2274 = vpop.f32.mrb[0].mxu0
    %v2275 = vadd.f32 %v2082, %v2274
    %2276 = vmatprep.mubr.bf16.mxu0 %v610
    %2277 = vmatmul.mubr.bf16.gmra.mrb[0].mxu0 %v609
    %v2278 = vpop.f32.mrb[0].mxu0
    %v2279 = vadd.f32 %v2086, %v2278
    %v2280 = vpop.f32.mrb[0].mxu0
    %v2281 = vadd.f32 %v2088, %v2280
    %v2282 = vpop.f32.mrb[0].mxu0
    %v2283 = vadd.f32 %v2090, %v2282
    %v2284 = vpop.f32.mrb[0].mxu0
    %v2285 = vadd.f32 %v2092, %v2284
    %2286 = vmatprep.mubr.bf16.mxu0 %v614
    %2287 = vmatmul.mubr.bf16.gmra.mrb[0].mxu0 %v613
    %v2288 = vpop.f32.mrb[0].mxu0
    %v2289 = vadd.f32 %v2096, %v2288
    %v2290 = vpop.f32.mrb[0].mxu0
    %v2291 = vadd.f32 %v2098, %v2290
    %v2292 = vpop.f32.mrb[0].mxu0
    %v2293 = vadd.f32 %v2100, %v2292
    %v2294 = vpop.f32.mrb[0].mxu0
    %v2295 = vadd.f32 %v2102, %v2294
    %2296 = vmatprep.mubr.bf16.mxu0 %v618
    %2297 = vmatmul.mubr.bf16.gmra.mrb[0].mxu0 %v617
    %v2298 = vpop.f32.mrb[0].mxu0
    %v2299 = vadd.f32 %v2106, %v2298
    %v2300 = vpop.f32.mrb[0].mxu0
    %v2301 = vadd.f32 %v2108, %v2300
    %v2302 = vpop.f32.mrb[0].mxu0
    %v2303 = vadd.f32 %v2110, %v2302
    %v2304 = vpop.f32.mrb[0].mxu0
    %v2305 = vadd.f32 %v2112, %v2304
    %2306 = vmatprep.mubr.bf16.mxu0 %v622
    %2307 = vmatmul.mubr.bf16.gmra.mrb[0].mxu0 %v621
    %v2308 = vpop.f32.mrb[0].mxu0
    %v2309 = vadd.f32 %v2116, %v2308
    %v2310 = vpop.f32.mrb[0].mxu0
    %v2311 = vadd.f32 %v2118, %v2310
    %v2312 = vpop.f32.mrb[0].mxu0
    %v2313 = vadd.f32 %v2120, %v2312
    %v2314 = vpop.f32.mrb[0].mxu0
    %v2315 = vadd.f32 %v2122, %v2314
    %2316 = vmatprep.mubr.bf16.mxu0 %v626
    %2317 = vmatmul.mubr.bf16.gmra.mrb[0].mxu0 %v625
    %v2318 = vpop.f32.mrb[0].mxu0
    %v2319 = vadd.f32 %v2126, %v2318
    %v2320 = vpop.f32.mrb[0].mxu0
    %v2321 = vadd.f32 %v2128, %v2320
    %v2322 = vpop.f32.mrb[0].mxu0
    %v2323 = vadd.f32 %v2130, %v2322
    %v2324 = vpop.f32.mrb[0].mxu0
    %v2325 = vadd.f32 %v2132, %v2324
    %2326 = vmatprep.mubr.bf16.mxu0 %v630
    %2327 = vmatmul.mubr.bf16.gmra.mrb[0].mxu0 %v629
    %v2328 = vpop.f32.mrb[0].mxu0
    %v2329 = vadd.f32 %v2136, %v2328
    %v2330 = vpop.f32.mrb[0].mxu0
    %v2331 = vadd.f32 %v2138, %v2330
    %v2332 = vpop.f32.mrb[0].mxu0
    %v2333 = vadd.f32 %v2140, %v2332
    %v2334 = vpop.f32.mrb[0].mxu0
    %v2335 = vadd.f32 %v2142, %v2334
    %2336 = vmatprep.mubr.bf16.mxu0 %v634
    %2337 = vmatmul.mubr.bf16.gmra.mrb[0].mxu0 %v633
    %v2338 = vpop.f32.mrb[0].mxu0
    %v2339 = vadd.f32 %v2146, %v2338
    %v2340 = vpop.f32.mrb[0].mxu0
    %v2341 = vadd.f32 %v2148, %v2340
    %v2342 = vpop.f32.mrb[0].mxu0
    %v2343 = vadd.f32 %v2150, %v2342
    %v2344 = vpop.f32.mrb[0].mxu0
    %v2345 = vadd.f32 %v2152, %v2344
    %2346 = vmatprep.mubr.bf16.mxu0 %v638
    %2347 = vmatmul.mubr.bf16.gmra.mrb[0].mxu0 %v637
    %v2348 = vpop.f32.mrb[0].mxu0
    %v2349 = vadd.f32 %v2156, %v2348
    %v2350 = vpop.f32.mrb[0].mxu0
    %v2351 = vadd.f32 %v2158, %v2350
    %v2352 = vpop.f32.mrb[0].mxu0
    %v2353 = vadd.f32 %v2160, %v2352
    %v2354 = vpop.f32.mrb[0].mxu0
    %v2355 = vadd.f32 %v2162, %v2354
    %2356 = vmatprep.mubr.bf16.mxu0 %v642
    %2357 = vmatmul.mubr.bf16.gmra.mrb[0].mxu0 %v641
    %v2358 = vpop.f32.mrb[0].mxu0
    %v2359 = vadd.f32 %v2166, %v2358
    %v2360 = vpop.f32.mrb[0].mxu0
    %v2361 = vadd.f32 %v2168, %v2360
    %v2362 = vpop.f32.mrb[0].mxu0
    %v2363 = vadd.f32 %v2170, %v2362
    %v2364 = vpop.f32.mrb[0].mxu0
    %v2365 = vadd.f32 %v2172, %v2364
    %2366 = vmatprep.mubr.bf16.mxu0 %v646
    %2367 = vmatmul.mubr.bf16.gmra.mrb[0].mxu0 %v645
    %v2368 = vpop.f32.mrb[0].mxu0
    %v2369 = vadd.f32 %v2176, %v2368
    %v2370 = vpop.f32.mrb[0].mxu0
    %v2371 = vadd.f32 %v2178, %v2370
    %v2372 = vpop.f32.mrb[0].mxu0
    %v2373 = vadd.f32 %v2180, %v2372
    %v2374 = vpop.f32.mrb[0].mxu0
    %v2375 = vadd.f32 %v2182, %v2374
    %2376 = vdwg.mxu0
    %2377 = vmatprep.subr.bf16.mxu0 %v1482
    %2378 = vmatpush1.bf16.msra.mxu0 %v1481
    %2379 = vmatprep.subr.bf16.mxu0 %v1490
    %2380 = vmatpush1.bf16.msra.mxu0 %v1489
    %2381 = vmatprep.subr.bf16.mxu0 %v1498
    %2382 = vmatpush1.bf16.msra.mxu0 %v1497
    %2383 = vmatprep.subr.bf16.mxu0 %v1506
    %2384 = vmatpush1.bf16.msra.mxu0 %v1505
    %2385 = vmatprep.subr.bf16.mxu0 %v1514
    %2386 = vmatpush1.bf16.msra.mxu0 %v1513
    %2387 = vmatprep.subr.bf16.mxu0 %v1522
    %2388 = vmatpush1.bf16.msra.mxu0 %v1521
    %2389 = vmatprep.subr.bf16.mxu0 %v1530
    %2390 = vmatpush1.bf16.msra.mxu0 %v1529
    %2391 = vmatprep.subr.bf16.mxu0 %v1538
    %2392 = vmatpush1.bf16.msra.mxu0 %v1537
    %2393 = vmatprep.subr.bf16.mxu0 %v1546
    %2394 = vmatpush1.bf16.msra.mxu0 %v1545
    %2395 = vmatprep.subr.bf16.mxu0 %v1554
    %2396 = vmatpush1.bf16.msra.mxu0 %v1553
    %2397 = vmatprep.subr.bf16.mxu0 %v1562
    %2398 = vmatpush1.bf16.msra.mxu0 %v1561
    %2399 = vmatprep.subr.bf16.mxu0 %v1570
    %2400 = vmatpush1.bf16.msra.mxu0 %v1569
    %2401 = vmatprep.subr.bf16.mxu0 %v1578
    %2402 = vmatpush1.bf16.msra.mxu0 %v1577
    %2403 = vmatprep.subr.bf16.mxu0 %v1586
    %2404 = vmatpush1.bf16.msra.mxu0 %v1585
    %2405 = vmatprep.subr.bf16.mxu0 %v1594
    %2406 = vmatpush1.bf16.msra.mxu0 %v1593
    %2407 = vmatprep.subr.bf16.mxu0 %v1602
    %2408 = vmatpush1.bf16.msra.mxu0 %v1601
    %2409 = vmatprep.mubr.bf16.mxu0 %v584
    %2410 = vmatmul.mubr.bf16.gmra.mrb[0].mxu0 %v583
    %v2411 = vpop.f32.mrb[0].mxu0
    %v2412 = vadd.f32 0.0, %v2411
    %v2413 = vpop.f32.mrb[0].mxu0
    %v2414 = vadd.f32 0.0, %v2413
    %v2415 = vpop.f32.mrb[0].mxu0
    %v2416 = vadd.f32 0.0, %v2415
    %v2417 = vpop.f32.mrb[0].mxu0
    %v2418 = vadd.f32 0.0, %v2417
    %2419 = vmatprep.mubr.bf16.mxu0 %v588
    %2420 = vmatmul.mubr.bf16.gmra.mrb[0].mxu0 %v587
    %v2421 = vpop.f32.mrb[0].mxu0
    %v2422 = vadd.f32 0.0, %v2421
    %v2423 = vpop.f32.mrb[0].mxu0
    %v2424 = vadd.f32 0.0, %v2423
    %v2425 = vpop.f32.mrb[0].mxu0
    %v2426 = vadd.f32 0.0, %v2425
    %v2427 = vpop.f32.mrb[0].mxu0
    %v2428 = vadd.f32 0.0, %v2427
    %2429 = vmatprep.mubr.bf16.mxu0 %v592
    %2430 = vmatmul.mubr.bf16.gmra.mrb[0].mxu0 %v591
    %v2431 = vpop.f32.mrb[0].mxu0
    %v2432 = vadd.f32 0.0, %v2431
    %v2433 = vpop.f32.mrb[0].mxu0
    %v2434 = vadd.f32 0.0, %v2433
    %v2435 = vpop.f32.mrb[0].mxu0
    %v2436 = vadd.f32 0.0, %v2435
    %v2437 = vpop.f32.mrb[0].mxu0
    %v2438 = vadd.f32 0.0, %v2437
    %2439 = vmatprep.mubr.bf16.mxu0 %v596
    %2440 = vmatmul.mubr.bf16.gmra.mrb[0].mxu0 %v595
    %v2441 = vpop.f32.mrb[0].mxu0
    %v2442 = vadd.f32 0.0, %v2441
    %v2443 = vpop.f32.mrb[0].mxu0
    %v2444 = vadd.f32 0.0, %v2443
    %v2445 = vpop.f32.mrb[0].mxu0
    %v2446 = vadd.f32 0.0, %v2445
    %v2447 = vpop.f32.mrb[0].mxu0
    %v2448 = vadd.f32 0.0, %v2447
    %2449 = vmatprep.mubr.bf16.mxu0 %v600
    %2450 = vmatmul.mubr.bf16.gmra.mrb[0].mxu0 %v599
    %v2451 = vpop.f32.mrb[0].mxu0
    %v2452 = vadd.f32 0.0, %v2451
    %v2453 = vpop.f32.mrb[0].mxu0
    %v2454 = vadd.f32 0.0, %v2453
    %v2455 = vpop.f32.mrb[0].mxu0
    %v2456 = vadd.f32 0.0, %v2455
    %v2457 = vpop.f32.mrb[0].mxu0
    %v2458 = vadd.f32 0.0, %v2457
    %2459 = vmatprep.mubr.bf16.mxu0 %v604
    %2460 = vmatmul.mubr.bf16.gmra.mrb[0].mxu0 %v603
    %v2461 = vpop.f32.mrb[0].mxu0
    %v2462 = vadd.f32 0.0, %v2461
    %v2463 = vpop.f32.mrb[0].mxu0
    %v2464 = vadd.f32 0.0, %v2463
    %v2465 = vpop.f32.mrb[0].mxu0
    %v2466 = vadd.f32 0.0, %v2465
    %v2467 = vpop.f32.mrb[0].mxu0
    %v2468 = vadd.f32 0.0, %v2467
    %2469 = vmatprep.mubr.bf16.mxu0 %v608
    %2470 = vmatmul.mubr.bf16.gmra.mrb[0].mxu0 %v607
    %v2471 = vpop.f32.mrb[0].mxu0
    %v2472 = vadd.f32 0.0, %v2471
    %v2473 = vpop.f32.mrb[0].mxu0
    %v2474 = vadd.f32 0.0, %v2473
    %v2475 = vpop.f32.mrb[0].mxu0
    %v2476 = vadd.f32 0.0, %v2475
    %v2477 = vpop.f32.mrb[0].mxu0
    %v2478 = vadd.f32 0.0, %v2477
    %2479 = vmatprep.mubr.bf16.mxu0 %v612
    %2480 = vmatmul.mubr.bf16.gmra.mrb[0].mxu0 %v611
    %v2481 = vpop.f32.mrb[0].mxu0
    %v2482 = vadd.f32 0.0, %v2481
    %v2483 = vpop.f32.mrb[0].mxu0
    %v2484 = vadd.f32 0.0, %v2483
    %v2485 = vpop.f32.mrb[0].mxu0
    %v2486 = vadd.f32 0.0, %v2485
    %v2487 = vpop.f32.mrb[0].mxu0
    %v2488 = vadd.f32 0.0, %v2487
    %2489 = vmatprep.mubr.bf16.mxu0 %v616
    %2490 = vmatmul.mubr.bf16.gmra.mrb[0].mxu0 %v615
    %v2491 = vpop.f32.mrb[0].mxu0
    %v2492 = vadd.f32 0.0, %v2491
    %v2493 = vpop.f32.mrb[0].mxu0
    %v2494 = vadd.f32 0.0, %v2493
    %v2495 = vpop.f32.mrb[0].mxu0
    %v2496 = vadd.f32 0.0, %v2495
    %v2497 = vpop.f32.mrb[0].mxu0
    %v2498 = vadd.f32 0.0, %v2497
    %2499 = vmatprep.mubr.bf16.mxu0 %v620
    %2500 = vmatmul.mubr.bf16.gmra.mrb[0].mxu0 %v619
    %v2501 = vpop.f32.mrb[0].mxu0
    %v2502 = vadd.f32 0.0, %v2501
    %v2503 = vpop.f32.mrb[0].mxu0
    %v2504 = vadd.f32 0.0, %v2503
    %v2505 = vpop.f32.mrb[0].mxu0
    %v2506 = vadd.f32 0.0, %v2505
    %v2507 = vpop.f32.mrb[0].mxu0
    %v2508 = vadd.f32 0.0, %v2507
    %2509 = vmatprep.mubr.bf16.mxu0 %v624
    %2510 = vmatmul.mubr.bf16.gmra.mrb[0].mxu0 %v623
    %v2511 = vpop.f32.mrb[0].mxu0
    %v2512 = vadd.f32 0.0, %v2511
    %v2513 = vpop.f32.mrb[0].mxu0
    %v2514 = vadd.f32 0.0, %v2513
    %v2515 = vpop.f32.mrb[0].mxu0
    %v2516 = vadd.f32 0.0, %v2515
    %v2517 = vpop.f32.mrb[0].mxu0
    %v2518 = vadd.f32 0.0, %v2517
    %2519 = vmatprep.mubr.bf16.mxu0 %v628
    %2520 = vmatmul.mubr.bf16.gmra.mrb[0].mxu0 %v627
    %v2521 = vpop.f32.mrb[0].mxu0
    %v2522 = vadd.f32 0.0, %v2521
    %v2523 = vpop.f32.mrb[0].mxu0
    %v2524 = vadd.f32 0.0, %v2523
    %v2525 = vpop.f32.mrb[0].mxu0
    %v2526 = vadd.f32 0.0, %v2525
    %v2527 = vpop.f32.mrb[0].mxu0
    %v2528 = vadd.f32 0.0, %v2527
    %2529 = vmatprep.mubr.bf16.mxu0 %v632
    %2530 = vmatmul.mubr.bf16.gmra.mrb[0].mxu0 %v631
    %v2531 = vpop.f32.mrb[0].mxu0
    %v2532 = vadd.f32 0.0, %v2531
    %v2533 = vpop.f32.mrb[0].mxu0
    %v2534 = vadd.f32 0.0, %v2533
    %v2535 = vpop.f32.mrb[0].mxu0
    %v2536 = vadd.f32 0.0, %v2535
    %v2537 = vpop.f32.mrb[0].mxu0
    %v2538 = vadd.f32 0.0, %v2537
    %2539 = vmatprep.mubr.bf16.mxu0 %v636
    %2540 = vmatmul.mubr.bf16.gmra.mrb[0].mxu0 %v635
    %v2541 = vpop.f32.mrb[0].mxu0
    %v2542 = vadd.f32 0.0, %v2541
    %v2543 = vpop.f32.mrb[0].mxu0
    %v2544 = vadd.f32 0.0, %v2543
    %v2545 = vpop.f32.mrb[0].mxu0
    %v2546 = vadd.f32 0.0, %v2545
    %v2547 = vpop.f32.mrb[0].mxu0
    %v2548 = vadd.f32 0.0, %v2547
    %2549 = vmatprep.mubr.bf16.mxu0 %v640
    %2550 = vmatmul.mubr.bf16.gmra.mrb[0].mxu0 %v639
    %v2551 = vpop.f32.mrb[0].mxu0
    %v2552 = vadd.f32 0.0, %v2551
    %v2553 = vpop.f32.mrb[0].mxu0
    %v2554 = vadd.f32 0.0, %v2553
    %v2555 = vpop.f32.mrb[0].mxu0
    %v2556 = vadd.f32 0.0, %v2555
    %v2557 = vpop.f32.mrb[0].mxu0
    %v2558 = vadd.f32 0.0, %v2557
    %2559 = vmatprep.mubr.bf16.mxu0 %v644
    %2560 = vmatmul.mubr.bf16.gmra.mrb[0].mxu0 %v643
    %v2561 = vpop.f32.mrb[0].mxu0
    %v2562 = vadd.f32 0.0, %v2561
    %v2563 = vpop.f32.mrb[0].mxu0
    %v2564 = vadd.f32 0.0, %v2563
    %v2565 = vpop.f32.mrb[0].mxu0
    %v2566 = vadd.f32 0.0, %v2565
    %v2567 = vpop.f32.mrb[0].mxu0
    %v2568 = vadd.f32 0.0, %v2567
    %2569 = vdwg.mxu0
    %2570 = vmatprep.subr.bf16.mxu0 %v1610
    %2571 = vmatpush1.bf16.msra.mxu0 %v1609
    %2572 = vmatprep.subr.bf16.mxu0 %v1618
    %2573 = vmatpush1.bf16.msra.mxu0 %v1617
    %2574 = vmatprep.subr.bf16.mxu0 %v1626
    %2575 = vmatpush1.bf16.msra.mxu0 %v1625
    %2576 = vmatprep.subr.bf16.mxu0 %v1634
    %2577 = vmatpush1.bf16.msra.mxu0 %v1633
    %2578 = vmatprep.subr.bf16.mxu0 %v1642
    %2579 = vmatpush1.bf16.msra.mxu0 %v1641
    %2580 = vmatprep.subr.bf16.mxu0 %v1650
    %2581 = vmatpush1.bf16.msra.mxu0 %v1649
    %2582 = vmatprep.subr.bf16.mxu0 %v1658
    %2583 = vmatpush1.bf16.msra.mxu0 %v1657
    %2584 = vmatprep.subr.bf16.mxu0 %v1666
    %2585 = vmatpush1.bf16.msra.mxu0 %v1665
    %2586 = vmatprep.subr.bf16.mxu0 %v1674
    %2587 = vmatpush1.bf16.msra.mxu0 %v1673
    %2588 = vmatprep.subr.bf16.mxu0 %v1682
    %2589 = vmatpush1.bf16.msra.mxu0 %v1681
    %2590 = vmatprep.subr.bf16.mxu0 %v1690
    %2591 = vmatpush1.bf16.msra.mxu0 %v1689
    %2592 = vmatprep.subr.bf16.mxu0 %v1698
    %2593 = vmatpush1.bf16.msra.mxu0 %v1697
    %2594 = vmatprep.subr.bf16.mxu0 %v1706
    %2595 = vmatpush1.bf16.msra.mxu0 %v1705
    %2596 = vmatprep.subr.bf16.mxu0 %v1714
    %2597 = vmatpush1.bf16.msra.mxu0 %v1713
    %2598 = vmatprep.subr.bf16.mxu0 %v1722
    %2599 = vmatpush1.bf16.msra.mxu0 %v1721
    %2600 = vmatprep.subr.bf16.mxu0 %v1730
    %2601 = vmatpush1.bf16.msra.mxu0 %v1729
    %2602 = vmatprep.mubr.bf16.mxu0 %v586
    %2603 = vmatmul.mubr.bf16.gmra.mrb[0].mxu0 %v585
    %v2604 = vpop.f32.mrb[0].mxu0
    %v2605 = vadd.f32 %v2412, %v2604
    %v2606 = vpop.f32.mrb[0].mxu0
    %v2607 = vadd.f32 %v2414, %v2606
    %v2608 = vpop.f32.mrb[0].mxu0
    %v2609 = vadd.f32 %v2416, %v2608
    %v2610 = vpop.f32.mrb[0].mxu0
    %v2611 = vadd.f32 %v2418, %v2610
    %2612 = vmatprep.mubr.bf16.mxu0 %v590
    %2613 = vmatmul.mubr.bf16.gmra.mrb[0].mxu0 %v589
    %v2614 = vpop.f32.mrb[0].mxu0
    %v2615 = vadd.f32 %v2422, %v2614
    %v2616 = vpop.f32.mrb[0].mxu0
    %v2617 = vadd.f32 %v2424, %v2616
    %v2618 = vpop.f32.mrb[0].mxu0
    %v2619 = vadd.f32 %v2426, %v2618
    %v2620 = vpop.f32.mrb[0].mxu0
    %v2621 = vadd.f32 %v2428, %v2620
    %2622 = vmatprep.mubr.bf16.mxu0 %v594
    %2623 = vmatmul.mubr.bf16.gmra.mrb[0].mxu0 %v593
    %v2624 = vpop.f32.mrb[0].mxu0
    %v2625 = vadd.f32 %v2432, %v2624
    %v2626 = vpop.f32.mrb[0].mxu0
    %v2627 = vadd.f32 %v2434, %v2626
    %v2628 = vpop.f32.mrb[0].mxu0
    %v2629 = vadd.f32 %v2436, %v2628
    %v2630 = vpop.f32.mrb[0].mxu0
    %v2631 = vadd.f32 %v2438, %v2630
    %2632 = vmatprep.mubr.bf16.mxu0 %v598
    %2633 = vmatmul.mubr.bf16.gmra.mrb[0].mxu0 %v597
    %v2634 = vpop.f32.mrb[0].mxu0
    %v2635 = vadd.f32 %v2442, %v2634
    %v2636 = vpop.f32.mrb[0].mxu0
    %v2637 = vadd.f32 %v2444, %v2636
    %v2638 = vpop.f32.mrb[0].mxu0
    %v2639 = vadd.f32 %v2446, %v2638
    %v2640 = vpop.f32.mrb[0].mxu0
    %v2641 = vadd.f32 %v2448, %v2640
    %2642 = vmatprep.mubr.bf16.mxu0 %v602
    %2643 = vmatmul.mubr.bf16.gmra.mrb[0].mxu0 %v601
    %v2644 = vpop.f32.mrb[0].mxu0
    %v2645 = vadd.f32 %v2452, %v2644
    %v2646 = vpop.f32.mrb[0].mxu0
    %v2647 = vadd.f32 %v2454, %v2646
    %v2648 = vpop.f32.mrb[0].mxu0
    %v2649 = vadd.f32 %v2456, %v2648
    %v2650 = vpop.f32.mrb[0].mxu0
    %v2651 = vadd.f32 %v2458, %v2650
    %2652 = vmatprep.mubr.bf16.mxu0 %v606
    %2653 = vmatmul.mubr.bf16.gmra.mrb[0].mxu0 %v605
    %v2654 = vpop.f32.mrb[0].mxu0
    %v2655 = vadd.f32 %v2462, %v2654
    %v2656 = vpop.f32.mrb[0].mxu0
    %v2657 = vadd.f32 %v2464, %v2656
    %v2658 = vpop.f32.mrb[0].mxu0
    %v2659 = vadd.f32 %v2466, %v2658
    %v2660 = vpop.f32.mrb[0].mxu0
    %v2661 = vadd.f32 %v2468, %v2660
    %2662 = vmatprep.mubr.bf16.mxu0 %v610
    %2663 = vmatmul.mubr.bf16.gmra.mrb[0].mxu0 %v609
    %v2664 = vpop.f32.mrb[0].mxu0
    %v2665 = vadd.f32 %v2472, %v2664
    %v2666 = vpop.f32.mrb[0].mxu0
    %v2667 = vadd.f32 %v2474, %v2666
    %v2668 = vpop.f32.mrb[0].mxu0
    %v2669 = vadd.f32 %v2476, %v2668
    %v2670 = vpop.f32.mrb[0].mxu0
    %v2671 = vadd.f32 %v2478, %v2670
    %2672 = vmatprep.mubr.bf16.mxu0 %v614
    %2673 = vmatmul.mubr.bf16.gmra.mrb[0].mxu0 %v613
    %v2674 = vpop.f32.mrb[0].mxu0
    %v2675 = vadd.f32 %v2482, %v2674
    %v2676 = vpop.f32.mrb[0].mxu0
    %v2677 = vadd.f32 %v2484, %v2676
    %v2678 = vpop.f32.mrb[0].mxu0
    %v2679 = vadd.f32 %v2486, %v2678
    %v2680 = vpop.f32.mrb[0].mxu0
    %v2681 = vadd.f32 %v2488, %v2680
    %2682 = vmatprep.mubr.bf16.mxu0 %v618
    %2683 = vmatmul.mubr.bf16.gmra.mrb[0].mxu0 %v617
    %v2684 = vpop.f32.mrb[0].mxu0
    %v2685 = vadd.f32 %v2492, %v2684
    %v2686 = vpop.f32.mrb[0].mxu0
    %v2687 = vadd.f32 %v2494, %v2686
    %v2688 = vpop.f32.mrb[0].mxu0
    %v2689 = vadd.f32 %v2496, %v2688
    %v2690 = vpop.f32.mrb[0].mxu0
    %v2691 = vadd.f32 %v2498, %v2690
    %2692 = vmatprep.mubr.bf16.mxu0 %v622
    %2693 = vmatmul.mubr.bf16.gmra.mrb[0].mxu0 %v621
    %v2694 = vpop.f32.mrb[0].mxu0
    %v2695 = vadd.f32 %v2502, %v2694
    %v2696 = vpop.f32.mrb[0].mxu0
    %v2697 = vadd.f32 %v2504, %v2696
    %v2698 = vpop.f32.mrb[0].mxu0
    %v2699 = vadd.f32 %v2506, %v2698
    %v2700 = vpop.f32.mrb[0].mxu0
    %v2701 = vadd.f32 %v2508, %v2700
    %2702 = vmatprep.mubr.bf16.mxu0 %v626
    %2703 = vmatmul.mubr.bf16.gmra.mrb[0].mxu0 %v625
    %v2704 = vpop.f32.mrb[0].mxu0
    %v2705 = vadd.f32 %v2512, %v2704
    %v2706 = vpop.f32.mrb[0].mxu0
    %v2707 = vadd.f32 %v2514, %v2706
    %v2708 = vpop.f32.mrb[0].mxu0
    %v2709 = vadd.f32 %v2516, %v2708
    %v2710 = vpop.f32.mrb[0].mxu0
    %v2711 = vadd.f32 %v2518, %v2710
    %2712 = vmatprep.mubr.bf16.mxu0 %v630
    %2713 = vmatmul.mubr.bf16.gmra.mrb[0].mxu0 %v629
    %v2714 = vpop.f32.mrb[0].mxu0
    %v2715 = vadd.f32 %v2522, %v2714
    %v2716 = vpop.f32.mrb[0].mxu0
    %v2717 = vadd.f32 %v2524, %v2716
    %v2718 = vpop.f32.mrb[0].mxu0
    %v2719 = vadd.f32 %v2526, %v2718
    %v2720 = vpop.f32.mrb[0].mxu0
    %v2721 = vadd.f32 %v2528, %v2720
    %2722 = vmatprep.mubr.bf16.mxu0 %v634
    %2723 = vmatmul.mubr.bf16.gmra.mrb[0].mxu0 %v633
    %v2724 = vpop.f32.mrb[0].mxu0
    %v2725 = vadd.f32 %v2532, %v2724
    %v2726 = vpop.f32.mrb[0].mxu0
    %v2727 = vadd.f32 %v2534, %v2726
    %v2728 = vpop.f32.mrb[0].mxu0
    %v2729 = vadd.f32 %v2536, %v2728
    %v2730 = vpop.f32.mrb[0].mxu0
    %v2731 = vadd.f32 %v2538, %v2730
    %2732 = vmatprep.mubr.bf16.mxu0 %v638
    %2733 = vmatmul.mubr.bf16.gmra.mrb[0].mxu0 %v637
    %v2734 = vpop.f32.mrb[0].mxu0
    %v2735 = vadd.f32 %v2542, %v2734
    %v2736 = vpop.f32.mrb[0].mxu0
    %v2737 = vadd.f32 %v2544, %v2736
    %v2738 = vpop.f32.mrb[0].mxu0
    %v2739 = vadd.f32 %v2546, %v2738
    %v2740 = vpop.f32.mrb[0].mxu0
    %v2741 = vadd.f32 %v2548, %v2740
    %2742 = vmatprep.mubr.bf16.mxu0 %v642
    %2743 = vmatmul.mubr.bf16.gmra.mrb[0].mxu0 %v641
    %v2744 = vpop.f32.mrb[0].mxu0
    %v2745 = vadd.f32 %v2552, %v2744
    %v2746 = vpop.f32.mrb[0].mxu0
    %v2747 = vadd.f32 %v2554, %v2746
    %v2748 = vpop.f32.mrb[0].mxu0
    %v2749 = vadd.f32 %v2556, %v2748
    %v2750 = vpop.f32.mrb[0].mxu0
    %v2751 = vadd.f32 %v2558, %v2750
    %2752 = vmatprep.mubr.bf16.mxu0 %v646
    %2753 = vmatmul.mubr.bf16.gmra.mrb[0].mxu0 %v645
    %v2754 = vpop.f32.mrb[0].mxu0
    %v2755 = vadd.f32 %v2562, %v2754
    %v2756 = vpop.f32.mrb[0].mxu0
    %v2757 = vadd.f32 %v2564, %v2756
    %v2758 = vpop.f32.mrb[0].mxu0
    %v2759 = vadd.f32 %v2566, %v2758
    %v2760 = vpop.f32.mrb[0].mxu0
    %v2761 = vadd.f32 %v2568, %v2760
    %2762 = vdwg.mxu0
    %2763 = vmatprep.subr.bf16.mxu0 %v1484
    %2764 = vmatpush1.bf16.msra.mxu0 %v1483
    %2765 = vmatprep.subr.bf16.mxu0 %v1492
    %2766 = vmatpush1.bf16.msra.mxu0 %v1491
    %2767 = vmatprep.subr.bf16.mxu0 %v1500
    %2768 = vmatpush1.bf16.msra.mxu0 %v1499
    %2769 = vmatprep.subr.bf16.mxu0 %v1508
    %2770 = vmatpush1.bf16.msra.mxu0 %v1507
    %2771 = vmatprep.subr.bf16.mxu0 %v1516
    %2772 = vmatpush1.bf16.msra.mxu0 %v1515
    %2773 = vmatprep.subr.bf16.mxu0 %v1524
    %2774 = vmatpush1.bf16.msra.mxu0 %v1523
    %2775 = vmatprep.subr.bf16.mxu0 %v1532
    %2776 = vmatpush1.bf16.msra.mxu0 %v1531
    %2777 = vmatprep.subr.bf16.mxu0 %v1540
    %2778 = vmatpush1.bf16.msra.mxu0 %v1539
    %2779 = vmatprep.subr.bf16.mxu0 %v1548
    %2780 = vmatpush1.bf16.msra.mxu0 %v1547
    %2781 = vmatprep.subr.bf16.mxu0 %v1556
    %2782 = vmatpush1.bf16.msra.mxu0 %v1555
    %2783 = vmatprep.subr.bf16.mxu0 %v1564
    %2784 = vmatpush1.bf16.msra.mxu0 %v1563
    %2785 = vmatprep.subr.bf16.mxu0 %v1572
    %2786 = vmatpush1.bf16.msra.mxu0 %v1571
    %2787 = vmatprep.subr.bf16.mxu0 %v1580
    %2788 = vmatpush1.bf16.msra.mxu0 %v1579
    %2789 = vmatprep.subr.bf16.mxu0 %v1588
    %2790 = vmatpush1.bf16.msra.mxu0 %v1587
    %2791 = vmatprep.subr.bf16.mxu0 %v1596
    %2792 = vmatpush1.bf16.msra.mxu0 %v1595
    %2793 = vmatprep.subr.bf16.mxu0 %v1604
    %2794 = vmatpush1.bf16.msra.mxu0 %v1603
    %2795 = vmatprep.mubr.bf16.mxu0 %v584
    %2796 = vmatmul.mubr.bf16.gmra.mrb[0].mxu0 %v583
    %v2797 = vpop.f32.mrb[0].mxu0
    %v2798 = vadd.f32 0.0, %v2797
    %v2799 = vpop.f32.mrb[0].mxu0
    %v2800 = vadd.f32 0.0, %v2799
    %v2801 = vpop.f32.mrb[0].mxu0
    %v2802 = vadd.f32 0.0, %v2801
    %v2803 = vpop.f32.mrb[0].mxu0
    %v2804 = vadd.f32 0.0, %v2803
    %2805 = vmatprep.mubr.bf16.mxu0 %v588
    %2806 = vmatmul.mubr.bf16.gmra.mrb[0].mxu0 %v587
    %v2807 = vpop.f32.mrb[0].mxu0
    %v2808 = vadd.f32 0.0, %v2807
    %v2809 = vpop.f32.mrb[0].mxu0
    %v2810 = vadd.f32 0.0, %v2809
    %v2811 = vpop.f32.mrb[0].mxu0
    %v2812 = vadd.f32 0.0, %v2811
    %v2813 = vpop.f32.mrb[0].mxu0
    %v2814 = vadd.f32 0.0, %v2813
    %2815 = vmatprep.mubr.bf16.mxu0 %v592
    %2816 = vmatmul.mubr.bf16.gmra.mrb[0].mxu0 %v591
    %v2817 = vpop.f32.mrb[0].mxu0
    %v2818 = vadd.f32 0.0, %v2817
    %v2819 = vpop.f32.mrb[0].mxu0
    %v2820 = vadd.f32 0.0, %v2819
    %v2821 = vpop.f32.mrb[0].mxu0
    %v2822 = vadd.f32 0.0, %v2821
    %v2823 = vpop.f32.mrb[0].mxu0
    %v2824 = vadd.f32 0.0, %v2823
    %2825 = vmatprep.mubr.bf16.mxu0 %v596
    %2826 = vmatmul.mubr.bf16.gmra.mrb[0].mxu0 %v595
    %v2827 = vpop.f32.mrb[0].mxu0
    %v2828 = vadd.f32 0.0, %v2827
    %v2829 = vpop.f32.mrb[0].mxu0
    %v2830 = vadd.f32 0.0, %v2829
    %v2831 = vpop.f32.mrb[0].mxu0
    %v2832 = vadd.f32 0.0, %v2831
    %v2833 = vpop.f32.mrb[0].mxu0
    %v2834 = vadd.f32 0.0, %v2833
    %2835 = vmatprep.mubr.bf16.mxu0 %v600
    %2836 = vmatmul.mubr.bf16.gmra.mrb[0].mxu0 %v599
    %v2837 = vpop.f32.mrb[0].mxu0
    %v2838 = vadd.f32 0.0, %v2837
    %v2839 = vpop.f32.mrb[0].mxu0
    %v2840 = vadd.f32 0.0, %v2839
    %v2841 = vpop.f32.mrb[0].mxu0
    %v2842 = vadd.f32 0.0, %v2841
    %v2843 = vpop.f32.mrb[0].mxu0
    %v2844 = vadd.f32 0.0, %v2843
    %2845 = vmatprep.mubr.bf16.mxu0 %v604
    %2846 = vmatmul.mubr.bf16.gmra.mrb[0].mxu0 %v603
    %v2847 = vpop.f32.mrb[0].mxu0
    %v2848 = vadd.f32 0.0, %v2847
    %v2849 = vpop.f32.mrb[0].mxu0
    %v2850 = vadd.f32 0.0, %v2849
    %v2851 = vpop.f32.mrb[0].mxu0
    %v2852 = vadd.f32 0.0, %v2851
    %v2853 = vpop.f32.mrb[0].mxu0
    %v2854 = vadd.f32 0.0, %v2853
    %2855 = vmatprep.mubr.bf16.mxu0 %v608
    %2856 = vmatmul.mubr.bf16.gmra.mrb[0].mxu0 %v607
    %v2857 = vpop.f32.mrb[0].mxu0
    %v2858 = vadd.f32 0.0, %v2857
    %v2859 = vpop.f32.mrb[0].mxu0
    %v2860 = vadd.f32 0.0, %v2859
    %v2861 = vpop.f32.mrb[0].mxu0
    %v2862 = vadd.f32 0.0, %v2861
    %v2863 = vpop.f32.mrb[0].mxu0
    %v2864 = vadd.f32 0.0, %v2863
    %2865 = vmatprep.mubr.bf16.mxu0 %v612
    %2866 = vmatmul.mubr.bf16.gmra.mrb[0].mxu0 %v611
    %v2867 = vpop.f32.mrb[0].mxu0
    %v2868 = vadd.f32 0.0, %v2867
    %v2869 = vpop.f32.mrb[0].mxu0
    %v2870 = vadd.f32 0.0, %v2869
    %v2871 = vpop.f32.mrb[0].mxu0
    %v2872 = vadd.f32 0.0, %v2871
    %v2873 = vpop.f32.mrb[0].mxu0
    %v2874 = vadd.f32 0.0, %v2873
    %2875 = vmatprep.mubr.bf16.mxu0 %v616
    %2876 = vmatmul.mubr.bf16.gmra.mrb[0].mxu0 %v615
    %v2877 = vpop.f32.mrb[0].mxu0
    %v2878 = vadd.f32 0.0, %v2877
    %v2879 = vpop.f32.mrb[0].mxu0
    %v2880 = vadd.f32 0.0, %v2879
    %v2881 = vpop.f32.mrb[0].mxu0
    %v2882 = vadd.f32 0.0, %v2881
    %v2883 = vpop.f32.mrb[0].mxu0
    %v2884 = vadd.f32 0.0, %v2883
    %2885 = vmatprep.mubr.bf16.mxu0 %v620
    %2886 = vmatmul.mubr.bf16.gmra.mrb[0].mxu0 %v619
    %v2887 = vpop.f32.mrb[0].mxu0
    %v2888 = vadd.f32 0.0, %v2887
    %v2889 = vpop.f32.mrb[0].mxu0
    %v2890 = vadd.f32 0.0, %v2889
    %v2891 = vpop.f32.mrb[0].mxu0
    %v2892 = vadd.f32 0.0, %v2891
    %v2893 = vpop.f32.mrb[0].mxu0
    %v2894 = vadd.f32 0.0, %v2893
    %2895 = vmatprep.mubr.bf16.mxu0 %v624
    %2896 = vmatmul.mubr.bf16.gmra.mrb[0].mxu0 %v623
    %v2897 = vpop.f32.mrb[0].mxu0
    %v2898 = vadd.f32 0.0, %v2897
    %v2899 = vpop.f32.mrb[0].mxu0
    %v2900 = vadd.f32 0.0, %v2899
    %v2901 = vpop.f32.mrb[0].mxu0
    %v2902 = vadd.f32 0.0, %v2901
    %v2903 = vpop.f32.mrb[0].mxu0
    %v2904 = vadd.f32 0.0, %v2903
    %2905 = vmatprep.mubr.bf16.mxu0 %v628
    %2906 = vmatmul.mubr.bf16.gmra.mrb[0].mxu0 %v627
    %v2907 = vpop.f32.mrb[0].mxu0
    %v2908 = vadd.f32 0.0, %v2907
    %v2909 = vpop.f32.mrb[0].mxu0
    %v2910 = vadd.f32 0.0, %v2909
    %v2911 = vpop.f32.mrb[0].mxu0
    %v2912 = vadd.f32 0.0, %v2911
    %v2913 = vpop.f32.mrb[0].mxu0
    %v2914 = vadd.f32 0.0, %v2913
    %2915 = vmatprep.mubr.bf16.mxu0 %v632
    %2916 = vmatmul.mubr.bf16.gmra.mrb[0].mxu0 %v631
    %v2917 = vpop.f32.mrb[0].mxu0
    %v2918 = vadd.f32 0.0, %v2917
    %v2919 = vpop.f32.mrb[0].mxu0
    %v2920 = vadd.f32 0.0, %v2919
    %v2921 = vpop.f32.mrb[0].mxu0
    %v2922 = vadd.f32 0.0, %v2921
    %v2923 = vpop.f32.mrb[0].mxu0
    %v2924 = vadd.f32 0.0, %v2923
    %2925 = vmatprep.mubr.bf16.mxu0 %v636
    %2926 = vmatmul.mubr.bf16.gmra.mrb[0].mxu0 %v635
    %v2927 = vpop.f32.mrb[0].mxu0
    %v2928 = vadd.f32 0.0, %v2927
    %v2929 = vpop.f32.mrb[0].mxu0
    %v2930 = vadd.f32 0.0, %v2929
    %v2931 = vpop.f32.mrb[0].mxu0
    %v2932 = vadd.f32 0.0, %v2931
    %v2933 = vpop.f32.mrb[0].mxu0
    %v2934 = vadd.f32 0.0, %v2933
    %2935 = vmatprep.mubr.bf16.mxu0 %v640
    %2936 = vmatmul.mubr.bf16.gmra.mrb[0].mxu0 %v639
    %v2937 = vpop.f32.mrb[0].mxu0
    %v2938 = vadd.f32 0.0, %v2937
    %v2939 = vpop.f32.mrb[0].mxu0
    %v2940 = vadd.f32 0.0, %v2939
    %v2941 = vpop.f32.mrb[0].mxu0
    %v2942 = vadd.f32 0.0, %v2941
    %v2943 = vpop.f32.mrb[0].mxu0
    %v2944 = vadd.f32 0.0, %v2943
    %2945 = vmatprep.mubr.bf16.mxu0 %v644
    %2946 = vmatmul.mubr.bf16.gmra.mrb[0].mxu0 %v643
    %v2947 = vpop.f32.mrb[0].mxu0
    %v2948 = vadd.f32 0.0, %v2947
    %v2949 = vpop.f32.mrb[0].mxu0
    %v2950 = vadd.f32 0.0, %v2949
    %v2951 = vpop.f32.mrb[0].mxu0
    %v2952 = vadd.f32 0.0, %v2951
    %v2953 = vpop.f32.mrb[0].mxu0
    %v2954 = vadd.f32 0.0, %v2953
    %2955 = vdwg.mxu0
    %2956 = vmatprep.subr.bf16.mxu0 %v1612
    %2957 = vmatpush1.bf16.msra.mxu0 %v1611
    %2958 = vmatprep.subr.bf16.mxu0 %v1620
    %2959 = vmatpush1.bf16.msra.mxu0 %v1619
    %2960 = vmatprep.subr.bf16.mxu0 %v1628
    %2961 = vmatpush1.bf16.msra.mxu0 %v1627
    %2962 = vmatprep.subr.bf16.mxu0 %v1636
    %2963 = vmatpush1.bf16.msra.mxu0 %v1635
    %2964 = vmatprep.subr.bf16.mxu0 %v1644
    %2965 = vmatpush1.bf16.msra.mxu0 %v1643
    %2966 = vmatprep.subr.bf16.mxu0 %v1652
    %2967 = vmatpush1.bf16.msra.mxu0 %v1651
    %2968 = vmatprep.subr.bf16.mxu0 %v1660
    %2969 = vmatpush1.bf16.msra.mxu0 %v1659
    %2970 = vmatprep.subr.bf16.mxu0 %v1668
    %2971 = vmatpush1.bf16.msra.mxu0 %v1667
    %2972 = vmatprep.subr.bf16.mxu0 %v1676
    %2973 = vmatpush1.bf16.msra.mxu0 %v1675
    %2974 = vmatprep.subr.bf16.mxu0 %v1684
    %2975 = vmatpush1.bf16.msra.mxu0 %v1683
    %2976 = vmatprep.subr.bf16.mxu0 %v1692
    %2977 = vmatpush1.bf16.msra.mxu0 %v1691
    %2978 = vmatprep.subr.bf16.mxu0 %v1700
    %2979 = vmatpush1.bf16.msra.mxu0 %v1699
    %2980 = vmatprep.subr.bf16.mxu0 %v1708
    %2981 = vmatpush1.bf16.msra.mxu0 %v1707
    %2982 = vmatprep.subr.bf16.mxu0 %v1716
    %2983 = vmatpush1.bf16.msra.mxu0 %v1715
    %2984 = vmatprep.subr.bf16.mxu0 %v1724
    %2985 = vmatpush1.bf16.msra.mxu0 %v1723
    %2986 = vmatprep.subr.bf16.mxu0 %v1732
    %2987 = vmatpush1.bf16.msra.mxu0 %v1731
    %2988 = vmatprep.mubr.bf16.mxu0 %v586
    %2989 = vmatmul.mubr.bf16.gmra.mrb[0].mxu0 %v585
    %v2990 = vpop.f32.mrb[0].mxu0
    %v2991 = vadd.f32 %v2798, %v2990
    %v2992 = vpop.f32.mrb[0].mxu0
    %v2993 = vadd.f32 %v2800, %v2992
    %v2994 = vpop.f32.mrb[0].mxu0
    %v2995 = vadd.f32 %v2802, %v2994
    %v2996 = vpop.f32.mrb[0].mxu0
    %v2997 = vadd.f32 %v2804, %v2996
    %2998 = vmatprep.mubr.bf16.mxu0 %v590
    %2999 = vmatmul.mubr.bf16.gmra.mrb[0].mxu0 %v589
    %v3000 = vpop.f32.mrb[0].mxu0
    %v3001 = vadd.f32 %v2808, %v3000
    %v3002 = vpop.f32.mrb[0].mxu0
    %v3003 = vadd.f32 %v2810, %v3002
    %v3004 = vpop.f32.mrb[0].mxu0
    %v3005 = vadd.f32 %v2812, %v3004
    %v3006 = vpop.f32.mrb[0].mxu0
    %v3007 = vadd.f32 %v2814, %v3006
    %3008 = vmatprep.mubr.bf16.mxu0 %v594
    %3009 = vmatmul.mubr.bf16.gmra.mrb[0].mxu0 %v593
    %v3010 = vpop.f32.mrb[0].mxu0
    %v3011 = vadd.f32 %v2818, %v3010
    %v3012 = vpop.f32.mrb[0].mxu0
    %v3013 = vadd.f32 %v2820, %v3012
    %v3014 = vpop.f32.mrb[0].mxu0
    %v3015 = vadd.f32 %v2822, %v3014
    %v3016 = vpop.f32.mrb[0].mxu0
    %v3017 = vadd.f32 %v2824, %v3016
    %3018 = vmatprep.mubr.bf16.mxu0 %v598
    %3019 = vmatmul.mubr.bf16.gmra.mrb[0].mxu0 %v597
    %v3020 = vpop.f32.mrb[0].mxu0
    %v3021 = vadd.f32 %v2828, %v3020
    %v3022 = vpop.f32.mrb[0].mxu0
    %v3023 = vadd.f32 %v2830, %v3022
    %v3024 = vpop.f32.mrb[0].mxu0
    %v3025 = vadd.f32 %v2832, %v3024
    %v3026 = vpop.f32.mrb[0].mxu0
    %v3027 = vadd.f32 %v2834, %v3026
    %3028 = vmatprep.mubr.bf16.mxu0 %v602
    %3029 = vmatmul.mubr.bf16.gmra.mrb[0].mxu0 %v601
    %v3030 = vpop.f32.mrb[0].mxu0
    %v3031 = vadd.f32 %v2838, %v3030
    %v3032 = vpop.f32.mrb[0].mxu0
    %v3033 = vadd.f32 %v2840, %v3032
    %v3034 = vpop.f32.mrb[0].mxu0
    %v3035 = vadd.f32 %v2842, %v3034
    %v3036 = vpop.f32.mrb[0].mxu0
    %v3037 = vadd.f32 %v2844, %v3036
    %3038 = vmatprep.mubr.bf16.mxu0 %v606
    %3039 = vmatmul.mubr.bf16.gmra.mrb[0].mxu0 %v605
    %v3040 = vpop.f32.mrb[0].mxu0
    %v3041 = vadd.f32 %v2848, %v3040
    %v3042 = vpop.f32.mrb[0].mxu0
    %v3043 = vadd.f32 %v2850, %v3042
    %v3044 = vpop.f32.mrb[0].mxu0
    %v3045 = vadd.f32 %v2852, %v3044
    %v3046 = vpop.f32.mrb[0].mxu0
    %v3047 = vadd.f32 %v2854, %v3046
    %3048 = vmatprep.mubr.bf16.mxu0 %v610
    %3049 = vmatmul.mubr.bf16.gmra.mrb[0].mxu0 %v609
    %v3050 = vpop.f32.mrb[0].mxu0
    %v3051 = vadd.f32 %v2858, %v3050
    %v3052 = vpop.f32.mrb[0].mxu0
    %v3053 = vadd.f32 %v2860, %v3052
    %v3054 = vpop.f32.mrb[0].mxu0
    %v3055 = vadd.f32 %v2862, %v3054
    %v3056 = vpop.f32.mrb[0].mxu0
    %v3057 = vadd.f32 %v2864, %v3056
    %3058 = vmatprep.mubr.bf16.mxu0 %v614
    %3059 = vmatmul.mubr.bf16.gmra.mrb[0].mxu0 %v613
    %v3060 = vpop.f32.mrb[0].mxu0
    %v3061 = vadd.f32 %v2868, %v3060
    %v3062 = vpop.f32.mrb[0].mxu0
    %v3063 = vadd.f32 %v2870, %v3062
    %v3064 = vpop.f32.mrb[0].mxu0
    %v3065 = vadd.f32 %v2872, %v3064
    %v3066 = vpop.f32.mrb[0].mxu0
    %v3067 = vadd.f32 %v2874, %v3066
    %3068 = vmatprep.mubr.bf16.mxu0 %v618
    %3069 = vmatmul.mubr.bf16.gmra.mrb[0].mxu0 %v617
    %v3070 = vpop.f32.mrb[0].mxu0
    %v3071 = vadd.f32 %v2878, %v3070
    %v3072 = vpop.f32.mrb[0].mxu0
    %v3073 = vadd.f32 %v2880, %v3072
    %v3074 = vpop.f32.mrb[0].mxu0
    %v3075 = vadd.f32 %v2882, %v3074
    %v3076 = vpop.f32.mrb[0].mxu0
    %v3077 = vadd.f32 %v2884, %v3076
    %3078 = vmatprep.mubr.bf16.mxu0 %v622
    %3079 = vmatmul.mubr.bf16.gmra.mrb[0].mxu0 %v621
    %v3080 = vpop.f32.mrb[0].mxu0
    %v3081 = vadd.f32 %v2888, %v3080
    %v3082 = vpop.f32.mrb[0].mxu0
    %v3083 = vadd.f32 %v2890, %v3082
    %v3084 = vpop.f32.mrb[0].mxu0
    %v3085 = vadd.f32 %v2892, %v3084
    %v3086 = vpop.f32.mrb[0].mxu0
    %v3087 = vadd.f32 %v2894, %v3086
    %3088 = vmatprep.mubr.bf16.mxu0 %v626
    %3089 = vmatmul.mubr.bf16.gmra.mrb[0].mxu0 %v625
    %v3090 = vpop.f32.mrb[0].mxu0
    %v3091 = vadd.f32 %v2898, %v3090
    %v3092 = vpop.f32.mrb[0].mxu0
    %v3093 = vadd.f32 %v2900, %v3092
    %v3094 = vpop.f32.mrb[0].mxu0
    %v3095 = vadd.f32 %v2902, %v3094
    %v3096 = vpop.f32.mrb[0].mxu0
    %v3097 = vadd.f32 %v2904, %v3096
    %3098 = vmatprep.mubr.bf16.mxu0 %v630
    %3099 = vmatmul.mubr.bf16.gmra.mrb[0].mxu0 %v629
    %v3100 = vpop.f32.mrb[0].mxu0
    %v3101 = vadd.f32 %v2908, %v3100
    %v3102 = vpop.f32.mrb[0].mxu0
    %v3103 = vadd.f32 %v2910, %v3102
    %v3104 = vpop.f32.mrb[0].mxu0
    %v3105 = vadd.f32 %v2912, %v3104
    %v3106 = vpop.f32.mrb[0].mxu0
    %v3107 = vadd.f32 %v2914, %v3106
    %3108 = vmatprep.mubr.bf16.mxu0 %v634
    %3109 = vmatmul.mubr.bf16.gmra.mrb[0].mxu0 %v633
    %v3110 = vpop.f32.mrb[0].mxu0
    %v3111 = vadd.f32 %v2918, %v3110
    %v3112 = vpop.f32.mrb[0].mxu0
    %v3113 = vadd.f32 %v2920, %v3112
    %v3114 = vpop.f32.mrb[0].mxu0
    %v3115 = vadd.f32 %v2922, %v3114
    %v3116 = vpop.f32.mrb[0].mxu0
    %v3117 = vadd.f32 %v2924, %v3116
    %3118 = vmatprep.mubr.bf16.mxu0 %v638
    %3119 = vmatmul.mubr.bf16.gmra.mrb[0].mxu0 %v637
    %v3120 = vpop.f32.mrb[0].mxu0
    %v3121 = vadd.f32 %v2928, %v3120
    %v3122 = vpop.f32.mrb[0].mxu0
    %v3123 = vadd.f32 %v2930, %v3122
    %v3124 = vpop.f32.mrb[0].mxu0
    %v3125 = vadd.f32 %v2932, %v3124
    %v3126 = vpop.f32.mrb[0].mxu0
    %v3127 = vadd.f32 %v2934, %v3126
    %3128 = vmatprep.mubr.bf16.mxu0 %v642
    %3129 = vmatmul.mubr.bf16.gmra.mrb[0].mxu0 %v641
    %v3130 = vpop.f32.mrb[0].mxu0
    %v3131 = vadd.f32 %v2938, %v3130
    %v3132 = vpop.f32.mrb[0].mxu0
    %v3133 = vadd.f32 %v2940, %v3132
    %v3134 = vpop.f32.mrb[0].mxu0
    %v3135 = vadd.f32 %v2942, %v3134
    %v3136 = vpop.f32.mrb[0].mxu0
    %v3137 = vadd.f32 %v2944, %v3136
    %3138 = vmatprep.mubr.bf16.mxu0 %v646
    %3139 = vmatmul.mubr.bf16.gmra.mrb[0].mxu0 %v645
    %v3140 = vpop.f32.mrb[0].mxu0
    %v3141 = vadd.f32 %v2948, %v3140
    %v3142 = vpop.f32.mrb[0].mxu0
    %v3143 = vadd.f32 %v2950, %v3142
    %v3144 = vpop.f32.mrb[0].mxu0
    %v3145 = vadd.f32 %v2952, %v3144
    %v3146 = vpop.f32.mrb[0].mxu0
    %v3147 = vadd.f32 %v2954, %v3146
    %3148 = vdwg.mxu0
    %3149 = vmatprep.subr.bf16.mxu0 %v1486
    %3150 = vmatpush1.bf16.msra.mxu0 %v1485
    %3151 = vmatprep.subr.bf16.mxu0 %v1494
    %3152 = vmatpush1.bf16.msra.mxu0 %v1493
    %3153 = vmatprep.subr.bf16.mxu0 %v1502
    %3154 = vmatpush1.bf16.msra.mxu0 %v1501
    %3155 = vmatprep.subr.bf16.mxu0 %v1510
    %3156 = vmatpush1.bf16.msra.mxu0 %v1509
    %3157 = vmatprep.subr.bf16.mxu0 %v1518
    %3158 = vmatpush1.bf16.msra.mxu0 %v1517
    %3159 = vmatprep.subr.bf16.mxu0 %v1526
    %3160 = vmatpush1.bf16.msra.mxu0 %v1525
    %3161 = vmatprep.subr.bf16.mxu0 %v1534
    %3162 = vmatpush1.bf16.msra.mxu0 %v1533
    %3163 = vmatprep.subr.bf16.mxu0 %v1542
    %3164 = vmatpush1.bf16.msra.mxu0 %v1541
    %3165 = vmatprep.subr.bf16.mxu0 %v1550
    %3166 = vmatpush1.bf16.msra.mxu0 %v1549
    %3167 = vmatprep.subr.bf16.mxu0 %v1558
    %3168 = vmatpush1.bf16.msra.mxu0 %v1557
    %3169 = vmatprep.subr.bf16.mxu0 %v1566
    %3170 = vmatpush1.bf16.msra.mxu0 %v1565
    %3171 = vmatprep.subr.bf16.mxu0 %v1574
    %3172 = vmatpush1.bf16.msra.mxu0 %v1573
    %3173 = vmatprep.subr.bf16.mxu0 %v1582
    %3174 = vmatpush1.bf16.msra.mxu0 %v1581
    %3175 = vmatprep.subr.bf16.mxu0 %v1590
    %3176 = vmatpush1.bf16.msra.mxu0 %v1589
    %3177 = vmatprep.subr.bf16.mxu0 %v1598
    %3178 = vmatpush1.bf16.msra.mxu0 %v1597
    %3179 = vmatprep.subr.bf16.mxu0 %v1606
    %3180 = vmatpush1.bf16.msra.mxu0 %v1605
    %3181 = vmatprep.mubr.bf16.mxu0 %v584
    %3182 = vmatmul.mubr.bf16.gmra.mrb[0].mxu0 %v583
    %v3183 = vpop.f32.mrb[0].mxu0
    %v3184 = vadd.f32 0.0, %v3183
    %v3185 = vpop.f32.mrb[0].mxu0
    %v3186 = vadd.f32 0.0, %v3185
    %v3187 = vpop.f32.mrb[0].mxu0
    %v3188 = vadd.f32 0.0, %v3187
    %v3189 = vpop.f32.mrb[0].mxu0
    %v3190 = vadd.f32 0.0, %v3189
    %3191 = vmatprep.mubr.bf16.mxu0 %v588
    %3192 = vmatmul.mubr.bf16.gmra.mrb[0].mxu0 %v587
    %v3193 = vpop.f32.mrb[0].mxu0
    %v3194 = vadd.f32 0.0, %v3193
    %v3195 = vpop.f32.mrb[0].mxu0
    %v3196 = vadd.f32 0.0, %v3195
    %v3197 = vpop.f32.mrb[0].mxu0
    %v3198 = vadd.f32 0.0, %v3197
    %v3199 = vpop.f32.mrb[0].mxu0
    %v3200 = vadd.f32 0.0, %v3199
    %3201 = vmatprep.mubr.bf16.mxu0 %v592
    %3202 = vmatmul.mubr.bf16.gmra.mrb[0].mxu0 %v591
    %v3203 = vpop.f32.mrb[0].mxu0
    %v3204 = vadd.f32 0.0, %v3203
    %v3205 = vpop.f32.mrb[0].mxu0
    %v3206 = vadd.f32 0.0, %v3205
    %v3207 = vpop.f32.mrb[0].mxu0
    %v3208 = vadd.f32 0.0, %v3207
    %v3209 = vpop.f32.mrb[0].mxu0
    %v3210 = vadd.f32 0.0, %v3209
    %3211 = vmatprep.mubr.bf16.mxu0 %v596
    %3212 = vmatmul.mubr.bf16.gmra.mrb[0].mxu0 %v595
    %v3213 = vpop.f32.mrb[0].mxu0
    %v3214 = vadd.f32 0.0, %v3213
    %v3215 = vpop.f32.mrb[0].mxu0
    %v3216 = vadd.f32 0.0, %v3215
    %v3217 = vpop.f32.mrb[0].mxu0
    %v3218 = vadd.f32 0.0, %v3217
    %v3219 = vpop.f32.mrb[0].mxu0
    %v3220 = vadd.f32 0.0, %v3219
    %3221 = vmatprep.mubr.bf16.mxu0 %v600
    %3222 = vmatmul.mubr.bf16.gmra.mrb[0].mxu0 %v599
    %v3223 = vpop.f32.mrb[0].mxu0
    %v3224 = vadd.f32 0.0, %v3223
    %v3225 = vpop.f32.mrb[0].mxu0
    %v3226 = vadd.f32 0.0, %v3225
    %v3227 = vpop.f32.mrb[0].mxu0
    %v3228 = vadd.f32 0.0, %v3227
    %v3229 = vpop.f32.mrb[0].mxu0
    %v3230 = vadd.f32 0.0, %v3229
    %3231 = vmatprep.mubr.bf16.mxu0 %v604
    %3232 = vmatmul.mubr.bf16.gmra.mrb[0].mxu0 %v603
    %v3233 = vpop.f32.mrb[0].mxu0
    %v3234 = vadd.f32 0.0, %v3233
    %v3235 = vpop.f32.mrb[0].mxu0
    %v3236 = vadd.f32 0.0, %v3235
    %v3237 = vpop.f32.mrb[0].mxu0
    %v3238 = vadd.f32 0.0, %v3237
    %v3239 = vpop.f32.mrb[0].mxu0
    %v3240 = vadd.f32 0.0, %v3239
    %3241 = vmatprep.mubr.bf16.mxu0 %v608
    %3242 = vmatmul.mubr.bf16.gmra.mrb[0].mxu0 %v607
    %v3243 = vpop.f32.mrb[0].mxu0
    %v3244 = vadd.f32 0.0, %v3243
    %v3245 = vpop.f32.mrb[0].mxu0
    %v3246 = vadd.f32 0.0, %v3245
    %v3247 = vpop.f32.mrb[0].mxu0
    %v3248 = vadd.f32 0.0, %v3247
    %v3249 = vpop.f32.mrb[0].mxu0
    %v3250 = vadd.f32 0.0, %v3249
    %3251 = vmatprep.mubr.bf16.mxu0 %v612
    %3252 = vmatmul.mubr.bf16.gmra.mrb[0].mxu0 %v611
    %v3253 = vpop.f32.mrb[0].mxu0
    %v3254 = vadd.f32 0.0, %v3253
    %v3255 = vpop.f32.mrb[0].mxu0
    %v3256 = vadd.f32 0.0, %v3255
    %v3257 = vpop.f32.mrb[0].mxu0
    %v3258 = vadd.f32 0.0, %v3257
    %v3259 = vpop.f32.mrb[0].mxu0
    %v3260 = vadd.f32 0.0, %v3259
    %3261 = vmatprep.mubr.bf16.mxu0 %v616
    %3262 = vmatmul.mubr.bf16.gmra.mrb[0].mxu0 %v615
    %v3263 = vpop.f32.mrb[0].mxu0
    %v3264 = vadd.f32 0.0, %v3263
    %v3265 = vpop.f32.mrb[0].mxu0
    %v3266 = vadd.f32 0.0, %v3265
    %v3267 = vpop.f32.mrb[0].mxu0
    %v3268 = vadd.f32 0.0, %v3267
    %v3269 = vpop.f32.mrb[0].mxu0
    %v3270 = vadd.f32 0.0, %v3269
    %3271 = vmatprep.mubr.bf16.mxu0 %v620
    %3272 = vmatmul.mubr.bf16.gmra.mrb[0].mxu0 %v619
    %v3273 = vpop.f32.mrb[0].mxu0
    %v3274 = vadd.f32 0.0, %v3273
    %v3275 = vpop.f32.mrb[0].mxu0
    %v3276 = vadd.f32 0.0, %v3275
    %v3277 = vpop.f32.mrb[0].mxu0
    %v3278 = vadd.f32 0.0, %v3277
    %v3279 = vpop.f32.mrb[0].mxu0
    %v3280 = vadd.f32 0.0, %v3279
    %3281 = vmatprep.mubr.bf16.mxu0 %v624
    %3282 = vmatmul.mubr.bf16.gmra.mrb[0].mxu0 %v623
    %v3283 = vpop.f32.mrb[0].mxu0
    %v3284 = vadd.f32 0.0, %v3283
    %v3285 = vpop.f32.mrb[0].mxu0
    %v3286 = vadd.f32 0.0, %v3285
    %v3287 = vpop.f32.mrb[0].mxu0
    %v3288 = vadd.f32 0.0, %v3287
    %v3289 = vpop.f32.mrb[0].mxu0
    %v3290 = vadd.f32 0.0, %v3289
    %3291 = vmatprep.mubr.bf16.mxu0 %v628
    %3292 = vmatmul.mubr.bf16.gmra.mrb[0].mxu0 %v627
    %v3293 = vpop.f32.mrb[0].mxu0
    %v3294 = vadd.f32 0.0, %v3293
    %v3295 = vpop.f32.mrb[0].mxu0
    %v3296 = vadd.f32 0.0, %v3295
    %v3297 = vpop.f32.mrb[0].mxu0
    %v3298 = vadd.f32 0.0, %v3297
    %v3299 = vpop.f32.mrb[0].mxu0
    %v3300 = vadd.f32 0.0, %v3299
    %3301 = vmatprep.mubr.bf16.mxu0 %v632
    %3302 = vmatmul.mubr.bf16.gmra.mrb[0].mxu0 %v631
    %v3303 = vpop.f32.mrb[0].mxu0
    %v3304 = vadd.f32 0.0, %v3303
    %v3305 = vpop.f32.mrb[0].mxu0
    %v3306 = vadd.f32 0.0, %v3305
    %v3307 = vpop.f32.mrb[0].mxu0
    %v3308 = vadd.f32 0.0, %v3307
    %v3309 = vpop.f32.mrb[0].mxu0
    %v3310 = vadd.f32 0.0, %v3309
    %3311 = vmatprep.mubr.bf16.mxu0 %v636
    %3312 = vmatmul.mubr.bf16.gmra.mrb[0].mxu0 %v635
    %v3313 = vpop.f32.mrb[0].mxu0
    %v3314 = vadd.f32 0.0, %v3313
    %v3315 = vpop.f32.mrb[0].mxu0
    %v3316 = vadd.f32 0.0, %v3315
    %v3317 = vpop.f32.mrb[0].mxu0
    %v3318 = vadd.f32 0.0, %v3317
    %v3319 = vpop.f32.mrb[0].mxu0
    %v3320 = vadd.f32 0.0, %v3319
    %3321 = vmatprep.mubr.bf16.mxu0 %v640
    %3322 = vmatmul.mubr.bf16.gmra.mrb[0].mxu0 %v639
    %v3323 = vpop.f32.mrb[0].mxu0
    %v3324 = vadd.f32 0.0, %v3323
    %v3325 = vpop.f32.mrb[0].mxu0
    %v3326 = vadd.f32 0.0, %v3325
    %v3327 = vpop.f32.mrb[0].mxu0
    %v3328 = vadd.f32 0.0, %v3327
    %v3329 = vpop.f32.mrb[0].mxu0
    %v3330 = vadd.f32 0.0, %v3329
    %3331 = vmatprep.mubr.bf16.mxu0 %v644
    %3332 = vmatmul.mubr.bf16.gmra.mrb[0].mxu0 %v643
    %v3333 = vpop.f32.mrb[0].mxu0
    %v3334 = vadd.f32 0.0, %v3333
    %v3335 = vpop.f32.mrb[0].mxu0
    %v3336 = vadd.f32 0.0, %v3335
    %v3337 = vpop.f32.mrb[0].mxu0
    %v3338 = vadd.f32 0.0, %v3337
    %v3339 = vpop.f32.mrb[0].mxu0
    %v3340 = vadd.f32 0.0, %v3339
    %3341 = vdwg.mxu0
    %3342 = vmatprep.subr.bf16.mxu0 %v1614
    %3343 = vmatpush1.bf16.msra.mxu0 %v1613
    %3344 = vmatprep.subr.bf16.mxu0 %v1622
    %3345 = vmatpush1.bf16.msra.mxu0 %v1621
    %3346 = vmatprep.subr.bf16.mxu0 %v1630
    %3347 = vmatpush1.bf16.msra.mxu0 %v1629
    %3348 = vmatprep.subr.bf16.mxu0 %v1638
    %3349 = vmatpush1.bf16.msra.mxu0 %v1637
    %3350 = vmatprep.subr.bf16.mxu0 %v1646
    %3351 = vmatpush1.bf16.msra.mxu0 %v1645
    %3352 = vmatprep.subr.bf16.mxu0 %v1654
    %3353 = vmatpush1.bf16.msra.mxu0 %v1653
    %3354 = vmatprep.subr.bf16.mxu0 %v1662
    %3355 = vmatpush1.bf16.msra.mxu0 %v1661
    %3356 = vmatprep.subr.bf16.mxu0 %v1670
    %3357 = vmatpush1.bf16.msra.mxu0 %v1669
    %3358 = vmatprep.subr.bf16.mxu0 %v1678
    %3359 = vmatpush1.bf16.msra.mxu0 %v1677
    %3360 = vmatprep.subr.bf16.mxu0 %v1686
    %3361 = vmatpush1.bf16.msra.mxu0 %v1685
    %3362 = vmatprep.subr.bf16.mxu0 %v1694
    %3363 = vmatpush1.bf16.msra.mxu0 %v1693
    %3364 = vmatprep.subr.bf16.mxu0 %v1702
    %3365 = vmatpush1.bf16.msra.mxu0 %v1701
    %3366 = vmatprep.subr.bf16.mxu0 %v1710
    %3367 = vmatpush1.bf16.msra.mxu0 %v1709
    %3368 = vmatprep.subr.bf16.mxu0 %v1718
    %3369 = vmatpush1.bf16.msra.mxu0 %v1717
    %3370 = vmatprep.subr.bf16.mxu0 %v1726
    %3371 = vmatpush1.bf16.msra.mxu0 %v1725
    %3372 = vmatprep.subr.bf16.mxu0 %v1734
    %3373 = vmatpush1.bf16.msra.mxu0 %v1733
    %3374 = vmatprep.mubr.bf16.mxu0 %v586
    %3375 = vmatmul.mubr.bf16.gmra.mrb[0].mxu0 %v585
    %v3376 = vpop.f32.mrb[0].mxu0
    %v3377 = vadd.f32 %v3184, %v3376
    %v3378 = vpop.f32.mrb[0].mxu0
    %v3379 = vadd.f32 %v3186, %v3378
    %v3380 = vpop.f32.mrb[0].mxu0
    %v3381 = vadd.f32 %v3188, %v3380
    %v3382 = vpop.f32.mrb[0].mxu0
    %v3383 = vadd.f32 %v3190, %v3382
    %3384 = vmatprep.mubr.bf16.mxu0 %v590
    %3385 = vmatmul.mubr.bf16.gmra.mrb[0].mxu0 %v589
    %v3386 = vpop.f32.mrb[0].mxu0
    %v3387 = vadd.f32 %v3194, %v3386
    %v3388 = vpop.f32.mrb[0].mxu0
    %v3389 = vadd.f32 %v3196, %v3388
    %v3390 = vpop.f32.mrb[0].mxu0
    %v3391 = vadd.f32 %v3198, %v3390
    %v3392 = vpop.f32.mrb[0].mxu0
    %v3393 = vadd.f32 %v3200, %v3392
    %3394 = vmatprep.mubr.bf16.mxu0 %v594
    %3395 = vmatmul.mubr.bf16.gmra.mrb[0].mxu0 %v593
    %v3396 = vpop.f32.mrb[0].mxu0
    %v3397 = vadd.f32 %v3204, %v3396
    %v3398 = vpop.f32.mrb[0].mxu0
    %v3399 = vadd.f32 %v3206, %v3398
    %v3400 = vpop.f32.mrb[0].mxu0
    %v3401 = vadd.f32 %v3208, %v3400
    %v3402 = vpop.f32.mrb[0].mxu0
    %v3403 = vadd.f32 %v3210, %v3402
    %3404 = vmatprep.mubr.bf16.mxu0 %v598
    %3405 = vmatmul.mubr.bf16.gmra.mrb[0].mxu0 %v597
    %v3406 = vpop.f32.mrb[0].mxu0
    %v3407 = vadd.f32 %v3214, %v3406
    %v3408 = vpop.f32.mrb[0].mxu0
    %v3409 = vadd.f32 %v3216, %v3408
    %v3410 = vpop.f32.mrb[0].mxu0
    %v3411 = vadd.f32 %v3218, %v3410
    %v3412 = vpop.f32.mrb[0].mxu0
    %v3413 = vadd.f32 %v3220, %v3412
    %3414 = vmatprep.mubr.bf16.mxu0 %v602
    %3415 = vmatmul.mubr.bf16.gmra.mrb[0].mxu0 %v601
    %v3416 = vpop.f32.mrb[0].mxu0
    %v3417 = vadd.f32 %v3224, %v3416
    %v3418 = vpop.f32.mrb[0].mxu0
    %v3419 = vadd.f32 %v3226, %v3418
    %v3420 = vpop.f32.mrb[0].mxu0
    %v3421 = vadd.f32 %v3228, %v3420
    %v3422 = vpop.f32.mrb[0].mxu0
    %v3423 = vadd.f32 %v3230, %v3422
    %3424 = vmatprep.mubr.bf16.mxu0 %v606
    %3425 = vmatmul.mubr.bf16.gmra.mrb[0].mxu0 %v605
    %v3426 = vpop.f32.mrb[0].mxu0
    %v3427 = vadd.f32 %v3234, %v3426
    %v3428 = vpop.f32.mrb[0].mxu0
    %v3429 = vadd.f32 %v3236, %v3428
    %v3430 = vpop.f32.mrb[0].mxu0
    %v3431 = vadd.f32 %v3238, %v3430
    %v3432 = vpop.f32.mrb[0].mxu0
    %v3433 = vadd.f32 %v3240, %v3432
    %3434 = vmatprep.mubr.bf16.mxu0 %v610
    %3435 = vmatmul.mubr.bf16.gmra.mrb[0].mxu0 %v609
    %v3436 = vpop.f32.mrb[0].mxu0
    %v3437 = vadd.f32 %v3244, %v3436
    %v3438 = vpop.f32.mrb[0].mxu0
    %v3439 = vadd.f32 %v3246, %v3438
    %v3440 = vpop.f32.mrb[0].mxu0
    %v3441 = vadd.f32 %v3248, %v3440
    %v3442 = vpop.f32.mrb[0].mxu0
    %v3443 = vadd.f32 %v3250, %v3442
    %3444 = vmatprep.mubr.bf16.mxu0 %v614
    %3445 = vmatmul.mubr.bf16.gmra.mrb[0].mxu0 %v613
    %v3446 = vpop.f32.mrb[0].mxu0
    %v3447 = vadd.f32 %v3254, %v3446
    %v3448 = vpop.f32.mrb[0].mxu0
    %v3449 = vadd.f32 %v3256, %v3448
    %v3450 = vpop.f32.mrb[0].mxu0
    %v3451 = vadd.f32 %v3258, %v3450
    %v3452 = vpop.f32.mrb[0].mxu0
    %v3453 = vadd.f32 %v3260, %v3452
    %3454 = vmatprep.mubr.bf16.mxu0 %v618
    %3455 = vmatmul.mubr.bf16.gmra.mrb[0].mxu0 %v617
    %v3456 = vpop.f32.mrb[0].mxu0
    %v3457 = vadd.f32 %v3264, %v3456
    %v3458 = vpop.f32.mrb[0].mxu0
    %v3459 = vadd.f32 %v3266, %v3458
    %v3460 = vpop.f32.mrb[0].mxu0
    %v3461 = vadd.f32 %v3268, %v3460
    %v3462 = vpop.f32.mrb[0].mxu0
    %v3463 = vadd.f32 %v3270, %v3462
    %3464 = vmatprep.mubr.bf16.mxu0 %v622
    %3465 = vmatmul.mubr.bf16.gmra.mrb[0].mxu0 %v621
    %v3466 = vpop.f32.mrb[0].mxu0
    %v3467 = vadd.f32 %v3274, %v3466
    %v3468 = vpop.f32.mrb[0].mxu0
    %v3469 = vadd.f32 %v3276, %v3468
    %v3470 = vpop.f32.mrb[0].mxu0
    %v3471 = vadd.f32 %v3278, %v3470
    %v3472 = vpop.f32.mrb[0].mxu0
    %v3473 = vadd.f32 %v3280, %v3472
    %3474 = vmatprep.mubr.bf16.mxu0 %v626
    %3475 = vmatmul.mubr.bf16.gmra.mrb[0].mxu0 %v625
    %v3476 = vpop.f32.mrb[0].mxu0
    %v3477 = vadd.f32 %v3284, %v3476
    %v3478 = vpop.f32.mrb[0].mxu0
    %v3479 = vadd.f32 %v3286, %v3478
    %v3480 = vpop.f32.mrb[0].mxu0
    %v3481 = vadd.f32 %v3288, %v3480
    %v3482 = vpop.f32.mrb[0].mxu0
    %v3483 = vadd.f32 %v3290, %v3482
    %3484 = vmatprep.mubr.bf16.mxu0 %v630
    %3485 = vmatmul.mubr.bf16.gmra.mrb[0].mxu0 %v629
    %v3486 = vpop.f32.mrb[0].mxu0
    %v3487 = vadd.f32 %v3294, %v3486
    %v3488 = vpop.f32.mrb[0].mxu0
    %v3489 = vadd.f32 %v3296, %v3488
    %v3490 = vpop.f32.mrb[0].mxu0
    %v3491 = vadd.f32 %v3298, %v3490
    %v3492 = vpop.f32.mrb[0].mxu0
    %v3493 = vadd.f32 %v3300, %v3492
    %3494 = vmatprep.mubr.bf16.mxu0 %v634
    %3495 = vmatmul.mubr.bf16.gmra.mrb[0].mxu0 %v633
    %v3496 = vpop.f32.mrb[0].mxu0
    %v3497 = vadd.f32 %v3304, %v3496
    %v3498 = vpop.f32.mrb[0].mxu0
    %v3499 = vadd.f32 %v3306, %v3498
    %v3500 = vpop.f32.mrb[0].mxu0
    %v3501 = vadd.f32 %v3308, %v3500
    %v3502 = vpop.f32.mrb[0].mxu0
    %v3503 = vadd.f32 %v3310, %v3502
    %3504 = vmatprep.mubr.bf16.mxu0 %v638
    %3505 = vmatmul.mubr.bf16.gmra.mrb[0].mxu0 %v637
    %v3506 = vpop.f32.mrb[0].mxu0
    %v3507 = vadd.f32 %v3314, %v3506
    %v3508 = vpop.f32.mrb[0].mxu0
    %v3509 = vadd.f32 %v3316, %v3508
    %v3510 = vpop.f32.mrb[0].mxu0
    %v3511 = vadd.f32 %v3318, %v3510
    %v3512 = vpop.f32.mrb[0].mxu0
    %v3513 = vadd.f32 %v3320, %v3512
    %3514 = vmatprep.mubr.bf16.mxu0 %v642
    %3515 = vmatmul.mubr.bf16.gmra.mrb[0].mxu0 %v641
    %v3516 = vpop.f32.mrb[0].mxu0
    %v3517 = vadd.f32 %v3324, %v3516
    %v3518 = vpop.f32.mrb[0].mxu0
    %v3519 = vadd.f32 %v3326, %v3518
    %v3520 = vpop.f32.mrb[0].mxu0
    %v3521 = vadd.f32 %v3328, %v3520
    %v3522 = vpop.f32.mrb[0].mxu0
    %v3523 = vadd.f32 %v3330, %v3522
    %3524 = vmatprep.mubr.bf16.mxu0 %v646
    %3525 = vmatmul.mubr.bf16.gmra.mrb[0].mxu0 %v645
    %v3526 = vpop.f32.mrb[0].mxu0
    %v3527 = vadd.f32 %v3334, %v3526
    %v3528 = vpop.f32.mrb[0].mxu0
    %v3529 = vadd.f32 %v3336, %v3528
    %v3530 = vpop.f32.mrb[0].mxu0
    %v3531 = vadd.f32 %v3338, %v3530
    %v3532 = vpop.f32.mrb[0].mxu0
    %v3533 = vadd.f32 %v3340, %v3532
    %3534 = vdwg.mxu0
    %v3535 = vpack.c.bf16 %v2223, %v2219
    %v3536 = vpack.c.bf16 %v2225, %v2221
    %v3537 = vpack.c.bf16 %v2609, %v2605
    %v3538 = vpack.c.bf16 %v2611, %v2607
    %v3539 = vpack.c.bf16 %v2995, %v2991
    %v3540 = vpack.c.bf16 %v2997, %v2993
    %v3541 = vpack.c.bf16 %v3381, %v3377
    %v3542 = vpack.c.bf16 %v3383, %v3379
    %v3543 = vpack.c.bf16 %v2233, %v2229
    %v3544 = vpack.c.bf16 %v2235, %v2231
    %v3545 = vpack.c.bf16 %v2619, %v2615
    %v3546 = vpack.c.bf16 %v2621, %v2617
    %v3547 = vpack.c.bf16 %v3005, %v3001
    %v3548 = vpack.c.bf16 %v3007, %v3003
    %v3549 = vpack.c.bf16 %v3391, %v3387
    %v3550 = vpack.c.bf16 %v3393, %v3389
    %v3551 = vpack.c.bf16 %v2243, %v2239
    %v3552 = vpack.c.bf16 %v2245, %v2241
    %v3553 = vpack.c.bf16 %v2629, %v2625
    %v3554 = vpack.c.bf16 %v2631, %v2627
    %v3555 = vpack.c.bf16 %v3015, %v3011
    %v3556 = vpack.c.bf16 %v3017, %v3013
    %v3557 = vpack.c.bf16 %v3401, %v3397
    %v3558 = vpack.c.bf16 %v3403, %v3399
    %v3559 = vpack.c.bf16 %v2253, %v2249
    %v3560 = vpack.c.bf16 %v2255, %v2251
    %v3561 = vpack.c.bf16 %v2639, %v2635
    %v3562 = vpack.c.bf16 %v2641, %v2637
    %v3563 = vpack.c.bf16 %v3025, %v3021
    %v3564 = vpack.c.bf16 %v3027, %v3023
    %v3565 = vpack.c.bf16 %v3411, %v3407
    %v3566 = vpack.c.bf16 %v3413, %v3409
    %v3567 = vpack.c.bf16 %v2263, %v2259
    %v3568 = vpack.c.bf16 %v2265, %v2261
    %v3569 = vpack.c.bf16 %v2649, %v2645
    %v3570 = vpack.c.bf16 %v2651, %v2647
    %v3571 = vpack.c.bf16 %v3035, %v3031
    %v3572 = vpack.c.bf16 %v3037, %v3033
    %v3573 = vpack.c.bf16 %v3421, %v3417
    %v3574 = vpack.c.bf16 %v3423, %v3419
    %v3575 = vpack.c.bf16 %v2273, %v2269
    %v3576 = vpack.c.bf16 %v2275, %v2271
    %v3577 = vpack.c.bf16 %v2659, %v2655
    %v3578 = vpack.c.bf16 %v2661, %v2657
    %v3579 = vpack.c.bf16 %v3045, %v3041
    %v3580 = vpack.c.bf16 %v3047, %v3043
    %v3581 = vpack.c.bf16 %v3431, %v3427
    %v3582 = vpack.c.bf16 %v3433, %v3429
    %v3583 = vpack.c.bf16 %v2283, %v2279
    %v3584 = vpack.c.bf16 %v2285, %v2281
    %v3585 = vpack.c.bf16 %v2669, %v2665
    %v3586 = vpack.c.bf16 %v2671, %v2667
    %v3587 = vpack.c.bf16 %v3055, %v3051
    %v3588 = vpack.c.bf16 %v3057, %v3053
    %v3589 = vpack.c.bf16 %v3441, %v3437
    %v3590 = vpack.c.bf16 %v3443, %v3439
    %v3591 = vpack.c.bf16 %v2293, %v2289
    %v3592 = vpack.c.bf16 %v2295, %v2291
    %v3593 = vpack.c.bf16 %v2679, %v2675
    %v3594 = vpack.c.bf16 %v2681, %v2677
    %v3595 = vpack.c.bf16 %v3065, %v3061
    %v3596 = vpack.c.bf16 %v3067, %v3063
    %v3597 = vpack.c.bf16 %v3451, %v3447
    %v3598 = vpack.c.bf16 %v3453, %v3449
    %v3599 = vpack.c.bf16 %v2303, %v2299
    %v3600 = vpack.c.bf16 %v2305, %v2301
    %v3601 = vpack.c.bf16 %v2689, %v2685
    %v3602 = vpack.c.bf16 %v2691, %v2687
    %v3603 = vpack.c.bf16 %v3075, %v3071
    %v3604 = vpack.c.bf16 %v3077, %v3073
    %v3605 = vpack.c.bf16 %v3461, %v3457
    %v3606 = vpack.c.bf16 %v3463, %v3459
    %v3607 = vpack.c.bf16 %v2313, %v2309
    %v3608 = vpack.c.bf16 %v2315, %v2311
    %v3609 = vpack.c.bf16 %v2699, %v2695
    %v3610 = vpack.c.bf16 %v2701, %v2697
    %v3611 = vpack.c.bf16 %v3085, %v3081
    %v3612 = vpack.c.bf16 %v3087, %v3083
    %v3613 = vpack.c.bf16 %v3471, %v3467
    %v3614 = vpack.c.bf16 %v3473, %v3469
    %v3615 = vpack.c.bf16 %v2323, %v2319
    %v3616 = vpack.c.bf16 %v2325, %v2321
    %v3617 = vpack.c.bf16 %v2709, %v2705
    %v3618 = vpack.c.bf16 %v2711, %v2707
    %v3619 = vpack.c.bf16 %v3095, %v3091
    %v3620 = vpack.c.bf16 %v3097, %v3093
    %v3621 = vpack.c.bf16 %v3481, %v3477
    %v3622 = vpack.c.bf16 %v3483, %v3479
    %v3623 = vpack.c.bf16 %v2333, %v2329
    %v3624 = vpack.c.bf16 %v2335, %v2331
    %v3625 = vpack.c.bf16 %v2719, %v2715
    %v3626 = vpack.c.bf16 %v2721, %v2717
    %v3627 = vpack.c.bf16 %v3105, %v3101
    %v3628 = vpack.c.bf16 %v3107, %v3103
    %v3629 = vpack.c.bf16 %v3491, %v3487
    %v3630 = vpack.c.bf16 %v3493, %v3489
    %v3631 = vpack.c.bf16 %v2343, %v2339
    %v3632 = vpack.c.bf16 %v2345, %v2341
    %v3633 = vpack.c.bf16 %v2729, %v2725
    %v3634 = vpack.c.bf16 %v2731, %v2727
    %v3635 = vpack.c.bf16 %v3115, %v3111
    %v3636 = vpack.c.bf16 %v3117, %v3113
    %v3637 = vpack.c.bf16 %v3501, %v3497
    %v3638 = vpack.c.bf16 %v3503, %v3499
    %v3639 = vpack.c.bf16 %v2353, %v2349
    %v3640 = vpack.c.bf16 %v2355, %v2351
    %v3641 = vpack.c.bf16 %v2739, %v2735
    %v3642 = vpack.c.bf16 %v2741, %v2737
    %v3643 = vpack.c.bf16 %v3125, %v3121
    %v3644 = vpack.c.bf16 %v3127, %v3123
    %v3645 = vpack.c.bf16 %v3511, %v3507
    %v3646 = vpack.c.bf16 %v3513, %v3509
    %v3647 = vpack.c.bf16 %v2363, %v2359
    %v3648 = vpack.c.bf16 %v2365, %v2361
    %v3649 = vpack.c.bf16 %v2749, %v2745
    %v3650 = vpack.c.bf16 %v2751, %v2747
    %v3651 = vpack.c.bf16 %v3135, %v3131
    %v3652 = vpack.c.bf16 %v3137, %v3133
    %v3653 = vpack.c.bf16 %v3521, %v3517
    %v3654 = vpack.c.bf16 %v3523, %v3519
    %v3655 = vpack.c.bf16 %v2373, %v2369
    %v3656 = vpack.c.bf16 %v2375, %v2371
    %v3657 = vpack.c.bf16 %v2759, %v2755
    %v3658 = vpack.c.bf16 %v2761, %v2757
    %v3659 = vpack.c.bf16 %v3145, %v3141
    %v3660 = vpack.c.bf16 %v3147, %v3143
    %v3661 = vpack.c.bf16 %v3531, %v3527
    %v3662 = vpack.c.bf16 %v3533, %v3529
    %v3791 = vunpack.c.l.b16 %v3535
    %v3792 = vunpack.c.l.b16 %v3536
    %v3793 = vunpack.c.l.b16 %v3537
    %v3794 = vunpack.c.l.b16 %v3538
    %v3795 = vunpack.c.l.b16 %v3539
    %v3796 = vunpack.c.l.b16 %v3540
    %v3797 = vunpack.c.l.b16 %v3541
    %v3798 = vunpack.c.l.b16 %v3542
    %v3799 = vunpack.c.h.b16 %v3535
    %v3800 = vunpack.c.h.b16 %v3536
    %v3801 = vunpack.c.h.b16 %v3537
    %v3802 = vunpack.c.h.b16 %v3538
    %v3803 = vunpack.c.h.b16 %v3539
    %v3804 = vunpack.c.h.b16 %v3540
    %v3805 = vunpack.c.h.b16 %v3541
    %v3806 = vunpack.c.h.b16 %v3542
    %v3807 = vunpack.c.l.b16 %v3543
    %v3808 = vunpack.c.l.b16 %v3544
    %v3809 = vunpack.c.l.b16 %v3545
    %v3810 = vunpack.c.l.b16 %v3546
    %v3811 = vunpack.c.l.b16 %v3547
    %v3812 = vunpack.c.l.b16 %v3548
    %v3813 = vunpack.c.l.b16 %v3549
    %v3814 = vunpack.c.l.b16 %v3550
    %v3815 = vunpack.c.h.b16 %v3543
    %v3816 = vunpack.c.h.b16 %v3544
    %v3817 = vunpack.c.h.b16 %v3545
    %v3818 = vunpack.c.h.b16 %v3546
    %v3819 = vunpack.c.h.b16 %v3547
    %v3820 = vunpack.c.h.b16 %v3548
    %v3821 = vunpack.c.h.b16 %v3549
    %v3822 = vunpack.c.h.b16 %v3550
    %v3823 = vunpack.c.l.b16 %v3551
    %v3824 = vunpack.c.l.b16 %v3552
    %v3825 = vunpack.c.l.b16 %v3553
    %v3826 = vunpack.c.l.b16 %v3554
    %v3827 = vunpack.c.l.b16 %v3555
    %v3828 = vunpack.c.l.b16 %v3556
    %v3829 = vunpack.c.l.b16 %v3557
    %v3830 = vunpack.c.l.b16 %v3558
    %v3831 = vunpack.c.h.b16 %v3551
    %v3832 = vunpack.c.h.b16 %v3552
    %v3833 = vunpack.c.h.b16 %v3553
    %v3834 = vunpack.c.h.b16 %v3554
    %v3835 = vunpack.c.h.b16 %v3555
    %v3836 = vunpack.c.h.b16 %v3556
    %v3837 = vunpack.c.h.b16 %v3557
    %v3838 = vunpack.c.h.b16 %v3558
    %v3839 = vunpack.c.l.b16 %v3559
    %v3840 = vunpack.c.l.b16 %v3560
    %v3841 = vunpack.c.l.b16 %v3561
    %v3842 = vunpack.c.l.b16 %v3562
    %v3843 = vunpack.c.l.b16 %v3563
    %v3844 = vunpack.c.l.b16 %v3564
    %v3845 = vunpack.c.l.b16 %v3565
    %v3846 = vunpack.c.l.b16 %v3566
    %v3847 = vunpack.c.h.b16 %v3559
    %v3848 = vunpack.c.h.b16 %v3560
    %v3849 = vunpack.c.h.b16 %v3561
    %v3850 = vunpack.c.h.b16 %v3562
    %v3851 = vunpack.c.h.b16 %v3563
    %v3852 = vunpack.c.h.b16 %v3564
    %v3853 = vunpack.c.h.b16 %v3565
    %v3854 = vunpack.c.h.b16 %v3566
    %v3855 = vunpack.c.l.b16 %v3567
    %v3856 = vunpack.c.l.b16 %v3568
    %v3857 = vunpack.c.l.b16 %v3569
    %v3858 = vunpack.c.l.b16 %v3570
    %v3859 = vunpack.c.l.b16 %v3571
    %v3860 = vunpack.c.l.b16 %v3572
    %v3861 = vunpack.c.l.b16 %v3573
    %v3862 = vunpack.c.l.b16 %v3574
    %v3863 = vunpack.c.h.b16 %v3567
    %v3864 = vunpack.c.h.b16 %v3568
    %v3865 = vunpack.c.h.b16 %v3569
    %v3866 = vunpack.c.h.b16 %v3570
    %v3867 = vunpack.c.h.b16 %v3571
    %v3868 = vunpack.c.h.b16 %v3572
    %v3869 = vunpack.c.h.b16 %v3573
    %v3870 = vunpack.c.h.b16 %v3574
    %v3871 = vunpack.c.l.b16 %v3575
    %v3872 = vunpack.c.l.b16 %v3576
    %v3873 = vunpack.c.l.b16 %v3577
    %v3874 = vunpack.c.l.b16 %v3578
    %v3875 = vunpack.c.l.b16 %v3579
    %v3876 = vunpack.c.l.b16 %v3580
    %v3877 = vunpack.c.l.b16 %v3581
    %v3878 = vunpack.c.l.b16 %v3582
    %v3879 = vunpack.c.h.b16 %v3575
    %v3880 = vunpack.c.h.b16 %v3576
    %v3881 = vunpack.c.h.b16 %v3577
    %v3882 = vunpack.c.h.b16 %v3578
    %v3883 = vunpack.c.h.b16 %v3579
    %v3884 = vunpack.c.h.b16 %v3580
    %v3885 = vunpack.c.h.b16 %v3581
    %v3886 = vunpack.c.h.b16 %v3582
    %v3887 = vunpack.c.l.b16 %v3583
    %v3888 = vunpack.c.l.b16 %v3584
    %v3889 = vunpack.c.l.b16 %v3585
    %v3890 = vunpack.c.l.b16 %v3586
    %v3891 = vunpack.c.l.b16 %v3587
    %v3892 = vunpack.c.l.b16 %v3588
    %v3893 = vunpack.c.l.b16 %v3589
    %v3894 = vunpack.c.l.b16 %v3590
    %v3895 = vunpack.c.h.b16 %v3583
    %v3896 = vunpack.c.h.b16 %v3584
    %v3897 = vunpack.c.h.b16 %v3585
    %v3898 = vunpack.c.h.b16 %v3586
    %v3899 = vunpack.c.h.b16 %v3587
    %v3900 = vunpack.c.h.b16 %v3588
    %v3901 = vunpack.c.h.b16 %v3589
    %v3902 = vunpack.c.h.b16 %v3590
    %v3903 = vunpack.c.l.b16 %v3591
    %v3904 = vunpack.c.l.b16 %v3592
    %v3905 = vunpack.c.l.b16 %v3593
    %v3906 = vunpack.c.l.b16 %v3594
    %v3907 = vunpack.c.l.b16 %v3595
    %v3908 = vunpack.c.l.b16 %v3596
    %v3909 = vunpack.c.l.b16 %v3597
    %v3910 = vunpack.c.l.b16 %v3598
    %v3911 = vunpack.c.h.b16 %v3591
    %v3912 = vunpack.c.h.b16 %v3592
    %v3913 = vunpack.c.h.b16 %v3593
    %v3914 = vunpack.c.h.b16 %v3594
    %v3915 = vunpack.c.h.b16 %v3595
    %v3916 = vunpack.c.h.b16 %v3596
    %v3917 = vunpack.c.h.b16 %v3597
    %v3918 = vunpack.c.h.b16 %v3598
    %v3919 = vunpack.c.l.b16 %v3599
    %v3920 = vunpack.c.l.b16 %v3600
    %v3921 = vunpack.c.l.b16 %v3601
    %v3922 = vunpack.c.l.b16 %v3602
    %v3923 = vunpack.c.l.b16 %v3603
    %v3924 = vunpack.c.l.b16 %v3604
    %v3925 = vunpack.c.l.b16 %v3605
    %v3926 = vunpack.c.l.b16 %v3606
    %v3927 = vunpack.c.h.b16 %v3599
    %v3928 = vunpack.c.h.b16 %v3600
    %v3929 = vunpack.c.h.b16 %v3601
    %v3930 = vunpack.c.h.b16 %v3602
    %v3931 = vunpack.c.h.b16 %v3603
    %v3932 = vunpack.c.h.b16 %v3604
    %v3933 = vunpack.c.h.b16 %v3605
    %v3934 = vunpack.c.h.b16 %v3606
    %v3935 = vunpack.c.l.b16 %v3607
    %v3936 = vunpack.c.l.b16 %v3608
    %v3937 = vunpack.c.l.b16 %v3609
    %v3938 = vunpack.c.l.b16 %v3610
    %v3939 = vunpack.c.l.b16 %v3611
    %v3940 = vunpack.c.l.b16 %v3612
    %v3941 = vunpack.c.l.b16 %v3613
    %v3942 = vunpack.c.l.b16 %v3614
    %v3943 = vunpack.c.h.b16 %v3607
    %v3944 = vunpack.c.h.b16 %v3608
    %v3945 = vunpack.c.h.b16 %v3609
    %v3946 = vunpack.c.h.b16 %v3610
    %v3947 = vunpack.c.h.b16 %v3611
    %v3948 = vunpack.c.h.b16 %v3612
    %v3949 = vunpack.c.h.b16 %v3613
    %v3950 = vunpack.c.h.b16 %v3614
    %v3951 = vunpack.c.l.b16 %v3615
    %v3952 = vunpack.c.l.b16 %v3616
    %v3953 = vunpack.c.l.b16 %v3617
    %v3954 = vunpack.c.l.b16 %v3618
    %v3955 = vunpack.c.l.b16 %v3619
    %v3956 = vunpack.c.l.b16 %v3620
    %v3957 = vunpack.c.l.b16 %v3621
    %v3958 = vunpack.c.l.b16 %v3622
    %v3959 = vunpack.c.h.b16 %v3615
    %v3960 = vunpack.c.h.b16 %v3616
    %v3961 = vunpack.c.h.b16 %v3617
    %v3962 = vunpack.c.h.b16 %v3618
    %v3963 = vunpack.c.h.b16 %v3619
    %v3964 = vunpack.c.h.b16 %v3620
    %v3965 = vunpack.c.h.b16 %v3621
    %v3966 = vunpack.c.h.b16 %v3622
    %v3967 = vunpack.c.l.b16 %v3623
    %v3968 = vunpack.c.l.b16 %v3624
    %v3969 = vunpack.c.l.b16 %v3625
    %v3970 = vunpack.c.l.b16 %v3626
    %v3971 = vunpack.c.l.b16 %v3627
    %v3972 = vunpack.c.l.b16 %v3628
    %v3973 = vunpack.c.l.b16 %v3629
    %v3974 = vunpack.c.l.b16 %v3630
    %v3975 = vunpack.c.h.b16 %v3623
    %v3976 = vunpack.c.h.b16 %v3624
    %v3977 = vunpack.c.h.b16 %v3625
    %v3978 = vunpack.c.h.b16 %v3626
    %v3979 = vunpack.c.h.b16 %v3627
    %v3980 = vunpack.c.h.b16 %v3628
    %v3981 = vunpack.c.h.b16 %v3629
    %v3982 = vunpack.c.h.b16 %v3630
    %v3983 = vunpack.c.l.b16 %v3631
    %v3984 = vunpack.c.l.b16 %v3632
    %v3985 = vunpack.c.l.b16 %v3633
    %v3986 = vunpack.c.l.b16 %v3634
    %v3987 = vunpack.c.l.b16 %v3635
    %v3988 = vunpack.c.l.b16 %v3636
    %v3989 = vunpack.c.l.b16 %v3637
    %v3990 = vunpack.c.l.b16 %v3638
    %v3991 = vunpack.c.h.b16 %v3631
    %v3992 = vunpack.c.h.b16 %v3632
    %v3993 = vunpack.c.h.b16 %v3633
    %v3994 = vunpack.c.h.b16 %v3634
    %v3995 = vunpack.c.h.b16 %v3635
    %v3996 = vunpack.c.h.b16 %v3636
    %v3997 = vunpack.c.h.b16 %v3637
    %v3998 = vunpack.c.h.b16 %v3638
    %v3999 = vunpack.c.l.b16 %v3639
    %v4000 = vunpack.c.l.b16 %v3640
    %v4001 = vunpack.c.l.b16 %v3641
    %v4002 = vunpack.c.l.b16 %v3642
    %v4003 = vunpack.c.l.b16 %v3643
    %v4004 = vunpack.c.l.b16 %v3644
    %v4005 = vunpack.c.l.b16 %v3645
    %v4006 = vunpack.c.l.b16 %v3646
    %v4007 = vunpack.c.h.b16 %v3639
    %v4008 = vunpack.c.h.b16 %v3640
    %v4009 = vunpack.c.h.b16 %v3641
    %v4010 = vunpack.c.h.b16 %v3642
    %v4011 = vunpack.c.h.b16 %v3643
    %v4012 = vunpack.c.h.b16 %v3644
    %v4013 = vunpack.c.h.b16 %v3645
    %v4014 = vunpack.c.h.b16 %v3646
    %v4015 = vunpack.c.l.b16 %v3647
    %v4016 = vunpack.c.l.b16 %v3648
    %v4017 = vunpack.c.l.b16 %v3649
    %v4018 = vunpack.c.l.b16 %v3650
    %v4019 = vunpack.c.l.b16 %v3651
    %v4020 = vunpack.c.l.b16 %v3652
    %v4021 = vunpack.c.l.b16 %v3653
    %v4022 = vunpack.c.l.b16 %v3654
    %v4023 = vunpack.c.h.b16 %v3647
    %v4024 = vunpack.c.h.b16 %v3648
    %v4025 = vunpack.c.h.b16 %v3649
    %v4026 = vunpack.c.h.b16 %v3650
    %v4027 = vunpack.c.h.b16 %v3651
    %v4028 = vunpack.c.h.b16 %v3652
    %v4029 = vunpack.c.h.b16 %v3653
    %v4030 = vunpack.c.h.b16 %v3654
    %v4031 = vunpack.c.l.b16 %v3655
    %v4032 = vunpack.c.l.b16 %v3656
    %v4033 = vunpack.c.l.b16 %v3657
    %v4034 = vunpack.c.l.b16 %v3658
    %v4035 = vunpack.c.l.b16 %v3659
    %v4036 = vunpack.c.l.b16 %v3660
    %v4037 = vunpack.c.l.b16 %v3661
    %v4038 = vunpack.c.l.b16 %v3662
    %v4039 = vunpack.c.h.b16 %v3655
    %v4040 = vunpack.c.h.b16 %v3656
    %v4041 = vunpack.c.h.b16 %v3657
    %v4042 = vunpack.c.h.b16 %v3658
    %v4043 = vunpack.c.h.b16 %v3659
    %v4044 = vunpack.c.h.b16 %v3660
    %v4045 = vunpack.c.h.b16 %v3661
    %v4046 = vunpack.c.h.b16 %v3662
    %v4047 = vpack.c.b16 %v3792, %v3791
    %v4048 = vpack.c.b16 %v3794, %v3793
    %v4049 = vpack.c.b16 %v3796, %v3795
    %v4050 = vpack.c.b16 %v3798, %v3797
    %v4051 = vpack.c.b16 %v3800, %v3799
    %v4052 = vpack.c.b16 %v3802, %v3801
    %v4053 = vpack.c.b16 %v3804, %v3803
    %v4054 = vpack.c.b16 %v3806, %v3805
    %v4055 = vpack.c.b16 %v3808, %v3807
    %v4056 = vpack.c.b16 %v3810, %v3809
    %v4057 = vpack.c.b16 %v3812, %v3811
    %v4058 = vpack.c.b16 %v3814, %v3813
    %v4059 = vpack.c.b16 %v3816, %v3815
    %v4060 = vpack.c.b16 %v3818, %v3817
    %v4061 = vpack.c.b16 %v3820, %v3819
    %v4062 = vpack.c.b16 %v3822, %v3821
    %v4063 = vpack.c.b16 %v3824, %v3823
    %v4064 = vpack.c.b16 %v3826, %v3825
    %v4065 = vpack.c.b16 %v3828, %v3827
    %v4066 = vpack.c.b16 %v3830, %v3829
    %v4067 = vpack.c.b16 %v3832, %v3831
    %v4068 = vpack.c.b16 %v3834, %v3833
    %v4069 = vpack.c.b16 %v3836, %v3835
    %v4070 = vpack.c.b16 %v3838, %v3837
    %v4071 = vpack.c.b16 %v3840, %v3839
    %v4072 = vpack.c.b16 %v3842, %v3841
    %v4073 = vpack.c.b16 %v3844, %v3843
    %v4074 = vpack.c.b16 %v3846, %v3845
    %v4075 = vpack.c.b16 %v3848, %v3847
    %v4076 = vpack.c.b16 %v3850, %v3849
    %v4077 = vpack.c.b16 %v3852, %v3851
    %v4078 = vpack.c.b16 %v3854, %v3853
    %v4079 = vpack.c.b16 %v3856, %v3855
    %v4080 = vpack.c.b16 %v3858, %v3857
    %v4081 = vpack.c.b16 %v3860, %v3859
    %v4082 = vpack.c.b16 %v3862, %v3861
    %v4083 = vpack.c.b16 %v3864, %v3863
    %v4084 = vpack.c.b16 %v3866, %v3865
    %v4085 = vpack.c.b16 %v3868, %v3867
    %v4086 = vpack.c.b16 %v3870, %v3869
    %v4087 = vpack.c.b16 %v3872, %v3871
    %v4088 = vpack.c.b16 %v3874, %v3873
    %v4089 = vpack.c.b16 %v3876, %v3875
    %v4090 = vpack.c.b16 %v3878, %v3877
    %v4091 = vpack.c.b16 %v3880, %v3879
    %v4092 = vpack.c.b16 %v3882, %v3881
    %v4093 = vpack.c.b16 %v3884, %v3883
    %v4094 = vpack.c.b16 %v3886, %v3885
    %v4095 = vpack.c.b16 %v3888, %v3887
    %v4096 = vpack.c.b16 %v3890, %v3889
    %v4097 = vpack.c.b16 %v3892, %v3891
    %v4098 = vpack.c.b16 %v3894, %v3893
    %v4099 = vpack.c.b16 %v3896, %v3895
    %v4100 = vpack.c.b16 %v3898, %v3897
    %v4101 = vpack.c.b16 %v3900, %v3899
    %v4102 = vpack.c.b16 %v3902, %v3901
    %v4103 = vpack.c.b16 %v3904, %v3903
    %v4104 = vpack.c.b16 %v3906, %v3905
    %v4105 = vpack.c.b16 %v3908, %v3907
    %v4106 = vpack.c.b16 %v3910, %v3909
    %v4107 = vpack.c.b16 %v3912, %v3911
    %v4108 = vpack.c.b16 %v3914, %v3913
    %v4109 = vpack.c.b16 %v3916, %v3915
    %v4110 = vpack.c.b16 %v3918, %v3917
    %v4111 = vpack.c.b16 %v3920, %v3919
    %v4112 = vpack.c.b16 %v3922, %v3921
    %v4113 = vpack.c.b16 %v3924, %v3923
    %v4114 = vpack.c.b16 %v3926, %v3925
    %v4115 = vpack.c.b16 %v3928, %v3927
    %v4116 = vpack.c.b16 %v3930, %v3929
    %v4117 = vpack.c.b16 %v3932, %v3931
    %v4118 = vpack.c.b16 %v3934, %v3933
    %v4119 = vpack.c.b16 %v3936, %v3935
    %v4120 = vpack.c.b16 %v3938, %v3937
    %v4121 = vpack.c.b16 %v3940, %v3939
    %v4122 = vpack.c.b16 %v3942, %v3941
    %v4123 = vpack.c.b16 %v3944, %v3943
    %v4124 = vpack.c.b16 %v3946, %v3945
    %v4125 = vpack.c.b16 %v3948, %v3947
    %v4126 = vpack.c.b16 %v3950, %v3949
    %v4127 = vpack.c.b16 %v3952, %v3951
    %v4128 = vpack.c.b16 %v3954, %v3953
    %v4129 = vpack.c.b16 %v3956, %v3955
    %v4130 = vpack.c.b16 %v3958, %v3957
    %v4131 = vpack.c.b16 %v3960, %v3959
    %v4132 = vpack.c.b16 %v3962, %v3961
    %v4133 = vpack.c.b16 %v3964, %v3963
    %v4134 = vpack.c.b16 %v3966, %v3965
    %v4135 = vpack.c.b16 %v3968, %v3967
    %v4136 = vpack.c.b16 %v3970, %v3969
    %v4137 = vpack.c.b16 %v3972, %v3971
    %v4138 = vpack.c.b16 %v3974, %v3973
    %v4139 = vpack.c.b16 %v3976, %v3975
    %v4140 = vpack.c.b16 %v3978, %v3977
    %v4141 = vpack.c.b16 %v3980, %v3979
    %v4142 = vpack.c.b16 %v3982, %v3981
    %v4143 = vpack.c.b16 %v3984, %v3983
    %v4144 = vpack.c.b16 %v3986, %v3985
    %v4145 = vpack.c.b16 %v3988, %v3987
    %v4146 = vpack.c.b16 %v3990, %v3989
    %v4147 = vpack.c.b16 %v3992, %v3991
    %v4148 = vpack.c.b16 %v3994, %v3993
    %v4149 = vpack.c.b16 %v3996, %v3995
    %v4150 = vpack.c.b16 %v3998, %v3997
    %v4151 = vpack.c.b16 %v4000, %v3999
    %v4152 = vpack.c.b16 %v4002, %v4001
    %v4153 = vpack.c.b16 %v4004, %v4003
    %v4154 = vpack.c.b16 %v4006, %v4005
    %v4155 = vpack.c.b16 %v4008, %v4007
    %v4156 = vpack.c.b16 %v4010, %v4009
    %v4157 = vpack.c.b16 %v4012, %v4011
    %v4158 = vpack.c.b16 %v4014, %v4013
    %v4159 = vpack.c.b16 %v4016, %v4015
    %v4160 = vpack.c.b16 %v4018, %v4017
    %v4161 = vpack.c.b16 %v4020, %v4019
    %v4162 = vpack.c.b16 %v4022, %v4021
    %v4163 = vpack.c.b16 %v4024, %v4023
    %v4164 = vpack.c.b16 %v4026, %v4025
    %v4165 = vpack.c.b16 %v4028, %v4027
    %v4166 = vpack.c.b16 %v4030, %v4029
    %v4167 = vpack.c.b16 %v4032, %v4031
    %v4168 = vpack.c.b16 %v4034, %v4033
    %v4169 = vpack.c.b16 %v4036, %v4035
    %v4170 = vpack.c.b16 %v4038, %v4037
    %v4171 = vpack.c.b16 %v4040, %v4039
    %v4172 = vpack.c.b16 %v4042, %v4041
    %v4173 = vpack.c.b16 %v4044, %v4043
    %v4174 = vpack.c.b16 %v4046, %v4045
    %4303 = vst [vmem:[#allocation8] sm:$0xff] %v4047
    %4304 = vst [vmem:[#allocation8 + $0x8] sm:$0xff] %v4048
    %4305 = vst [vmem:[#allocation8 + $0x10] sm:$0xff] %v4049
    %4306 = vst [vmem:[#allocation8 + $0x18] sm:$0xff] %v4050
    %4307 = vst [vmem:[#allocation8 + $0x20] sm:$0xff] %v4051
    %4308 = vst [vmem:[#allocation8 + $0x28] sm:$0xff] %v4052
    %4309 = vst [vmem:[#allocation8 + $0x30] sm:$0xff] %v4053
    %4310 = vst [vmem:[#allocation8 + $0x38] sm:$0xff] %v4054
    %4311 = vst [vmem:[#allocation8 + $0x40] sm:$0xff] %v4055
    %4312 = vst [vmem:[#allocation8 + $0x48] sm:$0xff] %v4056
    %4313 = vst [vmem:[#allocation8 + $0x50] sm:$0xff] %v4057
    %4314 = vst [vmem:[#allocation8 + $0x58] sm:$0xff] %v4058
    %4315 = vst [vmem:[#allocation8 + $0x60] sm:$0xff] %v4059
    %4316 = vst [vmem:[#allocation8 + $0x68] sm:$0xff] %v4060
    %4317 = vst [vmem:[#allocation8 + $0x70] sm:$0xff] %v4061
    %4318 = vst [vmem:[#allocation8 + $0x78] sm:$0xff] %v4062
    %4319 = vst [vmem:[#allocation8 + $0x80] sm:$0xff] %v4063
    %4320 = vst [vmem:[#allocation8 + $0x88] sm:$0xff] %v4064
    %4321 = vst [vmem:[#allocation8 + $0x90] sm:$0xff] %v4065
    %4322 = vst [vmem:[#allocation8 + $0x98] sm:$0xff] %v4066
    %4323 = vst [vmem:[#allocation8 + $0xa0] sm:$0xff] %v4067
    %4324 = vst [vmem:[#allocation8 + $0xa8] sm:$0xff] %v4068
    %4325 = vst [vmem:[#allocation8 + $0xb0] sm:$0xff] %v4069
    %4326 = vst [vmem:[#allocation8 + $0xb8] sm:$0xff] %v4070
    %4327 = vst [vmem:[#allocation8 + $0xc0] sm:$0xff] %v4071
    %4328 = vst [vmem:[#allocation8 + $0xc8] sm:$0xff] %v4072
    %4329 = vst [vmem:[#allocation8 + $0xd0] sm:$0xff] %v4073
    %4330 = vst [vmem:[#allocation8 + $0xd8] sm:$0xff] %v4074
    %4331 = vst [vmem:[#allocation8 + $0xe0] sm:$0xff] %v4075
    %4332 = vst [vmem:[#allocation8 + $0xe8] sm:$0xff] %v4076
    %4333 = vst [vmem:[#allocation8 + $0xf0] sm:$0xff] %v4077
    %4334 = vst [vmem:[#allocation8 + $0xf8] sm:$0xff] %v4078
    %4335 = vst [vmem:[#allocation8 + $0x100] sm:$0xff] %v4079
    %4336 = vst [vmem:[#allocation8 + $0x108] sm:$0xff] %v4080
    %4337 = vst [vmem:[#allocation8 + $0x110] sm:$0xff] %v4081
    %4338 = vst [vmem:[#allocation8 + $0x118] sm:$0xff] %v4082
    %4339 = vst [vmem:[#allocation8 + $0x120] sm:$0xff] %v4083
    %4340 = vst [vmem:[#allocation8 + $0x128] sm:$0xff] %v4084
    %4341 = vst [vmem:[#allocation8 + $0x130] sm:$0xff] %v4085
    %4342 = vst [vmem:[#allocation8 + $0x138] sm:$0xff] %v4086
    %4343 = vst [vmem:[#allocation8 + $0x140] sm:$0xff] %v4087
    %4344 = vst [vmem:[#allocation8 + $0x148] sm:$0xff] %v4088
    %4345 = vst [vmem:[#allocation8 + $0x150] sm:$0xff] %v4089
    %4346 = vst [vmem:[#allocation8 + $0x158] sm:$0xff] %v4090
    %4347 = vst [vmem:[#allocation8 + $0x160] sm:$0xff] %v4091
    %4348 = vst [vmem:[#allocation8 + $0x168] sm:$0xff] %v4092
    %4349 = vst [vmem:[#allocation8 + $0x170] sm:$0xff] %v4093
    %4350 = vst [vmem:[#allocation8 + $0x178] sm:$0xff] %v4094
    %4351 = vst [vmem:[#allocation8 + $0x180] sm:$0xff] %v4095
    %4352 = vst [vmem:[#allocation8 + $0x188] sm:$0xff] %v4096
    %4353 = vst [vmem:[#allocation8 + $0x190] sm:$0xff] %v4097
    %4354 = vst [vmem:[#allocation8 + $0x198] sm:$0xff] %v4098
    %4355 = vst [vmem:[#allocation8 + $0x1a0] sm:$0xff] %v4099
    %4356 = vst [vmem:[#allocation8 + $0x1a8] sm:$0xff] %v4100
    %4357 = vst [vmem:[#allocation8 + $0x1b0] sm:$0xff] %v4101
    %4358 = vst [vmem:[#allocation8 + $0x1b8] sm:$0xff] %v4102
    %4359 = vst [vmem:[#allocation8 + $0x1c0] sm:$0xff] %v4103
    %4360 = vst [vmem:[#allocation8 + $0x1c8] sm:$0xff] %v4104
    %4361 = vst [vmem:[#allocation8 + $0x1d0] sm:$0xff] %v4105
    %4362 = vst [vmem:[#allocation8 + $0x1d8] sm:$0xff] %v4106
    %4363 = vst [vmem:[#allocation8 + $0x1e0] sm:$0xff] %v4107
    %4364 = vst [vmem:[#allocation8 + $0x1e8] sm:$0xff] %v4108
    %4365 = vst [vmem:[#allocation8 + $0x1f0] sm:$0xff] %v4109
    %4366 = vst [vmem:[#allocation8 + $0x1f8] sm:$0xff] %v4110
    %4367 = vst [vmem:[#allocation8 + $0x200] sm:$0xff] %v4111
    %4368 = vst [vmem:[#allocation8 + $0x208] sm:$0xff] %v4112
    %4369 = vst [vmem:[#allocation8 + $0x210] sm:$0xff] %v4113
    %4370 = vst [vmem:[#allocation8 + $0x218] sm:$0xff] %v4114
    %4371 = vst [vmem:[#allocation8 + $0x220] sm:$0xff] %v4115
    %4372 = vst [vmem:[#allocation8 + $0x228] sm:$0xff] %v4116
    %4373 = vst [vmem:[#allocation8 + $0x230] sm:$0xff] %v4117
    %4374 = vst [vmem:[#allocation8 + $0x238] sm:$0xff] %v4118
    %4375 = vst [vmem:[#allocation8 + $0x240] sm:$0xff] %v4119
    %4376 = vst [vmem:[#allocation8 + $0x248] sm:$0xff] %v4120
    %4377 = vst [vmem:[#allocation8 + $0x250] sm:$0xff] %v4121
    %4378 = vst [vmem:[#allocation8 + $0x258] sm:$0xff] %v4122
    %4379 = vst [vmem:[#allocation8 + $0x260] sm:$0xff] %v4123
    %4380 = vst [vmem:[#allocation8 + $0x268] sm:$0xff] %v4124
    %4381 = vst [vmem:[#allocation8 + $0x270] sm:$0xff] %v4125
    %4382 = vst [vmem:[#allocation8 + $0x278] sm:$0xff] %v4126
    %4383 = vst [vmem:[#allocation8 + $0x280] sm:$0xff] %v4127
    %4384 = vst [vmem:[#allocation8 + $0x288] sm:$0xff] %v4128
    %4385 = vst [vmem:[#allocation8 + $0x290] sm:$0xff] %v4129
    %4386 = vst [vmem:[#allocation8 + $0x298] sm:$0xff] %v4130
    %4387 = vst [vmem:[#allocation8 + $0x2a0] sm:$0xff] %v4131
    %4388 = vst [vmem:[#allocation8 + $0x2a8] sm:$0xff] %v4132
    %4389 = vst [vmem:[#allocation8 + $0x2b0] sm:$0xff] %v4133
    %4390 = vst [vmem:[#allocation8 + $0x2b8] sm:$0xff] %v4134
    %4391 = vst [vmem:[#allocation8 + $0x2c0] sm:$0xff] %v4135
    %4392 = vst [vmem:[#allocation8 + $0x2c8] sm:$0xff] %v4136
    %4393 = vst [vmem:[#allocation8 + $0x2d0] sm:$0xff] %v4137
    %4394 = vst [vmem:[#allocation8 + $0x2d8] sm:$0xff] %v4138
    %4395 = vst [vmem:[#allocation8 + $0x2e0] sm:$0xff] %v4139
    %4396 = vst [vmem:[#allocation8 + $0x2e8] sm:$0xff] %v4140
    %4397 = vst [vmem:[#allocation8 + $0x2f0] sm:$0xff] %v4141
    %4398 = vst [vmem:[#allocation8 + $0x2f8] sm:$0xff] %v4142
    %4399 = vst [vmem:[#allocation8 + $0x300] sm:$0xff] %v4143
    %4400 = vst [vmem:[#allocation8 + $0x308] sm:$0xff] %v4144
    %4401 = vst [vmem:[#allocation8 + $0x310] sm:$0xff] %v4145
    %4402 = vst [vmem:[#allocation8 + $0x318] sm:$0xff] %v4146
    %4403 = vst [vmem:[#allocation8 + $0x320] sm:$0xff] %v4147
    %4404 = vst [vmem:[#allocation8 + $0x328] sm:$0xff] %v4148
    %4405 = vst [vmem:[#allocation8 + $0x330] sm:$0xff] %v4149
    %4406 = vst [vmem:[#allocation8 + $0x338] sm:$0xff] %v4150
    %4407 = vst [vmem:[#allocation8 + $0x340] sm:$0xff] %v4151
    %4408 = vst [vmem:[#allocation8 + $0x348] sm:$0xff] %v4152
    %4409 = vst [vmem:[#allocation8 + $0x350] sm:$0xff] %v4153
    %4410 = vst [vmem:[#allocation8 + $0x358] sm:$0xff] %v4154
    %4411 = vst [vmem:[#allocation8 + $0x360] sm:$0xff] %v4155
    %4412 = vst [vmem:[#allocation8 + $0x368] sm:$0xff] %v4156
    %4413 = vst [vmem:[#allocation8 + $0x370] sm:$0xff] %v4157
    %4414 = vst [vmem:[#allocation8 + $0x378] sm:$0xff] %v4158
    %4415 = vst [vmem:[#allocation8 + $0x380] sm:$0xff] %v4159
    %4416 = vst [vmem:[#allocation8 + $0x388] sm:$0xff] %v4160
    %4417 = vst [vmem:[#allocation8 + $0x390] sm:$0xff] %v4161
    %4418 = vst [vmem:[#allocation8 + $0x398] sm:$0xff] %v4162
    %4419 = vst [vmem:[#allocation8 + $0x3a0] sm:$0xff] %v4163
    %4420 = vst [vmem:[#allocation8 + $0x3a8] sm:$0xff] %v4164
    %4421 = vst [vmem:[#allocation8 + $0x3b0] sm:$0xff] %v4165
    %4422 = vst [vmem:[#allocation8 + $0x3b8] sm:$0xff] %v4166
    %4423 = vst [vmem:[#allocation8 + $0x3c0] sm:$0xff] %v4167
    %4424 = vst [vmem:[#allocation8 + $0x3c8] sm:$0xff] %v4168
    %4425 = vst [vmem:[#allocation8 + $0x3d0] sm:$0xff] %v4169
    %4426 = vst [vmem:[#allocation8 + $0x3d8] sm:$0xff] %v4170
    %4427 = vst [vmem:[#allocation8 + $0x3e0] sm:$0xff] %v4171
    %4428 = vst [vmem:[#allocation8 + $0x3e8] sm:$0xff] %v4172
    %4429 = vst [vmem:[#allocation8 + $0x3f0] sm:$0xff] %v4173
    %4430 = vst [vmem:[#allocation8 + $0x3f8] sm:$0xff] %v4174
    %v4431 = vmul.f32 %v2219, %v2219
    %v4432 = vmul.f32 %v2221, %v2221
    %v4433 = vmul.f32 %v2605, %v2605
    %v4434 = vmul.f32 %v2607, %v2607
    %v4435 = vmul.f32 %v2223, %v2223
    %v4436 = vmul.f32 %v2225, %v2225
    %v4437 = vmul.f32 %v2609, %v2609
    %v4438 = vmul.f32 %v2611, %v2611
    %v4439 = vmul.f32 %v2229, %v2229
    %v4440 = vmul.f32 %v2231, %v2231
    %v4441 = vmul.f32 %v2615, %v2615
    %v4442 = vmul.f32 %v2617, %v2617
    %v4443 = vmul.f32 %v2233, %v2233
    %v4444 = vmul.f32 %v2235, %v2235
    %v4445 = vmul.f32 %v2619, %v2619
    %v4446 = vmul.f32 %v2621, %v2621
    %v4447 = vmul.f32 %v2239, %v2239
    %v4448 = vmul.f32 %v2241, %v2241
    %v4449 = vmul.f32 %v2625, %v2625
    %v4450 = vmul.f32 %v2627, %v2627
    %v4451 = vmul.f32 %v2243, %v2243
    %v4452 = vmul.f32 %v2245, %v2245
    %v4453 = vmul.f32 %v2629, %v2629
    %v4454 = vmul.f32 %v2631, %v2631
    %v4455 = vmul.f32 %v2249, %v2249
    %v4456 = vmul.f32 %v2251, %v2251
    %v4457 = vmul.f32 %v2635, %v2635
    %v4458 = vmul.f32 %v2637, %v2637
    %v4459 = vmul.f32 %v2253, %v2253
    %v4460 = vmul.f32 %v2255, %v2255
    %v4461 = vmul.f32 %v2639, %v2639
    %v4462 = vmul.f32 %v2641, %v2641
    %v4463 = vmul.f32 %v2259, %v2259
    %v4464 = vmul.f32 %v2261, %v2261
    %v4465 = vmul.f32 %v2645, %v2645
    %v4466 = vmul.f32 %v2647, %v2647
    %v4467 = vmul.f32 %v2263, %v2263
    %v4468 = vmul.f32 %v2265, %v2265
    %v4469 = vmul.f32 %v2649, %v2649
    %v4470 = vmul.f32 %v2651, %v2651
    %v4471 = vmul.f32 %v2269, %v2269
    %v4472 = vmul.f32 %v2271, %v2271
    %v4473 = vmul.f32 %v2655, %v2655
    %v4474 = vmul.f32 %v2657, %v2657
    %v4475 = vmul.f32 %v2273, %v2273
    %v4476 = vmul.f32 %v2275, %v2275
    %v4477 = vmul.f32 %v2659, %v2659
    %v4478 = vmul.f32 %v2661, %v2661
    %v4479 = vmul.f32 %v2279, %v2279
    %v4480 = vmul.f32 %v2281, %v2281
    %v4481 = vmul.f32 %v2665, %v2665
    %v4482 = vmul.f32 %v2667, %v2667
    %v4483 = vmul.f32 %v2283, %v2283
    %v4484 = vmul.f32 %v2285, %v2285
    %v4485 = vmul.f32 %v2669, %v2669
    %v4486 = vmul.f32 %v2671, %v2671
    %v4487 = vmul.f32 %v2289, %v2289
    %v4488 = vmul.f32 %v2291, %v2291
    %v4489 = vmul.f32 %v2675, %v2675
    %v4490 = vmul.f32 %v2677, %v2677
    %v4491 = vmul.f32 %v2293, %v2293
    %v4492 = vmul.f32 %v2295, %v2295
    %v4493 = vmul.f32 %v2679, %v2679
    %v4494 = vmul.f32 %v2681, %v2681
    %v4495 = vmul.f32 %v2299, %v2299
    %v4496 = vmul.f32 %v2301, %v2301
    %v4497 = vmul.f32 %v2685, %v2685
    %v4498 = vmul.f32 %v2687, %v2687
    %v4499 = vmul.f32 %v2303, %v2303
    %v4500 = vmul.f32 %v2305, %v2305
    %v4501 = vmul.f32 %v2689, %v2689
    %v4502 = vmul.f32 %v2691, %v2691
    %v4503 = vmul.f32 %v2309, %v2309
    %v4504 = vmul.f32 %v2311, %v2311
    %v4505 = vmul.f32 %v2695, %v2695
    %v4506 = vmul.f32 %v2697, %v2697
    %v4507 = vmul.f32 %v2313, %v2313
    %v4508 = vmul.f32 %v2315, %v2315
    %v4509 = vmul.f32 %v2699, %v2699
    %v4510 = vmul.f32 %v2701, %v2701
    %v4511 = vmul.f32 %v2319, %v2319
    %v4512 = vmul.f32 %v2321, %v2321
    %v4513 = vmul.f32 %v2705, %v2705
    %v4514 = vmul.f32 %v2707, %v2707
    %v4515 = vmul.f32 %v2323, %v2323
    %v4516 = vmul.f32 %v2325, %v2325
    %v4517 = vmul.f32 %v2709, %v2709
    %v4518 = vmul.f32 %v2711, %v2711
    %v4519 = vmul.f32 %v2329, %v2329
    %v4520 = vmul.f32 %v2331, %v2331
    %v4521 = vmul.f32 %v2715, %v2715
    %v4522 = vmul.f32 %v2717, %v2717
    %v4523 = vmul.f32 %v2333, %v2333
    %v4524 = vmul.f32 %v2335, %v2335
    %v4525 = vmul.f32 %v2719, %v2719
    %v4526 = vmul.f32 %v2721, %v2721
    %v4527 = vmul.f32 %v2339, %v2339
    %v4528 = vmul.f32 %v2341, %v2341
    %v4529 = vmul.f32 %v2725, %v2725
    %v4530 = vmul.f32 %v2727, %v2727
    %v4531 = vmul.f32 %v2343, %v2343
    %v4532 = vmul.f32 %v2345, %v2345
    %v4533 = vmul.f32 %v2729, %v2729
    %v4534 = vmul.f32 %v2731, %v2731
    %v4535 = vmul.f32 %v2349, %v2349
    %v4536 = vmul.f32 %v2351, %v2351
    %v4537 = vmul.f32 %v2735, %v2735
    %v4538 = vmul.f32 %v2737, %v2737
    %v4539 = vmul.f32 %v2353, %v2353
    %v4540 = vmul.f32 %v2355, %v2355
    %v4541 = vmul.f32 %v2739, %v2739
    %v4542 = vmul.f32 %v2741, %v2741
    %v4543 = vmul.f32 %v2359, %v2359
    %v4544 = vmul.f32 %v2361, %v2361
    %v4545 = vmul.f32 %v2745, %v2745
    %v4546 = vmul.f32 %v2747, %v2747
    %v4547 = vmul.f32 %v2363, %v2363
    %v4548 = vmul.f32 %v2365, %v2365
    %v4549 = vmul.f32 %v2749, %v2749
    %v4550 = vmul.f32 %v2751, %v2751
    %v4551 = vmul.f32 %v2369, %v2369
    %v4552 = vmul.f32 %v2371, %v2371
    %v4553 = vmul.f32 %v2755, %v2755
    %v4554 = vmul.f32 %v2757, %v2757
    %v4555 = vmul.f32 %v2373, %v2373
    %v4556 = vmul.f32 %v2375, %v2375
    %v4557 = vmul.f32 %v2759, %v2759
    %v4558 = vmul.f32 %v2761, %v2761
    %v4559 = vmul.f32 %v2991, %v2991
    %v4560 = vmul.f32 %v2993, %v2993
    %v4561 = vmul.f32 %v3377, %v3377
    %v4562 = vmul.f32 %v3379, %v3379
    %v4563 = vmul.f32 %v2995, %v2995
    %v4564 = vmul.f32 %v2997, %v2997
    %v4565 = vmul.f32 %v3381, %v3381
    %v4566 = vmul.f32 %v3383, %v3383
    %v4567 = vmul.f32 %v3001, %v3001
    %v4568 = vmul.f32 %v3003, %v3003
    %v4569 = vmul.f32 %v3387, %v3387
    %v4570 = vmul.f32 %v3389, %v3389
    %v4571 = vmul.f32 %v3005, %v3005
    %v4572 = vmul.f32 %v3007, %v3007
    %v4573 = vmul.f32 %v3391, %v3391
    %v4574 = vmul.f32 %v3393, %v3393
    %v4575 = vmul.f32 %v3011, %v3011
    %v4576 = vmul.f32 %v3013, %v3013
    %v4577 = vmul.f32 %v3397, %v3397
    %v4578 = vmul.f32 %v3399, %v3399
    %v4579 = vmul.f32 %v3015, %v3015
    %v4580 = vmul.f32 %v3017, %v3017
    %v4581 = vmul.f32 %v3401, %v3401
    %v4582 = vmul.f32 %v3403, %v3403
    %v4583 = vmul.f32 %v3021, %v3021
    %v4584 = vmul.f32 %v3023, %v3023
    %v4585 = vmul.f32 %v3407, %v3407
    %v4586 = vmul.f32 %v3409, %v3409
    %v4587 = vmul.f32 %v3025, %v3025
    %v4588 = vmul.f32 %v3027, %v3027
    %v4589 = vmul.f32 %v3411, %v3411
    %v4590 = vmul.f32 %v3413, %v3413
    %v4591 = vmul.f32 %v3031, %v3031
    %v4592 = vmul.f32 %v3033, %v3033
    %v4593 = vmul.f32 %v3417, %v3417
    %v4594 = vmul.f32 %v3419, %v3419
    %v4595 = vmul.f32 %v3035, %v3035
    %v4596 = vmul.f32 %v3037, %v3037
    %v4597 = vmul.f32 %v3421, %v3421
    %v4598 = vmul.f32 %v3423, %v3423
    %v4599 = vmul.f32 %v3041, %v3041
    %v4600 = vmul.f32 %v3043, %v3043
    %v4601 = vmul.f32 %v3427, %v3427
    %v4602 = vmul.f32 %v3429, %v3429
    %v4603 = vmul.f32 %v3045, %v3045
    %v4604 = vmul.f32 %v3047, %v3047
    %v4605 = vmul.f32 %v3431, %v3431
    %v4606 = vmul.f32 %v3433, %v3433
    %v4607 = vmul.f32 %v3051, %v3051
    %v4608 = vmul.f32 %v3053, %v3053
    %v4609 = vmul.f32 %v3437, %v3437
    %v4610 = vmul.f32 %v3439, %v3439
    %v4611 = vmul.f32 %v3055, %v3055
    %v4612 = vmul.f32 %v3057, %v3057
    %v4613 = vmul.f32 %v3441, %v3441
    %v4614 = vmul.f32 %v3443, %v3443
    %v4615 = vmul.f32 %v3061, %v3061
    %v4616 = vmul.f32 %v3063, %v3063
    %v4617 = vmul.f32 %v3447, %v3447
    %v4618 = vmul.f32 %v3449, %v3449
    %v4619 = vmul.f32 %v3065, %v3065
    %v4620 = vmul.f32 %v3067, %v3067
    %v4621 = vmul.f32 %v3451, %v3451
    %v4622 = vmul.f32 %v3453, %v3453
    %v4623 = vmul.f32 %v3071, %v3071
    %v4624 = vmul.f32 %v3073, %v3073
    %v4625 = vmul.f32 %v3457, %v3457
    %v4626 = vmul.f32 %v3459, %v3459
    %v4627 = vmul.f32 %v3075, %v3075
    %v4628 = vmul.f32 %v3077, %v3077
    %v4629 = vmul.f32 %v3461, %v3461
    %v4630 = vmul.f32 %v3463, %v3463
    %v4631 = vmul.f32 %v3081, %v3081
    %v4632 = vmul.f32 %v3083, %v3083
    %v4633 = vmul.f32 %v3467, %v3467
    %v4634 = vmul.f32 %v3469, %v3469
    %v4635 = vmul.f32 %v3085, %v3085
    %v4636 = vmul.f32 %v3087, %v3087
    %v4637 = vmul.f32 %v3471, %v3471
    %v4638 = vmul.f32 %v3473, %v3473
    %v4639 = vmul.f32 %v3091, %v3091
    %v4640 = vmul.f32 %v3093, %v3093
    %v4641 = vmul.f32 %v3477, %v3477
    %v4642 = vmul.f32 %v3479, %v3479
    %v4643 = vmul.f32 %v3095, %v3095
    %v4644 = vmul.f32 %v3097, %v3097
    %v4645 = vmul.f32 %v3481, %v3481
    %v4646 = vmul.f32 %v3483, %v3483
    %v4647 = vmul.f32 %v3101, %v3101
    %v4648 = vmul.f32 %v3103, %v3103
    %v4649 = vmul.f32 %v3487, %v3487
    %v4650 = vmul.f32 %v3489, %v3489
    %v4651 = vmul.f32 %v3105, %v3105
    %v4652 = vmul.f32 %v3107, %v3107
    %v4653 = vmul.f32 %v3491, %v3491
    %v4654 = vmul.f32 %v3493, %v3493
    %v4655 = vmul.f32 %v3111, %v3111
    %v4656 = vmul.f32 %v3113, %v3113
    %v4657 = vmul.f32 %v3497, %v3497
    %v4658 = vmul.f32 %v3499, %v3499
    %v4659 = vmul.f32 %v3115, %v3115
    %v4660 = vmul.f32 %v3117, %v3117
    %v4661 = vmul.f32 %v3501, %v3501
    %v4662 = vmul.f32 %v3503, %v3503
    %v4663 = vmul.f32 %v3121, %v3121
    %v4664 = vmul.f32 %v3123, %v3123
    %v4665 = vmul.f32 %v3507, %v3507
    %v4666 = vmul.f32 %v3509, %v3509
    %v4667 = vmul.f32 %v3125, %v3125
    %v4668 = vmul.f32 %v3127, %v3127
    %v4669 = vmul.f32 %v3511, %v3511
    %v4670 = vmul.f32 %v3513, %v3513
    %v4671 = vmul.f32 %v3131, %v3131
    %v4672 = vmul.f32 %v3133, %v3133
    %v4673 = vmul.f32 %v3517, %v3517
    %v4674 = vmul.f32 %v3519, %v3519
    %v4675 = vmul.f32 %v3135, %v3135
    %v4676 = vmul.f32 %v3137, %v3137
    %v4677 = vmul.f32 %v3521, %v3521
    %v4678 = vmul.f32 %v3523, %v3523
    %v4679 = vmul.f32 %v3141, %v3141
    %v4680 = vmul.f32 %v3143, %v3143
    %v4681 = vmul.f32 %v3527, %v3527
    %v4682 = vmul.f32 %v3529, %v3529
    %v4683 = vmul.f32 %v3145, %v3145
    %v4684 = vmul.f32 %v3147, %v3147
    %v4685 = vmul.f32 %v3531, %v3531
    %v4686 = vmul.f32 %v3533, %v3533
    %v4687 = vadd.f32 %v4431, %v4559
    %v4688 = vadd.f32 %v4432, %v4560
    %v4689 = vadd.f32 %v4433, %v4561
    %v4690 = vadd.f32 %v4434, %v4562
    %v4691 = vadd.f32 %v4435, %v4563
    %v4692 = vadd.f32 %v4436, %v4564
    %v4693 = vadd.f32 %v4437, %v4565
    %v4694 = vadd.f32 %v4438, %v4566
    %v4695 = vadd.f32 %v4439, %v4567
    %v4696 = vadd.f32 %v4440, %v4568
    %v4697 = vadd.f32 %v4441, %v4569
    %v4698 = vadd.f32 %v4442, %v4570
    %v4699 = vadd.f32 %v4443, %v4571
    %v4700 = vadd.f32 %v4444, %v4572
    %v4701 = vadd.f32 %v4445, %v4573
    %v4702 = vadd.f32 %v4446, %v4574
    %v4703 = vadd.f32 %v4447, %v4575
    %v4704 = vadd.f32 %v4448, %v4576
    %v4705 = vadd.f32 %v4449, %v4577
    %v4706 = vadd.f32 %v4450, %v4578
    %v4707 = vadd.f32 %v4451, %v4579
    %v4708 = vadd.f32 %v4452, %v4580
    %v4709 = vadd.f32 %v4453, %v4581
    %v4710 = vadd.f32 %v4454, %v4582
    %v4711 = vadd.f32 %v4455, %v4583
    %v4712 = vadd.f32 %v4456, %v4584
    %v4713 = vadd.f32 %v4457, %v4585
    %v4714 = vadd.f32 %v4458, %v4586
    %v4715 = vadd.f32 %v4459, %v4587
    %v4716 = vadd.f32 %v4460, %v4588
    %v4717 = vadd.f32 %v4461, %v4589
    %v4718 = vadd.f32 %v4462, %v4590
    %v4719 = vadd.f32 %v4463, %v4591
    %v4720 = vadd.f32 %v4464, %v4592
    %v4721 = vadd.f32 %v4465, %v4593
    %v4722 = vadd.f32 %v4466, %v4594
    %v4723 = vadd.f32 %v4467, %v4595
    %v4724 = vadd.f32 %v4468, %v4596
    %v4725 = vadd.f32 %v4469, %v4597
    %v4726 = vadd.f32 %v4470, %v4598
    %v4727 = vadd.f32 %v4471, %v4599
    %v4728 = vadd.f32 %v4472, %v4600
    %v4729 = vadd.f32 %v4473, %v4601
    %v4730 = vadd.f32 %v4474, %v4602
    %v4731 = vadd.f32 %v4475, %v4603
    %v4732 = vadd.f32 %v4476, %v4604
    %v4733 = vadd.f32 %v4477, %v4605
    %v4734 = vadd.f32 %v4478, %v4606
    %v4735 = vadd.f32 %v4479, %v4607
    %v4736 = vadd.f32 %v4480, %v4608
    %v4737 = vadd.f32 %v4481, %v4609
    %v4738 = vadd.f32 %v4482, %v4610
    %v4739 = vadd.f32 %v4483, %v4611
    %v4740 = vadd.f32 %v4484, %v4612
    %v4741 = vadd.f32 %v4485, %v4613
    %v4742 = vadd.f32 %v4486, %v4614
    %v4743 = vadd.f32 %v4487, %v4615
    %v4744 = vadd.f32 %v4488, %v4616
    %v4745 = vadd.f32 %v4489, %v4617
    %v4746 = vadd.f32 %v4490, %v4618
    %v4747 = vadd.f32 %v4491, %v4619
    %v4748 = vadd.f32 %v4492, %v4620
    %v4749 = vadd.f32 %v4493, %v4621
    %v4750 = vadd.f32 %v4494, %v4622
    %v4751 = vadd.f32 %v4495, %v4623
    %v4752 = vadd.f32 %v4496, %v4624
    %v4753 = vadd.f32 %v4497, %v4625
    %v4754 = vadd.f32 %v4498, %v4626
    %v4755 = vadd.f32 %v4499, %v4627
    %v4756 = vadd.f32 %v4500, %v4628
    %v4757 = vadd.f32 %v4501, %v4629
    %v4758 = vadd.f32 %v4502, %v4630
    %v4759 = vadd.f32 %v4503, %v4631
    %v4760 = vadd.f32 %v4504, %v4632
    %v4761 = vadd.f32 %v4505, %v4633
    %v4762 = vadd.f32 %v4506, %v4634
    %v4763 = vadd.f32 %v4507, %v4635
    %v4764 = vadd.f32 %v4508, %v4636
    %v4765 = vadd.f32 %v4509, %v4637
    %v4766 = vadd.f32 %v4510, %v4638
    %v4767 = vadd.f32 %v4511, %v4639
    %v4768 = vadd.f32 %v4512, %v4640
    %v4769 = vadd.f32 %v4513, %v4641
    %v4770 = vadd.f32 %v4514, %v4642
    %v4771 = vadd.f32 %v4515, %v4643
    %v4772 = vadd.f32 %v4516, %v4644
    %v4773 = vadd.f32 %v4517, %v4645
    %v4774 = vadd.f32 %v4518, %v4646
    %v4775 = vadd.f32 %v4519, %v4647
    %v4776 = vadd.f32 %v4520, %v4648
    %v4777 = vadd.f32 %v4521, %v4649
    %v4778 = vadd.f32 %v4522, %v4650
    %v4779 = vadd.f32 %v4523, %v4651
    %v4780 = vadd.f32 %v4524, %v4652
    %v4781 = vadd.f32 %v4525, %v4653
    %v4782 = vadd.f32 %v4526, %v4654
    %v4783 = vadd.f32 %v4527, %v4655
    %v4784 = vadd.f32 %v4528, %v4656
    %v4785 = vadd.f32 %v4529, %v4657
    %v4786 = vadd.f32 %v4530, %v4658
    %v4787 = vadd.f32 %v4531, %v4659
    %v4788 = vadd.f32 %v4532, %v4660
    %v4789 = vadd.f32 %v4533, %v4661
    %v4790 = vadd.f32 %v4534, %v4662
    %v4791 = vadd.f32 %v4535, %v4663
    %v4792 = vadd.f32 %v4536, %v4664
    %v4793 = vadd.f32 %v4537, %v4665
    %v4794 = vadd.f32 %v4538, %v4666
    %v4795 = vadd.f32 %v4539, %v4667
    %v4796 = vadd.f32 %v4540, %v4668
    %v4797 = vadd.f32 %v4541, %v4669
    %v4798 = vadd.f32 %v4542, %v4670
    %v4799 = vadd.f32 %v4543, %v4671
    %v4800 = vadd.f32 %v4544, %v4672
    %v4801 = vadd.f32 %v4545, %v4673
    %v4802 = vadd.f32 %v4546, %v4674
    %v4803 = vadd.f32 %v4547, %v4675
    %v4804 = vadd.f32 %v4548, %v4676
    %v4805 = vadd.f32 %v4549, %v4677
    %v4806 = vadd.f32 %v4550, %v4678
    %v4807 = vadd.f32 %v4551, %v4679
    %v4808 = vadd.f32 %v4552, %v4680
    %v4809 = vadd.f32 %v4553, %v4681
    %v4810 = vadd.f32 %v4554, %v4682
    %v4811 = vadd.f32 %v4555, %v4683
    %v4812 = vadd.f32 %v4556, %v4684
    %v4813 = vadd.f32 %v4557, %v4685
    %v4814 = vadd.f32 %v4558, %v4686
    %v4815 = vmax.f32 %v4687, 1e-12
    %v4816 = vmax.f32 %v4688, 1e-12
    %v4817 = vmax.f32 %v4689, 1e-12
    %v4818 = vmax.f32 %v4690, 1e-12
    %v4819 = vmax.f32 %v4691, 1e-12
    %v4820 = vmax.f32 %v4692, 1e-12
    %v4821 = vmax.f32 %v4693, 1e-12
    %v4822 = vmax.f32 %v4694, 1e-12
    %v4823 = vmax.f32 %v4695, 1e-12
    %v4824 = vmax.f32 %v4696, 1e-12
    %v4825 = vmax.f32 %v4697, 1e-12
    %v4826 = vmax.f32 %v4698, 1e-12
    %v4827 = vmax.f32 %v4699, 1e-12
    %v4828 = vmax.f32 %v4700, 1e-12
    %v4829 = vmax.f32 %v4701, 1e-12
    %v4830 = vmax.f32 %v4702, 1e-12
    %v4831 = vmax.f32 %v4703, 1e-12
    %v4832 = vmax.f32 %v4704, 1e-12
    %v4833 = vmax.f32 %v4705, 1e-12
    %v4834 = vmax.f32 %v4706, 1e-12
    %v4835 = vmax.f32 %v4707, 1e-12
    %v4836 = vmax.f32 %v4708, 1e-12
    %v4837 = vmax.f32 %v4709, 1e-12
    %v4838 = vmax.f32 %v4710, 1e-12
    %v4839 = vmax.f32 %v4711, 1e-12
    %v4840 = vmax.f32 %v4712, 1e-12
    %v4841 = vmax.f32 %v4713, 1e-12
    %v4842 = vmax.f32 %v4714, 1e-12
    %v4843 = vmax.f32 %v4715, 1e-12
    %v4844 = vmax.f32 %v4716, 1e-12
    %v4845 = vmax.f32 %v4717, 1e-12
    %v4846 = vmax.f32 %v4718, 1e-12
    %v4847 = vmax.f32 %v4719, 1e-12
    %v4848 = vmax.f32 %v4720, 1e-12
    %v4849 = vmax.f32 %v4721, 1e-12
    %v4850 = vmax.f32 %v4722, 1e-12
    %v4851 = vmax.f32 %v4723, 1e-12
    %v4852 = vmax.f32 %v4724, 1e-12
    %v4853 = vmax.f32 %v4725, 1e-12
    %v4854 = vmax.f32 %v4726, 1e-12
    %v4855 = vmax.f32 %v4727, 1e-12
    %v4856 = vmax.f32 %v4728, 1e-12
    %v4857 = vmax.f32 %v4729, 1e-12
    %v4858 = vmax.f32 %v4730, 1e-12
    %v4859 = vmax.f32 %v4731, 1e-12
    %v4860 = vmax.f32 %v4732, 1e-12
    %v4861 = vmax.f32 %v4733, 1e-12
    %v4862 = vmax.f32 %v4734, 1e-12
    %v4863 = vmax.f32 %v4735, 1e-12
    %v4864 = vmax.f32 %v4736, 1e-12
    %v4865 = vmax.f32 %v4737, 1e-12
    %v4866 = vmax.f32 %v4738, 1e-12
    %v4867 = vmax.f32 %v4739, 1e-12
    %v4868 = vmax.f32 %v4740, 1e-12
    %v4869 = vmax.f32 %v4741, 1e-12
    %v4870 = vmax.f32 %v4742, 1e-12
    %v4871 = vmax.f32 %v4743, 1e-12
    %v4872 = vmax.f32 %v4744, 1e-12
    %v4873 = vmax.f32 %v4745, 1e-12
    %v4874 = vmax.f32 %v4746, 1e-12
    %v4875 = vmax.f32 %v4747, 1e-12
    %v4876 = vmax.f32 %v4748, 1e-12
    %v4877 = vmax.f32 %v4749, 1e-12
    %v4878 = vmax.f32 %v4750, 1e-12
    %v4879 = vmax.f32 %v4751, 1e-12
    %v4880 = vmax.f32 %v4752, 1e-12
    %v4881 = vmax.f32 %v4753, 1e-12
    %v4882 = vmax.f32 %v4754, 1e-12
    %v4883 = vmax.f32 %v4755, 1e-12
    %v4884 = vmax.f32 %v4756, 1e-12
    %v4885 = vmax.f32 %v4757, 1e-12
    %v4886 = vmax.f32 %v4758, 1e-12
    %v4887 = vmax.f32 %v4759, 1e-12
    %v4888 = vmax.f32 %v4760, 1e-12
    %v4889 = vmax.f32 %v4761, 1e-12
    %v4890 = vmax.f32 %v4762, 1e-12
    %v4891 = vmax.f32 %v4763, 1e-12
    %v4892 = vmax.f32 %v4764, 1e-12
    %v4893 = vmax.f32 %v4765, 1e-12
    %v4894 = vmax.f32 %v4766, 1e-12
    %v4895 = vmax.f32 %v4767, 1e-12
    %v4896 = vmax.f32 %v4768, 1e-12
    %v4897 = vmax.f32 %v4769, 1e-12
    %v4898 = vmax.f32 %v4770, 1e-12
    %v4899 = vmax.f32 %v4771, 1e-12
    %v4900 = vmax.f32 %v4772, 1e-12
    %v4901 = vmax.f32 %v4773, 1e-12
    %v4902 = vmax.f32 %v4774, 1e-12
    %v4903 = vmax.f32 %v4775, 1e-12
    %v4904 = vmax.f32 %v4776, 1e-12
    %v4905 = vmax.f32 %v4777, 1e-12
    %v4906 = vmax.f32 %v4778, 1e-12
    %v4907 = vmax.f32 %v4779, 1e-12
    %v4908 = vmax.f32 %v4780, 1e-12
    %v4909 = vmax.f32 %v4781, 1e-12
    %v4910 = vmax.f32 %v4782, 1e-12
    %v4911 = vmax.f32 %v4783, 1e-12
    %v4912 = vmax.f32 %v4784, 1e-12
    %v4913 = vmax.f32 %v4785, 1e-12
    %v4914 = vmax.f32 %v4786, 1e-12
    %v4915 = vmax.f32 %v4787, 1e-12
    %v4916 = vmax.f32 %v4788, 1e-12
    %v4917 = vmax.f32 %v4789, 1e-12
    %v4918 = vmax.f32 %v4790, 1e-12
    %v4919 = vmax.f32 %v4791, 1e-12
    %v4920 = vmax.f32 %v4792, 1e-12
    %v4921 = vmax.f32 %v4793, 1e-12
    %v4922 = vmax.f32 %v4794, 1e-12
    %v4923 = vmax.f32 %v4795, 1e-12
    %v4924 = vmax.f32 %v4796, 1e-12
    %v4925 = vmax.f32 %v4797, 1e-12
    %v4926 = vmax.f32 %v4798, 1e-12
    %v4927 = vmax.f32 %v4799, 1e-12
    %v4928 = vmax.f32 %v4800, 1e-12
    %v4929 = vmax.f32 %v4801, 1e-12
    %v4930 = vmax.f32 %v4802, 1e-12
    %v4931 = vmax.f32 %v4803, 1e-12
    %v4932 = vmax.f32 %v4804, 1e-12
    %v4933 = vmax.f32 %v4805, 1e-12
    %v4934 = vmax.f32 %v4806, 1e-12
    %v4935 = vmax.f32 %v4807, 1e-12
    %v4936 = vmax.f32 %v4808, 1e-12
    %v4937 = vmax.f32 %v4809, 1e-12
    %v4938 = vmax.f32 %v4810, 1e-12
    %v4939 = vmax.f32 %v4811, 1e-12
    %v4940 = vmax.f32 %v4812, 1e-12
    %v4941 = vmax.f32 %v4813, 1e-12
    %v4942 = vmax.f32 %v4814, 1e-12
    %v4943 = vlog2.pop %v4815
    %v4944 = vmul.f32 %v4943, 0.6931472
    %v4945 = vlog2.pop %v4816
    %v4946 = vmul.f32 %v4945, 0.6931472
    %v4947 = vlog2.pop %v4817
    %v4948 = vmul.f32 %v4947, 0.6931472
    %v4949 = vlog2.pop %v4818
    %v4950 = vmul.f32 %v4949, 0.6931472
    %v4951 = vlog2.pop %v4819
    %v4952 = vmul.f32 %v4951, 0.6931472
    %v4953 = vlog2.pop %v4820
    %v4954 = vmul.f32 %v4953, 0.6931472
    %v4955 = vlog2.pop %v4821
    %v4956 = vmul.f32 %v4955, 0.6931472
    %v4957 = vlog2.pop %v4822
    %v4958 = vmul.f32 %v4957, 0.6931472
    %v4959 = vlog2.pop %v4823
    %v4960 = vmul.f32 %v4959, 0.6931472
    %v4961 = vlog2.pop %v4824
    %v4962 = vmul.f32 %v4961, 0.6931472
    %v4963 = vlog2.pop %v4825
    %v4964 = vmul.f32 %v4963, 0.6931472
    %v4965 = vlog2.pop %v4826
    %v4966 = vmul.f32 %v4965, 0.6931472
    %v4967 = vlog2.pop %v4827
    %v4968 = vmul.f32 %v4967, 0.6931472
    %v4969 = vlog2.pop %v4828
    %v4970 = vmul.f32 %v4969, 0.6931472
    %v4971 = vlog2.pop %v4829
    %v4972 = vmul.f32 %v4971, 0.6931472
    %v4973 = vlog2.pop %v4830
    %v4974 = vmul.f32 %v4973, 0.6931472
    %v4975 = vlog2.pop %v4831
    %v4976 = vmul.f32 %v4975, 0.6931472
    %v4977 = vlog2.pop %v4832
    %v4978 = vmul.f32 %v4977, 0.6931472
    %v4979 = vlog2.pop %v4833
    %v4980 = vmul.f32 %v4979, 0.6931472
    %v4981 = vlog2.pop %v4834
    %v4982 = vmul.f32 %v4981, 0.6931472
    %v4983 = vlog2.pop %v4835
    %v4984 = vmul.f32 %v4983, 0.6931472
    %v4985 = vlog2.pop %v4836
    %v4986 = vmul.f32 %v4985, 0.6931472
    %v4987 = vlog2.pop %v4837
    %v4988 = vmul.f32 %v4987, 0.6931472
    %v4989 = vlog2.pop %v4838
    %v4990 = vmul.f32 %v4989, 0.6931472
    %v4991 = vlog2.pop %v4839
    %v4992 = vmul.f32 %v4991, 0.6931472
    %v4993 = vlog2.pop %v4840
    %v4994 = vmul.f32 %v4993, 0.6931472
    %v4995 = vlog2.pop %v4841
    %v4996 = vmul.f32 %v4995, 0.6931472
    %v4997 = vlog2.pop %v4842
    %v4998 = vmul.f32 %v4997, 0.6931472
    %v4999 = vlog2.pop %v4843
    %v5000 = vmul.f32 %v4999, 0.6931472
    %v5001 = vlog2.pop %v4844
    %v5002 = vmul.f32 %v5001, 0.6931472
    %v5003 = vlog2.pop %v4845
    %v5004 = vmul.f32 %v5003, 0.6931472
    %v5005 = vlog2.pop %v4846
    %v5006 = vmul.f32 %v5005, 0.6931472
    %v5007 = vlog2.pop %v4847
    %v5008 = vmul.f32 %v5007, 0.6931472
    %v5009 = vlog2.pop %v4848
    %v5010 = vmul.f32 %v5009, 0.6931472
    %v5011 = vlog2.pop %v4849
    %v5012 = vmul.f32 %v5011, 0.6931472
    %v5013 = vlog2.pop %v4850
    %v5014 = vmul.f32 %v5013, 0.6931472
    %v5015 = vlog2.pop %v4851
    %v5016 = vmul.f32 %v5015, 0.6931472
    %v5017 = vlog2.pop %v4852
    %v5018 = vmul.f32 %v5017, 0.6931472
    %v5019 = vlog2.pop %v4853
    %v5020 = vmul.f32 %v5019, 0.6931472
    %v5021 = vlog2.pop %v4854
    %v5022 = vmul.f32 %v5021, 0.6931472
    %v5023 = vlog2.pop %v4855
    %v5024 = vmul.f32 %v5023, 0.6931472
    %v5025 = vlog2.pop %v4856
    %v5026 = vmul.f32 %v5025, 0.6931472
    %v5027 = vlog2.pop %v4857
    %v5028 = vmul.f32 %v5027, 0.6931472
    %v5029 = vlog2.pop %v4858
    %v5030 = vmul.f32 %v5029, 0.6931472
    %v5031 = vlog2.pop %v4859
    %v5032 = vmul.f32 %v5031, 0.6931472
    %v5033 = vlog2.pop %v4860
    %v5034 = vmul.f32 %v5033, 0.6931472
    %v5035 = vlog2.pop %v4861
    %v5036 = vmul.f32 %v5035, 0.6931472
    %v5037 = vlog2.pop %v4862
    %v5038 = vmul.f32 %v5037, 0.6931472
    %v5039 = vlog2.pop %v4863
    %v5040 = vmul.f32 %v5039, 0.6931472
    %v5041 = vlog2.pop %v4864
    %v5042 = vmul.f32 %v5041, 0.6931472
    %v5043 = vlog2.pop %v4865
    %v5044 = vmul.f32 %v5043, 0.6931472
    %v5045 = vlog2.pop %v4866
    %v5046 = vmul.f32 %v5045, 0.6931472
    %v5047 = vlog2.pop %v4867
    %v5048 = vmul.f32 %v5047, 0.6931472
    %v5049 = vlog2.pop %v4868
    %v5050 = vmul.f32 %v5049, 0.6931472
    %v5051 = vlog2.pop %v4869
    %v5052 = vmul.f32 %v5051, 0.6931472
    %v5053 = vlog2.pop %v4870
    %v5054 = vmul.f32 %v5053, 0.6931472
    %v5055 = vlog2.pop %v4871
    %v5056 = vmul.f32 %v5055, 0.6931472
    %v5057 = vlog2.pop %v4872
    %v5058 = vmul.f32 %v5057, 0.6931472
    %v5059 = vlog2.pop %v4873
    %v5060 = vmul.f32 %v5059, 0.6931472
    %v5061 = vlog2.pop %v4874
    %v5062 = vmul.f32 %v5061, 0.6931472
    %v5063 = vlog2.pop %v4875
    %v5064 = vmul.f32 %v5063, 0.6931472
    %v5065 = vlog2.pop %v4876
    %v5066 = vmul.f32 %v5065, 0.6931472
    %v5067 = vlog2.pop %v4877
    %v5068 = vmul.f32 %v5067, 0.6931472
    %v5069 = vlog2.pop %v4878
    %v5070 = vmul.f32 %v5069, 0.6931472
    %v5071 = vlog2.pop %v4879
    %v5072 = vmul.f32 %v5071, 0.6931472
    %v5073 = vlog2.pop %v4880
    %v5074 = vmul.f32 %v5073, 0.6931472
    %v5075 = vlog2.pop %v4881
    %v5076 = vmul.f32 %v5075, 0.6931472
    %v5077 = vlog2.pop %v4882
    %v5078 = vmul.f32 %v5077, 0.6931472
    %v5079 = vlog2.pop %v4883
    %v5080 = vmul.f32 %v5079, 0.6931472
    %v5081 = vlog2.pop %v4884
    %v5082 = vmul.f32 %v5081, 0.6931472
    %v5083 = vlog2.pop %v4885
    %v5084 = vmul.f32 %v5083, 0.6931472
    %v5085 = vlog2.pop %v4886
    %v5086 = vmul.f32 %v5085, 0.6931472
    %v5087 = vlog2.pop %v4887
    %v5088 = vmul.f32 %v5087, 0.6931472
    %v5089 = vlog2.pop %v4888
    %v5090 = vmul.f32 %v5089, 0.6931472
    %v5091 = vlog2.pop %v4889
    %v5092 = vmul.f32 %v5091, 0.6931472
    %v5093 = vlog2.pop %v4890
    %v5094 = vmul.f32 %v5093, 0.6931472
    %v5095 = vlog2.pop %v4891
    %v5096 = vmul.f32 %v5095, 0.6931472
    %v5097 = vlog2.pop %v4892
    %v5098 = vmul.f32 %v5097, 0.6931472
    %v5099 = vlog2.pop %v4893
    %v5100 = vmul.f32 %v5099, 0.6931472
    %v5101 = vlog2.pop %v4894
    %v5102 = vmul.f32 %v5101, 0.6931472
    %v5103 = vlog2.pop %v4895
    %v5104 = vmul.f32 %v5103, 0.6931472
    %v5105 = vlog2.pop %v4896
    %v5106 = vmul.f32 %v5105, 0.6931472
    %v5107 = vlog2.pop %v4897
    %v5108 = vmul.f32 %v5107, 0.6931472
    %v5109 = vlog2.pop %v4898
    %v5110 = vmul.f32 %v5109, 0.6931472
    %v5111 = vlog2.pop %v4899
    %v5112 = vmul.f32 %v5111, 0.6931472
    %v5113 = vlog2.pop %v4900
    %v5114 = vmul.f32 %v5113, 0.6931472
    %v5115 = vlog2.pop %v4901
    %v5116 = vmul.f32 %v5115, 0.6931472
    %v5117 = vlog2.pop %v4902
    %v5118 = vmul.f32 %v5117, 0.6931472
    %v5119 = vlog2.pop %v4903
    %v5120 = vmul.f32 %v5119, 0.6931472
    %v5121 = vlog2.pop %v4904
    %v5122 = vmul.f32 %v5121, 0.6931472
    %v5123 = vlog2.pop %v4905
    %v5124 = vmul.f32 %v5123, 0.6931472
    %v5125 = vlog2.pop %v4906
    %v5126 = vmul.f32 %v5125, 0.6931472
    %v5127 = vlog2.pop %v4907
    %v5128 = vmul.f32 %v5127, 0.6931472
    %v5129 = vlog2.pop %v4908
    %v5130 = vmul.f32 %v5129, 0.6931472
    %v5131 = vlog2.pop %v4909
    %v5132 = vmul.f32 %v5131, 0.6931472
    %v5133 = vlog2.pop %v4910
    %v5134 = vmul.f32 %v5133, 0.6931472
    %v5135 = vlog2.pop %v4911
    %v5136 = vmul.f32 %v5135, 0.6931472
    %v5137 = vlog2.pop %v4912
    %v5138 = vmul.f32 %v5137, 0.6931472
    %v5139 = vlog2.pop %v4913
    %v5140 = vmul.f32 %v5139, 0.6931472
    %v5141 = vlog2.pop %v4914
    %v5142 = vmul.f32 %v5141, 0.6931472
    %v5143 = vlog2.pop %v4915
    %v5144 = vmul.f32 %v5143, 0.6931472
    %v5145 = vlog2.pop %v4916
    %v5146 = vmul.f32 %v5145, 0.6931472
    %v5147 = vlog2.pop %v4917
    %v5148 = vmul.f32 %v5147, 0.6931472
    %v5149 = vlog2.pop %v4918
    %v5150 = vmul.f32 %v5149, 0.6931472
    %v5151 = vlog2.pop %v4919
    %v5152 = vmul.f32 %v5151, 0.6931472
    %v5153 = vlog2.pop %v4920
    %v5154 = vmul.f32 %v5153, 0.6931472
    %v5155 = vlog2.pop %v4921
    %v5156 = vmul.f32 %v5155, 0.6931472
    %v5157 = vlog2.pop %v4922
    %v5158 = vmul.f32 %v5157, 0.6931472
    %v5159 = vlog2.pop %v4923
    %v5160 = vmul.f32 %v5159, 0.6931472
    %v5161 = vlog2.pop %v4924
    %v5162 = vmul.f32 %v5161, 0.6931472
    %v5163 = vlog2.pop %v4925
    %v5164 = vmul.f32 %v5163, 0.6931472
    %v5165 = vlog2.pop %v4926
    %v5166 = vmul.f32 %v5165, 0.6931472
    %v5167 = vlog2.pop %v4927
    %v5168 = vmul.f32 %v5167, 0.6931472
    %v5169 = vlog2.pop %v4928
    %v5170 = vmul.f32 %v5169, 0.6931472
    %v5171 = vlog2.pop %v4929
    %v5172 = vmul.f32 %v5171, 0.6931472
    %v5173 = vlog2.pop %v4930
    %v5174 = vmul.f32 %v5173, 0.6931472
    %v5175 = vlog2.pop %v4931
    %v5176 = vmul.f32 %v5175, 0.6931472
    %v5177 = vlog2.pop %v4932
    %v5178 = vmul.f32 %v5177, 0.6931472
    %v5179 = vlog2.pop %v4933
    %v5180 = vmul.f32 %v5179, 0.6931472
    %v5181 = vlog2.pop %v4934
    %v5182 = vmul.f32 %v5181, 0.6931472
    %v5183 = vlog2.pop %v4935
    %v5184 = vmul.f32 %v5183, 0.6931472
    %v5185 = vlog2.pop %v4936
    %v5186 = vmul.f32 %v5185, 0.6931472
    %v5187 = vlog2.pop %v4937
    %v5188 = vmul.f32 %v5187, 0.6931472
    %v5189 = vlog2.pop %v4938
    %v5190 = vmul.f32 %v5189, 0.6931472
    %v5191 = vlog2.pop %v4939
    %v5192 = vmul.f32 %v5191, 0.6931472
    %v5193 = vlog2.pop %v4940
    %v5194 = vmul.f32 %v5193, 0.6931472
    %v5195 = vlog2.pop %v4941
    %v5196 = vmul.f32 %v5195, 0.6931472
    %v5197 = vlog2.pop %v4942
    %v5198 = vmul.f32 %v5197, 0.6931472
    %v5199 = vmul.f32 %v4944, 0.4342945
    %v5200 = vmul.f32 %v4946, 0.4342945
    %v5201 = vmul.f32 %v4948, 0.4342945
    %v5202 = vmul.f32 %v4950, 0.4342945
    %v5203 = vmul.f32 %v4952, 0.4342945
    %v5204 = vmul.f32 %v4954, 0.4342945
    %v5205 = vmul.f32 %v4956, 0.4342945
    %v5206 = vmul.f32 %v4958, 0.4342945
    %v5207 = vmul.f32 %v4960, 0.4342945
    %v5208 = vmul.f32 %v4962, 0.4342945
    %v5209 = vmul.f32 %v4964, 0.4342945
    %v5210 = vmul.f32 %v4966, 0.4342945
    %v5211 = vmul.f32 %v4968, 0.4342945
    %v5212 = vmul.f32 %v4970, 0.4342945
    %v5213 = vmul.f32 %v4972, 0.4342945
    %v5214 = vmul.f32 %v4974, 0.4342945
    %v5215 = vmul.f32 %v4976, 0.4342945
    %v5216 = vmul.f32 %v4978, 0.4342945
    %v5217 = vmul.f32 %v4980, 0.4342945
    %v5218 = vmul.f32 %v4982, 0.4342945
    %v5219 = vmul.f32 %v4984, 0.4342945
    %v5220 = vmul.f32 %v4986, 0.4342945
    %v5221 = vmul.f32 %v4988, 0.4342945
    %v5222 = vmul.f32 %v4990, 0.4342945
    %v5223 = vmul.f32 %v4992, 0.4342945
    %v5224 = vmul.f32 %v4994, 0.4342945
    %v5225 = vmul.f32 %v4996, 0.4342945
    %v5226 = vmul.f32 %v4998, 0.4342945
    %v5227 = vmul.f32 %v5000, 0.4342945
    %v5228 = vmul.f32 %v5002, 0.4342945
    %v5229 = vmul.f32 %v5004, 0.4342945
    %v5230 = vmul.f32 %v5006, 0.4342945
    %v5231 = vmul.f32 %v5008, 0.4342945
    %v5232 = vmul.f32 %v5010, 0.4342945
    %v5233 = vmul.f32 %v5012, 0.4342945
    %v5234 = vmul.f32 %v5014, 0.4342945
    %v5235 = vmul.f32 %v5016, 0.4342945
    %v5236 = vmul.f32 %v5018, 0.4342945
    %v5237 = vmul.f32 %v5020, 0.4342945
    %v5238 = vmul.f32 %v5022, 0.4342945
    %v5239 = vmul.f32 %v5024, 0.4342945
    %v5240 = vmul.f32 %v5026, 0.4342945
    %v5241 = vmul.f32 %v5028, 0.4342945
    %v5242 = vmul.f32 %v5030, 0.4342945
    %v5243 = vmul.f32 %v5032, 0.4342945
    %v5244 = vmul.f32 %v5034, 0.4342945
    %v5245 = vmul.f32 %v5036, 0.4342945
    %v5246 = vmul.f32 %v5038, 0.4342945
    %v5247 = vmul.f32 %v5040, 0.4342945
    %v5248 = vmul.f32 %v5042, 0.4342945
    %v5249 = vmul.f32 %v5044, 0.4342945
    %v5250 = vmul.f32 %v5046, 0.4342945
    %v5251 = vmul.f32 %v5048, 0.4342945
    %v5252 = vmul.f32 %v5050, 0.4342945
    %v5253 = vmul.f32 %v5052, 0.4342945
    %v5254 = vmul.f32 %v5054, 0.4342945
    %v5255 = vmul.f32 %v5056, 0.4342945
    %v5256 = vmul.f32 %v5058, 0.4342945
    %v5257 = vmul.f32 %v5060, 0.4342945
    %v5258 = vmul.f32 %v5062, 0.4342945
    %v5259 = vmul.f32 %v5064, 0.4342945
    %v5260 = vmul.f32 %v5066, 0.4342945
    %v5261 = vmul.f32 %v5068, 0.4342945
    %v5262 = vmul.f32 %v5070, 0.4342945
    %v5263 = vmul.f32 %v5072, 0.4342945
    %v5264 = vmul.f32 %v5074, 0.4342945
    %v5265 = vmul.f32 %v5076, 0.4342945
    %v5266 = vmul.f32 %v5078, 0.4342945
    %v5267 = vmul.f32 %v5080, 0.4342945
    %v5268 = vmul.f32 %v5082, 0.4342945
    %v5269 = vmul.f32 %v5084, 0.4342945
    %v5270 = vmul.f32 %v5086, 0.4342945
    %v5271 = vmul.f32 %v5088, 0.4342945
    %v5272 = vmul.f32 %v5090, 0.4342945
    %v5273 = vmul.f32 %v5092, 0.4342945
    %v5274 = vmul.f32 %v5094, 0.4342945
    %v5275 = vmul.f32 %v5096, 0.4342945
    %v5276 = vmul.f32 %v5098, 0.4342945
    %v5277 = vmul.f32 %v5100, 0.4342945
    %v5278 = vmul.f32 %v5102, 0.4342945
    %v5279 = vmul.f32 %v5104, 0.4342945
    %v5280 = vmul.f32 %v5106, 0.4342945
    %v5281 = vmul.f32 %v5108, 0.4342945
    %v5282 = vmul.f32 %v5110, 0.4342945
    %v5283 = vmul.f32 %v5112, 0.4342945
    %v5284 = vmul.f32 %v5114, 0.4342945
    %v5285 = vmul.f32 %v5116, 0.4342945
    %v5286 = vmul.f32 %v5118, 0.4342945
    %v5287 = vmul.f32 %v5120, 0.4342945
    %v5288 = vmul.f32 %v5122, 0.4342945
    %v5289 = vmul.f32 %v5124, 0.4342945
    %v5290 = vmul.f32 %v5126, 0.4342945
    %v5291 = vmul.f32 %v5128, 0.4342945
    %v5292 = vmul.f32 %v5130, 0.4342945
    %v5293 = vmul.f32 %v5132, 0.4342945
    %v5294 = vmul.f32 %v5134, 0.4342945
    %v5295 = vmul.f32 %v5136, 0.4342945
    %v5296 = vmul.f32 %v5138, 0.4342945
    %v5297 = vmul.f32 %v5140, 0.4342945
    %v5298 = vmul.f32 %v5142, 0.4342945
    %v5299 = vmul.f32 %v5144, 0.4342945
    %v5300 = vmul.f32 %v5146, 0.4342945
    %v5301 = vmul.f32 %v5148, 0.4342945
    %v5302 = vmul.f32 %v5150, 0.4342945
    %v5303 = vmul.f32 %v5152, 0.4342945
    %v5304 = vmul.f32 %v5154, 0.4342945
    %v5305 = vmul.f32 %v5156, 0.4342945
    %v5306 = vmul.f32 %v5158, 0.4342945
    %v5307 = vmul.f32 %v5160, 0.4342945
    %v5308 = vmul.f32 %v5162, 0.4342945
    %v5309 = vmul.f32 %v5164, 0.4342945
    %v5310 = vmul.f32 %v5166, 0.4342945
    %v5311 = vmul.f32 %v5168, 0.4342945
    %v5312 = vmul.f32 %v5170, 0.4342945
    %v5313 = vmul.f32 %v5172, 0.4342945
    %v5314 = vmul.f32 %v5174, 0.4342945
    %v5315 = vmul.f32 %v5176, 0.4342945
    %v5316 = vmul.f32 %v5178, 0.4342945
    %v5317 = vmul.f32 %v5180, 0.4342945
    %v5318 = vmul.f32 %v5182, 0.4342945
    %v5319 = vmul.f32 %v5184, 0.4342945
    %v5320 = vmul.f32 %v5186, 0.4342945
    %v5321 = vmul.f32 %v5188, 0.4342945
    %v5322 = vmul.f32 %v5190, 0.4342945
    %v5323 = vmul.f32 %v5192, 0.4342945
    %v5324 = vmul.f32 %v5194, 0.4342945
    %v5325 = vmul.f32 %v5196, 0.4342945
    %v5326 = vmul.f32 %v5198, 0.4342945
    %v5327 = vpack.c.bf16 %v5203, %v5199
    %v5328 = vpack.c.bf16 %v5204, %v5200
    %v5329 = vpack.c.bf16 %v5205, %v5201
    %v5330 = vpack.c.bf16 %v5206, %v5202
    %v5331 = vpack.c.bf16 %v5211, %v5207
    %v5332 = vpack.c.bf16 %v5212, %v5208
    %v5333 = vpack.c.bf16 %v5213, %v5209
    %v5334 = vpack.c.bf16 %v5214, %v5210
    %v5335 = vpack.c.bf16 %v5219, %v5215
    %v5336 = vpack.c.bf16 %v5220, %v5216
    %v5337 = vpack.c.bf16 %v5221, %v5217
    %v5338 = vpack.c.bf16 %v5222, %v5218
    %v5339 = vpack.c.bf16 %v5227, %v5223
    %v5340 = vpack.c.bf16 %v5228, %v5224
    %v5341 = vpack.c.bf16 %v5229, %v5225
    %v5342 = vpack.c.bf16 %v5230, %v5226
    %v5343 = vpack.c.bf16 %v5235, %v5231
    %v5344 = vpack.c.bf16 %v5236, %v5232
    %v5345 = vpack.c.bf16 %v5237, %v5233
    %v5346 = vpack.c.bf16 %v5238, %v5234
    %v5347 = vpack.c.bf16 %v5243, %v5239
    %v5348 = vpack.c.bf16 %v5244, %v5240
    %v5349 = vpack.c.bf16 %v5245, %v5241
    %v5350 = vpack.c.bf16 %v5246, %v5242
    %v5351 = vpack.c.bf16 %v5251, %v5247
    %v5352 = vpack.c.bf16 %v5252, %v5248
    %v5353 = vpack.c.bf16 %v5253, %v5249
    %v5354 = vpack.c.bf16 %v5254, %v5250
    %v5355 = vpack.c.bf16 %v5259, %v5255
    %v5356 = vpack.c.bf16 %v5260, %v5256
    %v5357 = vpack.c.bf16 %v5261, %v5257
    %v5358 = vpack.c.bf16 %v5262, %v5258
    %v5359 = vpack.c.bf16 %v5267, %v5263
    %v5360 = vpack.c.bf16 %v5268, %v5264
    %v5361 = vpack.c.bf16 %v5269, %v5265
    %v5362 = vpack.c.bf16 %v5270, %v5266
    %v5363 = vpack.c.bf16 %v5275, %v5271
    %v5364 = vpack.c.bf16 %v5276, %v5272
    %v5365 = vpack.c.bf16 %v5277, %v5273
    %v5366 = vpack.c.bf16 %v5278, %v5274
    %v5367 = vpack.c.bf16 %v5283, %v5279
    %v5368 = vpack.c.bf16 %v5284, %v5280
    %v5369 = vpack.c.bf16 %v5285, %v5281
    %v5370 = vpack.c.bf16 %v5286, %v5282
    %v5371 = vpack.c.bf16 %v5291, %v5287
    %v5372 = vpack.c.bf16 %v5292, %v5288
    %v5373 = vpack.c.bf16 %v5293, %v5289
    %v5374 = vpack.c.bf16 %v5294, %v5290
    %v5375 = vpack.c.bf16 %v5299, %v5295
    %v5376 = vpack.c.bf16 %v5300, %v5296
    %v5377 = vpack.c.bf16 %v5301, %v5297
    %v5378 = vpack.c.bf16 %v5302, %v5298
    %v5379 = vpack.c.bf16 %v5307, %v5303
    %v5380 = vpack.c.bf16 %v5308, %v5304
    %v5381 = vpack.c.bf16 %v5309, %v5305
    %v5382 = vpack.c.bf16 %v5310, %v5306
    %v5383 = vpack.c.bf16 %v5315, %v5311
    %v5384 = vpack.c.bf16 %v5316, %v5312
    %v5385 = vpack.c.bf16 %v5317, %v5313
    %v5386 = vpack.c.bf16 %v5318, %v5314
    %v5387 = vpack.c.bf16 %v5323, %v5319
    %v5388 = vpack.c.bf16 %v5324, %v5320
    %v5389 = vpack.c.bf16 %v5325, %v5321
    %v5390 = vpack.c.bf16 %v5326, %v5322
    %v5391 = vld [vmem:[#allocation7] sm:$0xff]
    %v5392 = vld [vmem:[#allocation7 + $0x8] sm:$0xff]
    %v5393 = vld [vmem:[#allocation7 + $0x10] sm:$0xff]
    %v5394 = vld [vmem:[#allocation7 + $0x18] sm:$0xff]
    %v5395 = vld [vmem:[#allocation7 + $0x20] sm:$0xff]
    %v5396 = vld [vmem:[#allocation7 + $0x28] sm:$0xff]
    %v5397 = vld [vmem:[#allocation7 + $0x30] sm:$0xff]
    %v5398 = vld [vmem:[#allocation7 + $0x38] sm:$0xff]
    %v5399 = vld [vmem:[#allocation7 + $0x40] sm:$0xff]
    %v5400 = vld [vmem:[#allocation7 + $0x48] sm:$0xff]
    %v5401 = vld [vmem:[#allocation7 + $0x50] sm:$0xff]
    %v5402 = vld [vmem:[#allocation7 + $0x58] sm:$0xff]
    %v5403 = vld [vmem:[#allocation7 + $0x60] sm:$0xff]
    %v5404 = vld [vmem:[#allocation7 + $0x68] sm:$0xff]
    %v5405 = vld [vmem:[#allocation7 + $0x70] sm:$0xff]
    %v5406 = vld [vmem:[#allocation7 + $0x78] sm:$0xff]
    %v5407 = vld [vmem:[#allocation7 + $0x80] sm:$0xff]
    %v5408 = vld [vmem:[#allocation7 + $0x88] sm:$0xff]
    %v5409 = vld [vmem:[#allocation7 + $0x90] sm:$0xff]
    %v5410 = vld [vmem:[#allocation7 + $0x98] sm:$0xff]
    %v5411 = vld [vmem:[#allocation7 + $0xa0] sm:$0xff]
    %v5412 = vld [vmem:[#allocation7 + $0xa8] sm:$0xff]
    %v5413 = vld [vmem:[#allocation7 + $0xb0] sm:$0xff]
    %v5414 = vld [vmem:[#allocation7 + $0xb8] sm:$0xff]
    %v5415 = vld [vmem:[#allocation7 + $0xc0] sm:$0xff]
    %v5416 = vld [vmem:[#allocation7 + $0xc8] sm:$0xff]
    %v5417 = vld [vmem:[#allocation7 + $0xd0] sm:$0xff]
    %v5418 = vld [vmem:[#allocation7 + $0xd8] sm:$0xff]
    %v5419 = vld [vmem:[#allocation7 + $0xe0] sm:$0xff]
    %v5420 = vld [vmem:[#allocation7 + $0xe8] sm:$0xff]
    %v5421 = vld [vmem:[#allocation7 + $0xf0] sm:$0xff]
    %v5422 = vld [vmem:[#allocation7 + $0xf8] sm:$0xff]
    %v5423 = vld [vmem:[#allocation7 + $0x100] sm:$0xff]
    %v5424 = vld [vmem:[#allocation7 + $0x108] sm:$0xff]
    %v5425 = vld [vmem:[#allocation7 + $0x110] sm:$0xff]
    %v5426 = vld [vmem:[#allocation7 + $0x118] sm:$0xff]
    %v5427 = vld [vmem:[#allocation7 + $0x120] sm:$0xff]
    %v5428 = vld [vmem:[#allocation7 + $0x128] sm:$0xff]
    %v5429 = vld [vmem:[#allocation7 + $0x130] sm:$0xff]
    %v5430 = vld [vmem:[#allocation7 + $0x138] sm:$0xff]
    %v5431 = vld [vmem:[#allocation7 + $0x140] sm:$0xff]
    %v5432 = vld [vmem:[#allocation7 + $0x148] sm:$0xff]
    %v5433 = vld [vmem:[#allocation7 + $0x150] sm:$0xff]
    %v5434 = vld [vmem:[#allocation7 + $0x158] sm:$0xff]
    %v5435 = vld [vmem:[#allocation7 + $0x160] sm:$0xff]
    %v5436 = vld [vmem:[#allocation7 + $0x168] sm:$0xff]
    %v5437 = vld [vmem:[#allocation7 + $0x170] sm:$0xff]
    %v5438 = vld [vmem:[#allocation7 + $0x178] sm:$0xff]
    %v5439 = vld [vmem:[#allocation7 + $0x180] sm:$0xff]
    %v5440 = vld [vmem:[#allocation7 + $0x188] sm:$0xff]
    %v5441 = vld [vmem:[#allocation7 + $0x190] sm:$0xff]
    %v5442 = vld [vmem:[#allocation7 + $0x198] sm:$0xff]
    %v5443 = vld [vmem:[#allocation7 + $0x1a0] sm:$0xff]
    %v5444 = vld [vmem:[#allocation7 + $0x1a8] sm:$0xff]
    %v5445 = vld [vmem:[#allocation7 + $0x1b0] sm:$0xff]
    %v5446 = vld [vmem:[#allocation7 + $0x1b8] sm:$0xff]
    %v5447 = vld [vmem:[#allocation7 + $0x1c0] sm:$0xff]
    %v5448 = vld [vmem:[#allocation7 + $0x1c8] sm:$0xff]
    %v5449 = vld [vmem:[#allocation7 + $0x1d0] sm:$0xff]
    %v5450 = vld [vmem:[#allocation7 + $0x1d8] sm:$0xff]
    %v5451 = vld [vmem:[#allocation7 + $0x1e0] sm:$0xff]
    %v5452 = vld [vmem:[#allocation7 + $0x1e8] sm:$0xff]
    %v5453 = vld [vmem:[#allocation7 + $0x1f0] sm:$0xff]
    %v5454 = vld [vmem:[#allocation7 + $0x1f8] sm:$0xff]
    %v5455 = vld [vmem:[#allocation7 + $0x200] sm:$0xff]
    %v5456 = vld [vmem:[#allocation7 + $0x208] sm:$0xff]
    %v5457 = vld [vmem:[#allocation7 + $0x210] sm:$0xff]
    %v5458 = vld [vmem:[#allocation7 + $0x218] sm:$0xff]
    %v5459 = vld [vmem:[#allocation7 + $0x220] sm:$0xff]
    %v5460 = vld [vmem:[#allocation7 + $0x228] sm:$0xff]
    %v5461 = vld [vmem:[#allocation7 + $0x230] sm:$0xff]
    %v5462 = vld [vmem:[#allocation7 + $0x238] sm:$0xff]
    %v5463 = vld [vmem:[#allocation7 + $0x240] sm:$0xff]
    %v5464 = vld [vmem:[#allocation7 + $0x248] sm:$0xff]
    %v5465 = vld [vmem:[#allocation7 + $0x250] sm:$0xff]
    %v5466 = vld [vmem:[#allocation7 + $0x258] sm:$0xff]
    %v5467 = vld [vmem:[#allocation7 + $0x260] sm:$0xff]
    %v5468 = vld [vmem:[#allocation7 + $0x268] sm:$0xff]
    %v5469 = vld [vmem:[#allocation7 + $0x270] sm:$0xff]
    %v5470 = vld [vmem:[#allocation7 + $0x278] sm:$0xff]
    %v5471 = vld [vmem:[#allocation7 + $0x280] sm:$0xff]
    %v5472 = vld [vmem:[#allocation7 + $0x288] sm:$0xff]
    %v5473 = vld [vmem:[#allocation7 + $0x290] sm:$0xff]
    %v5474 = vld [vmem:[#allocation7 + $0x298] sm:$0xff]
    %v5475 = vld [vmem:[#allocation7 + $0x2a0] sm:$0xff]
    %v5476 = vld [vmem:[#allocation7 + $0x2a8] sm:$0xff]
    %v5477 = vld [vmem:[#allocation7 + $0x2b0] sm:$0xff]
    %v5478 = vld [vmem:[#allocation7 + $0x2b8] sm:$0xff]
    %v5479 = vld [vmem:[#allocation7 + $0x2c0] sm:$0xff]
    %v5480 = vld [vmem:[#allocation7 + $0x2c8] sm:$0xff]
    %v5481 = vld [vmem:[#allocation7 + $0x2d0] sm:$0xff]
    %v5482 = vld [vmem:[#allocation7 + $0x2d8] sm:$0xff]
    %v5483 = vld [vmem:[#allocation7 + $0x2e0] sm:$0xff]
    %v5484 = vld [vmem:[#allocation7 + $0x2e8] sm:$0xff]
    %v5485 = vld [vmem:[#allocation7 + $0x2f0] sm:$0xff]
    %v5486 = vld [vmem:[#allocation7 + $0x2f8] sm:$0xff]
    %v5487 = vld [vmem:[#allocation7 + $0x300] sm:$0xff]
    %v5488 = vld [vmem:[#allocation7 + $0x308] sm:$0xff]
    %v5489 = vld [vmem:[#allocation7 + $0x310] sm:$0xff]
    %v5490 = vld [vmem:[#allocation7 + $0x318] sm:$0xff]
    %v5491 = vld [vmem:[#allocation7 + $0x320] sm:$0xff]
    %v5492 = vld [vmem:[#allocation7 + $0x328] sm:$0xff]
    %v5493 = vld [vmem:[#allocation7 + $0x330] sm:$0xff]
    %v5494 = vld [vmem:[#allocation7 + $0x338] sm:$0xff]
    %v5495 = vld [vmem:[#allocation7 + $0x340] sm:$0xff]
    %v5496 = vld [vmem:[#allocation7 + $0x348] sm:$0xff]
    %v5497 = vld [vmem:[#allocation7 + $0x350] sm:$0xff]
    %v5498 = vld [vmem:[#allocation7 + $0x358] sm:$0xff]
    %v5499 = vld [vmem:[#allocation7 + $0x360] sm:$0xff]
    %v5500 = vld [vmem:[#allocation7 + $0x368] sm:$0xff]
    %v5501 = vld [vmem:[#allocation7 + $0x370] sm:$0xff]
    %v5502 = vld [vmem:[#allocation7 + $0x378] sm:$0xff]
    %v5503 = vld [vmem:[#allocation7 + $0x380] sm:$0xff]
    %v5504 = vld [vmem:[#allocation7 + $0x388] sm:$0xff]
    %v5505 = vld [vmem:[#allocation7 + $0x390] sm:$0xff]
    %v5506 = vld [vmem:[#allocation7 + $0x398] sm:$0xff]
    %v5507 = vld [vmem:[#allocation7 + $0x3a0] sm:$0xff]
    %v5508 = vld [vmem:[#allocation7 + $0x3a8] sm:$0xff]
    %v5509 = vld [vmem:[#allocation7 + $0x3b0] sm:$0xff]
    %v5510 = vld [vmem:[#allocation7 + $0x3b8] sm:$0xff]
    %v5511 = vld [vmem:[#allocation7 + $0x3c0] sm:$0xff]
    %v5512 = vld [vmem:[#allocation7 + $0x3c8] sm:$0xff]
    %v5513 = vld [vmem:[#allocation7 + $0x3d0] sm:$0xff]
    %v5514 = vld [vmem:[#allocation7 + $0x3d8] sm:$0xff]
    %v5515 = vld [vmem:[#allocation7 + $0x3e0] sm:$0xff]
    %v5516 = vld [vmem:[#allocation7 + $0x3e8] sm:$0xff]
    %v5517 = vld [vmem:[#allocation7 + $0x3f0] sm:$0xff]
    %v5518 = vld [vmem:[#allocation7 + $0x3f8] sm:$0xff]
    %v5519 = vld [vmem:[%s3] sm:$0xf]
    %v5521 = vlaneseq
    %v5522 = vshrl.u32 %v5521, 7
    %v5523 = vsub.s32 0, %v5522
    %v5524 = vrot.slane %v5519, %v5523
    %v5525 = vlaneseq
    %v5526 = vshrl.u32 %v5525, 7
    %v5527 = vsub.s32 1, %v5526
    %v5528 = vrot.slane %v5519, %v5527
    %v5529 = vlaneseq
    %v5530 = vshrl.u32 %v5529, 7
    %v5531 = vsub.s32 2, %v5530
    %v5532 = vrot.slane %v5519, %v5531
    %v5533 = vlaneseq
    %v5534 = vshrl.u32 %v5533, 7
    %v5535 = vsub.s32 3, %v5534
    %v5536 = vrot.slane %v5519, %v5535
    %v5669 = vunpack.c.l.b16 %v5391
    %v5670 = vunpack.c.h.b16 %v5391
    %v5671 = vunpack.c.l.b16 %v5392
    %v5672 = vunpack.c.h.b16 %v5392
    %v5673 = vunpack.c.l.b16 %v5393
    %v5674 = vunpack.c.h.b16 %v5393
    %v5675 = vunpack.c.l.b16 %v5394
    %v5676 = vunpack.c.h.b16 %v5394
    %v5677 = vunpack.c.l.b16 %v5395
    %v5678 = vunpack.c.h.b16 %v5395
    %v5679 = vunpack.c.l.b16 %v5396
    %v5680 = vunpack.c.h.b16 %v5396
    %v5681 = vunpack.c.l.b16 %v5397
    %v5682 = vunpack.c.h.b16 %v5397
    %v5683 = vunpack.c.l.b16 %v5398
    %v5684 = vunpack.c.h.b16 %v5398
    %v5685 = vunpack.c.l.b16 %v5399
    %v5686 = vunpack.c.h.b16 %v5399
    %v5687 = vunpack.c.l.b16 %v5400
    %v5688 = vunpack.c.h.b16 %v5400
    %v5689 = vunpack.c.l.b16 %v5401
    %v5690 = vunpack.c.h.b16 %v5401
    %v5691 = vunpack.c.l.b16 %v5402
    %v5692 = vunpack.c.h.b16 %v5402
    %v5693 = vunpack.c.l.b16 %v5403
    %v5694 = vunpack.c.h.b16 %v5403
    %v5695 = vunpack.c.l.b16 %v5404
    %v5696 = vunpack.c.h.b16 %v5404
    %v5697 = vunpack.c.l.b16 %v5405
    %v5698 = vunpack.c.h.b16 %v5405
    %v5699 = vunpack.c.l.b16 %v5406
    %v5700 = vunpack.c.h.b16 %v5406
    %v5701 = vunpack.c.l.b16 %v5407
    %v5702 = vunpack.c.h.b16 %v5407
    %v5703 = vunpack.c.l.b16 %v5408
    %v5704 = vunpack.c.h.b16 %v5408
    %v5705 = vunpack.c.l.b16 %v5409
    %v5706 = vunpack.c.h.b16 %v5409
    %v5707 = vunpack.c.l.b16 %v5410
    %v5708 = vunpack.c.h.b16 %v5410
    %v5709 = vunpack.c.l.b16 %v5411
    %v5710 = vunpack.c.h.b16 %v5411
    %v5711 = vunpack.c.l.b16 %v5412
    %v5712 = vunpack.c.h.b16 %v5412
    %v5713 = vunpack.c.l.b16 %v5413
    %v5714 = vunpack.c.h.b16 %v5413
    %v5715 = vunpack.c.l.b16 %v5414
    %v5716 = vunpack.c.h.b16 %v5414
    %v5717 = vunpack.c.l.b16 %v5415
    %v5718 = vunpack.c.h.b16 %v5415
    %v5719 = vunpack.c.l.b16 %v5416
    %v5720 = vunpack.c.h.b16 %v5416
    %v5721 = vunpack.c.l.b16 %v5417
    %v5722 = vunpack.c.h.b16 %v5417
    %v5723 = vunpack.c.l.b16 %v5418
    %v5724 = vunpack.c.h.b16 %v5418
    %v5725 = vunpack.c.l.b16 %v5419
    %v5726 = vunpack.c.h.b16 %v5419
    %v5727 = vunpack.c.l.b16 %v5420
    %v5728 = vunpack.c.h.b16 %v5420
    %v5729 = vunpack.c.l.b16 %v5421
    %v5730 = vunpack.c.h.b16 %v5421
    %v5731 = vunpack.c.l.b16 %v5422
    %v5732 = vunpack.c.h.b16 %v5422
    %v5733 = vunpack.c.l.b16 %v5423
    %v5734 = vunpack.c.h.b16 %v5423
    %v5735 = vunpack.c.l.b16 %v5424
    %v5736 = vunpack.c.h.b16 %v5424
    %v5737 = vunpack.c.l.b16 %v5425
    %v5738 = vunpack.c.h.b16 %v5425
    %v5739 = vunpack.c.l.b16 %v5426
    %v5740 = vunpack.c.h.b16 %v5426
    %v5741 = vunpack.c.l.b16 %v5427
    %v5742 = vunpack.c.h.b16 %v5427
    %v5743 = vunpack.c.l.b16 %v5428
    %v5744 = vunpack.c.h.b16 %v5428
    %v5745 = vunpack.c.l.b16 %v5429
    %v5746 = vunpack.c.h.b16 %v5429
    %v5747 = vunpack.c.l.b16 %v5430
    %v5748 = vunpack.c.h.b16 %v5430
    %v5749 = vunpack.c.l.b16 %v5431
    %v5750 = vunpack.c.h.b16 %v5431
    %v5751 = vunpack.c.l.b16 %v5432
    %v5752 = vunpack.c.h.b16 %v5432
    %v5753 = vunpack.c.l.b16 %v5433
    %v5754 = vunpack.c.h.b16 %v5433
    %v5755 = vunpack.c.l.b16 %v5434
    %v5756 = vunpack.c.h.b16 %v5434
    %v5757 = vunpack.c.l.b16 %v5435
    %v5758 = vunpack.c.h.b16 %v5435
    %v5759 = vunpack.c.l.b16 %v5436
    %v5760 = vunpack.c.h.b16 %v5436
    %v5761 = vunpack.c.l.b16 %v5437
    %v5762 = vunpack.c.h.b16 %v5437
    %v5763 = vunpack.c.l.b16 %v5438
    %v5764 = vunpack.c.h.b16 %v5438
    %v5765 = vunpack.c.l.b16 %v5439
    %v5766 = vunpack.c.h.b16 %v5439
    %v5767 = vunpack.c.l.b16 %v5440
    %v5768 = vunpack.c.h.b16 %v5440
    %v5769 = vunpack.c.l.b16 %v5441
    %v5770 = vunpack.c.h.b16 %v5441
    %v5771 = vunpack.c.l.b16 %v5442
    %v5772 = vunpack.c.h.b16 %v5442
    %v5773 = vunpack.c.l.b16 %v5443
    %v5774 = vunpack.c.h.b16 %v5443
    %v5775 = vunpack.c.l.b16 %v5444
    %v5776 = vunpack.c.h.b16 %v5444
    %v5777 = vunpack.c.l.b16 %v5445
    %v5778 = vunpack.c.h.b16 %v5445
    %v5779 = vunpack.c.l.b16 %v5446
    %v5780 = vunpack.c.h.b16 %v5446
    %v5781 = vunpack.c.l.b16 %v5447
    %v5782 = vunpack.c.h.b16 %v5447
    %v5783 = vunpack.c.l.b16 %v5448
    %v5784 = vunpack.c.h.b16 %v5448
    %v5785 = vunpack.c.l.b16 %v5449
    %v5786 = vunpack.c.h.b16 %v5449
    %v5787 = vunpack.c.l.b16 %v5450
    %v5788 = vunpack.c.h.b16 %v5450
    %v5789 = vunpack.c.l.b16 %v5451
    %v5790 = vunpack.c.h.b16 %v5451
    %v5791 = vunpack.c.l.b16 %v5452
    %v5792 = vunpack.c.h.b16 %v5452
    %v5793 = vunpack.c.l.b16 %v5453
    %v5794 = vunpack.c.h.b16 %v5453
    %v5795 = vunpack.c.l.b16 %v5454
    %v5796 = vunpack.c.h.b16 %v5454
    %v5797 = vunpack.c.l.b16 %v5455
    %v5798 = vunpack.c.h.b16 %v5455
    %v5799 = vunpack.c.l.b16 %v5456
    %v5800 = vunpack.c.h.b16 %v5456
    %v5801 = vunpack.c.l.b16 %v5457
    %v5802 = vunpack.c.h.b16 %v5457
    %v5803 = vunpack.c.l.b16 %v5458
    %v5804 = vunpack.c.h.b16 %v5458
    %v5805 = vunpack.c.l.b16 %v5459
    %v5806 = vunpack.c.h.b16 %v5459
    %v5807 = vunpack.c.l.b16 %v5460
    %v5808 = vunpack.c.h.b16 %v5460
    %v5809 = vunpack.c.l.b16 %v5461
    %v5810 = vunpack.c.h.b16 %v5461
    %v5811 = vunpack.c.l.b16 %v5462
    %v5812 = vunpack.c.h.b16 %v5462
    %v5813 = vunpack.c.l.b16 %v5463
    %v5814 = vunpack.c.h.b16 %v5463
    %v5815 = vunpack.c.l.b16 %v5464
    %v5816 = vunpack.c.h.b16 %v5464
    %v5817 = vunpack.c.l.b16 %v5465
    %v5818 = vunpack.c.h.b16 %v5465
    %v5819 = vunpack.c.l.b16 %v5466
    %v5820 = vunpack.c.h.b16 %v5466
    %v5821 = vunpack.c.l.b16 %v5467
    %v5822 = vunpack.c.h.b16 %v5467
    %v5823 = vunpack.c.l.b16 %v5468
    %v5824 = vunpack.c.h.b16 %v5468
    %v5825 = vunpack.c.l.b16 %v5469
    %v5826 = vunpack.c.h.b16 %v5469
    %v5827 = vunpack.c.l.b16 %v5470
    %v5828 = vunpack.c.h.b16 %v5470
    %v5829 = vunpack.c.l.b16 %v5471
    %v5830 = vunpack.c.h.b16 %v5471
    %v5831 = vunpack.c.l.b16 %v5472
    %v5832 = vunpack.c.h.b16 %v5472
    %v5833 = vunpack.c.l.b16 %v5473
    %v5834 = vunpack.c.h.b16 %v5473
    %v5835 = vunpack.c.l.b16 %v5474
    %v5836 = vunpack.c.h.b16 %v5474
    %v5837 = vunpack.c.l.b16 %v5475
    %v5838 = vunpack.c.h.b16 %v5475
    %v5839 = vunpack.c.l.b16 %v5476
    %v5840 = vunpack.c.h.b16 %v5476
    %v5841 = vunpack.c.l.b16 %v5477
    %v5842 = vunpack.c.h.b16 %v5477
    %v5843 = vunpack.c.l.b16 %v5478
    %v5844 = vunpack.c.h.b16 %v5478
    %v5845 = vunpack.c.l.b16 %v5479
    %v5846 = vunpack.c.h.b16 %v5479
    %v5847 = vunpack.c.l.b16 %v5480
    %v5848 = vunpack.c.h.b16 %v5480
    %v5849 = vunpack.c.l.b16 %v5481
    %v5850 = vunpack.c.h.b16 %v5481
    %v5851 = vunpack.c.l.b16 %v5482
    %v5852 = vunpack.c.h.b16 %v5482
    %v5853 = vunpack.c.l.b16 %v5483
    %v5854 = vunpack.c.h.b16 %v5483
    %v5855 = vunpack.c.l.b16 %v5484
    %v5856 = vunpack.c.h.b16 %v5484
    %v5857 = vunpack.c.l.b16 %v5485
    %v5858 = vunpack.c.h.b16 %v5485
    %v5859 = vunpack.c.l.b16 %v5486
    %v5860 = vunpack.c.h.b16 %v5486
    %v5861 = vunpack.c.l.b16 %v5487
    %v5862 = vunpack.c.h.b16 %v5487
    %v5863 = vunpack.c.l.b16 %v5488
    %v5864 = vunpack.c.h.b16 %v5488
    %v5865 = vunpack.c.l.b16 %v5489
    %v5866 = vunpack.c.h.b16 %v5489
    %v5867 = vunpack.c.l.b16 %v5490
    %v5868 = vunpack.c.h.b16 %v5490
    %v5869 = vunpack.c.l.b16 %v5491
    %v5870 = vunpack.c.h.b16 %v5491
    %v5871 = vunpack.c.l.b16 %v5492
    %v5872 = vunpack.c.h.b16 %v5492
    %v5873 = vunpack.c.l.b16 %v5493
    %v5874 = vunpack.c.h.b16 %v5493
    %v5875 = vunpack.c.l.b16 %v5494
    %v5876 = vunpack.c.h.b16 %v5494
    %v5877 = vunpack.c.l.b16 %v5495
    %v5878 = vunpack.c.h.b16 %v5495
    %v5879 = vunpack.c.l.b16 %v5496
    %v5880 = vunpack.c.h.b16 %v5496
    %v5881 = vunpack.c.l.b16 %v5497
    %v5882 = vunpack.c.h.b16 %v5497
    %v5883 = vunpack.c.l.b16 %v5498
    %v5884 = vunpack.c.h.b16 %v5498
    %v5885 = vunpack.c.l.b16 %v5499
    %v5886 = vunpack.c.h.b16 %v5499
    %v5887 = vunpack.c.l.b16 %v5500
    %v5888 = vunpack.c.h.b16 %v5500
    %v5889 = vunpack.c.l.b16 %v5501
    %v5890 = vunpack.c.h.b16 %v5501
    %v5891 = vunpack.c.l.b16 %v5502
    %v5892 = vunpack.c.h.b16 %v5502
    %v5893 = vunpack.c.l.b16 %v5503
    %v5894 = vunpack.c.h.b16 %v5503
    %v5895 = vunpack.c.l.b16 %v5504
    %v5896 = vunpack.c.h.b16 %v5504
    %v5897 = vunpack.c.l.b16 %v5505
    %v5898 = vunpack.c.h.b16 %v5505
    %v5899 = vunpack.c.l.b16 %v5506
    %v5900 = vunpack.c.h.b16 %v5506
    %v5901 = vunpack.c.l.b16 %v5507
    %v5902 = vunpack.c.h.b16 %v5507
    %v5903 = vunpack.c.l.b16 %v5508
    %v5904 = vunpack.c.h.b16 %v5508
    %v5905 = vunpack.c.l.b16 %v5509
    %v5906 = vunpack.c.h.b16 %v5509
    %v5907 = vunpack.c.l.b16 %v5510
    %v5908 = vunpack.c.h.b16 %v5510
    %v5909 = vunpack.c.l.b16 %v5511
    %v5910 = vunpack.c.h.b16 %v5511
    %v5911 = vunpack.c.l.b16 %v5512
    %v5912 = vunpack.c.h.b16 %v5512
    %v5913 = vunpack.c.l.b16 %v5513
    %v5914 = vunpack.c.h.b16 %v5513
    %v5915 = vunpack.c.l.b16 %v5514
    %v5916 = vunpack.c.h.b16 %v5514
    %v5917 = vunpack.c.l.b16 %v5515
    %v5918 = vunpack.c.h.b16 %v5515
    %v5919 = vunpack.c.l.b16 %v5516
    %v5920 = vunpack.c.h.b16 %v5516
    %v5921 = vunpack.c.l.b16 %v5517
    %v5922 = vunpack.c.h.b16 %v5517
    %v5923 = vunpack.c.l.b16 %v5518
    %v5924 = vunpack.c.h.b16 %v5518
    %v5925 = vpack.c.b16 %v5673, %v5669
    %v5926 = vpack.c.b16 %v5674, %v5670
    %v5927 = vpack.c.b16 %v5675, %v5671
    %v5928 = vpack.c.b16 %v5676, %v5672
    %v5929 = vpack.c.b16 %v5681, %v5677
    %v5930 = vpack.c.b16 %v5682, %v5678
    %v5931 = vpack.c.b16 %v5683, %v5679
    %v5932 = vpack.c.b16 %v5684, %v5680
    %v5933 = vpack.c.b16 %v5689, %v5685
    %v5934 = vpack.c.b16 %v5690, %v5686
    %v5935 = vpack.c.b16 %v5691, %v5687
    %v5936 = vpack.c.b16 %v5692, %v5688
    %v5937 = vpack.c.b16 %v5697, %v5693
    %v5938 = vpack.c.b16 %v5698, %v5694
    %v5939 = vpack.c.b16 %v5699, %v5695
    %v5940 = vpack.c.b16 %v5700, %v5696
    %v5941 = vpack.c.b16 %v5705, %v5701
    %v5942 = vpack.c.b16 %v5706, %v5702
    %v5943 = vpack.c.b16 %v5707, %v5703
    %v5944 = vpack.c.b16 %v5708, %v5704
    %v5945 = vpack.c.b16 %v5713, %v5709
    %v5946 = vpack.c.b16 %v5714, %v5710
    %v5947 = vpack.c.b16 %v5715, %v5711
    %v5948 = vpack.c.b16 %v5716, %v5712
    %v5949 = vpack.c.b16 %v5721, %v5717
    %v5950 = vpack.c.b16 %v5722, %v5718
    %v5951 = vpack.c.b16 %v5723, %v5719
    %v5952 = vpack.c.b16 %v5724, %v5720
    %v5953 = vpack.c.b16 %v5729, %v5725
    %v5954 = vpack.c.b16 %v5730, %v5726
    %v5955 = vpack.c.b16 %v5731, %v5727
    %v5956 = vpack.c.b16 %v5732, %v5728
    %v5957 = vpack.c.b16 %v5737, %v5733
    %v5958 = vpack.c.b16 %v5738, %v5734
    %v5959 = vpack.c.b16 %v5739, %v5735
    %v5960 = vpack.c.b16 %v5740, %v5736
    %v5961 = vpack.c.b16 %v5745, %v5741
    %v5962 = vpack.c.b16 %v5746, %v5742
    %v5963 = vpack.c.b16 %v5747, %v5743
    %v5964 = vpack.c.b16 %v5748, %v5744
    %v5965 = vpack.c.b16 %v5753, %v5749
    %v5966 = vpack.c.b16 %v5754, %v5750
    %v5967 = vpack.c.b16 %v5755, %v5751
    %v5968 = vpack.c.b16 %v5756, %v5752
    %v5969 = vpack.c.b16 %v5761, %v5757
    %v5970 = vpack.c.b16 %v5762, %v5758
    %v5971 = vpack.c.b16 %v5763, %v5759
    %v5972 = vpack.c.b16 %v5764, %v5760
    %v5973 = vpack.c.b16 %v5769, %v5765
    %v5974 = vpack.c.b16 %v5770, %v5766
    %v5975 = vpack.c.b16 %v5771, %v5767
    %v5976 = vpack.c.b16 %v5772, %v5768
    %v5977 = vpack.c.b16 %v5777, %v5773
    %v5978 = vpack.c.b16 %v5778, %v5774
    %v5979 = vpack.c.b16 %v5779, %v5775
    %v5980 = vpack.c.b16 %v5780, %v5776
    %v5981 = vpack.c.b16 %v5785, %v5781
    %v5982 = vpack.c.b16 %v5786, %v5782
    %v5983 = vpack.c.b16 %v5787, %v5783
    %v5984 = vpack.c.b16 %v5788, %v5784
    %v5985 = vpack.c.b16 %v5793, %v5789
    %v5986 = vpack.c.b16 %v5794, %v5790
    %v5987 = vpack.c.b16 %v5795, %v5791
    %v5988 = vpack.c.b16 %v5796, %v5792
    %v5989 = vpack.c.b16 %v5801, %v5797
    %v5990 = vpack.c.b16 %v5802, %v5798
    %v5991 = vpack.c.b16 %v5803, %v5799
    %v5992 = vpack.c.b16 %v5804, %v5800
    %v5993 = vpack.c.b16 %v5809, %v5805
    %v5994 = vpack.c.b16 %v5810, %v5806
    %v5995 = vpack.c.b16 %v5811, %v5807
    %v5996 = vpack.c.b16 %v5812, %v5808
    %v5997 = vpack.c.b16 %v5817, %v5813
    %v5998 = vpack.c.b16 %v5818, %v5814
    %v5999 = vpack.c.b16 %v5819, %v5815
    %v6000 = vpack.c.b16 %v5820, %v5816
    %v6001 = vpack.c.b16 %v5825, %v5821
    %v6002 = vpack.c.b16 %v5826, %v5822
    %v6003 = vpack.c.b16 %v5827, %v5823
    %v6004 = vpack.c.b16 %v5828, %v5824
    %v6005 = vpack.c.b16 %v5833, %v5829
    %v6006 = vpack.c.b16 %v5834, %v5830
    %v6007 = vpack.c.b16 %v5835, %v5831
    %v6008 = vpack.c.b16 %v5836, %v5832
    %v6009 = vpack.c.b16 %v5841, %v5837
    %v6010 = vpack.c.b16 %v5842, %v5838
    %v6011 = vpack.c.b16 %v5843, %v5839
    %v6012 = vpack.c.b16 %v5844, %v5840
    %v6013 = vpack.c.b16 %v5849, %v5845
    %v6014 = vpack.c.b16 %v5850, %v5846
    %v6015 = vpack.c.b16 %v5851, %v5847
    %v6016 = vpack.c.b16 %v5852, %v5848
    %v6017 = vpack.c.b16 %v5857, %v5853
    %v6018 = vpack.c.b16 %v5858, %v5854
    %v6019 = vpack.c.b16 %v5859, %v5855
    %v6020 = vpack.c.b16 %v5860, %v5856
    %v6021 = vpack.c.b16 %v5865, %v5861
    %v6022 = vpack.c.b16 %v5866, %v5862
    %v6023 = vpack.c.b16 %v5867, %v5863
    %v6024 = vpack.c.b16 %v5868, %v5864
    %v6025 = vpack.c.b16 %v5873, %v5869
    %v6026 = vpack.c.b16 %v5874, %v5870
    %v6027 = vpack.c.b16 %v5875, %v5871
    %v6028 = vpack.c.b16 %v5876, %v5872
    %v6029 = vpack.c.b16 %v5881, %v5877
    %v6030 = vpack.c.b16 %v5882, %v5878
    %v6031 = vpack.c.b16 %v5883, %v5879
    %v6032 = vpack.c.b16 %v5884, %v5880
    %v6033 = vpack.c.b16 %v5889, %v5885
    %v6034 = vpack.c.b16 %v5890, %v5886
    %v6035 = vpack.c.b16 %v5891, %v5887
    %v6036 = vpack.c.b16 %v5892, %v5888
    %v6037 = vpack.c.b16 %v5897, %v5893
    %v6038 = vpack.c.b16 %v5898, %v5894
    %v6039 = vpack.c.b16 %v5899, %v5895
    %v6040 = vpack.c.b16 %v5900, %v5896
    %v6041 = vpack.c.b16 %v5905, %v5901
    %v6042 = vpack.c.b16 %v5906, %v5902
    %v6043 = vpack.c.b16 %v5907, %v5903
    %v6044 = vpack.c.b16 %v5908, %v5904
    %v6045 = vpack.c.b16 %v5913, %v5909
    %v6046 = vpack.c.b16 %v5914, %v5910
    %v6047 = vpack.c.b16 %v5915, %v5911
    %v6048 = vpack.c.b16 %v5916, %v5912
    %v6049 = vpack.c.b16 %v5921, %v5917
    %v6050 = vpack.c.b16 %v5922, %v5918
    %v6051 = vpack.c.b16 %v5923, %v5919
    %v6052 = vpack.c.b16 %v5924, %v5920
    %6181 = vmatprep.subr.bf16.mxu0 %v5926
    %6182 = vmatpush1.bf16.msra.mxu0 %v5925
    %6183 = vmatprep.subr.bf16.mxu0 %v5930
    %6184 = vmatpush1.bf16.msra.mxu0 %v5929
    %6185 = vmatprep.subr.bf16.mxu0 %v5934
    %6186 = vmatpush1.bf16.msra.mxu0 %v5933
    %6187 = vmatprep.subr.bf16.mxu0 %v5938
    %6188 = vmatpush1.bf16.msra.mxu0 %v5937
    %6189 = vmatprep.subr.bf16.mxu0 %v5942
    %6190 = vmatpush1.bf16.msra.mxu0 %v5941
    %6191 = vmatprep.subr.bf16.mxu0 %v5946
    %6192 = vmatpush1.bf16.msra.mxu0 %v5945
    %6193 = vmatprep.subr.bf16.mxu0 %v5950
    %6194 = vmatpush1.bf16.msra.mxu0 %v5949
    %6195 = vmatprep.subr.bf16.mxu0 %v5954
    %6196 = vmatpush1.bf16.msra.mxu0 %v5953
    %6197 = vmatprep.subr.bf16.mxu0 %v5958
    %6198 = vmatpush1.bf16.msra.mxu0 %v5957
    %6199 = vmatprep.subr.bf16.mxu0 %v5962
    %6200 = vmatpush1.bf16.msra.mxu0 %v5961
    %6201 = vmatprep.subr.bf16.mxu0 %v5966
    %6202 = vmatpush1.bf16.msra.mxu0 %v5965
    %6203 = vmatprep.subr.bf16.mxu0 %v5970
    %6204 = vmatpush1.bf16.msra.mxu0 %v5969
    %6205 = vmatprep.subr.bf16.mxu0 %v5974
    %6206 = vmatpush1.bf16.msra.mxu0 %v5973
    %6207 = vmatprep.subr.bf16.mxu0 %v5978
    %6208 = vmatpush1.bf16.msra.mxu0 %v5977
    %6209 = vmatprep.subr.bf16.mxu0 %v5982
    %6210 = vmatpush1.bf16.msra.mxu0 %v5981
    %6211 = vmatprep.subr.bf16.mxu0 %v5986
    %6212 = vmatpush1.bf16.msra.mxu0 %v5985
    %6213 = vmatprep.mubr.bf16.mxu0 %v5328
    %6214 = vmatmul.mubr.bf16.gmra.mrb[0].mxu0 %v5327
    %v6215 = vpop.f32.mrb[0].mxu0
    %v6216 = vadd.f32 %v5524, %v6215
    %v6217 = vpop.f32.mrb[0].mxu0
    %v6218 = vadd.f32 %v5528, %v6217
    %v6219 = vpop.f32.mrb[0].mxu0
    %v6220 = vadd.f32 %v5524, %v6219
    %v6221 = vpop.f32.mrb[0].mxu0
    %v6222 = vadd.f32 %v5528, %v6221
    %6223 = vmatprep.mubr.bf16.mxu0 %v5332
    %6224 = vmatmul.mubr.bf16.gmra.mrb[0].mxu0 %v5331
    %v6225 = vpop.f32.mrb[0].mxu0
    %v6226 = vadd.f32 %v5524, %v6225
    %v6227 = vpop.f32.mrb[0].mxu0
    %v6228 = vadd.f32 %v5528, %v6227
    %v6229 = vpop.f32.mrb[0].mxu0
    %v6230 = vadd.f32 %v5524, %v6229
    %v6231 = vpop.f32.mrb[0].mxu0
    %v6232 = vadd.f32 %v5528, %v6231
    %6233 = vmatprep.mubr.bf16.mxu0 %v5336
    %6234 = vmatmul.mubr.bf16.gmra.mrb[0].mxu0 %v5335
    %v6235 = vpop.f32.mrb[0].mxu0
    %v6236 = vadd.f32 %v5524, %v6235
    %v6237 = vpop.f32.mrb[0].mxu0
    %v6238 = vadd.f32 %v5528, %v6237
    %v6239 = vpop.f32.mrb[0].mxu0
    %v6240 = vadd.f32 %v5524, %v6239
    %v6241 = vpop.f32.mrb[0].mxu0
    %v6242 = vadd.f32 %v5528, %v6241
    %6243 = vmatprep.mubr.bf16.mxu0 %v5340
    %6244 = vmatmul.mubr.bf16.gmra.mrb[0].mxu0 %v5339
    %v6245 = vpop.f32.mrb[0].mxu0
    %v6246 = vadd.f32 %v5524, %v6245
    %v6247 = vpop.f32.mrb[0].mxu0
    %v6248 = vadd.f32 %v5528, %v6247
    %v6249 = vpop.f32.mrb[0].mxu0
    %v6250 = vadd.f32 %v5524, %v6249
    %v6251 = vpop.f32.mrb[0].mxu0
    %v6252 = vadd.f32 %v5528, %v6251
    %6253 = vmatprep.mubr.bf16.mxu0 %v5344
    %6254 = vmatmul.mubr.bf16.gmra.mrb[0].mxu0 %v5343
    %v6255 = vpop.f32.mrb[0].mxu0
    %v6256 = vadd.f32 %v5524, %v6255
    %v6257 = vpop.f32.mrb[0].mxu0
    %v6258 = vadd.f32 %v5528, %v6257
    %v6259 = vpop.f32.mrb[0].mxu0
    %v6260 = vadd.f32 %v5524, %v6259
    %v6261 = vpop.f32.mrb[0].mxu0
    %v6262 = vadd.f32 %v5528, %v6261
    %6263 = vmatprep.mubr.bf16.mxu0 %v5348
    %6264 = vmatmul.mubr.bf16.gmra.mrb[0].mxu0 %v5347
    %v6265 = vpop.f32.mrb[0].mxu0
    %v6266 = vadd.f32 %v5524, %v6265
    %v6267 = vpop.f32.mrb[0].mxu0
    %v6268 = vadd.f32 %v5528, %v6267
    %v6269 = vpop.f32.mrb[0].mxu0
    %v6270 = vadd.f32 %v5524, %v6269
    %v6271 = vpop.f32.mrb[0].mxu0
    %v6272 = vadd.f32 %v5528, %v6271
    %6273 = vmatprep.mubr.bf16.mxu0 %v5352
    %6274 = vmatmul.mubr.bf16.gmra.mrb[0].mxu0 %v5351
    %v6275 = vpop.f32.mrb[0].mxu0
    %v6276 = vadd.f32 %v5524, %v6275
    %v6277 = vpop.f32.mrb[0].mxu0
    %v6278 = vadd.f32 %v5528, %v6277
    %v6279 = vpop.f32.mrb[0].mxu0
    %v6280 = vadd.f32 %v5524, %v6279
    %v6281 = vpop.f32.mrb[0].mxu0
    %v6282 = vadd.f32 %v5528, %v6281
    %6283 = vmatprep.mubr.bf16.mxu0 %v5356
    %6284 = vmatmul.mubr.bf16.gmra.mrb[0].mxu0 %v5355
    %v6285 = vpop.f32.mrb[0].mxu0
    %v6286 = vadd.f32 %v5524, %v6285
    %v6287 = vpop.f32.mrb[0].mxu0
    %v6288 = vadd.f32 %v5528, %v6287
    %v6289 = vpop.f32.mrb[0].mxu0
    %v6290 = vadd.f32 %v5524, %v6289
    %v6291 = vpop.f32.mrb[0].mxu0
    %v6292 = vadd.f32 %v5528, %v6291
    %6293 = vmatprep.mubr.bf16.mxu0 %v5360
    %6294 = vmatmul.mubr.bf16.gmra.mrb[0].mxu0 %v5359
    %v6295 = vpop.f32.mrb[0].mxu0
    %v6296 = vadd.f32 %v5524, %v6295
    %v6297 = vpop.f32.mrb[0].mxu0
    %v6298 = vadd.f32 %v5528, %v6297
    %v6299 = vpop.f32.mrb[0].mxu0
    %v6300 = vadd.f32 %v5524, %v6299
    %v6301 = vpop.f32.mrb[0].mxu0
    %v6302 = vadd.f32 %v5528, %v6301
    %6303 = vmatprep.mubr.bf16.mxu0 %v5364
    %6304 = vmatmul.mubr.bf16.gmra.mrb[0].mxu0 %v5363
    %v6305 = vpop.f32.mrb[0].mxu0
    %v6306 = vadd.f32 %v5524, %v6305
    %v6307 = vpop.f32.mrb[0].mxu0
    %v6308 = vadd.f32 %v5528, %v6307
    %v6309 = vpop.f32.mrb[0].mxu0
    %v6310 = vadd.f32 %v5524, %v6309
    %v6311 = vpop.f32.mrb[0].mxu0
    %v6312 = vadd.f32 %v5528, %v6311
    %6313 = vmatprep.mubr.bf16.mxu0 %v5368
    %6314 = vmatmul.mubr.bf16.gmra.mrb[0].mxu0 %v5367
    %v6315 = vpop.f32.mrb[0].mxu0
    %v6316 = vadd.f32 %v5524, %v6315
    %v6317 = vpop.f32.mrb[0].mxu0
    %v6318 = vadd.f32 %v5528, %v6317
    %v6319 = vpop.f32.mrb[0].mxu0
    %v6320 = vadd.f32 %v5524, %v6319
    %v6321 = vpop.f32.mrb[0].mxu0
    %v6322 = vadd.f32 %v5528, %v6321
    %6323 = vmatprep.mubr.bf16.mxu0 %v5372
    %6324 = vmatmul.mubr.bf16.gmra.mrb[0].mxu0 %v5371
    %v6325 = vpop.f32.mrb[0].mxu0
    %v6326 = vadd.f32 %v5524, %v6325
    %v6327 = vpop.f32.mrb[0].mxu0
    %v6328 = vadd.f32 %v5528, %v6327
    %v6329 = vpop.f32.mrb[0].mxu0
    %v6330 = vadd.f32 %v5524, %v6329
    %v6331 = vpop.f32.mrb[0].mxu0
    %v6332 = vadd.f32 %v5528, %v6331
    %6333 = vmatprep.mubr.bf16.mxu0 %v5376
    %6334 = vmatmul.mubr.bf16.gmra.mrb[0].mxu0 %v5375
    %v6335 = vpop.f32.mrb[0].mxu0
    %v6336 = vadd.f32 %v5524, %v6335
    %v6337 = vpop.f32.mrb[0].mxu0
    %v6338 = vadd.f32 %v5528, %v6337
    %v6339 = vpop.f32.mrb[0].mxu0
    %v6340 = vadd.f32 %v5524, %v6339
    %v6341 = vpop.f32.mrb[0].mxu0
    %v6342 = vadd.f32 %v5528, %v6341
    %6343 = vmatprep.mubr.bf16.mxu0 %v5380
    %6344 = vmatmul.mubr.bf16.gmra.mrb[0].mxu0 %v5379
    %v6345 = vpop.f32.mrb[0].mxu0
    %v6346 = vadd.f32 %v5524, %v6345
    %v6347 = vpop.f32.mrb[0].mxu0
    %v6348 = vadd.f32 %v5528, %v6347
    %v6349 = vpop.f32.mrb[0].mxu0
    %v6350 = vadd.f32 %v5524, %v6349
    %v6351 = vpop.f32.mrb[0].mxu0
    %v6352 = vadd.f32 %v5528, %v6351
    %6353 = vmatprep.mubr.bf16.mxu0 %v5384
    %6354 = vmatmul.mubr.bf16.gmra.mrb[0].mxu0 %v5383
    %v6355 = vpop.f32.mrb[0].mxu0
    %v6356 = vadd.f32 %v5524, %v6355
    %v6357 = vpop.f32.mrb[0].mxu0
    %v6358 = vadd.f32 %v5528, %v6357
    %v6359 = vpop.f32.mrb[0].mxu0
    %v6360 = vadd.f32 %v5524, %v6359
    %v6361 = vpop.f32.mrb[0].mxu0
    %v6362 = vadd.f32 %v5528, %v6361
    %6363 = vmatprep.mubr.bf16.mxu0 %v5388
    %6364 = vmatmul.mubr.bf16.gmra.mrb[0].mxu0 %v5387
    %v6365 = vpop.f32.mrb[0].mxu0
    %v6366 = vadd.f32 %v5524, %v6365
    %v6367 = vpop.f32.mrb[0].mxu0
    %v6368 = vadd.f32 %v5528, %v6367
    %v6369 = vpop.f32.mrb[0].mxu0
    %v6370 = vadd.f32 %v5524, %v6369
    %v6371 = vpop.f32.mrb[0].mxu0
    %v6372 = vadd.f32 %v5528, %v6371
    %6373 = vdwg.mxu0
    %6374 = vmatprep.subr.bf16.mxu0 %v5990
    %6375 = vmatpush1.bf16.msra.mxu0 %v5989
    %6376 = vmatprep.subr.bf16.mxu0 %v5994
    %6377 = vmatpush1.bf16.msra.mxu0 %v5993
    %6378 = vmatprep.subr.bf16.mxu0 %v5998
    %6379 = vmatpush1.bf16.msra.mxu0 %v5997
    %6380 = vmatprep.subr.bf16.mxu0 %v6002
    %6381 = vmatpush1.bf16.msra.mxu0 %v6001
    %6382 = vmatprep.subr.bf16.mxu0 %v6006
    %6383 = vmatpush1.bf16.msra.mxu0 %v6005
    %6384 = vmatprep.subr.bf16.mxu0 %v6010
    %6385 = vmatpush1.bf16.msra.mxu0 %v6009
    %6386 = vmatprep.subr.bf16.mxu0 %v6014
    %6387 = vmatpush1.bf16.msra.mxu0 %v6013
    %6388 = vmatprep.subr.bf16.mxu0 %v6018
    %6389 = vmatpush1.bf16.msra.mxu0 %v6017
    %6390 = vmatprep.subr.bf16.mxu0 %v6022
    %6391 = vmatpush1.bf16.msra.mxu0 %v6021
    %6392 = vmatprep.subr.bf16.mxu0 %v6026
    %6393 = vmatpush1.bf16.msra.mxu0 %v6025
    %6394 = vmatprep.subr.bf16.mxu0 %v6030
    %6395 = vmatpush1.bf16.msra.mxu0 %v6029
    %6396 = vmatprep.subr.bf16.mxu0 %v6034
    %6397 = vmatpush1.bf16.msra.mxu0 %v6033
    %6398 = vmatprep.subr.bf16.mxu0 %v6038
    %6399 = vmatpush1.bf16.msra.mxu0 %v6037
    %6400 = vmatprep.subr.bf16.mxu0 %v6042
    %6401 = vmatpush1.bf16.msra.mxu0 %v6041
    %6402 = vmatprep.subr.bf16.mxu0 %v6046
    %6403 = vmatpush1.bf16.msra.mxu0 %v6045
    %6404 = vmatprep.subr.bf16.mxu0 %v6050
    %6405 = vmatpush1.bf16.msra.mxu0 %v6049
    %6406 = vmatprep.mubr.bf16.mxu0 %v5330
    %6407 = vmatmul.mubr.bf16.gmra.mrb[0].mxu0 %v5329
    %v6408 = vpop.f32.mrb[0].mxu0
    %v6409 = vadd.f32 %v6216, %v6408
    %v6410 = vpop.f32.mrb[0].mxu0
    %v6411 = vadd.f32 %v6218, %v6410
    %v6412 = vpop.f32.mrb[0].mxu0
    %v6413 = vadd.f32 %v6220, %v6412
    %v6414 = vpop.f32.mrb[0].mxu0
    %v6415 = vadd.f32 %v6222, %v6414
    %6416 = vmatprep.mubr.bf16.mxu0 %v5334
    %6417 = vmatmul.mubr.bf16.gmra.mrb[0].mxu0 %v5333
    %v6418 = vpop.f32.mrb[0].mxu0
    %v6419 = vadd.f32 %v6226, %v6418
    %v6420 = vpop.f32.mrb[0].mxu0
    %v6421 = vadd.f32 %v6228, %v6420
    %v6422 = vpop.f32.mrb[0].mxu0
    %v6423 = vadd.f32 %v6230, %v6422
    %v6424 = vpop.f32.mrb[0].mxu0
    %v6425 = vadd.f32 %v6232, %v6424
    %6426 = vmatprep.mubr.bf16.mxu0 %v5338
    %6427 = vmatmul.mubr.bf16.gmra.mrb[0].mxu0 %v5337
    %v6428 = vpop.f32.mrb[0].mxu0
    %v6429 = vadd.f32 %v6236, %v6428
    %v6430 = vpop.f32.mrb[0].mxu0
    %v6431 = vadd.f32 %v6238, %v6430
    %v6432 = vpop.f32.mrb[0].mxu0
    %v6433 = vadd.f32 %v6240, %v6432
    %v6434 = vpop.f32.mrb[0].mxu0
    %v6435 = vadd.f32 %v6242, %v6434
    %6436 = vmatprep.mubr.bf16.mxu0 %v5342
    %6437 = vmatmul.mubr.bf16.gmra.mrb[0].mxu0 %v5341
    %v6438 = vpop.f32.mrb[0].mxu0
    %v6439 = vadd.f32 %v6246, %v6438
    %v6440 = vpop.f32.mrb[0].mxu0
    %v6441 = vadd.f32 %v6248, %v6440
    %v6442 = vpop.f32.mrb[0].mxu0
    %v6443 = vadd.f32 %v6250, %v6442
    %v6444 = vpop.f32.mrb[0].mxu0
    %v6445 = vadd.f32 %v6252, %v6444
    %6446 = vmatprep.mubr.bf16.mxu0 %v5346
    %6447 = vmatmul.mubr.bf16.gmra.mrb[0].mxu0 %v5345
    %v6448 = vpop.f32.mrb[0].mxu0
    %v6449 = vadd.f32 %v6256, %v6448
    %v6450 = vpop.f32.mrb[0].mxu0
    %v6451 = vadd.f32 %v6258, %v6450
    %v6452 = vpop.f32.mrb[0].mxu0
    %v6453 = vadd.f32 %v6260, %v6452
    %v6454 = vpop.f32.mrb[0].mxu0
    %v6455 = vadd.f32 %v6262, %v6454
    %6456 = vmatprep.mubr.bf16.mxu0 %v5350
    %6457 = vmatmul.mubr.bf16.gmra.mrb[0].mxu0 %v5349
    %v6458 = vpop.f32.mrb[0].mxu0
    %v6459 = vadd.f32 %v6266, %v6458
    %v6460 = vpop.f32.mrb[0].mxu0
    %v6461 = vadd.f32 %v6268, %v6460
    %v6462 = vpop.f32.mrb[0].mxu0
    %v6463 = vadd.f32 %v6270, %v6462
    %v6464 = vpop.f32.mrb[0].mxu0
    %v6465 = vadd.f32 %v6272, %v6464
    %6466 = vmatprep.mubr.bf16.mxu0 %v5354
    %6467 = vmatmul.mubr.bf16.gmra.mrb[0].mxu0 %v5353
    %v6468 = vpop.f32.mrb[0].mxu0
    %v6469 = vadd.f32 %v6276, %v6468
    %v6470 = vpop.f32.mrb[0].mxu0
    %v6471 = vadd.f32 %v6278, %v6470
    %v6472 = vpop.f32.mrb[0].mxu0
    %v6473 = vadd.f32 %v6280, %v6472
    %v6474 = vpop.f32.mrb[0].mxu0
    %v6475 = vadd.f32 %v6282, %v6474
    %6476 = vmatprep.mubr.bf16.mxu0 %v5358
    %6477 = vmatmul.mubr.bf16.gmra.mrb[0].mxu0 %v5357
    %v6478 = vpop.f32.mrb[0].mxu0
    %v6479 = vadd.f32 %v6286, %v6478
    %v6480 = vpop.f32.mrb[0].mxu0
    %v6481 = vadd.f32 %v6288, %v6480
    %v6482 = vpop.f32.mrb[0].mxu0
    %v6483 = vadd.f32 %v6290, %v6482
    %v6484 = vpop.f32.mrb[0].mxu0
    %v6485 = vadd.f32 %v6292, %v6484
    %6486 = vmatprep.mubr.bf16.mxu0 %v5362
    %6487 = vmatmul.mubr.bf16.gmra.mrb[0].mxu0 %v5361
    %v6488 = vpop.f32.mrb[0].mxu0
    %v6489 = vadd.f32 %v6296, %v6488
    %v6490 = vpop.f32.mrb[0].mxu0
    %v6491 = vadd.f32 %v6298, %v6490
    %v6492 = vpop.f32.mrb[0].mxu0
    %v6493 = vadd.f32 %v6300, %v6492
    %v6494 = vpop.f32.mrb[0].mxu0
    %v6495 = vadd.f32 %v6302, %v6494
    %6496 = vmatprep.mubr.bf16.mxu0 %v5366
    %6497 = vmatmul.mubr.bf16.gmra.mrb[0].mxu0 %v5365
    %v6498 = vpop.f32.mrb[0].mxu0
    %v6499 = vadd.f32 %v6306, %v6498
    %v6500 = vpop.f32.mrb[0].mxu0
    %v6501 = vadd.f32 %v6308, %v6500
    %v6502 = vpop.f32.mrb[0].mxu0
    %v6503 = vadd.f32 %v6310, %v6502
    %v6504 = vpop.f32.mrb[0].mxu0
    %v6505 = vadd.f32 %v6312, %v6504
    %6506 = vmatprep.mubr.bf16.mxu0 %v5370
    %6507 = vmatmul.mubr.bf16.gmra.mrb[0].mxu0 %v5369
    %v6508 = vpop.f32.mrb[0].mxu0
    %v6509 = vadd.f32 %v6316, %v6508
    %v6510 = vpop.f32.mrb[0].mxu0
    %v6511 = vadd.f32 %v6318, %v6510
    %v6512 = vpop.f32.mrb[0].mxu0
    %v6513 = vadd.f32 %v6320, %v6512
    %v6514 = vpop.f32.mrb[0].mxu0
    %v6515 = vadd.f32 %v6322, %v6514
    %6516 = vmatprep.mubr.bf16.mxu0 %v5374
    %6517 = vmatmul.mubr.bf16.gmra.mrb[0].mxu0 %v5373
    %v6518 = vpop.f32.mrb[0].mxu0
    %v6519 = vadd.f32 %v6326, %v6518
    %v6520 = vpop.f32.mrb[0].mxu0
    %v6521 = vadd.f32 %v6328, %v6520
    %v6522 = vpop.f32.mrb[0].mxu0
    %v6523 = vadd.f32 %v6330, %v6522
    %v6524 = vpop.f32.mrb[0].mxu0
    %v6525 = vadd.f32 %v6332, %v6524
    %6526 = vmatprep.mubr.bf16.mxu0 %v5378
    %6527 = vmatmul.mubr.bf16.gmra.mrb[0].mxu0 %v5377
    %v6528 = vpop.f32.mrb[0].mxu0
    %v6529 = vadd.f32 %v6336, %v6528
    %v6530 = vpop.f32.mrb[0].mxu0
    %v6531 = vadd.f32 %v6338, %v6530
    %v6532 = vpop.f32.mrb[0].mxu0
    %v6533 = vadd.f32 %v6340, %v6532
    %v6534 = vpop.f32.mrb[0].mxu0
    %v6535 = vadd.f32 %v6342, %v6534
    %6536 = vmatprep.mubr.bf16.mxu0 %v5382
    %6537 = vmatmul.mubr.bf16.gmra.mrb[0].mxu0 %v5381
    %v6538 = vpop.f32.mrb[0].mxu0
    %v6539 = vadd.f32 %v6346, %v6538
    %v6540 = vpop.f32.mrb[0].mxu0
    %v6541 = vadd.f32 %v6348, %v6540
    %v6542 = vpop.f32.mrb[0].mxu0
    %v6543 = vadd.f32 %v6350, %v6542
    %v6544 = vpop.f32.mrb[0].mxu0
    %v6545 = vadd.f32 %v6352, %v6544
    %6546 = vmatprep.mubr.bf16.mxu0 %v5386
    %6547 = vmatmul.mubr.bf16.gmra.mrb[0].mxu0 %v5385
    %v6548 = vpop.f32.mrb[0].mxu0
    %v6549 = vadd.f32 %v6356, %v6548
    %v6550 = vpop.f32.mrb[0].mxu0
    %v6551 = vadd.f32 %v6358, %v6550
    %v6552 = vpop.f32.mrb[0].mxu0
    %v6553 = vadd.f32 %v6360, %v6552
    %v6554 = vpop.f32.mrb[0].mxu0
    %v6555 = vadd.f32 %v6362, %v6554
    %6556 = vmatprep.mubr.bf16.mxu0 %v5390
    %6557 = vmatmul.mubr.bf16.gmra.mrb[0].mxu0 %v5389
    %v6558 = vpop.f32.mrb[0].mxu0
    %v6559 = vadd.f32 %v6366, %v6558
    %v6560 = vpop.f32.mrb[0].mxu0
    %v6561 = vadd.f32 %v6368, %v6560
    %v6562 = vpop.f32.mrb[0].mxu0
    %v6563 = vadd.f32 %v6370, %v6562
    %v6564 = vpop.f32.mrb[0].mxu0
    %v6565 = vadd.f32 %v6372, %v6564
    %6566 = vdwg.mxu0
    %6567 = vmatprep.subr.bf16.mxu0 %v5928
    %6568 = vmatpush1.bf16.msra.mxu0 %v5927
    %6569 = vmatprep.subr.bf16.mxu0 %v5932
    %6570 = vmatpush1.bf16.msra.mxu0 %v5931
    %6571 = vmatprep.subr.bf16.mxu0 %v5936
    %6572 = vmatpush1.bf16.msra.mxu0 %v5935
    %6573 = vmatprep.subr.bf16.mxu0 %v5940
    %6574 = vmatpush1.bf16.msra.mxu0 %v5939
    %6575 = vmatprep.subr.bf16.mxu0 %v5944
    %6576 = vmatpush1.bf16.msra.mxu0 %v5943
    %6577 = vmatprep.subr.bf16.mxu0 %v5948
    %6578 = vmatpush1.bf16.msra.mxu0 %v5947
    %6579 = vmatprep.subr.bf16.mxu0 %v5952
    %6580 = vmatpush1.bf16.msra.mxu0 %v5951
    %6581 = vmatprep.subr.bf16.mxu0 %v5956
    %6582 = vmatpush1.bf16.msra.mxu0 %v5955
    %6583 = vmatprep.subr.bf16.mxu0 %v5960
    %6584 = vmatpush1.bf16.msra.mxu0 %v5959
    %6585 = vmatprep.subr.bf16.mxu0 %v5964
    %6586 = vmatpush1.bf16.msra.mxu0 %v5963
    %6587 = vmatprep.subr.bf16.mxu0 %v5968
    %6588 = vmatpush1.bf16.msra.mxu0 %v5967
    %6589 = vmatprep.subr.bf16.mxu0 %v5972
    %6590 = vmatpush1.bf16.msra.mxu0 %v5971
    %6591 = vmatprep.subr.bf16.mxu0 %v5976
    %6592 = vmatpush1.bf16.msra.mxu0 %v5975
    %6593 = vmatprep.subr.bf16.mxu0 %v5980
    %6594 = vmatpush1.bf16.msra.mxu0 %v5979
    %6595 = vmatprep.subr.bf16.mxu0 %v5984
    %6596 = vmatpush1.bf16.msra.mxu0 %v5983
    %6597 = vmatprep.subr.bf16.mxu0 %v5988
    %6598 = vmatpush1.bf16.msra.mxu0 %v5987
    %6599 = vmatprep.mubr.bf16.mxu0 %v5328
    %6600 = vmatmul.mubr.bf16.gmra.mrb[0].mxu0 %v5327
    %v6601 = vpop.f32.mrb[0].mxu0
    %v6602 = vadd.f32 %v5532, %v6601
    %v6603 = vpop.f32.mrb[0].mxu0
    %v6604 = vadd.f32 %v5536, %v6603
    %v6605 = vpop.f32.mrb[0].mxu0
    %v6606 = vadd.f32 %v5532, %v6605
    %v6607 = vpop.f32.mrb[0].mxu0
    %v6608 = vadd.f32 %v5536, %v6607
    %6609 = vmatprep.mubr.bf16.mxu0 %v5332
    %6610 = vmatmul.mubr.bf16.gmra.mrb[0].mxu0 %v5331
    %v6611 = vpop.f32.mrb[0].mxu0
    %v6612 = vadd.f32 %v5532, %v6611
    %v6613 = vpop.f32.mrb[0].mxu0
    %v6614 = vadd.f32 %v5536, %v6613
    %v6615 = vpop.f32.mrb[0].mxu0
    %v6616 = vadd.f32 %v5532, %v6615
    %v6617 = vpop.f32.mrb[0].mxu0
    %v6618 = vadd.f32 %v5536, %v6617
    %6619 = vmatprep.mubr.bf16.mxu0 %v5336
    %6620 = vmatmul.mubr.bf16.gmra.mrb[0].mxu0 %v5335
    %v6621 = vpop.f32.mrb[0].mxu0
    %v6622 = vadd.f32 %v5532, %v6621
    %v6623 = vpop.f32.mrb[0].mxu0
    %v6624 = vadd.f32 %v5536, %v6623
    %v6625 = vpop.f32.mrb[0].mxu0
    %v6626 = vadd.f32 %v5532, %v6625
    %v6627 = vpop.f32.mrb[0].mxu0
    %v6628 = vadd.f32 %v5536, %v6627
    %6629 = vmatprep.mubr.bf16.mxu0 %v5340
    %6630 = vmatmul.mubr.bf16.gmra.mrb[0].mxu0 %v5339
    %v6631 = vpop.f32.mrb[0].mxu0
    %v6632 = vadd.f32 %v5532, %v6631
    %v6633 = vpop.f32.mrb[0].mxu0
    %v6634 = vadd.f32 %v5536, %v6633
    %v6635 = vpop.f32.mrb[0].mxu0
    %v6636 = vadd.f32 %v5532, %v6635
    %v6637 = vpop.f32.mrb[0].mxu0
    %v6638 = vadd.f32 %v5536, %v6637
    %6639 = vmatprep.mubr.bf16.mxu0 %v5344
    %6640 = vmatmul.mubr.bf16.gmra.mrb[0].mxu0 %v5343
    %v6641 = vpop.f32.mrb[0].mxu0
    %v6642 = vadd.f32 %v5532, %v6641
    %v6643 = vpop.f32.mrb[0].mxu0
    %v6644 = vadd.f32 %v5536, %v6643
    %v6645 = vpop.f32.mrb[0].mxu0
    %v6646 = vadd.f32 %v5532, %v6645
    %v6647 = vpop.f32.mrb[0].mxu0
    %v6648 = vadd.f32 %v5536, %v6647
    %6649 = vmatprep.mubr.bf16.mxu0 %v5348
    %6650 = vmatmul.mubr.bf16.gmra.mrb[0].mxu0 %v5347
    %v6651 = vpop.f32.mrb[0].mxu0
    %v6652 = vadd.f32 %v5532, %v6651
    %v6653 = vpop.f32.mrb[0].mxu0
    %v6654 = vadd.f32 %v5536, %v6653
    %v6655 = vpop.f32.mrb[0].mxu0
    %v6656 = vadd.f32 %v5532, %v6655
    %v6657 = vpop.f32.mrb[0].mxu0
    %v6658 = vadd.f32 %v5536, %v6657
    %6659 = vmatprep.mubr.bf16.mxu0 %v5352
    %6660 = vmatmul.mubr.bf16.gmra.mrb[0].mxu0 %v5351
    %v6661 = vpop.f32.mrb[0].mxu0
    %v6662 = vadd.f32 %v5532, %v6661
    %v6663 = vpop.f32.mrb[0].mxu0
    %v6664 = vadd.f32 %v5536, %v6663
    %v6665 = vpop.f32.mrb[0].mxu0
    %v6666 = vadd.f32 %v5532, %v6665
    %v6667 = vpop.f32.mrb[0].mxu0
    %v6668 = vadd.f32 %v5536, %v6667
    %6669 = vmatprep.mubr.bf16.mxu0 %v5356
    %6670 = vmatmul.mubr.bf16.gmra.mrb[0].mxu0 %v5355
    %v6671 = vpop.f32.mrb[0].mxu0
    %v6672 = vadd.f32 %v5532, %v6671
    %v6673 = vpop.f32.mrb[0].mxu0
    %v6674 = vadd.f32 %v5536, %v6673
    %v6675 = vpop.f32.mrb[0].mxu0
    %v6676 = vadd.f32 %v5532, %v6675
    %v6677 = vpop.f32.mrb[0].mxu0
    %v6678 = vadd.f32 %v5536, %v6677
    %6679 = vmatprep.mubr.bf16.mxu0 %v5360
    %6680 = vmatmul.mubr.bf16.gmra.mrb[0].mxu0 %v5359
    %v6681 = vpop.f32.mrb[0].mxu0
    %v6682 = vadd.f32 %v5532, %v6681
    %v6683 = vpop.f32.mrb[0].mxu0
    %v6684 = vadd.f32 %v5536, %v6683
    %v6685 = vpop.f32.mrb[0].mxu0
    %v6686 = vadd.f32 %v5532, %v6685
    %v6687 = vpop.f32.mrb[0].mxu0
    %v6688 = vadd.f32 %v5536, %v6687
    %6689 = vmatprep.mubr.bf16.mxu0 %v5364
    %6690 = vmatmul.mubr.bf16.gmra.mrb[0].mxu0 %v5363
    %v6691 = vpop.f32.mrb[0].mxu0
    %v6692 = vadd.f32 %v5532, %v6691
    %v6693 = vpop.f32.mrb[0].mxu0
    %v6694 = vadd.f32 %v5536, %v6693
    %v6695 = vpop.f32.mrb[0].mxu0
    %v6696 = vadd.f32 %v5532, %v6695
    %v6697 = vpop.f32.mrb[0].mxu0
    %v6698 = vadd.f32 %v5536, %v6697
    %6699 = vmatprep.mubr.bf16.mxu0 %v5368
    %6700 = vmatmul.mubr.bf16.gmra.mrb[0].mxu0 %v5367
    %v6701 = vpop.f32.mrb[0].mxu0
    %v6702 = vadd.f32 %v5532, %v6701
    %v6703 = vpop.f32.mrb[0].mxu0
    %v6704 = vadd.f32 %v5536, %v6703
    %v6705 = vpop.f32.mrb[0].mxu0
    %v6706 = vadd.f32 %v5532, %v6705
    %v6707 = vpop.f32.mrb[0].mxu0
    %v6708 = vadd.f32 %v5536, %v6707
    %6709 = vmatprep.mubr.bf16.mxu0 %v5372
    %6710 = vmatmul.mubr.bf16.gmra.mrb[0].mxu0 %v5371
    %v6711 = vpop.f32.mrb[0].mxu0
    %v6712 = vadd.f32 %v5532, %v6711
    %v6713 = vpop.f32.mrb[0].mxu0
    %v6714 = vadd.f32 %v5536, %v6713
    %v6715 = vpop.f32.mrb[0].mxu0
    %v6716 = vadd.f32 %v5532, %v6715
    %v6717 = vpop.f32.mrb[0].mxu0
    %v6718 = vadd.f32 %v5536, %v6717
    %6719 = vmatprep.mubr.bf16.mxu0 %v5376
    %6720 = vmatmul.mubr.bf16.gmra.mrb[0].mxu0 %v5375
    %v6721 = vpop.f32.mrb[0].mxu0
    %v6722 = vadd.f32 %v5532, %v6721
    %v6723 = vpop.f32.mrb[0].mxu0
    %v6724 = vadd.f32 %v5536, %v6723
    %v6725 = vpop.f32.mrb[0].mxu0
    %v6726 = vadd.f32 %v5532, %v6725
    %v6727 = vpop.f32.mrb[0].mxu0
    %v6728 = vadd.f32 %v5536, %v6727
    %6729 = vmatprep.mubr.bf16.mxu0 %v5380
    %6730 = vmatmul.mubr.bf16.gmra.mrb[0].mxu0 %v5379
    %v6731 = vpop.f32.mrb[0].mxu0
    %v6732 = vadd.f32 %v5532, %v6731
    %v6733 = vpop.f32.mrb[0].mxu0
    %v6734 = vadd.f32 %v5536, %v6733
    %v6735 = vpop.f32.mrb[0].mxu0
    %v6736 = vadd.f32 %v5532, %v6735
    %v6737 = vpop.f32.mrb[0].mxu0
    %v6738 = vadd.f32 %v5536, %v6737
    %6739 = vmatprep.mubr.bf16.mxu0 %v5384
    %6740 = vmatmul.mubr.bf16.gmra.mrb[0].mxu0 %v5383
    %v6741 = vpop.f32.mrb[0].mxu0
    %v6742 = vadd.f32 %v5532, %v6741
    %v6743 = vpop.f32.mrb[0].mxu0
    %v6744 = vadd.f32 %v5536, %v6743
    %v6745 = vpop.f32.mrb[0].mxu0
    %v6746 = vadd.f32 %v5532, %v6745
    %v6747 = vpop.f32.mrb[0].mxu0
    %v6748 = vadd.f32 %v5536, %v6747
    %6749 = vmatprep.mubr.bf16.mxu0 %v5388
    %6750 = vmatmul.mubr.bf16.gmra.mrb[0].mxu0 %v5387
    %v6751 = vpop.f32.mrb[0].mxu0
    %v6752 = vadd.f32 %v5532, %v6751
    %v6753 = vpop.f32.mrb[0].mxu0
    %v6754 = vadd.f32 %v5536, %v6753
    %v6755 = vpop.f32.mrb[0].mxu0
    %v6756 = vadd.f32 %v5532, %v6755
    %v6757 = vpop.f32.mrb[0].mxu0
    %v6758 = vadd.f32 %v5536, %v6757
    %6759 = vdwg.mxu0
    %6760 = vmatprep.subr.bf16.mxu0 %v5992
    %6761 = vmatpush1.bf16.msra.mxu0 %v5991
    %6762 = vmatprep.subr.bf16.mxu0 %v5996
    %6763 = vmatpush1.bf16.msra.mxu0 %v5995
    %6764 = vmatprep.subr.bf16.mxu0 %v6000
    %6765 = vmatpush1.bf16.msra.mxu0 %v5999
    %6766 = vmatprep.subr.bf16.mxu0 %v6004
    %6767 = vmatpush1.bf16.msra.mxu0 %v6003
    %6768 = vmatprep.subr.bf16.mxu0 %v6008
    %6769 = vmatpush1.bf16.msra.mxu0 %v6007
    %6770 = vmatprep.subr.bf16.mxu0 %v6012
    %6771 = vmatpush1.bf16.msra.mxu0 %v6011
    %6772 = vmatprep.subr.bf16.mxu0 %v6016
    %6773 = vmatpush1.bf16.msra.mxu0 %v6015
    %6774 = vmatprep.subr.bf16.mxu0 %v6020
    %6775 = vmatpush1.bf16.msra.mxu0 %v6019
    %6776 = vmatprep.subr.bf16.mxu0 %v6024
    %6777 = vmatpush1.bf16.msra.mxu0 %v6023
    %6778 = vmatprep.subr.bf16.mxu0 %v6028
    %6779 = vmatpush1.bf16.msra.mxu0 %v6027
    %6780 = vmatprep.subr.bf16.mxu0 %v6032
    %6781 = vmatpush1.bf16.msra.mxu0 %v6031
    %6782 = vmatprep.subr.bf16.mxu0 %v6036
    %6783 = vmatpush1.bf16.msra.mxu0 %v6035
    %6784 = vmatprep.subr.bf16.mxu0 %v6040
    %6785 = vmatpush1.bf16.msra.mxu0 %v6039
    %6786 = vmatprep.subr.bf16.mxu0 %v6044
    %6787 = vmatpush1.bf16.msra.mxu0 %v6043
    %6788 = vmatprep.subr.bf16.mxu0 %v6048
    %6789 = vmatpush1.bf16.msra.mxu0 %v6047
    %6790 = vmatprep.subr.bf16.mxu0 %v6052
    %6791 = vmatpush1.bf16.msra.mxu0 %v6051
    %6792 = vmatprep.mubr.bf16.mxu0 %v5330
    %6793 = vmatmul.mubr.bf16.gmra.mrb[0].mxu0 %v5329
    %v6794 = vpop.f32.mrb[0].mxu0
    %v6795 = vadd.f32 %v6602, %v6794
    %v6796 = vpop.f32.mrb[0].mxu0
    %v6797 = vadd.f32 %v6604, %v6796
    %v6798 = vpop.f32.mrb[0].mxu0
    %v6799 = vadd.f32 %v6606, %v6798
    %v6800 = vpop.f32.mrb[0].mxu0
    %v6801 = vadd.f32 %v6608, %v6800
    %6802 = vmatprep.mubr.bf16.mxu0 %v5334
    %6803 = vmatmul.mubr.bf16.gmra.mrb[0].mxu0 %v5333
    %v6804 = vpop.f32.mrb[0].mxu0
    %v6805 = vadd.f32 %v6612, %v6804
    %v6806 = vpop.f32.mrb[0].mxu0
    %v6807 = vadd.f32 %v6614, %v6806
    %v6808 = vpop.f32.mrb[0].mxu0
    %v6809 = vadd.f32 %v6616, %v6808
    %v6810 = vpop.f32.mrb[0].mxu0
    %v6811 = vadd.f32 %v6618, %v6810
    %6812 = vmatprep.mubr.bf16.mxu0 %v5338
    %6813 = vmatmul.mubr.bf16.gmra.mrb[0].mxu0 %v5337
    %v6814 = vpop.f32.mrb[0].mxu0
    %v6815 = vadd.f32 %v6622, %v6814
    %v6816 = vpop.f32.mrb[0].mxu0
    %v6817 = vadd.f32 %v6624, %v6816
    %v6818 = vpop.f32.mrb[0].mxu0
    %v6819 = vadd.f32 %v6626, %v6818
    %v6820 = vpop.f32.mrb[0].mxu0
    %v6821 = vadd.f32 %v6628, %v6820
    %6822 = vmatprep.mubr.bf16.mxu0 %v5342
    %6823 = vmatmul.mubr.bf16.gmra.mrb[0].mxu0 %v5341
    %v6824 = vpop.f32.mrb[0].mxu0
    %v6825 = vadd.f32 %v6632, %v6824
    %v6826 = vpop.f32.mrb[0].mxu0
    %v6827 = vadd.f32 %v6634, %v6826
    %v6828 = vpop.f32.mrb[0].mxu0
    %v6829 = vadd.f32 %v6636, %v6828
    %v6830 = vpop.f32.mrb[0].mxu0
    %v6831 = vadd.f32 %v6638, %v6830
    %6832 = vmatprep.mubr.bf16.mxu0 %v5346
    %6833 = vmatmul.mubr.bf16.gmra.mrb[0].mxu0 %v5345
    %v6834 = vpop.f32.mrb[0].mxu0
    %v6835 = vadd.f32 %v6642, %v6834
    %v6836 = vpop.f32.mrb[0].mxu0
    %v6837 = vadd.f32 %v6644, %v6836
    %v6838 = vpop.f32.mrb[0].mxu0
    %v6839 = vadd.f32 %v6646, %v6838
    %v6840 = vpop.f32.mrb[0].mxu0
    %v6841 = vadd.f32 %v6648, %v6840
    %6842 = vmatprep.mubr.bf16.mxu0 %v5350
    %6843 = vmatmul.mubr.bf16.gmra.mrb[0].mxu0 %v5349
    %v6844 = vpop.f32.mrb[0].mxu0
    %v6845 = vadd.f32 %v6652, %v6844
    %v6846 = vpop.f32.mrb[0].mxu0
    %v6847 = vadd.f32 %v6654, %v6846
    %v6848 = vpop.f32.mrb[0].mxu0
    %v6849 = vadd.f32 %v6656, %v6848
    %v6850 = vpop.f32.mrb[0].mxu0
    %v6851 = vadd.f32 %v6658, %v6850
    %6852 = vmatprep.mubr.bf16.mxu0 %v5354
    %6853 = vmatmul.mubr.bf16.gmra.mrb[0].mxu0 %v5353
    %v6854 = vpop.f32.mrb[0].mxu0
    %v6855 = vadd.f32 %v6662, %v6854
    %v6856 = vpop.f32.mrb[0].mxu0
    %v6857 = vadd.f32 %v6664, %v6856
    %v6858 = vpop.f32.mrb[0].mxu0
    %v6859 = vadd.f32 %v6666, %v6858
    %v6860 = vpop.f32.mrb[0].mxu0
    %v6861 = vadd.f32 %v6668, %v6860
    %6862 = vmatprep.mubr.bf16.mxu0 %v5358
    %6863 = vmatmul.mubr.bf16.gmra.mrb[0].mxu0 %v5357
    %v6864 = vpop.f32.mrb[0].mxu0
    %v6865 = vadd.f32 %v6672, %v6864
    %v6866 = vpop.f32.mrb[0].mxu0
    %v6867 = vadd.f32 %v6674, %v6866
    %v6868 = vpop.f32.mrb[0].mxu0
    %v6869 = vadd.f32 %v6676, %v6868
    %v6870 = vpop.f32.mrb[0].mxu0
    %v6871 = vadd.f32 %v6678, %v6870
    %6872 = vmatprep.mubr.bf16.mxu0 %v5362
    %6873 = vmatmul.mubr.bf16.gmra.mrb[0].mxu0 %v5361
    %v6874 = vpop.f32.mrb[0].mxu0
    %v6875 = vadd.f32 %v6682, %v6874
    %v6876 = vpop.f32.mrb[0].mxu0
    %v6877 = vadd.f32 %v6684, %v6876
    %v6878 = vpop.f32.mrb[0].mxu0
    %v6879 = vadd.f32 %v6686, %v6878
    %v6880 = vpop.f32.mrb[0].mxu0
    %v6881 = vadd.f32 %v6688, %v6880
    %6882 = vmatprep.mubr.bf16.mxu0 %v5366
    %6883 = vmatmul.mubr.bf16.gmra.mrb[0].mxu0 %v5365
    %v6884 = vpop.f32.mrb[0].mxu0
    %v6885 = vadd.f32 %v6692, %v6884
    %v6886 = vpop.f32.mrb[0].mxu0
    %v6887 = vadd.f32 %v6694, %v6886
    %v6888 = vpop.f32.mrb[0].mxu0
    %v6889 = vadd.f32 %v6696, %v6888
    %v6890 = vpop.f32.mrb[0].mxu0
    %v6891 = vadd.f32 %v6698, %v6890
    %6892 = vmatprep.mubr.bf16.mxu0 %v5370
    %6893 = vmatmul.mubr.bf16.gmra.mrb[0].mxu0 %v5369
    %v6894 = vpop.f32.mrb[0].mxu0
    %v6895 = vadd.f32 %v6702, %v6894
    %v6896 = vpop.f32.mrb[0].mxu0
    %v6897 = vadd.f32 %v6704, %v6896
    %v6898 = vpop.f32.mrb[0].mxu0
    %v6899 = vadd.f32 %v6706, %v6898
    %v6900 = vpop.f32.mrb[0].mxu0
    %v6901 = vadd.f32 %v6708, %v6900
    %6902 = vmatprep.mubr.bf16.mxu0 %v5374
    %6903 = vmatmul.mubr.bf16.gmra.mrb[0].mxu0 %v5373
    %v6904 = vpop.f32.mrb[0].mxu0
    %v6905 = vadd.f32 %v6712, %v6904
    %v6906 = vpop.f32.mrb[0].mxu0
    %v6907 = vadd.f32 %v6714, %v6906
    %v6908 = vpop.f32.mrb[0].mxu0
    %v6909 = vadd.f32 %v6716, %v6908
    %v6910 = vpop.f32.mrb[0].mxu0
    %v6911 = vadd.f32 %v6718, %v6910
    %6912 = vmatprep.mubr.bf16.mxu0 %v5378
    %6913 = vmatmul.mubr.bf16.gmra.mrb[0].mxu0 %v5377
    %v6914 = vpop.f32.mrb[0].mxu0
    %v6915 = vadd.f32 %v6722, %v6914
    %v6916 = vpop.f32.mrb[0].mxu0
    %v6917 = vadd.f32 %v6724, %v6916
    %v6918 = vpop.f32.mrb[0].mxu0
    %v6919 = vadd.f32 %v6726, %v6918
    %v6920 = vpop.f32.mrb[0].mxu0
    %v6921 = vadd.f32 %v6728, %v6920
    %6922 = vmatprep.mubr.bf16.mxu0 %v5382
    %6923 = vmatmul.mubr.bf16.gmra.mrb[0].mxu0 %v5381
    %v6924 = vpop.f32.mrb[0].mxu0
    %v6925 = vadd.f32 %v6732, %v6924
    %v6926 = vpop.f32.mrb[0].mxu0
    %v6927 = vadd.f32 %v6734, %v6926
    %v6928 = vpop.f32.mrb[0].mxu0
    %v6929 = vadd.f32 %v6736, %v6928
    %v6930 = vpop.f32.mrb[0].mxu0
    %v6931 = vadd.f32 %v6738, %v6930
    %6932 = vmatprep.mubr.bf16.mxu0 %v5386
    %6933 = vmatmul.mubr.bf16.gmra.mrb[0].mxu0 %v5385
    %v6934 = vpop.f32.mrb[0].mxu0
    %v6935 = vadd.f32 %v6742, %v6934
    %v6936 = vpop.f32.mrb[0].mxu0
    %v6937 = vadd.f32 %v6744, %v6936
    %v6938 = vpop.f32.mrb[0].mxu0
    %v6939 = vadd.f32 %v6746, %v6938
    %v6940 = vpop.f32.mrb[0].mxu0
    %v6941 = vadd.f32 %v6748, %v6940
    %6942 = vmatprep.mubr.bf16.mxu0 %v5390
    %6943 = vmatmul.mubr.bf16.gmra.mrb[0].mxu0 %v5389
    %v6944 = vpop.f32.mrb[0].mxu0
    %v6945 = vadd.f32 %v6752, %v6944
    %v6946 = vpop.f32.mrb[0].mxu0
    %v6947 = vadd.f32 %v6754, %v6946
    %v6948 = vpop.f32.mrb[0].mxu0
    %v6949 = vadd.f32 %v6756, %v6948
    %v6950 = vpop.f32.mrb[0].mxu0
    %v6951 = vadd.f32 %v6758, %v6950
    %6952 = vdwg.mxu0
    %v6953 = vld [vmem:[%s6] sm:$0xf]
    %vm6954 = vcmp.ge.f32.partialorder %v6409, 0.0
    %vm6955 = vcmp.ge.f32.partialorder %v6411, 0.0
    %vm6956 = vcmp.ge.f32.partialorder %v6795, 0.0
    %vm6957 = vcmp.ge.f32.partialorder %v6797, 0.0
    %vm6958 = vcmp.ge.f32.partialorder %v6413, 0.0
    %vm6959 = vcmp.ge.f32.partialorder %v6415, 0.0
    %vm6960 = vcmp.ge.f32.partialorder %v6799, 0.0
    %vm6961 = vcmp.ge.f32.partialorder %v6801, 0.0
    %vm6962 = vcmp.ge.f32.partialorder %v6419, 0.0
    %vm6963 = vcmp.ge.f32.partialorder %v6421, 0.0
    %vm6964 = vcmp.ge.f32.partialorder %v6805, 0.0
    %vm6965 = vcmp.ge.f32.partialorder %v6807, 0.0
    %vm6966 = vcmp.ge.f32.partialorder %v6423, 0.0
    %vm6967 = vcmp.ge.f32.partialorder %v6425, 0.0
    %vm6968 = vcmp.ge.f32.partialorder %v6809, 0.0
    %vm6969 = vcmp.ge.f32.partialorder %v6811, 0.0
    %vm6970 = vcmp.ge.f32.partialorder %v6429, 0.0
    %vm6971 = vcmp.ge.f32.partialorder %v6431, 0.0
    %vm6972 = vcmp.ge.f32.partialorder %v6815, 0.0
    %vm6973 = vcmp.ge.f32.partialorder %v6817, 0.0
    %vm6974 = vcmp.ge.f32.partialorder %v6433, 0.0
    %vm6975 = vcmp.ge.f32.partialorder %v6435, 0.0
    %vm6976 = vcmp.ge.f32.partialorder %v6819, 0.0
    %vm6977 = vcmp.ge.f32.partialorder %v6821, 0.0
    %vm6978 = vcmp.ge.f32.partialorder %v6439, 0.0
    %vm6979 = vcmp.ge.f32.partialorder %v6441, 0.0
    %vm6980 = vcmp.ge.f32.partialorder %v6825, 0.0
    %vm6981 = vcmp.ge.f32.partialorder %v6827, 0.0
    %vm6982 = vcmp.ge.f32.partialorder %v6443, 0.0
    %vm6983 = vcmp.ge.f32.partialorder %v6445, 0.0
    %vm6984 = vcmp.ge.f32.partialorder %v6829, 0.0
    %vm6985 = vcmp.ge.f32.partialorder %v6831, 0.0
    %vm6986 = vcmp.ge.f32.partialorder %v6449, 0.0
    %vm6987 = vcmp.ge.f32.partialorder %v6451, 0.0
    %vm6988 = vcmp.ge.f32.partialorder %v6835, 0.0
    %vm6989 = vcmp.ge.f32.partialorder %v6837, 0.0
    %vm6990 = vcmp.ge.f32.partialorder %v6453, 0.0
    %vm6991 = vcmp.ge.f32.partialorder %v6455, 0.0
    %vm6992 = vcmp.ge.f32.partialorder %v6839, 0.0
    %vm6993 = vcmp.ge.f32.partialorder %v6841, 0.0
    %vm6994 = vcmp.ge.f32.partialorder %v6459, 0.0
    %vm6995 = vcmp.ge.f32.partialorder %v6461, 0.0
    %vm6996 = vcmp.ge.f32.partialorder %v6845, 0.0
    %vm6997 = vcmp.ge.f32.partialorder %v6847, 0.0
    %vm6998 = vcmp.ge.f32.partialorder %v6463, 0.0
    %vm6999 = vcmp.ge.f32.partialorder %v6465, 0.0
    %vm7000 = vcmp.ge.f32.partialorder %v6849, 0.0
    %vm7001 = vcmp.ge.f32.partialorder %v6851, 0.0
    %vm7002 = vcmp.ge.f32.partialorder %v6469, 0.0
    %vm7003 = vcmp.ge.f32.partialorder %v6471, 0.0
    %vm7004 = vcmp.ge.f32.partialorder %v6855, 0.0
    %vm7005 = vcmp.ge.f32.partialorder %v6857, 0.0
    %vm7006 = vcmp.ge.f32.partialorder %v6473, 0.0
    %vm7007 = vcmp.ge.f32.partialorder %v6475, 0.0
    %vm7008 = vcmp.ge.f32.partialorder %v6859, 0.0
    %vm7009 = vcmp.ge.f32.partialorder %v6861, 0.0
    %vm7010 = vcmp.ge.f32.partialorder %v6479, 0.0
    %vm7011 = vcmp.ge.f32.partialorder %v6481, 0.0
    %vm7012 = vcmp.ge.f32.partialorder %v6865, 0.0
    %vm7013 = vcmp.ge.f32.partialorder %v6867, 0.0
    %vm7014 = vcmp.ge.f32.partialorder %v6483, 0.0
    %vm7015 = vcmp.ge.f32.partialorder %v6485, 0.0
    %vm7016 = vcmp.ge.f32.partialorder %v6869, 0.0
    %vm7017 = vcmp.ge.f32.partialorder %v6871, 0.0
    %vm7018 = vcmp.ge.f32.partialorder %v6489, 0.0
    %vm7019 = vcmp.ge.f32.partialorder %v6491, 0.0
    %vm7020 = vcmp.ge.f32.partialorder %v6875, 0.0
    %vm7021 = vcmp.ge.f32.partialorder %v6877, 0.0
    %vm7022 = vcmp.ge.f32.partialorder %v6493, 0.0
    %vm7023 = vcmp.ge.f32.partialorder %v6495, 0.0
    %vm7024 = vcmp.ge.f32.partialorder %v6879, 0.0
    %vm7025 = vcmp.ge.f32.partialorder %v6881, 0.0
    %vm7026 = vcmp.ge.f32.partialorder %v6499, 0.0
    %vm7027 = vcmp.ge.f32.partialorder %v6501, 0.0
    %vm7028 = vcmp.ge.f32.partialorder %v6885, 0.0
    %vm7029 = vcmp.ge.f32.partialorder %v6887, 0.0
    %vm7030 = vcmp.ge.f32.partialorder %v6503, 0.0
    %vm7031 = vcmp.ge.f32.partialorder %v6505, 0.0
    %vm7032 = vcmp.ge.f32.partialorder %v6889, 0.0
    %vm7033 = vcmp.ge.f32.partialorder %v6891, 0.0
    %vm7034 = vcmp.ge.f32.partialorder %v6509, 0.0
    %vm7035 = vcmp.ge.f32.partialorder %v6511, 0.0
    %vm7036 = vcmp.ge.f32.partialorder %v6895, 0.0
    %vm7037 = vcmp.ge.f32.partialorder %v6897, 0.0
    %vm7038 = vcmp.ge.f32.partialorder %v6513, 0.0
    %vm7039 = vcmp.ge.f32.partialorder %v6515, 0.0
    %vm7040 = vcmp.ge.f32.partialorder %v6899, 0.0
    %vm7041 = vcmp.ge.f32.partialorder %v6901, 0.0
    %vm7042 = vcmp.ge.f32.partialorder %v6519, 0.0
    %vm7043 = vcmp.ge.f32.partialorder %v6521, 0.0
    %vm7044 = vcmp.ge.f32.partialorder %v6905, 0.0
    %vm7045 = vcmp.ge.f32.partialorder %v6907, 0.0
    %vm7046 = vcmp.ge.f32.partialorder %v6523, 0.0
    %vm7047 = vcmp.ge.f32.partialorder %v6525, 0.0
    %vm7048 = vcmp.ge.f32.partialorder %v6909, 0.0
    %vm7049 = vcmp.ge.f32.partialorder %v6911, 0.0
    %vm7050 = vcmp.ge.f32.partialorder %v6529, 0.0
    %vm7051 = vcmp.ge.f32.partialorder %v6531, 0.0
    %vm7052 = vcmp.ge.f32.partialorder %v6915, 0.0
    %vm7053 = vcmp.ge.f32.partialorder %v6917, 0.0
    %vm7054 = vcmp.ge.f32.partialorder %v6533, 0.0
    %vm7055 = vcmp.ge.f32.partialorder %v6535, 0.0
    %vm7056 = vcmp.ge.f32.partialorder %v6919, 0.0
    %vm7057 = vcmp.ge.f32.partialorder %v6921, 0.0
    %vm7058 = vcmp.ge.f32.partialorder %v6539, 0.0
    %vm7059 = vcmp.ge.f32.partialorder %v6541, 0.0
    %vm7060 = vcmp.ge.f32.partialorder %v6925, 0.0
    %vm7061 = vcmp.ge.f32.partialorder %v6927, 0.0
    %vm7062 = vcmp.ge.f32.partialorder %v6543, 0.0
    %vm7063 = vcmp.ge.f32.partialorder %v6545, 0.0
    %vm7064 = vcmp.ge.f32.partialorder %v6929, 0.0
    %vm7065 = vcmp.ge.f32.partialorder %v6931, 0.0
    %vm7066 = vcmp.ge.f32.partialorder %v6549, 0.0
    %vm7067 = vcmp.ge.f32.partialorder %v6551, 0.0
    %vm7068 = vcmp.ge.f32.partialorder %v6935, 0.0
    %vm7069 = vcmp.ge.f32.partialorder %v6937, 0.0
    %vm7070 = vcmp.ge.f32.partialorder %v6553, 0.0
    %vm7071 = vcmp.ge.f32.partialorder %v6555, 0.0
    %vm7072 = vcmp.ge.f32.partialorder %v6939, 0.0
    %vm7073 = vcmp.ge.f32.partialorder %v6941, 0.0
    %vm7074 = vcmp.ge.f32.partialorder %v6559, 0.0
    %vm7075 = vcmp.ge.f32.partialorder %v6561, 0.0
    %vm7076 = vcmp.ge.f32.partialorder %v6945, 0.0
    %vm7077 = vcmp.ge.f32.partialorder %v6947, 0.0
    %vm7078 = vcmp.ge.f32.partialorder %v6563, 0.0
    %vm7079 = vcmp.ge.f32.partialorder %v6565, 0.0
    %vm7080 = vcmp.ge.f32.partialorder %v6949, 0.0
    %vm7081 = vcmp.ge.f32.partialorder %v6951, 0.0
    %v7083 = vlaneseq
    %v7084 = vshrl.u32 %v7083, 7
    %v7085 = vsub.s32 0, %v7084
    %v7086 = vrot.slane %v6953, %v7085
    %v7087 = vlaneseq
    %v7088 = vshrl.u32 %v7087, 7
    %v7089 = vsub.s32 1, %v7088
    %v7090 = vrot.slane %v6953, %v7089
    %v7091 = vlaneseq
    %v7092 = vshrl.u32 %v7091, 7
    %v7093 = vsub.s32 2, %v7092
    %v7094 = vrot.slane %v6953, %v7093
    %v7095 = vlaneseq
    %v7096 = vshrl.u32 %v7095, 7
    %v7097 = vsub.s32 3, %v7096
    %v7098 = vrot.slane %v6953, %v7097
    %v7103 = vmul.f32 %v7086, %v6409
    %v7104 = vmul.f32 %v7090, %v6411
    %v7105 = vmul.f32 %v7094, %v6795
    %v7106 = vmul.f32 %v7098, %v6797
    %v7107 = vmul.f32 %v7086, %v6413
    %v7108 = vmul.f32 %v7090, %v6415
    %v7109 = vmul.f32 %v7094, %v6799
    %v7110 = vmul.f32 %v7098, %v6801
    %v7111 = vmul.f32 %v7086, %v6419
    %v7112 = vmul.f32 %v7090, %v6421
    %v7113 = vmul.f32 %v7094, %v6805
    %v7114 = vmul.f32 %v7098, %v6807
    %v7115 = vmul.f32 %v7086, %v6423
    %v7116 = vmul.f32 %v7090, %v6425
    %v7117 = vmul.f32 %v7094, %v6809
    %v7118 = vmul.f32 %v7098, %v6811
    %v7119 = vmul.f32 %v7086, %v6429
    %v7120 = vmul.f32 %v7090, %v6431
    %v7121 = vmul.f32 %v7094, %v6815
    %v7122 = vmul.f32 %v7098, %v6817
    %v7123 = vmul.f32 %v7086, %v6433
    %v7124 = vmul.f32 %v7090, %v6435
    %v7125 = vmul.f32 %v7094, %v6819
    %v7126 = vmul.f32 %v7098, %v6821
    %v7127 = vmul.f32 %v7086, %v6439
    %v7128 = vmul.f32 %v7090, %v6441
    %v7129 = vmul.f32 %v7094, %v6825
    %v7130 = vmul.f32 %v7098, %v6827
    %v7131 = vmul.f32 %v7086, %v6443
    %v7132 = vmul.f32 %v7090, %v6445
    %v7133 = vmul.f32 %v7094, %v6829
    %v7134 = vmul.f32 %v7098, %v6831
    %v7135 = vmul.f32 %v7086, %v6449
    %v7136 = vmul.f32 %v7090, %v6451
    %v7137 = vmul.f32 %v7094, %v6835
    %v7138 = vmul.f32 %v7098, %v6837
    %v7139 = vmul.f32 %v7086, %v6453
    %v7140 = vmul.f32 %v7090, %v6455
    %v7141 = vmul.f32 %v7094, %v6839
    %v7142 = vmul.f32 %v7098, %v6841
    %v7143 = vmul.f32 %v7086, %v6459
    %v7144 = vmul.f32 %v7090, %v6461
    %v7145 = vmul.f32 %v7094, %v6845
    %v7146 = vmul.f32 %v7098, %v6847
    %v7147 = vmul.f32 %v7086, %v6463
    %v7148 = vmul.f32 %v7090, %v6465
    %v7149 = vmul.f32 %v7094, %v6849
    %v7150 = vmul.f32 %v7098, %v6851
    %v7151 = vmul.f32 %v7086, %v6469
    %v7152 = vmul.f32 %v7090, %v6471
    %v7153 = vmul.f32 %v7094, %v6855
    %v7154 = vmul.f32 %v7098, %v6857
    %v7155 = vmul.f32 %v7086, %v6473
    %v7156 = vmul.f32 %v7090, %v6475
    %v7157 = vmul.f32 %v7094, %v6859
    %v7158 = vmul.f32 %v7098, %v6861
    %v7159 = vmul.f32 %v7086, %v6479
    %v7160 = vmul.f32 %v7090, %v6481
    %v7161 = vmul.f32 %v7094, %v6865
    %v7162 = vmul.f32 %v7098, %v6867
    %v7163 = vmul.f32 %v7086, %v6483
    %v7164 = vmul.f32 %v7090, %v6485
    %v7165 = vmul.f32 %v7094, %v6869
    %v7166 = vmul.f32 %v7098, %v6871
    %v7167 = vmul.f32 %v7086, %v6489
    %v7168 = vmul.f32 %v7090, %v6491
    %v7169 = vmul.f32 %v7094, %v6875
    %v7170 = vmul.f32 %v7098, %v6877
    %v7171 = vmul.f32 %v7086, %v6493
    %v7172 = vmul.f32 %v7090, %v6495
    %v7173 = vmul.f32 %v7094, %v6879
    %v7174 = vmul.f32 %v7098, %v6881
    %v7175 = vmul.f32 %v7086, %v6499
    %v7176 = vmul.f32 %v7090, %v6501
    %v7177 = vmul.f32 %v7094, %v6885
    %v7178 = vmul.f32 %v7098, %v6887
    %v7179 = vmul.f32 %v7086, %v6503
    %v7180 = vmul.f32 %v7090, %v6505
    %v7181 = vmul.f32 %v7094, %v6889
    %v7182 = vmul.f32 %v7098, %v6891
    %v7183 = vmul.f32 %v7086, %v6509
    %v7184 = vmul.f32 %v7090, %v6511
    %v7185 = vmul.f32 %v7094, %v6895
    %v7186 = vmul.f32 %v7098, %v6897
    %v7187 = vmul.f32 %v7086, %v6513
    %v7188 = vmul.f32 %v7090, %v6515
    %v7189 = vmul.f32 %v7094, %v6899
    %v7190 = vmul.f32 %v7098, %v6901
    %v7191 = vmul.f32 %v7086, %v6519
    %v7192 = vmul.f32 %v7090, %v6521
    %v7193 = vmul.f32 %v7094, %v6905
    %v7194 = vmul.f32 %v7098, %v6907
    %v7195 = vmul.f32 %v7086, %v6523
    %v7196 = vmul.f32 %v7090, %v6525
    %v7197 = vmul.f32 %v7094, %v6909
    %v7198 = vmul.f32 %v7098, %v6911
    %v7199 = vmul.f32 %v7086, %v6529
    %v7200 = vmul.f32 %v7090, %v6531
    %v7201 = vmul.f32 %v7094, %v6915
    %v7202 = vmul.f32 %v7098, %v6917
    %v7203 = vmul.f32 %v7086, %v6533
    %v7204 = vmul.f32 %v7090, %v6535
    %v7205 = vmul.f32 %v7094, %v6919
    %v7206 = vmul.f32 %v7098, %v6921
    %v7207 = vmul.f32 %v7086, %v6539
    %v7208 = vmul.f32 %v7090, %v6541
    %v7209 = vmul.f32 %v7094, %v6925
    %v7210 = vmul.f32 %v7098, %v6927
    %v7211 = vmul.f32 %v7086, %v6543
    %v7212 = vmul.f32 %v7090, %v6545
    %v7213 = vmul.f32 %v7094, %v6929
    %v7214 = vmul.f32 %v7098, %v6931
    %v7215 = vmul.f32 %v7086, %v6549
    %v7216 = vmul.f32 %v7090, %v6551
    %v7217 = vmul.f32 %v7094, %v6935
    %v7218 = vmul.f32 %v7098, %v6937
    %v7219 = vmul.f32 %v7086, %v6553
    %v7220 = vmul.f32 %v7090, %v6555
    %v7221 = vmul.f32 %v7094, %v6939
    %v7222 = vmul.f32 %v7098, %v6941
    %v7223 = vmul.f32 %v7086, %v6559
    %v7224 = vmul.f32 %v7090, %v6561
    %v7225 = vmul.f32 %v7094, %v6945
    %v7226 = vmul.f32 %v7098, %v6947
    %v7227 = vmul.f32 %v7086, %v6563
    %v7228 = vmul.f32 %v7090, %v6565
    %v7229 = vmul.f32 %v7094, %v6949
    %v7230 = vmul.f32 %v7098, %v6951
    %v7231 = vsel %vm6954, %v6409, %v7103
    %v7232 = vsel %vm6955, %v6411, %v7104
    %v7233 = vsel %vm6956, %v6795, %v7105
    %v7234 = vsel %vm6957, %v6797, %v7106
    %v7235 = vsel %vm6958, %v6413, %v7107
    %v7236 = vsel %vm6959, %v6415, %v7108
    %v7237 = vsel %vm6960, %v6799, %v7109
    %v7238 = vsel %vm6961, %v6801, %v7110
    %v7239 = vsel %vm6962, %v6419, %v7111
    %v7240 = vsel %vm6963, %v6421, %v7112
    %v7241 = vsel %vm6964, %v6805, %v7113
    %v7242 = vsel %vm6965, %v6807, %v7114
    %v7243 = vsel %vm6966, %v6423, %v7115
    %v7244 = vsel %vm6967, %v6425, %v7116
    %v7245 = vsel %vm6968, %v6809, %v7117
    %v7246 = vsel %vm6969, %v6811, %v7118
    %v7247 = vsel %vm6970, %v6429, %v7119
    %v7248 = vsel %vm6971, %v6431, %v7120
    %v7249 = vsel %vm6972, %v6815, %v7121
    %v7250 = vsel %vm6973, %v6817, %v7122
    %v7251 = vsel %vm6974, %v6433, %v7123
    %v7252 = vsel %vm6975, %v6435, %v7124
    %v7253 = vsel %vm6976, %v6819, %v7125
    %v7254 = vsel %vm6977, %v6821, %v7126
    %v7255 = vsel %vm6978, %v6439, %v7127
    %v7256 = vsel %vm6979, %v6441, %v7128
    %v7257 = vsel %vm6980, %v6825, %v7129
    %v7258 = vsel %vm6981, %v6827, %v7130
    %v7259 = vsel %vm6982, %v6443, %v7131
    %v7260 = vsel %vm6983, %v6445, %v7132
    %v7261 = vsel %vm6984, %v6829, %v7133
    %v7262 = vsel %vm6985, %v6831, %v7134
    %v7263 = vsel %vm6986, %v6449, %v7135
    %v7264 = vsel %vm6987, %v6451, %v7136
    %v7265 = vsel %vm6988, %v6835, %v7137
    %v7266 = vsel %vm6989, %v6837, %v7138
    %v7267 = vsel %vm6990, %v6453, %v7139
    %v7268 = vsel %vm6991, %v6455, %v7140
    %v7269 = vsel %vm6992, %v6839, %v7141
    %v7270 = vsel %vm6993, %v6841, %v7142
    %v7271 = vsel %vm6994, %v6459, %v7143
    %v7272 = vsel %vm6995, %v6461, %v7144
    %v7273 = vsel %vm6996, %v6845, %v7145
    %v7274 = vsel %vm6997, %v6847, %v7146
    %v7275 = vsel %vm6998, %v6463, %v7147
    %v7276 = vsel %vm6999, %v6465, %v7148
    %v7277 = vsel %vm7000, %v6849, %v7149
    %v7278 = vsel %vm7001, %v6851, %v7150
    %v7279 = vsel %vm7002, %v6469, %v7151
    %v7280 = vsel %vm7003, %v6471, %v7152
    %v7281 = vsel %vm7004, %v6855, %v7153
    %v7282 = vsel %vm7005, %v6857, %v7154
    %v7283 = vsel %vm7006, %v6473, %v7155
    %v7284 = vsel %vm7007, %v6475, %v7156
    %v7285 = vsel %vm7008, %v6859, %v7157
    %v7286 = vsel %vm7009, %v6861, %v7158
    %v7287 = vsel %vm7010, %v6479, %v7159
    %v7288 = vsel %vm7011, %v6481, %v7160
    %v7289 = vsel %vm7012, %v6865, %v7161
    %v7290 = vsel %vm7013, %v6867, %v7162
    %v7291 = vsel %vm7014, %v6483, %v7163
    %v7292 = vsel %vm7015, %v6485, %v7164
    %v7293 = vsel %vm7016, %v6869, %v7165
    %v7294 = vsel %vm7017, %v6871, %v7166
    %v7295 = vsel %vm7018, %v6489, %v7167
    %v7296 = vsel %vm7019, %v6491, %v7168
    %v7297 = vsel %vm7020, %v6875, %v7169
    %v7298 = vsel %vm7021, %v6877, %v7170
    %v7299 = vsel %vm7022, %v6493, %v7171
    %v7300 = vsel %vm7023, %v6495, %v7172
    %v7301 = vsel %vm7024, %v6879, %v7173
    %v7302 = vsel %vm7025, %v6881, %v7174
    %v7303 = vsel %vm7026, %v6499, %v7175
    %v7304 = vsel %vm7027, %v6501, %v7176
    %v7305 = vsel %vm7028, %v6885, %v7177
    %v7306 = vsel %vm7029, %v6887, %v7178
    %v7307 = vsel %vm7030, %v6503, %v7179
    %v7308 = vsel %vm7031, %v6505, %v7180
    %v7309 = vsel %vm7032, %v6889, %v7181
    %v7310 = vsel %vm7033, %v6891, %v7182
    %v7311 = vsel %vm7034, %v6509, %v7183
    %v7312 = vsel %vm7035, %v6511, %v7184
    %v7313 = vsel %vm7036, %v6895, %v7185
    %v7314 = vsel %vm7037, %v6897, %v7186
    %v7315 = vsel %vm7038, %v6513, %v7187
    %v7316 = vsel %vm7039, %v6515, %v7188
    %v7317 = vsel %vm7040, %v6899, %v7189
    %v7318 = vsel %vm7041, %v6901, %v7190
    %v7319 = vsel %vm7042, %v6519, %v7191
    %v7320 = vsel %vm7043, %v6521, %v7192
    %v7321 = vsel %vm7044, %v6905, %v7193
    %v7322 = vsel %vm7045, %v6907, %v7194
    %v7323 = vsel %vm7046, %v6523, %v7195
    %v7324 = vsel %vm7047, %v6525, %v7196
    %v7325 = vsel %vm7048, %v6909, %v7197
    %v7326 = vsel %vm7049, %v6911, %v7198
    %v7327 = vsel %vm7050, %v6529, %v7199
    %v7328 = vsel %vm7051, %v6531, %v7200
    %v7329 = vsel %vm7052, %v6915, %v7201
    %v7330 = vsel %vm7053, %v6917, %v7202
    %v7331 = vsel %vm7054, %v6533, %v7203
    %v7332 = vsel %vm7055, %v6535, %v7204
    %v7333 = vsel %vm7056, %v6919, %v7205
    %v7334 = vsel %vm7057, %v6921, %v7206
    %v7335 = vsel %vm7058, %v6539, %v7207
    %v7336 = vsel %vm7059, %v6541, %v7208
    %v7337 = vsel %vm7060, %v6925, %v7209
    %v7338 = vsel %vm7061, %v6927, %v7210
    %v7339 = vsel %vm7062, %v6543, %v7211
    %v7340 = vsel %vm7063, %v6545, %v7212
    %v7341 = vsel %vm7064, %v6929, %v7213
    %v7342 = vsel %vm7065, %v6931, %v7214
    %v7343 = vsel %vm7066, %v6549, %v7215
    %v7344 = vsel %vm7067, %v6551, %v7216
    %v7345 = vsel %vm7068, %v6935, %v7217
    %v7346 = vsel %vm7069, %v6937, %v7218
    %v7347 = vsel %vm7070, %v6553, %v7219
    %v7348 = vsel %vm7071, %v6555, %v7220
    %v7349 = vsel %vm7072, %v6939, %v7221
    %v7350 = vsel %vm7073, %v6941, %v7222
    %v7351 = vsel %vm7074, %v6559, %v7223
    %v7352 = vsel %vm7075, %v6561, %v7224
    %v7353 = vsel %vm7076, %v6945, %v7225
    %v7354 = vsel %vm7077, %v6947, %v7226
    %v7355 = vsel %vm7078, %v6563, %v7227
    %v7356 = vsel %vm7079, %v6565, %v7228
    %v7357 = vsel %vm7080, %v6949, %v7229
    %v7358 = vsel %vm7081, %v6951, %v7230
    %v7359 = vld [vmem:[%s4] sm:$0xf]
    %v7360 = vld [vmem:[%s5] sm:$0xf]
    %v7361 = vlaneseq
    %v7362 = vand.u32 %v7361, 127
    %v7363 = vadd.s32 %v7362, 128
    %v7364 = vadd.s32 %v7362, 256
    %v7365 = vadd.s32 %v7362, 384
    %vm7366 = vcmp.lt.s32.totalorder %v7362, 400
    %vm7367 = vcmp.lt.s32.totalorder %v7363, 400
    %vm7368 = vcmp.lt.s32.totalorder %v7364, 400
    %vm7369 = vcmp.lt.s32.totalorder %v7365, 400
    %v7370 = vsel %vm7366, 1, 0
    %v7371 = vsel %vm7367, 1, 0
    %v7372 = vsel %vm7368, 1, 0
    %v7373 = vsel %vm7369, 1, 0
    %v7374 = vcvt.s32.f32 %v7370
    %v7375 = vcvt.s32.f32 %v7371
    %v7376 = vcvt.s32.f32 %v7372
    %v7377 = vcvt.s32.f32 %v7373
    %v7378 = vadd.f32 %v7231, %v7232
    %v7379 = vadd.f32 %v7378, %v7233
    %v7380 = vadd.f32 %v7379, %v7234
    %7381 = vadd.xlane.f32.xlu0 %v7380
    %v7382 = vpop.xlane.xlu0 %7381
    %v7383 = vadd.f32 %v7235, %v7236
    %v7384 = vadd.f32 %v7383, %v7237
    %v7385 = vadd.f32 %v7384, %v7238
    %7386 = vadd.xlane.f32.xlu0 %v7385
    %v7387 = vpop.xlane.xlu0 %7386
    %v7388 = vadd.f32 %v7239, %v7240
    %v7389 = vadd.f32 %v7388, %v7241
    %v7390 = vadd.f32 %v7389, %v7242
    %7391 = vadd.xlane.f32.xlu0 %v7390
    %v7392 = vpop.xlane.xlu0 %7391
    %v7393 = vadd.f32 %v7243, %v7244
    %v7394 = vadd.f32 %v7393, %v7245
    %v7395 = vadd.f32 %v7394, %v7246
    %7396 = vadd.xlane.f32.xlu0 %v7395
    %v7397 = vpop.xlane.xlu0 %7396
    %v7398 = vadd.f32 %v7247, %v7248
    %v7399 = vadd.f32 %v7398, %v7249
    %v7400 = vadd.f32 %v7399, %v7250
    %7401 = vadd.xlane.f32.xlu0 %v7400
    %v7402 = vpop.xlane.xlu0 %7401
    %v7403 = vadd.f32 %v7251, %v7252
    %v7404 = vadd.f32 %v7403, %v7253
    %v7405 = vadd.f32 %v7404, %v7254
    %7406 = vadd.xlane.f32.xlu0 %v7405
    %v7407 = vpop.xlane.xlu0 %7406
    %v7408 = vadd.f32 %v7255, %v7256
    %v7409 = vadd.f32 %v7408, %v7257
    %v7410 = vadd.f32 %v7409, %v7258
    %7411 = vadd.xlane.f32.xlu0 %v7410
    %v7412 = vpop.xlane.xlu0 %7411
    %v7413 = vadd.f32 %v7259, %v7260
    %v7414 = vadd.f32 %v7413, %v7261
    %v7415 = vadd.f32 %v7414, %v7262
    %7416 = vadd.xlane.f32.xlu0 %v7415
    %v7417 = vpop.xlane.xlu0 %7416
    %v7418 = vadd.f32 %v7263, %v7264
    %v7419 = vadd.f32 %v7418, %v7265
    %v7420 = vadd.f32 %v7419, %v7266
    %7421 = vadd.xlane.f32.xlu0 %v7420
    %v7422 = vpop.xlane.xlu0 %7421
    %v7423 = vadd.f32 %v7267, %v7268
    %v7424 = vadd.f32 %v7423, %v7269
    %v7425 = vadd.f32 %v7424, %v7270
    %7426 = vadd.xlane.f32.xlu0 %v7425
    %v7427 = vpop.xlane.xlu0 %7426
    %v7428 = vadd.f32 %v7271, %v7272
    %v7429 = vadd.f32 %v7428, %v7273
    %v7430 = vadd.f32 %v7429, %v7274
    %7431 = vadd.xlane.f32.xlu0 %v7430
    %v7432 = vpop.xlane.xlu0 %7431
    %v7433 = vadd.f32 %v7275, %v7276
    %v7434 = vadd.f32 %v7433, %v7277
    %v7435 = vadd.f32 %v7434, %v7278
    %7436 = vadd.xlane.f32.xlu0 %v7435
    %v7437 = vpop.xlane.xlu0 %7436
    %v7438 = vadd.f32 %v7279, %v7280
    %v7439 = vadd.f32 %v7438, %v7281
    %v7440 = vadd.f32 %v7439, %v7282
    %7441 = vadd.xlane.f32.xlu0 %v7440
    %v7442 = vpop.xlane.xlu0 %7441
    %v7443 = vadd.f32 %v7283, %v7284
    %v7444 = vadd.f32 %v7443, %v7285
    %v7445 = vadd.f32 %v7444, %v7286
    %7446 = vadd.xlane.f32.xlu0 %v7445
    %v7447 = vpop.xlane.xlu0 %7446
    %v7448 = vadd.f32 %v7287, %v7288
    %v7449 = vadd.f32 %v7448, %v7289
    %v7450 = vadd.f32 %v7449, %v7290
    %7451 = vadd.xlane.f32.xlu0 %v7450
    %v7452 = vpop.xlane.xlu0 %7451
    %v7453 = vadd.f32 %v7291, %v7292
    %v7454 = vadd.f32 %v7453, %v7293
    %v7455 = vadd.f32 %v7454, %v7294
    %7456 = vadd.xlane.f32.xlu0 %v7455
    %v7457 = vpop.xlane.xlu0 %7456
    %v7458 = vadd.f32 %v7295, %v7296
    %v7459 = vadd.f32 %v7458, %v7297
    %v7460 = vadd.f32 %v7459, %v7298
    %7461 = vadd.xlane.f32.xlu0 %v7460
    %v7462 = vpop.xlane.xlu0 %7461
    %v7463 = vadd.f32 %v7299, %v7300
    %v7464 = vadd.f32 %v7463, %v7301
    %v7465 = vadd.f32 %v7464, %v7302
    %7466 = vadd.xlane.f32.xlu0 %v7465
    %v7467 = vpop.xlane.xlu0 %7466
    %v7468 = vadd.f32 %v7303, %v7304
    %v7469 = vadd.f32 %v7468, %v7305
    %v7470 = vadd.f32 %v7469, %v7306
    %7471 = vadd.xlane.f32.xlu0 %v7470
    %v7472 = vpop.xlane.xlu0 %7471
    %v7473 = vadd.f32 %v7307, %v7308
    %v7474 = vadd.f32 %v7473, %v7309
    %v7475 = vadd.f32 %v7474, %v7310
    %7476 = vadd.xlane.f32.xlu0 %v7475
    %v7477 = vpop.xlane.xlu0 %7476
    %v7478 = vadd.f32 %v7311, %v7312
    %v7479 = vadd.f32 %v7478, %v7313
    %v7480 = vadd.f32 %v7479, %v7314
    %7481 = vadd.xlane.f32.xlu0 %v7480
    %v7482 = vpop.xlane.xlu0 %7481
    %v7483 = vadd.f32 %v7315, %v7316
    %v7484 = vadd.f32 %v7483, %v7317
    %v7485 = vadd.f32 %v7484, %v7318
    %7486 = vadd.xlane.f32.xlu0 %v7485
    %v7487 = vpop.xlane.xlu0 %7486
    %v7488 = vadd.f32 %v7319, %v7320
    %v7489 = vadd.f32 %v7488, %v7321
    %v7490 = vadd.f32 %v7489, %v7322
    %7491 = vadd.xlane.f32.xlu0 %v7490
    %v7492 = vpop.xlane.xlu0 %7491
    %v7493 = vadd.f32 %v7323, %v7324
    %v7494 = vadd.f32 %v7493, %v7325
    %v7495 = vadd.f32 %v7494, %v7326
    %7496 = vadd.xlane.f32.xlu0 %v7495
    %v7497 = vpop.xlane.xlu0 %7496
    %v7498 = vadd.f32 %v7327, %v7328
    %v7499 = vadd.f32 %v7498, %v7329
    %v7500 = vadd.f32 %v7499, %v7330
    %7501 = vadd.xlane.f32.xlu0 %v7500
    %v7502 = vpop.xlane.xlu0 %7501
    %v7503 = vadd.f32 %v7331, %v7332
    %v7504 = vadd.f32 %v7503, %v7333
    %v7505 = vadd.f32 %v7504, %v7334
    %7506 = vadd.xlane.f32.xlu0 %v7505
    %v7507 = vpop.xlane.xlu0 %7506
    %v7508 = vadd.f32 %v7335, %v7336
    %v7509 = vadd.f32 %v7508, %v7337
    %v7510 = vadd.f32 %v7509, %v7338
    %7511 = vadd.xlane.f32.xlu0 %v7510
    %v7512 = vpop.xlane.xlu0 %7511
    %v7513 = vadd.f32 %v7339, %v7340
    %v7514 = vadd.f32 %v7513, %v7341
    %v7515 = vadd.f32 %v7514, %v7342
    %7516 = vadd.xlane.f32.xlu0 %v7515
    %v7517 = vpop.xlane.xlu0 %7516
    %v7518 = vadd.f32 %v7343, %v7344
    %v7519 = vadd.f32 %v7518, %v7345
    %v7520 = vadd.f32 %v7519, %v7346
    %7521 = vadd.xlane.f32.xlu0 %v7520
    %v7522 = vpop.xlane.xlu0 %7521
    %v7523 = vadd.f32 %v7347, %v7348
    %v7524 = vadd.f32 %v7523, %v7349
    %v7525 = vadd.f32 %v7524, %v7350
    %7526 = vadd.xlane.f32.xlu0 %v7525
    %v7527 = vpop.xlane.xlu0 %7526
    %v7528 = vadd.f32 %v7351, %v7352
    %v7529 = vadd.f32 %v7528, %v7353
    %v7530 = vadd.f32 %v7529, %v7354
    %7531 = vadd.xlane.f32.xlu0 %v7530
    %v7532 = vpop.xlane.xlu0 %7531
    %v7533 = vadd.f32 %v7355, %v7356
    %v7534 = vadd.f32 %v7533, %v7357
    %v7535 = vadd.f32 %v7534, %v7358
    %7536 = vadd.xlane.f32.xlu0 %v7535
    %v7537 = vpop.xlane.xlu0 %7536
    %v7538 = vmul.f32 %v7382, 0.0025
    %v7539 = vmul.f32 %v7387, 0.0025
    %v7540 = vmul.f32 %v7392, 0.0025
    %v7541 = vmul.f32 %v7397, 0.0025
    %v7542 = vmul.f32 %v7402, 0.0025
    %v7543 = vmul.f32 %v7407, 0.0025
    %v7544 = vmul.f32 %v7412, 0.0025
    %v7545 = vmul.f32 %v7417, 0.0025
    %v7546 = vmul.f32 %v7422, 0.0025
    %v7547 = vmul.f32 %v7427, 0.0025
    %v7548 = vmul.f32 %v7432, 0.0025
    %v7549 = vmul.f32 %v7437, 0.0025
    %v7550 = vmul.f32 %v7442, 0.0025
    %v7551 = vmul.f32 %v7447, 0.0025
    %v7552 = vmul.f32 %v7452, 0.0025
    %v7553 = vmul.f32 %v7457, 0.0025
    %v7554 = vmul.f32 %v7462, 0.0025
    %v7555 = vmul.f32 %v7467, 0.0025
    %v7556 = vmul.f32 %v7472, 0.0025
    %v7557 = vmul.f32 %v7477, 0.0025
    %v7558 = vmul.f32 %v7482, 0.0025
    %v7559 = vmul.f32 %v7487, 0.0025
    %v7560 = vmul.f32 %v7492, 0.0025
    %v7561 = vmul.f32 %v7497, 0.0025
    %v7562 = vmul.f32 %v7502, 0.0025
    %v7563 = vmul.f32 %v7507, 0.0025
    %v7564 = vmul.f32 %v7512, 0.0025
    %v7565 = vmul.f32 %v7517, 0.0025
    %v7566 = vmul.f32 %v7522, 0.0025
    %v7567 = vmul.f32 %v7527, 0.0025
    %v7568 = vmul.f32 %v7532, 0.0025
    %v7569 = vmul.f32 %v7537, 0.0025
    %v7570 = vsub.f32 %v7231, %v7538
    %v7571 = vsub.f32 %v7232, %v7538
    %v7572 = vsub.f32 %v7233, %v7538
    %v7573 = vsub.f32 %v7234, %v7538
    %v7574 = vsub.f32 %v7235, %v7539
    %v7575 = vsub.f32 %v7236, %v7539
    %v7576 = vsub.f32 %v7237, %v7539
    %v7577 = vsub.f32 %v7238, %v7539
    %v7578 = vsub.f32 %v7239, %v7540
    %v7579 = vsub.f32 %v7240, %v7540
    %v7580 = vsub.f32 %v7241, %v7540
    %v7581 = vsub.f32 %v7242, %v7540
    %v7582 = vsub.f32 %v7243, %v7541
    %v7583 = vsub.f32 %v7244, %v7541
    %v7584 = vsub.f32 %v7245, %v7541
    %v7585 = vsub.f32 %v7246, %v7541
    %v7586 = vsub.f32 %v7247, %v7542
    %v7587 = vsub.f32 %v7248, %v7542
    %v7588 = vsub.f32 %v7249, %v7542
    %v7589 = vsub.f32 %v7250, %v7542
    %v7590 = vsub.f32 %v7251, %v7543
    %v7591 = vsub.f32 %v7252, %v7543
    %v7592 = vsub.f32 %v7253, %v7543
    %v7593 = vsub.f32 %v7254, %v7543
    %v7594 = vsub.f32 %v7255, %v7544
    %v7595 = vsub.f32 %v7256, %v7544
    %v7596 = vsub.f32 %v7257, %v7544
    %v7597 = vsub.f32 %v7258, %v7544
    %v7598 = vsub.f32 %v7259, %v7545
    %v7599 = vsub.f32 %v7260, %v7545
    %v7600 = vsub.f32 %v7261, %v7545
    %v7601 = vsub.f32 %v7262, %v7545
    %v7602 = vsub.f32 %v7263, %v7546
    %v7603 = vsub.f32 %v7264, %v7546
    %v7604 = vsub.f32 %v7265, %v7546
    %v7605 = vsub.f32 %v7266, %v7546
    %v7606 = vsub.f32 %v7267, %v7547
    %v7607 = vsub.f32 %v7268, %v7547
    %v7608 = vsub.f32 %v7269, %v7547
    %v7609 = vsub.f32 %v7270, %v7547
    %v7610 = vsub.f32 %v7271, %v7548
    %v7611 = vsub.f32 %v7272, %v7548
    %v7612 = vsub.f32 %v7273, %v7548
    %v7613 = vsub.f32 %v7274, %v7548
    %v7614 = vsub.f32 %v7275, %v7549
    %v7615 = vsub.f32 %v7276, %v7549
    %v7616 = vsub.f32 %v7277, %v7549
    %v7617 = vsub.f32 %v7278, %v7549
    %v7618 = vsub.f32 %v7279, %v7550
    %v7619 = vsub.f32 %v7280, %v7550
    %v7620 = vsub.f32 %v7281, %v7550
    %v7621 = vsub.f32 %v7282, %v7550
    %v7622 = vsub.f32 %v7283, %v7551
    %v7623 = vsub.f32 %v7284, %v7551
    %v7624 = vsub.f32 %v7285, %v7551
    %v7625 = vsub.f32 %v7286, %v7551
    %v7626 = vsub.f32 %v7287, %v7552
    %v7627 = vsub.f32 %v7288, %v7552
    %v7628 = vsub.f32 %v7289, %v7552
    %v7629 = vsub.f32 %v7290, %v7552
    %v7630 = vsub.f32 %v7291, %v7553
    %v7631 = vsub.f32 %v7292, %v7553
    %v7632 = vsub.f32 %v7293, %v7553
    %v7633 = vsub.f32 %v7294, %v7553
    %v7634 = vsub.f32 %v7295, %v7554
    %v7635 = vsub.f32 %v7296, %v7554
    %v7636 = vsub.f32 %v7297, %v7554
    %v7637 = vsub.f32 %v7298, %v7554
    %v7638 = vsub.f32 %v7299, %v7555
    %v7639 = vsub.f32 %v7300, %v7555
    %v7640 = vsub.f32 %v7301, %v7555
    %v7641 = vsub.f32 %v7302, %v7555
    %v7642 = vsub.f32 %v7303, %v7556
    %v7643 = vsub.f32 %v7304, %v7556
    %v7644 = vsub.f32 %v7305, %v7556
    %v7645 = vsub.f32 %v7306, %v7556
    %v7646 = vsub.f32 %v7307, %v7557
    %v7647 = vsub.f32 %v7308, %v7557
    %v7648 = vsub.f32 %v7309, %v7557
    %v7649 = vsub.f32 %v7310, %v7557
    %v7650 = vsub.f32 %v7311, %v7558
    %v7651 = vsub.f32 %v7312, %v7558
    %v7652 = vsub.f32 %v7313, %v7558
    %v7653 = vsub.f32 %v7314, %v7558
    %v7654 = vsub.f32 %v7315, %v7559
    %v7655 = vsub.f32 %v7316, %v7559
    %v7656 = vsub.f32 %v7317, %v7559
    %v7657 = vsub.f32 %v7318, %v7559
    %v7658 = vsub.f32 %v7319, %v7560
    %v7659 = vsub.f32 %v7320, %v7560
    %v7660 = vsub.f32 %v7321, %v7560
    %v7661 = vsub.f32 %v7322, %v7560
    %v7662 = vsub.f32 %v7323, %v7561
    %v7663 = vsub.f32 %v7324, %v7561
    %v7664 = vsub.f32 %v7325, %v7561
    %v7665 = vsub.f32 %v7326, %v7561
    %v7666 = vsub.f32 %v7327, %v7562
    %v7667 = vsub.f32 %v7328, %v7562
    %v7668 = vsub.f32 %v7329, %v7562
    %v7669 = vsub.f32 %v7330, %v7562
    %v7670 = vsub.f32 %v7331, %v7563
    %v7671 = vsub.f32 %v7332, %v7563
    %v7672 = vsub.f32 %v7333, %v7563
    %v7673 = vsub.f32 %v7334, %v7563
    %v7674 = vsub.f32 %v7335, %v7564
    %v7675 = vsub.f32 %v7336, %v7564
    %v7676 = vsub.f32 %v7337, %v7564
    %v7677 = vsub.f32 %v7338, %v7564
    %v7678 = vsub.f32 %v7339, %v7565
    %v7679 = vsub.f32 %v7340, %v7565
    %v7680 = vsub.f32 %v7341, %v7565
    %v7681 = vsub.f32 %v7342, %v7565
    %v7682 = vsub.f32 %v7343, %v7566
    %v7683 = vsub.f32 %v7344, %v7566
    %v7684 = vsub.f32 %v7345, %v7566
    %v7685 = vsub.f32 %v7346, %v7566
    %v7686 = vsub.f32 %v7347, %v7567
    %v7687 = vsub.f32 %v7348, %v7567
    %v7688 = vsub.f32 %v7349, %v7567
    %v7689 = vsub.f32 %v7350, %v7567
    %v7690 = vsub.f32 %v7351, %v7568
    %v7691 = vsub.f32 %v7352, %v7568
    %v7692 = vsub.f32 %v7353, %v7568
    %v7693 = vsub.f32 %v7354, %v7568
    %v7694 = vsub.f32 %v7355, %v7569
    %v7695 = vsub.f32 %v7356, %v7569
    %v7696 = vsub.f32 %v7357, %v7569
    %v7697 = vsub.f32 %v7358, %v7569
    %v7698 = vmul.f32 %v7570, %v7374
    %v7699 = vmul.f32 %v7571, %v7375
    %v7700 = vmul.f32 %v7572, %v7376
    %v7701 = vmul.f32 %v7573, %v7377
    %v7702 = vmul.f32 %v7574, %v7374
    %v7703 = vmul.f32 %v7575, %v7375
    %v7704 = vmul.f32 %v7576, %v7376
    %v7705 = vmul.f32 %v7577, %v7377
    %v7706 = vmul.f32 %v7578, %v7374
    %v7707 = vmul.f32 %v7579, %v7375
    %v7708 = vmul.f32 %v7580, %v7376
    %v7709 = vmul.f32 %v7581, %v7377
    %v7710 = vmul.f32 %v7582, %v7374
    %v7711 = vmul.f32 %v7583, %v7375
    %v7712 = vmul.f32 %v7584, %v7376
    %v7713 = vmul.f32 %v7585, %v7377
    %v7714 = vmul.f32 %v7586, %v7374
    %v7715 = vmul.f32 %v7587, %v7375
    %v7716 = vmul.f32 %v7588, %v7376
    %v7717 = vmul.f32 %v7589, %v7377
    %v7718 = vmul.f32 %v7590, %v7374
    %v7719 = vmul.f32 %v7591, %v7375
    %v7720 = vmul.f32 %v7592, %v7376
    %v7721 = vmul.f32 %v7593, %v7377
    %v7722 = vmul.f32 %v7594, %v7374
    %v7723 = vmul.f32 %v7595, %v7375
    %v7724 = vmul.f32 %v7596, %v7376
    %v7725 = vmul.f32 %v7597, %v7377
    %v7726 = vmul.f32 %v7598, %v7374
    %v7727 = vmul.f32 %v7599, %v7375
    %v7728 = vmul.f32 %v7600, %v7376
    %v7729 = vmul.f32 %v7601, %v7377
    %v7730 = vmul.f32 %v7602, %v7374
    %v7731 = vmul.f32 %v7603, %v7375
    %v7732 = vmul.f32 %v7604, %v7376
    %v7733 = vmul.f32 %v7605, %v7377
    %v7734 = vmul.f32 %v7606, %v7374
    %v7735 = vmul.f32 %v7607, %v7375
    %v7736 = vmul.f32 %v7608, %v7376
    %v7737 = vmul.f32 %v7609, %v7377
    %v7738 = vmul.f32 %v7610, %v7374
    %v7739 = vmul.f32 %v7611, %v7375
    %v7740 = vmul.f32 %v7612, %v7376
    %v7741 = vmul.f32 %v7613, %v7377
    %v7742 = vmul.f32 %v7614, %v7374
    %v7743 = vmul.f32 %v7615, %v7375
    %v7744 = vmul.f32 %v7616, %v7376
    %v7745 = vmul.f32 %v7617, %v7377
    %v7746 = vmul.f32 %v7618, %v7374
    %v7747 = vmul.f32 %v7619, %v7375
    %v7748 = vmul.f32 %v7620, %v7376
    %v7749 = vmul.f32 %v7621, %v7377
    %v7750 = vmul.f32 %v7622, %v7374
    %v7751 = vmul.f32 %v7623, %v7375
    %v7752 = vmul.f32 %v7624, %v7376
    %v7753 = vmul.f32 %v7625, %v7377
    %v7754 = vmul.f32 %v7626, %v7374
    %v7755 = vmul.f32 %v7627, %v7375
    %v7756 = vmul.f32 %v7628, %v7376
    %v7757 = vmul.f32 %v7629, %v7377
    %v7758 = vmul.f32 %v7630, %v7374
    %v7759 = vmul.f32 %v7631, %v7375
    %v7760 = vmul.f32 %v7632, %v7376
    %v7761 = vmul.f32 %v7633, %v7377
    %v7762 = vmul.f32 %v7634, %v7374
    %v7763 = vmul.f32 %v7635, %v7375
    %v7764 = vmul.f32 %v7636, %v7376
    %v7765 = vmul.f32 %v7637, %v7377
    %v7766 = vmul.f32 %v7638, %v7374
    %v7767 = vmul.f32 %v7639, %v7375
    %v7768 = vmul.f32 %v7640, %v7376
    %v7769 = vmul.f32 %v7641, %v7377
    %v7770 = vmul.f32 %v7642, %v7374
    %v7771 = vmul.f32 %v7643, %v7375
    %v7772 = vmul.f32 %v7644, %v7376
    %v7773 = vmul.f32 %v7645, %v7377
    %v7774 = vmul.f32 %v7646, %v7374
    %v7775 = vmul.f32 %v7647, %v7375
    %v7776 = vmul.f32 %v7648, %v7376
    %v7777 = vmul.f32 %v7649, %v7377
    %v7778 = vmul.f32 %v7650, %v7374
    %v7779 = vmul.f32 %v7651, %v7375
    %v7780 = vmul.f32 %v7652, %v7376
    %v7781 = vmul.f32 %v7653, %v7377
    %v7782 = vmul.f32 %v7654, %v7374
    %v7783 = vmul.f32 %v7655, %v7375
    %v7784 = vmul.f32 %v7656, %v7376
    %v7785 = vmul.f32 %v7657, %v7377
    %v7786 = vmul.f32 %v7658, %v7374
    %v7787 = vmul.f32 %v7659, %v7375
    %v7788 = vmul.f32 %v7660, %v7376
    %v7789 = vmul.f32 %v7661, %v7377
    %v7790 = vmul.f32 %v7662, %v7374
    %v7791 = vmul.f32 %v7663, %v7375
    %v7792 = vmul.f32 %v7664, %v7376
    %v7793 = vmul.f32 %v7665, %v7377
    %v7794 = vmul.f32 %v7666, %v7374
    %v7795 = vmul.f32 %v7667, %v7375
    %v7796 = vmul.f32 %v7668, %v7376
    %v7797 = vmul.f32 %v7669, %v7377
    %v7798 = vmul.f32 %v7670, %v7374
    %v7799 = vmul.f32 %v7671, %v7375
    %v7800 = vmul.f32 %v7672, %v7376
    %v7801 = vmul.f32 %v7673, %v7377
    %v7802 = vmul.f32 %v7674, %v7374
    %v7803 = vmul.f32 %v7675, %v7375
    %v7804 = vmul.f32 %v7676, %v7376
    %v7805 = vmul.f32 %v7677, %v7377
    %v7806 = vmul.f32 %v7678, %v7374
    %v7807 = vmul.f32 %v7679, %v7375
    %v7808 = vmul.f32 %v7680, %v7376
    %v7809 = vmul.f32 %v7681, %v7377
    %v7810 = vmul.f32 %v7682, %v7374
    %v7811 = vmul.f32 %v7683, %v7375
    %v7812 = vmul.f32 %v7684, %v7376
    %v7813 = vmul.f32 %v7685, %v7377
    %v7814 = vmul.f32 %v7686, %v7374
    %v7815 = vmul.f32 %v7687, %v7375
    %v7816 = vmul.f32 %v7688, %v7376
    %v7817 = vmul.f32 %v7689, %v7377
    %v7818 = vmul.f32 %v7690, %v7374
    %v7819 = vmul.f32 %v7691, %v7375
    %v7820 = vmul.f32 %v7692, %v7376
    %v7821 = vmul.f32 %v7693, %v7377
    %v7822 = vmul.f32 %v7694, %v7374
    %v7823 = vmul.f32 %v7695, %v7375
    %v7824 = vmul.f32 %v7696, %v7376
    %v7825 = vmul.f32 %v7697, %v7377
    %v7826 = vmul.f32 %v7698, %v7698
    %v7827 = vmul.f32 %v7699, %v7699
    %v7828 = vmul.f32 %v7700, %v7700
    %v7829 = vmul.f32 %v7701, %v7701
    %v7830 = vmul.f32 %v7702, %v7702
    %v7831 = vmul.f32 %v7703, %v7703
    %v7832 = vmul.f32 %v7704, %v7704
    %v7833 = vmul.f32 %v7705, %v7705
    %v7834 = vmul.f32 %v7706, %v7706
    %v7835 = vmul.f32 %v7707, %v7707
    %v7836 = vmul.f32 %v7708, %v7708
    %v7837 = vmul.f32 %v7709, %v7709
    %v7838 = vmul.f32 %v7710, %v7710
    %v7839 = vmul.f32 %v7711, %v7711
    %v7840 = vmul.f32 %v7712, %v7712
    %v7841 = vmul.f32 %v7713, %v7713
    %v7842 = vmul.f32 %v7714, %v7714
    %v7843 = vmul.f32 %v7715, %v7715
    %v7844 = vmul.f32 %v7716, %v7716
    %v7845 = vmul.f32 %v7717, %v7717
    %v7846 = vmul.f32 %v7718, %v7718
    %v7847 = vmul.f32 %v7719, %v7719
    %v7848 = vmul.f32 %v7720, %v7720
    %v7849 = vmul.f32 %v7721, %v7721
    %v7850 = vmul.f32 %v7722, %v7722
    %v7851 = vmul.f32 %v7723, %v7723
    %v7852 = vmul.f32 %v7724, %v7724
    %v7853 = vmul.f32 %v7725, %v7725
    %v7854 = vmul.f32 %v7726, %v7726
    %v7855 = vmul.f32 %v7727, %v7727
    %v7856 = vmul.f32 %v7728, %v7728
    %v7857 = vmul.f32 %v7729, %v7729
    %v7858 = vmul.f32 %v7730, %v7730
    %v7859 = vmul.f32 %v7731, %v7731
    %v7860 = vmul.f32 %v7732, %v7732
    %v7861 = vmul.f32 %v7733, %v7733
    %v7862 = vmul.f32 %v7734, %v7734
    %v7863 = vmul.f32 %v7735, %v7735
    %v7864 = vmul.f32 %v7736, %v7736
    %v7865 = vmul.f32 %v7737, %v7737
    %v7866 = vmul.f32 %v7738, %v7738
    %v7867 = vmul.f32 %v7739, %v7739
    %v7868 = vmul.f32 %v7740, %v7740
    %v7869 = vmul.f32 %v7741, %v7741
    %v7870 = vmul.f32 %v7742, %v7742
    %v7871 = vmul.f32 %v7743, %v7743
    %v7872 = vmul.f32 %v7744, %v7744
    %v7873 = vmul.f32 %v7745, %v7745
    %v7874 = vmul.f32 %v7746, %v7746
    %v7875 = vmul.f32 %v7747, %v7747
    %v7876 = vmul.f32 %v7748, %v7748
    %v7877 = vmul.f32 %v7749, %v7749
    %v7878 = vmul.f32 %v7750, %v7750
    %v7879 = vmul.f32 %v7751, %v7751
    %v7880 = vmul.f32 %v7752, %v7752
    %v7881 = vmul.f32 %v7753, %v7753
    %v7882 = vmul.f32 %v7754, %v7754
    %v7883 = vmul.f32 %v7755, %v7755
    %v7884 = vmul.f32 %v7756, %v7756
    %v7885 = vmul.f32 %v7757, %v7757
    %v7886 = vmul.f32 %v7758, %v7758
    %v7887 = vmul.f32 %v7759, %v7759
    %v7888 = vmul.f32 %v7760, %v7760
    %v7889 = vmul.f32 %v7761, %v7761
    %v7890 = vmul.f32 %v7762, %v7762
    %v7891 = vmul.f32 %v7763, %v7763
    %v7892 = vmul.f32 %v7764, %v7764
    %v7893 = vmul.f32 %v7765, %v7765
    %v7894 = vmul.f32 %v7766, %v7766
    %v7895 = vmul.f32 %v7767, %v7767
    %v7896 = vmul.f32 %v7768, %v7768
    %v7897 = vmul.f32 %v7769, %v7769
    %v7898 = vmul.f32 %v7770, %v7770
    %v7899 = vmul.f32 %v7771, %v7771
    %v7900 = vmul.f32 %v7772, %v7772
    %v7901 = vmul.f32 %v7773, %v7773
    %v7902 = vmul.f32 %v7774, %v7774
    %v7903 = vmul.f32 %v7775, %v7775
    %v7904 = vmul.f32 %v7776, %v7776
    %v7905 = vmul.f32 %v7777, %v7777
    %v7906 = vmul.f32 %v7778, %v7778
    %v7907 = vmul.f32 %v7779, %v7779
    %v7908 = vmul.f32 %v7780, %v7780
    %v7909 = vmul.f32 %v7781, %v7781
    %v7910 = vmul.f32 %v7782, %v7782
    %v7911 = vmul.f32 %v7783, %v7783
    %v7912 = vmul.f32 %v7784, %v7784
    %v7913 = vmul.f32 %v7785, %v7785
    %v7914 = vmul.f32 %v7786, %v7786
    %v7915 = vmul.f32 %v7787, %v7787
    %v7916 = vmul.f32 %v7788, %v7788
    %v7917 = vmul.f32 %v7789, %v7789
    %v7918 = vmul.f32 %v7790, %v7790
    %v7919 = vmul.f32 %v7791, %v7791
    %v7920 = vmul.f32 %v7792, %v7792
    %v7921 = vmul.f32 %v7793, %v7793
    %v7922 = vmul.f32 %v7794, %v7794
    %v7923 = vmul.f32 %v7795, %v7795
    %v7924 = vmul.f32 %v7796, %v7796
    %v7925 = vmul.f32 %v7797, %v7797
    %v7926 = vmul.f32 %v7798, %v7798
    %v7927 = vmul.f32 %v7799, %v7799
    %v7928 = vmul.f32 %v7800, %v7800
    %v7929 = vmul.f32 %v7801, %v7801
    %v7930 = vmul.f32 %v7802, %v7802
    %v7931 = vmul.f32 %v7803, %v7803
    %v7932 = vmul.f32 %v7804, %v7804
    %v7933 = vmul.f32 %v7805, %v7805
    %v7934 = vmul.f32 %v7806, %v7806
    %v7935 = vmul.f32 %v7807, %v7807
    %v7936 = vmul.f32 %v7808, %v7808
    %v7937 = vmul.f32 %v7809, %v7809
    %v7938 = vmul.f32 %v7810, %v7810
    %v7939 = vmul.f32 %v7811, %v7811
    %v7940 = vmul.f32 %v7812, %v7812
    %v7941 = vmul.f32 %v7813, %v7813
    %v7942 = vmul.f32 %v7814, %v7814
    %v7943 = vmul.f32 %v7815, %v7815
    %v7944 = vmul.f32 %v7816, %v7816
    %v7945 = vmul.f32 %v7817, %v7817
    %v7946 = vmul.f32 %v7818, %v7818
    %v7947 = vmul.f32 %v7819, %v7819
    %v7948 = vmul.f32 %v7820, %v7820
    %v7949 = vmul.f32 %v7821, %v7821
    %v7950 = vmul.f32 %v7822, %v7822
    %v7951 = vmul.f32 %v7823, %v7823
    %v7952 = vmul.f32 %v7824, %v7824
    %v7953 = vmul.f32 %v7825, %v7825
    %v7954 = vadd.f32 %v7826, %v7827
    %v7955 = vadd.f32 %v7954, %v7828
    %v7956 = vadd.f32 %v7955, %v7829
    %7957 = vadd.xlane.f32.xlu0 %v7956
    %v7958 = vpop.xlane.xlu0 %7957
    %v7959 = vadd.f32 %v7830, %v7831
    %v7960 = vadd.f32 %v7959, %v7832
    %v7961 = vadd.f32 %v7960, %v7833
    %7962 = vadd.xlane.f32.xlu0 %v7961
    %v7963 = vpop.xlane.xlu0 %7962
    %v7964 = vadd.f32 %v7834, %v7835
    %v7965 = vadd.f32 %v7964, %v7836
    %v7966 = vadd.f32 %v7965, %v7837
    %7967 = vadd.xlane.f32.xlu0 %v7966
    %v7968 = vpop.xlane.xlu0 %7967
    %v7969 = vadd.f32 %v7838, %v7839
    %v7970 = vadd.f32 %v7969, %v7840
    %v7971 = vadd.f32 %v7970, %v7841
    %7972 = vadd.xlane.f32.xlu0 %v7971
    %v7973 = vpop.xlane.xlu0 %7972
    %v7974 = vadd.f32 %v7842, %v7843
    %v7975 = vadd.f32 %v7974, %v7844
    %v7976 = vadd.f32 %v7975, %v7845
    %7977 = vadd.xlane.f32.xlu0 %v7976
    %v7978 = vpop.xlane.xlu0 %7977
    %v7979 = vadd.f32 %v7846, %v7847
    %v7980 = vadd.f32 %v7979, %v7848
    %v7981 = vadd.f32 %v7980, %v7849
    %7982 = vadd.xlane.f32.xlu0 %v7981
    %v7983 = vpop.xlane.xlu0 %7982
    %v7984 = vadd.f32 %v7850, %v7851
    %v7985 = vadd.f32 %v7984, %v7852
    %v7986 = vadd.f32 %v7985, %v7853
    %7987 = vadd.xlane.f32.xlu0 %v7986
    %v7988 = vpop.xlane.xlu0 %7987
    %v7989 = vadd.f32 %v7854, %v7855
    %v7990 = vadd.f32 %v7989, %v7856
    %v7991 = vadd.f32 %v7990, %v7857
    %7992 = vadd.xlane.f32.xlu0 %v7991
    %v7993 = vpop.xlane.xlu0 %7992
    %v7994 = vadd.f32 %v7858, %v7859
    %v7995 = vadd.f32 %v7994, %v7860
    %v7996 = vadd.f32 %v7995, %v7861
    %7997 = vadd.xlane.f32.xlu0 %v7996
    %v7998 = vpop.xlane.xlu0 %7997
    %v7999 = vadd.f32 %v7862, %v7863
    %v8000 = vadd.f32 %v7999, %v7864
    %v8001 = vadd.f32 %v8000, %v7865
    %8002 = vadd.xlane.f32.xlu0 %v8001
    %v8003 = vpop.xlane.xlu0 %8002
    %v8004 = vadd.f32 %v7866, %v7867
    %v8005 = vadd.f32 %v8004, %v7868
    %v8006 = vadd.f32 %v8005, %v7869
    %8007 = vadd.xlane.f32.xlu0 %v8006
    %v8008 = vpop.xlane.xlu0 %8007
    %v8009 = vadd.f32 %v7870, %v7871
    %v8010 = vadd.f32 %v8009, %v7872
    %v8011 = vadd.f32 %v8010, %v7873
    %8012 = vadd.xlane.f32.xlu0 %v8011
    %v8013 = vpop.xlane.xlu0 %8012
    %v8014 = vadd.f32 %v7874, %v7875
    %v8015 = vadd.f32 %v8014, %v7876
    %v8016 = vadd.f32 %v8015, %v7877
    %8017 = vadd.xlane.f32.xlu0 %v8016
    %v8018 = vpop.xlane.xlu0 %8017
    %v8019 = vadd.f32 %v7878, %v7879
    %v8020 = vadd.f32 %v8019, %v7880
    %v8021 = vadd.f32 %v8020, %v7881
    %8022 = vadd.xlane.f32.xlu0 %v8021
    %v8023 = vpop.xlane.xlu0 %8022
    %v8024 = vadd.f32 %v7882, %v7883
    %v8025 = vadd.f32 %v8024, %v7884
    %v8026 = vadd.f32 %v8025, %v7885
    %8027 = vadd.xlane.f32.xlu0 %v8026
    %v8028 = vpop.xlane.xlu0 %8027
    %v8029 = vadd.f32 %v7886, %v7887
    %v8030 = vadd.f32 %v8029, %v7888
    %v8031 = vadd.f32 %v8030, %v7889
    %8032 = vadd.xlane.f32.xlu0 %v8031
    %v8033 = vpop.xlane.xlu0 %8032
    %v8034 = vadd.f32 %v7890, %v7891
    %v8035 = vadd.f32 %v8034, %v7892
    %v8036 = vadd.f32 %v8035, %v7893
    %8037 = vadd.xlane.f32.xlu0 %v8036
    %v8038 = vpop.xlane.xlu0 %8037
    %v8039 = vadd.f32 %v7894, %v7895
    %v8040 = vadd.f32 %v8039, %v7896
    %v8041 = vadd.f32 %v8040, %v7897
    %8042 = vadd.xlane.f32.xlu0 %v8041
    %v8043 = vpop.xlane.xlu0 %8042
    %v8044 = vadd.f32 %v7898, %v7899
    %v8045 = vadd.f32 %v8044, %v7900
    %v8046 = vadd.f32 %v8045, %v7901
    %8047 = vadd.xlane.f32.xlu0 %v8046
    %v8048 = vpop.xlane.xlu0 %8047
    %v8049 = vadd.f32 %v7902, %v7903
    %v8050 = vadd.f32 %v8049, %v7904
    %v8051 = vadd.f32 %v8050, %v7905
    %8052 = vadd.xlane.f32.xlu0 %v8051
    %v8053 = vpop.xlane.xlu0 %8052
    %v8054 = vadd.f32 %v7906, %v7907
    %v8055 = vadd.f32 %v8054, %v7908
    %v8056 = vadd.f32 %v8055, %v7909
    %8057 = vadd.xlane.f32.xlu0 %v8056
    %v8058 = vpop.xlane.xlu0 %8057
    %v8059 = vadd.f32 %v7910, %v7911
    %v8060 = vadd.f32 %v8059, %v7912
    %v8061 = vadd.f32 %v8060, %v7913
    %8062 = vadd.xlane.f32.xlu0 %v8061
    %v8063 = vpop.xlane.xlu0 %8062
    %v8064 = vadd.f32 %v7914, %v7915
    %v8065 = vadd.f32 %v8064, %v7916
    %v8066 = vadd.f32 %v8065, %v7917
    %8067 = vadd.xlane.f32.xlu0 %v8066
    %v8068 = vpop.xlane.xlu0 %8067
    %v8069 = vadd.f32 %v7918, %v7919
    %v8070 = vadd.f32 %v8069, %v7920
    %v8071 = vadd.f32 %v8070, %v7921
    %8072 = vadd.xlane.f32.xlu0 %v8071
    %v8073 = vpop.xlane.xlu0 %8072
    %v8074 = vadd.f32 %v7922, %v7923
    %v8075 = vadd.f32 %v8074, %v7924
    %v8076 = vadd.f32 %v8075, %v7925
    %8077 = vadd.xlane.f32.xlu0 %v8076
    %v8078 = vpop.xlane.xlu0 %8077
    %v8079 = vadd.f32 %v7926, %v7927
    %v8080 = vadd.f32 %v8079, %v7928
    %v8081 = vadd.f32 %v8080, %v7929
    %8082 = vadd.xlane.f32.xlu0 %v8081
    %v8083 = vpop.xlane.xlu0 %8082
    %v8084 = vadd.f32 %v7930, %v7931
    %v8085 = vadd.f32 %v8084, %v7932
    %v8086 = vadd.f32 %v8085, %v7933
    %8087 = vadd.xlane.f32.xlu0 %v8086
    %v8088 = vpop.xlane.xlu0 %8087
    %v8089 = vadd.f32 %v7934, %v7935
    %v8090 = vadd.f32 %v8089, %v7936
    %v8091 = vadd.f32 %v8090, %v7937
    %8092 = vadd.xlane.f32.xlu0 %v8091
    %v8093 = vpop.xlane.xlu0 %8092
    %v8094 = vadd.f32 %v7938, %v7939
    %v8095 = vadd.f32 %v8094, %v7940
    %v8096 = vadd.f32 %v8095, %v7941
    %8097 = vadd.xlane.f32.xlu0 %v8096
    %v8098 = vpop.xlane.xlu0 %8097
    %v8099 = vadd.f32 %v7942, %v7943
    %v8100 = vadd.f32 %v8099, %v7944
    %v8101 = vadd.f32 %v8100, %v7945
    %8102 = vadd.xlane.f32.xlu0 %v8101
    %v8103 = vpop.xlane.xlu0 %8102
    %v8104 = vadd.f32 %v7946, %v7947
    %v8105 = vadd.f32 %v8104, %v7948
    %v8106 = vadd.f32 %v8105, %v7949
    %8107 = vadd.xlane.f32.xlu0 %v8106
    %v8108 = vpop.xlane.xlu0 %8107
    %v8109 = vadd.f32 %v7950, %v7951
    %v8110 = vadd.f32 %v8109, %v7952
    %v8111 = vadd.f32 %v8110, %v7953
    %8112 = vadd.xlane.f32.xlu0 %v8111
    %v8113 = vpop.xlane.xlu0 %8112
    %v8114 = vmul.f32 %v7958, 0.0025
    %v8115 = vmul.f32 %v7963, 0.0025
    %v8116 = vmul.f32 %v7968, 0.0025
    %v8117 = vmul.f32 %v7973, 0.0025
    %v8118 = vmul.f32 %v7978, 0.0025
    %v8119 = vmul.f32 %v7983, 0.0025
    %v8120 = vmul.f32 %v7988, 0.0025
    %v8121 = vmul.f32 %v7993, 0.0025
    %v8122 = vmul.f32 %v7998, 0.0025
    %v8123 = vmul.f32 %v8003, 0.0025
    %v8124 = vmul.f32 %v8008, 0.0025
    %v8125 = vmul.f32 %v8013, 0.0025
    %v8126 = vmul.f32 %v8018, 0.0025
    %v8127 = vmul.f32 %v8023, 0.0025
    %v8128 = vmul.f32 %v8028, 0.0025
    %v8129 = vmul.f32 %v8033, 0.0025
    %v8130 = vmul.f32 %v8038, 0.0025
    %v8131 = vmul.f32 %v8043, 0.0025
    %v8132 = vmul.f32 %v8048, 0.0025
    %v8133 = vmul.f32 %v8053, 0.0025
    %v8134 = vmul.f32 %v8058, 0.0025
    %v8135 = vmul.f32 %v8063, 0.0025
    %v8136 = vmul.f32 %v8068, 0.0025
    %v8137 = vmul.f32 %v8073, 0.0025
    %v8138 = vmul.f32 %v8078, 0.0025
    %v8139 = vmul.f32 %v8083, 0.0025
    %v8140 = vmul.f32 %v8088, 0.0025
    %v8141 = vmul.f32 %v8093, 0.0025
    %v8142 = vmul.f32 %v8098, 0.0025
    %v8143 = vmul.f32 %v8103, 0.0025
    %v8144 = vmul.f32 %v8108, 0.0025
    %v8145 = vmul.f32 %v8113, 0.0025
    %v8146 = vadd.f32 %v8114, 1e-05
    %v8147 = vadd.f32 %v8115, 1e-05
    %v8148 = vadd.f32 %v8116, 1e-05
    %v8149 = vadd.f32 %v8117, 1e-05
    %v8150 = vadd.f32 %v8118, 1e-05
    %v8151 = vadd.f32 %v8119, 1e-05
    %v8152 = vadd.f32 %v8120, 1e-05
    %v8153 = vadd.f32 %v8121, 1e-05
    %v8154 = vadd.f32 %v8122, 1e-05
    %v8155 = vadd.f32 %v8123, 1e-05
    %v8156 = vadd.f32 %v8124, 1e-05
    %v8157 = vadd.f32 %v8125, 1e-05
    %v8158 = vadd.f32 %v8126, 1e-05
    %v8159 = vadd.f32 %v8127, 1e-05
    %v8160 = vadd.f32 %v8128, 1e-05
    %v8161 = vadd.f32 %v8129, 1e-05
    %v8162 = vadd.f32 %v8130, 1e-05
    %v8163 = vadd.f32 %v8131, 1e-05
    %v8164 = vadd.f32 %v8132, 1e-05
    %v8165 = vadd.f32 %v8133, 1e-05
    %v8166 = vadd.f32 %v8134, 1e-05
    %v8167 = vadd.f32 %v8135, 1e-05
    %v8168 = vadd.f32 %v8136, 1e-05
    %v8169 = vadd.f32 %v8137, 1e-05
    %v8170 = vadd.f32 %v8138, 1e-05
    %v8171 = vadd.f32 %v8139, 1e-05
    %v8172 = vadd.f32 %v8140, 1e-05
    %v8173 = vadd.f32 %v8141, 1e-05
    %v8174 = vadd.f32 %v8142, 1e-05
    %v8175 = vadd.f32 %v8143, 1e-05
    %v8176 = vadd.f32 %v8144, 1e-05
    %v8177 = vadd.f32 %v8145, 1e-05
    %v8178 = vrsqrt.pop %v8146
    %v8179 = vrsqrt.pop %v8147
    %v8180 = vrsqrt.pop %v8148
    %v8181 = vrsqrt.pop %v8149
    %v8182 = vrsqrt.pop %v8150
    %v8183 = vrsqrt.pop %v8151
    %v8184 = vrsqrt.pop %v8152
    %v8185 = vrsqrt.pop %v8153
    %v8186 = vrsqrt.pop %v8154
    %v8187 = vrsqrt.pop %v8155
    %v8188 = vrsqrt.pop %v8156
    %v8189 = vrsqrt.pop %v8157
    %v8190 = vrsqrt.pop %v8158
    %v8191 = vrsqrt.pop %v8159
    %v8192 = vrsqrt.pop %v8160
    %v8193 = vrsqrt.pop %v8161
    %v8194 = vrsqrt.pop %v8162
    %v8195 = vrsqrt.pop %v8163
    %v8196 = vrsqrt.pop %v8164
    %v8197 = vrsqrt.pop %v8165
    %v8198 = vrsqrt.pop %v8166
    %v8199 = vrsqrt.pop %v8167
    %v8200 = vrsqrt.pop %v8168
    %v8201 = vrsqrt.pop %v8169
    %v8202 = vrsqrt.pop %v8170
    %v8203 = vrsqrt.pop %v8171
    %v8204 = vrsqrt.pop %v8172
    %v8205 = vrsqrt.pop %v8173
    %v8206 = vrsqrt.pop %v8174
    %v8207 = vrsqrt.pop %v8175
    %v8208 = vrsqrt.pop %v8176
    %v8209 = vrsqrt.pop %v8177
    %v8210 = vmul.f32 %v7698, %v8178
    %v8211 = vmul.f32 %v7699, %v8178
    %v8212 = vmul.f32 %v7700, %v8178
    %v8213 = vmul.f32 %v7701, %v8178
    %v8214 = vmul.f32 %v7702, %v8179
    %v8215 = vmul.f32 %v7703, %v8179
    %v8216 = vmul.f32 %v7704, %v8179
    %v8217 = vmul.f32 %v7705, %v8179
    %v8218 = vmul.f32 %v7706, %v8180
    %v8219 = vmul.f32 %v7707, %v8180
    %v8220 = vmul.f32 %v7708, %v8180
    %v8221 = vmul.f32 %v7709, %v8180
    %v8222 = vmul.f32 %v7710, %v8181
    %v8223 = vmul.f32 %v7711, %v8181
    %v8224 = vmul.f32 %v7712, %v8181
    %v8225 = vmul.f32 %v7713, %v8181
    %v8226 = vmul.f32 %v7714, %v8182
    %v8227 = vmul.f32 %v7715, %v8182
    %v8228 = vmul.f32 %v7716, %v8182
    %v8229 = vmul.f32 %v7717, %v8182
    %v8230 = vmul.f32 %v7718, %v8183
    %v8231 = vmul.f32 %v7719, %v8183
    %v8232 = vmul.f32 %v7720, %v8183
    %v8233 = vmul.f32 %v7721, %v8183
    %v8234 = vmul.f32 %v7722, %v8184
    %v8235 = vmul.f32 %v7723, %v8184
    %v8236 = vmul.f32 %v7724, %v8184
    %v8237 = vmul.f32 %v7725, %v8184
    %v8238 = vmul.f32 %v7726, %v8185
    %v8239 = vmul.f32 %v7727, %v8185
    %v8240 = vmul.f32 %v7728, %v8185
    %v8241 = vmul.f32 %v7729, %v8185
    %v8242 = vmul.f32 %v7730, %v8186
    %v8243 = vmul.f32 %v7731, %v8186
    %v8244 = vmul.f32 %v7732, %v8186
    %v8245 = vmul.f32 %v7733, %v8186
    %v8246 = vmul.f32 %v7734, %v8187
    %v8247 = vmul.f32 %v7735, %v8187
    %v8248 = vmul.f32 %v7736, %v8187
    %v8249 = vmul.f32 %v7737, %v8187
    %v8250 = vmul.f32 %v7738, %v8188
    %v8251 = vmul.f32 %v7739, %v8188
    %v8252 = vmul.f32 %v7740, %v8188
    %v8253 = vmul.f32 %v7741, %v8188
    %v8254 = vmul.f32 %v7742, %v8189
    %v8255 = vmul.f32 %v7743, %v8189
    %v8256 = vmul.f32 %v7744, %v8189
    %v8257 = vmul.f32 %v7745, %v8189
    %v8258 = vmul.f32 %v7746, %v8190
    %v8259 = vmul.f32 %v7747, %v8190
    %v8260 = vmul.f32 %v7748, %v8190
    %v8261 = vmul.f32 %v7749, %v8190
    %v8262 = vmul.f32 %v7750, %v8191
    %v8263 = vmul.f32 %v7751, %v8191
    %v8264 = vmul.f32 %v7752, %v8191
    %v8265 = vmul.f32 %v7753, %v8191
    %v8266 = vmul.f32 %v7754, %v8192
    %v8267 = vmul.f32 %v7755, %v8192
    %v8268 = vmul.f32 %v7756, %v8192
    %v8269 = vmul.f32 %v7757, %v8192
    %v8270 = vmul.f32 %v7758, %v8193
    %v8271 = vmul.f32 %v7759, %v8193
    %v8272 = vmul.f32 %v7760, %v8193
    %v8273 = vmul.f32 %v7761, %v8193
    %v8274 = vmul.f32 %v7762, %v8194
    %v8275 = vmul.f32 %v7763, %v8194
    %v8276 = vmul.f32 %v7764, %v8194
    %v8277 = vmul.f32 %v7765, %v8194
    %v8278 = vmul.f32 %v7766, %v8195
    %v8279 = vmul.f32 %v7767, %v8195
    %v8280 = vmul.f32 %v7768, %v8195
    %v8281 = vmul.f32 %v7769, %v8195
    %v8282 = vmul.f32 %v7770, %v8196
    %v8283 = vmul.f32 %v7771, %v8196
    %v8284 = vmul.f32 %v7772, %v8196
    %v8285 = vmul.f32 %v7773, %v8196
    %v8286 = vmul.f32 %v7774, %v8197
    %v8287 = vmul.f32 %v7775, %v8197
    %v8288 = vmul.f32 %v7776, %v8197
    %v8289 = vmul.f32 %v7777, %v8197
    %v8290 = vmul.f32 %v7778, %v8198
    %v8291 = vmul.f32 %v7779, %v8198
    %v8292 = vmul.f32 %v7780, %v8198
    %v8293 = vmul.f32 %v7781, %v8198
    %v8294 = vmul.f32 %v7782, %v8199
    %v8295 = vmul.f32 %v7783, %v8199
    %v8296 = vmul.f32 %v7784, %v8199
    %v8297 = vmul.f32 %v7785, %v8199
    %v8298 = vmul.f32 %v7786, %v8200
    %v8299 = vmul.f32 %v7787, %v8200
    %v8300 = vmul.f32 %v7788, %v8200
    %v8301 = vmul.f32 %v7789, %v8200
    %v8302 = vmul.f32 %v7790, %v8201
    %v8303 = vmul.f32 %v7791, %v8201
    %v8304 = vmul.f32 %v7792, %v8201
    %v8305 = vmul.f32 %v7793, %v8201
    %v8306 = vmul.f32 %v7794, %v8202
    %v8307 = vmul.f32 %v7795, %v8202
    %v8308 = vmul.f32 %v7796, %v8202
    %v8309 = vmul.f32 %v7797, %v8202
    %v8310 = vmul.f32 %v7798, %v8203
    %v8311 = vmul.f32 %v7799, %v8203
    %v8312 = vmul.f32 %v7800, %v8203
    %v8313 = vmul.f32 %v7801, %v8203
    %v8314 = vmul.f32 %v7802, %v8204
    %v8315 = vmul.f32 %v7803, %v8204
    %v8316 = vmul.f32 %v7804, %v8204
    %v8317 = vmul.f32 %v7805, %v8204
    %v8318 = vmul.f32 %v7806, %v8205
    %v8319 = vmul.f32 %v7807, %v8205
    %v8320 = vmul.f32 %v7808, %v8205
    %v8321 = vmul.f32 %v7809, %v8205
    %v8322 = vmul.f32 %v7810, %v8206
    %v8323 = vmul.f32 %v7811, %v8206
    %v8324 = vmul.f32 %v7812, %v8206
    %v8325 = vmul.f32 %v7813, %v8206
    %v8326 = vmul.f32 %v7814, %v8207
    %v8327 = vmul.f32 %v7815, %v8207
    %v8328 = vmul.f32 %v7816, %v8207
    %v8329 = vmul.f32 %v7817, %v8207
    %v8330 = vmul.f32 %v7818, %v8208
    %v8331 = vmul.f32 %v7819, %v8208
    %v8332 = vmul.f32 %v7820, %v8208
    %v8333 = vmul.f32 %v7821, %v8208
    %v8334 = vmul.f32 %v7822, %v8209
    %v8335 = vmul.f32 %v7823, %v8209
    %v8336 = vmul.f32 %v7824, %v8209
    %v8337 = vmul.f32 %v7825, %v8209
    %v8339 = vlaneseq
    %v8340 = vshrl.u32 %v8339, 7
    %v8341 = vsub.s32 0, %v8340
    %v8342 = vrot.slane %v7359, %v8341
    %v8343 = vlaneseq
    %v8344 = vshrl.u32 %v8343, 7
    %v8345 = vsub.s32 1, %v8344
    %v8346 = vrot.slane %v7359, %v8345
    %v8347 = vlaneseq
    %v8348 = vshrl.u32 %v8347, 7
    %v8349 = vsub.s32 2, %v8348
    %v8350 = vrot.slane %v7359, %v8349
    %v8351 = vlaneseq
    %v8352 = vshrl.u32 %v8351, 7
    %v8353 = vsub.s32 3, %v8352
    %v8354 = vrot.slane %v7359, %v8353
    %v8359 = vmul.f32 %v8210, %v8342
    %v8360 = vmul.f32 %v8211, %v8346
    %v8361 = vmul.f32 %v8212, %v8350
    %v8362 = vmul.f32 %v8213, %v8354
    %v8363 = vmul.f32 %v8214, %v8342
    %v8364 = vmul.f32 %v8215, %v8346
    %v8365 = vmul.f32 %v8216, %v8350
    %v8366 = vmul.f32 %v8217, %v8354
    %v8367 = vmul.f32 %v8218, %v8342
    %v8368 = vmul.f32 %v8219, %v8346
    %v8369 = vmul.f32 %v8220, %v8350
    %v8370 = vmul.f32 %v8221, %v8354
    %v8371 = vmul.f32 %v8222, %v8342
    %v8372 = vmul.f32 %v8223, %v8346
    %v8373 = vmul.f32 %v8224, %v8350
    %v8374 = vmul.f32 %v8225, %v8354
    %v8375 = vmul.f32 %v8226, %v8342
    %v8376 = vmul.f32 %v8227, %v8346
    %v8377 = vmul.f32 %v8228, %v8350
    %v8378 = vmul.f32 %v8229, %v8354
    %v8379 = vmul.f32 %v8230, %v8342
    %v8380 = vmul.f32 %v8231, %v8346
    %v8381 = vmul.f32 %v8232, %v8350
    %v8382 = vmul.f32 %v8233, %v8354
    %v8383 = vmul.f32 %v8234, %v8342
    %v8384 = vmul.f32 %v8235, %v8346
    %v8385 = vmul.f32 %v8236, %v8350
    %v8386 = vmul.f32 %v8237, %v8354
    %v8387 = vmul.f32 %v8238, %v8342
    %v8388 = vmul.f32 %v8239, %v8346
    %v8389 = vmul.f32 %v8240, %v8350
    %v8390 = vmul.f32 %v8241, %v8354
    %v8391 = vmul.f32 %v8242, %v8342
    %v8392 = vmul.f32 %v8243, %v8346
    %v8393 = vmul.f32 %v8244, %v8350
    %v8394 = vmul.f32 %v8245, %v8354
    %v8395 = vmul.f32 %v8246, %v8342
    %v8396 = vmul.f32 %v8247, %v8346
    %v8397 = vmul.f32 %v8248, %v8350
    %v8398 = vmul.f32 %v8249, %v8354
    %v8399 = vmul.f32 %v8250, %v8342
    %v8400 = vmul.f32 %v8251, %v8346
    %v8401 = vmul.f32 %v8252, %v8350
    %v8402 = vmul.f32 %v8253, %v8354
    %v8403 = vmul.f32 %v8254, %v8342
    %v8404 = vmul.f32 %v8255, %v8346
    %v8405 = vmul.f32 %v8256, %v8350
    %v8406 = vmul.f32 %v8257, %v8354
    %v8407 = vmul.f32 %v8258, %v8342
    %v8408 = vmul.f32 %v8259, %v8346
    %v8409 = vmul.f32 %v8260, %v8350
    %v8410 = vmul.f32 %v8261, %v8354
    %v8411 = vmul.f32 %v8262, %v8342
    %v8412 = vmul.f32 %v8263, %v8346
    %v8413 = vmul.f32 %v8264, %v8350
    %v8414 = vmul.f32 %v8265, %v8354
    %v8415 = vmul.f32 %v8266, %v8342
    %v8416 = vmul.f32 %v8267, %v8346
    %v8417 = vmul.f32 %v8268, %v8350
    %v8418 = vmul.f32 %v8269, %v8354
    %v8419 = vmul.f32 %v8270, %v8342
    %v8420 = vmul.f32 %v8271, %v8346
    %v8421 = vmul.f32 %v8272, %v8350
    %v8422 = vmul.f32 %v8273, %v8354
    %v8423 = vmul.f32 %v8274, %v8342
    %v8424 = vmul.f32 %v8275, %v8346
    %v8425 = vmul.f32 %v8276, %v8350
    %v8426 = vmul.f32 %v8277, %v8354
    %v8427 = vmul.f32 %v8278, %v8342
    %v8428 = vmul.f32 %v8279, %v8346
    %v8429 = vmul.f32 %v8280, %v8350
    %v8430 = vmul.f32 %v8281, %v8354
    %v8431 = vmul.f32 %v8282, %v8342
    %v8432 = vmul.f32 %v8283, %v8346
    %v8433 = vmul.f32 %v8284, %v8350
    %v8434 = vmul.f32 %v8285, %v8354
    %v8435 = vmul.f32 %v8286, %v8342
    %v8436 = vmul.f32 %v8287, %v8346
    %v8437 = vmul.f32 %v8288, %v8350
    %v8438 = vmul.f32 %v8289, %v8354
    %v8439 = vmul.f32 %v8290, %v8342
    %v8440 = vmul.f32 %v8291, %v8346
    %v8441 = vmul.f32 %v8292, %v8350
    %v8442 = vmul.f32 %v8293, %v8354
    %v8443 = vmul.f32 %v8294, %v8342
    %v8444 = vmul.f32 %v8295, %v8346
    %v8445 = vmul.f32 %v8296, %v8350
    %v8446 = vmul.f32 %v8297, %v8354
    %v8447 = vmul.f32 %v8298, %v8342
    %v8448 = vmul.f32 %v8299, %v8346
    %v8449 = vmul.f32 %v8300, %v8350
    %v8450 = vmul.f32 %v8301, %v8354
    %v8451 = vmul.f32 %v8302, %v8342
    %v8452 = vmul.f32 %v8303, %v8346
    %v8453 = vmul.f32 %v8304, %v8350
    %v8454 = vmul.f32 %v8305, %v8354
    %v8455 = vmul.f32 %v8306, %v8342
    %v8456 = vmul.f32 %v8307, %v8346
    %v8457 = vmul.f32 %v8308, %v8350
    %v8458 = vmul.f32 %v8309, %v8354
    %v8459 = vmul.f32 %v8310, %v8342
    %v8460 = vmul.f32 %v8311, %v8346
    %v8461 = vmul.f32 %v8312, %v8350
    %v8462 = vmul.f32 %v8313, %v8354
    %v8463 = vmul.f32 %v8314, %v8342
    %v8464 = vmul.f32 %v8315, %v8346
    %v8465 = vmul.f32 %v8316, %v8350
    %v8466 = vmul.f32 %v8317, %v8354
    %v8467 = vmul.f32 %v8318, %v8342
    %v8468 = vmul.f32 %v8319, %v8346
    %v8469 = vmul.f32 %v8320, %v8350
    %v8470 = vmul.f32 %v8321, %v8354
    %v8471 = vmul.f32 %v8322, %v8342
    %v8472 = vmul.f32 %v8323, %v8346
    %v8473 = vmul.f32 %v8324, %v8350
    %v8474 = vmul.f32 %v8325, %v8354
    %v8475 = vmul.f32 %v8326, %v8342
    %v8476 = vmul.f32 %v8327, %v8346
    %v8477 = vmul.f32 %v8328, %v8350
    %v8478 = vmul.f32 %v8329, %v8354
    %v8479 = vmul.f32 %v8330, %v8342
    %v8480 = vmul.f32 %v8331, %v8346
    %v8481 = vmul.f32 %v8332, %v8350
    %v8482 = vmul.f32 %v8333, %v8354
    %v8483 = vmul.f32 %v8334, %v8342
    %v8484 = vmul.f32 %v8335, %v8346
    %v8485 = vmul.f32 %v8336, %v8350
    %v8486 = vmul.f32 %v8337, %v8354
    %v8488 = vlaneseq
    %v8489 = vshrl.u32 %v8488, 7
    %v8490 = vsub.s32 0, %v8489
    %v8491 = vrot.slane %v7360, %v8490
    %v8492 = vlaneseq
    %v8493 = vshrl.u32 %v8492, 7
    %v8494 = vsub.s32 1, %v8493
    %v8495 = vrot.slane %v7360, %v8494
    %v8496 = vlaneseq
    %v8497 = vshrl.u32 %v8496, 7
    %v8498 = vsub.s32 2, %v8497
    %v8499 = vrot.slane %v7360, %v8498
    %v8500 = vlaneseq
    %v8501 = vshrl.u32 %v8500, 7
    %v8502 = vsub.s32 3, %v8501
    %v8503 = vrot.slane %v7360, %v8502
    %v8508 = vadd.f32 %v8359, %v8491
    %v8509 = vadd.f32 %v8360, %v8495
    %v8510 = vadd.f32 %v8361, %v8499
    %v8511 = vadd.f32 %v8362, %v8503
    %v8512 = vadd.f32 %v8363, %v8491
    %v8513 = vadd.f32 %v8364, %v8495
    %v8514 = vadd.f32 %v8365, %v8499
    %v8515 = vadd.f32 %v8366, %v8503
    %v8516 = vadd.f32 %v8367, %v8491
    %v8517 = vadd.f32 %v8368, %v8495
    %v8518 = vadd.f32 %v8369, %v8499
    %v8519 = vadd.f32 %v8370, %v8503
    %v8520 = vadd.f32 %v8371, %v8491
    %v8521 = vadd.f32 %v8372, %v8495
    %v8522 = vadd.f32 %v8373, %v8499
    %v8523 = vadd.f32 %v8374, %v8503
    %v8524 = vadd.f32 %v8375, %v8491
    %v8525 = vadd.f32 %v8376, %v8495
    %v8526 = vadd.f32 %v8377, %v8499
    %v8527 = vadd.f32 %v8378, %v8503
    %v8528 = vadd.f32 %v8379, %v8491
    %v8529 = vadd.f32 %v8380, %v8495
    %v8530 = vadd.f32 %v8381, %v8499
    %v8531 = vadd.f32 %v8382, %v8503
    %v8532 = vadd.f32 %v8383, %v8491
    %v8533 = vadd.f32 %v8384, %v8495
    %v8534 = vadd.f32 %v8385, %v8499
    %v8535 = vadd.f32 %v8386, %v8503
    %v8536 = vadd.f32 %v8387, %v8491
    %v8537 = vadd.f32 %v8388, %v8495
    %v8538 = vadd.f32 %v8389, %v8499
    %v8539 = vadd.f32 %v8390, %v8503
    %v8540 = vadd.f32 %v8391, %v8491
    %v8541 = vadd.f32 %v8392, %v8495
    %v8542 = vadd.f32 %v8393, %v8499
    %v8543 = vadd.f32 %v8394, %v8503
    %v8544 = vadd.f32 %v8395, %v8491
    %v8545 = vadd.f32 %v8396, %v8495
    %v8546 = vadd.f32 %v8397, %v8499
    %v8547 = vadd.f32 %v8398, %v8503
    %v8548 = vadd.f32 %v8399, %v8491
    %v8549 = vadd.f32 %v8400, %v8495
    %v8550 = vadd.f32 %v8401, %v8499
    %v8551 = vadd.f32 %v8402, %v8503
    %v8552 = vadd.f32 %v8403, %v8491
    %v8553 = vadd.f32 %v8404, %v8495
    %v8554 = vadd.f32 %v8405, %v8499
    %v8555 = vadd.f32 %v8406, %v8503
    %v8556 = vadd.f32 %v8407, %v8491
    %v8557 = vadd.f32 %v8408, %v8495
    %v8558 = vadd.f32 %v8409, %v8499
    %v8559 = vadd.f32 %v8410, %v8503
    %v8560 = vadd.f32 %v8411, %v8491
    %v8561 = vadd.f32 %v8412, %v8495
    %v8562 = vadd.f32 %v8413, %v8499
    %v8563 = vadd.f32 %v8414, %v8503
    %v8564 = vadd.f32 %v8415, %v8491
    %v8565 = vadd.f32 %v8416, %v8495
    %v8566 = vadd.f32 %v8417, %v8499
    %v8567 = vadd.f32 %v8418, %v8503
    %v8568 = vadd.f32 %v8419, %v8491
    %v8569 = vadd.f32 %v8420, %v8495
    %v8570 = vadd.f32 %v8421, %v8499
    %v8571 = vadd.f32 %v8422, %v8503
    %v8572 = vadd.f32 %v8423, %v8491
    %v8573 = vadd.f32 %v8424, %v8495
    %v8574 = vadd.f32 %v8425, %v8499
    %v8575 = vadd.f32 %v8426, %v8503
    %v8576 = vadd.f32 %v8427, %v8491
    %v8577 = vadd.f32 %v8428, %v8495
    %v8578 = vadd.f32 %v8429, %v8499
    %v8579 = vadd.f32 %v8430, %v8503
    %v8580 = vadd.f32 %v8431, %v8491
    %v8581 = vadd.f32 %v8432, %v8495
    %v8582 = vadd.f32 %v8433, %v8499
    %v8583 = vadd.f32 %v8434, %v8503
    %v8584 = vadd.f32 %v8435, %v8491
    %v8585 = vadd.f32 %v8436, %v8495
    %v8586 = vadd.f32 %v8437, %v8499
    %v8587 = vadd.f32 %v8438, %v8503
    %v8588 = vadd.f32 %v8439, %v8491
    %v8589 = vadd.f32 %v8440, %v8495
    %v8590 = vadd.f32 %v8441, %v8499
    %v8591 = vadd.f32 %v8442, %v8503
    %v8592 = vadd.f32 %v8443, %v8491
    %v8593 = vadd.f32 %v8444, %v8495
    %v8594 = vadd.f32 %v8445, %v8499
    %v8595 = vadd.f32 %v8446, %v8503
    %v8596 = vadd.f32 %v8447, %v8491
    %v8597 = vadd.f32 %v8448, %v8495
    %v8598 = vadd.f32 %v8449, %v8499
    %v8599 = vadd.f32 %v8450, %v8503
    %v8600 = vadd.f32 %v8451, %v8491
    %v8601 = vadd.f32 %v8452, %v8495
    %v8602 = vadd.f32 %v8453, %v8499
    %v8603 = vadd.f32 %v8454, %v8503
    %v8604 = vadd.f32 %v8455, %v8491
    %v8605 = vadd.f32 %v8456, %v8495
    %v8606 = vadd.f32 %v8457, %v8499
    %v8607 = vadd.f32 %v8458, %v8503
    %v8608 = vadd.f32 %v8459, %v8491
    %v8609 = vadd.f32 %v8460, %v8495
    %v8610 = vadd.f32 %v8461, %v8499
    %v8611 = vadd.f32 %v8462, %v8503
    %v8612 = vadd.f32 %v8463, %v8491
    %v8613 = vadd.f32 %v8464, %v8495
    %v8614 = vadd.f32 %v8465, %v8499
    %v8615 = vadd.f32 %v8466, %v8503
    %v8616 = vadd.f32 %v8467, %v8491
    %v8617 = vadd.f32 %v8468, %v8495
    %v8618 = vadd.f32 %v8469, %v8499
    %v8619 = vadd.f32 %v8470, %v8503
    %v8620 = vadd.f32 %v8471, %v8491
    %v8621 = vadd.f32 %v8472, %v8495
    %v8622 = vadd.f32 %v8473, %v8499
    %v8623 = vadd.f32 %v8474, %v8503
    %v8624 = vadd.f32 %v8475, %v8491
    %v8625 = vadd.f32 %v8476, %v8495
    %v8626 = vadd.f32 %v8477, %v8499
    %v8627 = vadd.f32 %v8478, %v8503
    %v8628 = vadd.f32 %v8479, %v8491
    %v8629 = vadd.f32 %v8480, %v8495
    %v8630 = vadd.f32 %v8481, %v8499
    %v8631 = vadd.f32 %v8482, %v8503
    %v8632 = vadd.f32 %v8483, %v8491
    %v8633 = vadd.f32 %v8484, %v8495
    %v8634 = vadd.f32 %v8485, %v8499
    %v8635 = vadd.f32 %v8486, %v8503
    %v8636 = vpack.c.bf16 %v8512, %v8508
    %v8637 = vpack.c.bf16 %v8513, %v8509
    %v8638 = vpack.c.bf16 %v8514, %v8510
    %v8639 = vpack.c.bf16 %v8515, %v8511
    %v8640 = vpack.c.bf16 %v8520, %v8516
    %v8641 = vpack.c.bf16 %v8521, %v8517
    %v8642 = vpack.c.bf16 %v8522, %v8518
    %v8643 = vpack.c.bf16 %v8523, %v8519
    %v8644 = vpack.c.bf16 %v8528, %v8524
    %v8645 = vpack.c.bf16 %v8529, %v8525
    %v8646 = vpack.c.bf16 %v8530, %v8526
    %v8647 = vpack.c.bf16 %v8531, %v8527
    %v8648 = vpack.c.bf16 %v8536, %v8532
    %v8649 = vpack.c.bf16 %v8537, %v8533
    %v8650 = vpack.c.bf16 %v8538, %v8534
    %v8651 = vpack.c.bf16 %v8539, %v8535
    %v8652 = vpack.c.bf16 %v8544, %v8540
    %v8653 = vpack.c.bf16 %v8545, %v8541
    %v8654 = vpack.c.bf16 %v8546, %v8542
    %v8655 = vpack.c.bf16 %v8547, %v8543
    %v8656 = vpack.c.bf16 %v8552, %v8548
    %v8657 = vpack.c.bf16 %v8553, %v8549
    %v8658 = vpack.c.bf16 %v8554, %v8550
    %v8659 = vpack.c.bf16 %v8555, %v8551
    %v8660 = vpack.c.bf16 %v8560, %v8556
    %v8661 = vpack.c.bf16 %v8561, %v8557
    %v8662 = vpack.c.bf16 %v8562, %v8558
    %v8663 = vpack.c.bf16 %v8563, %v8559
    %v8664 = vpack.c.bf16 %v8568, %v8564
    %v8665 = vpack.c.bf16 %v8569, %v8565
    %v8666 = vpack.c.bf16 %v8570, %v8566
    %v8667 = vpack.c.bf16 %v8571, %v8567
    %v8668 = vpack.c.bf16 %v8576, %v8572
    %v8669 = vpack.c.bf16 %v8577, %v8573
    %v8670 = vpack.c.bf16 %v8578, %v8574
    %v8671 = vpack.c.bf16 %v8579, %v8575
    %v8672 = vpack.c.bf16 %v8584, %v8580
    %v8673 = vpack.c.bf16 %v8585, %v8581
    %v8674 = vpack.c.bf16 %v8586, %v8582
    %v8675 = vpack.c.bf16 %v8587, %v8583
    %v8676 = vpack.c.bf16 %v8592, %v8588
    %v8677 = vpack.c.bf16 %v8593, %v8589
    %v8678 = vpack.c.bf16 %v8594, %v8590
    %v8679 = vpack.c.bf16 %v8595, %v8591
    %v8680 = vpack.c.bf16 %v8600, %v8596
    %v8681 = vpack.c.bf16 %v8601, %v8597
    %v8682 = vpack.c.bf16 %v8602, %v8598
    %v8683 = vpack.c.bf16 %v8603, %v8599
    %v8684 = vpack.c.bf16 %v8608, %v8604
    %v8685 = vpack.c.bf16 %v8609, %v8605
    %v8686 = vpack.c.bf16 %v8610, %v8606
    %v8687 = vpack.c.bf16 %v8611, %v8607
    %v8688 = vpack.c.bf16 %v8616, %v8612
    %v8689 = vpack.c.bf16 %v8617, %v8613
    %v8690 = vpack.c.bf16 %v8618, %v8614
    %v8691 = vpack.c.bf16 %v8619, %v8615
    %v8692 = vpack.c.bf16 %v8624, %v8620
    %v8693 = vpack.c.bf16 %v8625, %v8621
    %v8694 = vpack.c.bf16 %v8626, %v8622
    %v8695 = vpack.c.bf16 %v8627, %v8623
    %v8696 = vpack.c.bf16 %v8632, %v8628
    %v8697 = vpack.c.bf16 %v8633, %v8629
    %v8698 = vpack.c.bf16 %v8634, %v8630
    %v8699 = vpack.c.bf16 %v8635, %v8631
    %v8764 = vunpack.c.l.b16 %v8636
    %v8765 = vunpack.c.l.b16 %v8637
    %v8766 = vunpack.c.l.b16 %v8638
    %v8767 = vunpack.c.l.b16 %v8639
    %v8768 = vunpack.c.h.b16 %v8636
    %v8769 = vunpack.c.h.b16 %v8637
    %v8770 = vunpack.c.h.b16 %v8638
    %v8771 = vunpack.c.h.b16 %v8639
    %v8772 = vunpack.c.l.b16 %v8640
    %v8773 = vunpack.c.l.b16 %v8641
    %v8774 = vunpack.c.l.b16 %v8642
    %v8775 = vunpack.c.l.b16 %v8643
    %v8776 = vunpack.c.h.b16 %v8640
    %v8777 = vunpack.c.h.b16 %v8641
    %v8778 = vunpack.c.h.b16 %v8642
    %v8779 = vunpack.c.h.b16 %v8643
    %v8780 = vunpack.c.l.b16 %v8644
    %v8781 = vunpack.c.l.b16 %v8645
    %v8782 = vunpack.c.l.b16 %v8646
    %v8783 = vunpack.c.l.b16 %v8647
    %v8784 = vunpack.c.h.b16 %v8644
    %v8785 = vunpack.c.h.b16 %v8645
    %v8786 = vunpack.c.h.b16 %v8646
    %v8787 = vunpack.c.h.b16 %v8647
    %v8788 = vunpack.c.l.b16 %v8648
    %v8789 = vunpack.c.l.b16 %v8649
    %v8790 = vunpack.c.l.b16 %v8650
    %v8791 = vunpack.c.l.b16 %v8651
    %v8792 = vunpack.c.h.b16 %v8648
    %v8793 = vunpack.c.h.b16 %v8649
    %v8794 = vunpack.c.h.b16 %v8650
    %v8795 = vunpack.c.h.b16 %v8651
    %v8796 = vunpack.c.l.b16 %v8652
    %v8797 = vunpack.c.l.b16 %v8653
    %v8798 = vunpack.c.l.b16 %v8654
    %v8799 = vunpack.c.l.b16 %v8655
    %v8800 = vunpack.c.h.b16 %v8652
    %v8801 = vunpack.c.h.b16 %v8653
    %v8802 = vunpack.c.h.b16 %v8654
    %v8803 = vunpack.c.h.b16 %v8655
    %v8804 = vunpack.c.l.b16 %v8656
    %v8805 = vunpack.c.l.b16 %v8657
    %v8806 = vunpack.c.l.b16 %v8658
    %v8807 = vunpack.c.l.b16 %v8659
    %v8808 = vunpack.c.h.b16 %v8656
    %v8809 = vunpack.c.h.b16 %v8657
    %v8810 = vunpack.c.h.b16 %v8658
    %v8811 = vunpack.c.h.b16 %v8659
    %v8812 = vunpack.c.l.b16 %v8660
    %v8813 = vunpack.c.l.b16 %v8661
    %v8814 = vunpack.c.l.b16 %v8662
    %v8815 = vunpack.c.l.b16 %v8663
    %v8816 = vunpack.c.h.b16 %v8660
    %v8817 = vunpack.c.h.b16 %v8661
    %v8818 = vunpack.c.h.b16 %v8662
    %v8819 = vunpack.c.h.b16 %v8663
    %v8820 = vunpack.c.l.b16 %v8664
    %v8821 = vunpack.c.l.b16 %v8665
    %v8822 = vunpack.c.l.b16 %v8666
    %v8823 = vunpack.c.l.b16 %v8667
    %v8824 = vunpack.c.h.b16 %v8664
    %v8825 = vunpack.c.h.b16 %v8665
    %v8826 = vunpack.c.h.b16 %v8666
    %v8827 = vunpack.c.h.b16 %v8667
    %v8828 = vunpack.c.l.b16 %v8668
    %v8829 = vunpack.c.l.b16 %v8669
    %v8830 = vunpack.c.l.b16 %v8670
    %v8831 = vunpack.c.l.b16 %v8671
    %v8832 = vunpack.c.h.b16 %v8668
    %v8833 = vunpack.c.h.b16 %v8669
    %v8834 = vunpack.c.h.b16 %v8670
    %v8835 = vunpack.c.h.b16 %v8671
    %v8836 = vunpack.c.l.b16 %v8672
    %v8837 = vunpack.c.l.b16 %v8673
    %v8838 = vunpack.c.l.b16 %v8674
    %v8839 = vunpack.c.l.b16 %v8675
    %v8840 = vunpack.c.h.b16 %v8672
    %v8841 = vunpack.c.h.b16 %v8673
    %v8842 = vunpack.c.h.b16 %v8674
    %v8843 = vunpack.c.h.b16 %v8675
    %v8844 = vunpack.c.l.b16 %v8676
    %v8845 = vunpack.c.l.b16 %v8677
    %v8846 = vunpack.c.l.b16 %v8678
    %v8847 = vunpack.c.l.b16 %v8679
    %v8848 = vunpack.c.h.b16 %v8676
    %v8849 = vunpack.c.h.b16 %v8677
    %v8850 = vunpack.c.h.b16 %v8678
    %v8851 = vunpack.c.h.b16 %v8679
    %v8852 = vunpack.c.l.b16 %v8680
    %v8853 = vunpack.c.l.b16 %v8681
    %v8854 = vunpack.c.l.b16 %v8682
    %v8855 = vunpack.c.l.b16 %v8683
    %v8856 = vunpack.c.h.b16 %v8680
    %v8857 = vunpack.c.h.b16 %v8681
    %v8858 = vunpack.c.h.b16 %v8682
    %v8859 = vunpack.c.h.b16 %v8683
    %v8860 = vunpack.c.l.b16 %v8684
    %v8861 = vunpack.c.l.b16 %v8685
    %v8862 = vunpack.c.l.b16 %v8686
    %v8863 = vunpack.c.l.b16 %v8687
    %v8864 = vunpack.c.h.b16 %v8684
    %v8865 = vunpack.c.h.b16 %v8685
    %v8866 = vunpack.c.h.b16 %v8686
    %v8867 = vunpack.c.h.b16 %v8687
    %v8868 = vunpack.c.l.b16 %v8688
    %v8869 = vunpack.c.l.b16 %v8689
    %v8870 = vunpack.c.l.b16 %v8690
    %v8871 = vunpack.c.l.b16 %v8691
    %v8872 = vunpack.c.h.b16 %v8688
    %v8873 = vunpack.c.h.b16 %v8689
    %v8874 = vunpack.c.h.b16 %v8690
    %v8875 = vunpack.c.h.b16 %v8691
    %v8876 = vunpack.c.l.b16 %v8692
    %v8877 = vunpack.c.l.b16 %v8693
    %v8878 = vunpack.c.l.b16 %v8694
    %v8879 = vunpack.c.l.b16 %v8695
    %v8880 = vunpack.c.h.b16 %v8692
    %v8881 = vunpack.c.h.b16 %v8693
    %v8882 = vunpack.c.h.b16 %v8694
    %v8883 = vunpack.c.h.b16 %v8695
    %v8884 = vunpack.c.l.b16 %v8696
    %v8885 = vunpack.c.l.b16 %v8697
    %v8886 = vunpack.c.l.b16 %v8698
    %v8887 = vunpack.c.l.b16 %v8699
    %v8888 = vunpack.c.h.b16 %v8696
    %v8889 = vunpack.c.h.b16 %v8697
    %v8890 = vunpack.c.h.b16 %v8698
    %v8891 = vunpack.c.h.b16 %v8699
    %v8892 = vpack.c.b16 %v8765, %v8764
    %v8893 = vpack.c.b16 %v8767, %v8766
    %v8894 = vpack.c.b16 %v8769, %v8768
    %v8895 = vpack.c.b16 %v8771, %v8770
    %v8896 = vpack.c.b16 %v8773, %v8772
    %v8897 = vpack.c.b16 %v8775, %v8774
    %v8898 = vpack.c.b16 %v8777, %v8776
    %v8899 = vpack.c.b16 %v8779, %v8778
    %v8900 = vpack.c.b16 %v8781, %v8780
    %v8901 = vpack.c.b16 %v8783, %v8782
    %v8902 = vpack.c.b16 %v8785, %v8784
    %v8903 = vpack.c.b16 %v8787, %v8786
    %v8904 = vpack.c.b16 %v8789, %v8788
    %v8905 = vpack.c.b16 %v8791, %v8790
    %v8906 = vpack.c.b16 %v8793, %v8792
    %v8907 = vpack.c.b16 %v8795, %v8794
    %v8908 = vpack.c.b16 %v8797, %v8796
    %v8909 = vpack.c.b16 %v8799, %v8798
    %v8910 = vpack.c.b16 %v8801, %v8800
    %v8911 = vpack.c.b16 %v8803, %v8802
    %v8912 = vpack.c.b16 %v8805, %v8804
    %v8913 = vpack.c.b16 %v8807, %v8806
    %v8914 = vpack.c.b16 %v8809, %v8808
    %v8915 = vpack.c.b16 %v8811, %v8810
    %v8916 = vpack.c.b16 %v8813, %v8812
    %v8917 = vpack.c.b16 %v8815, %v8814
    %v8918 = vpack.c.b16 %v8817, %v8816
    %v8919 = vpack.c.b16 %v8819, %v8818
    %v8920 = vpack.c.b16 %v8821, %v8820
    %v8921 = vpack.c.b16 %v8823, %v8822
    %v8922 = vpack.c.b16 %v8825, %v8824
    %v8923 = vpack.c.b16 %v8827, %v8826
    %v8924 = vpack.c.b16 %v8829, %v8828
    %v8925 = vpack.c.b16 %v8831, %v8830
    %v8926 = vpack.c.b16 %v8833, %v8832
    %v8927 = vpack.c.b16 %v8835, %v8834
    %v8928 = vpack.c.b16 %v8837, %v8836
    %v8929 = vpack.c.b16 %v8839, %v8838
    %v8930 = vpack.c.b16 %v8841, %v8840
    %v8931 = vpack.c.b16 %v8843, %v8842
    %v8932 = vpack.c.b16 %v8845, %v8844
    %v8933 = vpack.c.b16 %v8847, %v8846
    %v8934 = vpack.c.b16 %v8849, %v8848
    %v8935 = vpack.c.b16 %v8851, %v8850
    %v8936 = vpack.c.b16 %v8853, %v8852
    %v8937 = vpack.c.b16 %v8855, %v8854
    %v8938 = vpack.c.b16 %v8857, %v8856
    %v8939 = vpack.c.b16 %v8859, %v8858
    %v8940 = vpack.c.b16 %v8861, %v8860
    %v8941 = vpack.c.b16 %v8863, %v8862
    %v8942 = vpack.c.b16 %v8865, %v8864
    %v8943 = vpack.c.b16 %v8867, %v8866
    %v8944 = vpack.c.b16 %v8869, %v8868
    %v8945 = vpack.c.b16 %v8871, %v8870
    %v8946 = vpack.c.b16 %v8873, %v8872
    %v8947 = vpack.c.b16 %v8875, %v8874
    %v8948 = vpack.c.b16 %v8877, %v8876
    %v8949 = vpack.c.b16 %v8879, %v8878
    %v8950 = vpack.c.b16 %v8881, %v8880
    %v8951 = vpack.c.b16 %v8883, %v8882
    %v8952 = vpack.c.b16 %v8885, %v8884
    %v8953 = vpack.c.b16 %v8887, %v8886
    %v8954 = vpack.c.b16 %v8889, %v8888
    %v8955 = vpack.c.b16 %v8891, %v8890
    %9020 = vst [vmem:[#allocation9] sm:$0xff] %v8892
    %9021 = vst [vmem:[#allocation9 + $0x8] sm:$0xff] %v8893
    %9022 = vst [vmem:[#allocation9 + $0x10] sm:$0xff] %v8894
    %9023 = vst [vmem:[#allocation9 + $0x18] sm:$0xff] %v8895
    %9024 = vst [vmem:[#allocation9 + $0x20] sm:$0xff] %v8896
    %9025 = vst [vmem:[#allocation9 + $0x28] sm:$0xff] %v8897
    %9026 = vst [vmem:[#allocation9 + $0x30] sm:$0xff] %v8898
    %9027 = vst [vmem:[#allocation9 + $0x38] sm:$0xff] %v8899
    %9028 = vst [vmem:[#allocation9 + $0x40] sm:$0xff] %v8900
    %9029 = vst [vmem:[#allocation9 + $0x48] sm:$0xff] %v8901
    %9030 = vst [vmem:[#allocation9 + $0x50] sm:$0xff] %v8902
    %9031 = vst [vmem:[#allocation9 + $0x58] sm:$0xff] %v8903
    %9032 = vst [vmem:[#allocation9 + $0x60] sm:$0xff] %v8904
    %9033 = vst [vmem:[#allocation9 + $0x68] sm:$0xff] %v8905
    %9034 = vst [vmem:[#allocation9 + $0x70] sm:$0xff] %v8906
    %9035 = vst [vmem:[#allocation9 + $0x78] sm:$0xff] %v8907
    %9036 = vst [vmem:[#allocation9 + $0x80] sm:$0xff] %v8908
    %9037 = vst [vmem:[#allocation9 + $0x88] sm:$0xff] %v8909
    %9038 = vst [vmem:[#allocation9 + $0x90] sm:$0xff] %v8910
    %9039 = vst [vmem:[#allocation9 + $0x98] sm:$0xff] %v8911
    %9040 = vst [vmem:[#allocation9 + $0xa0] sm:$0xff] %v8912
    %9041 = vst [vmem:[#allocation9 + $0xa8] sm:$0xff] %v8913
    %9042 = vst [vmem:[#allocation9 + $0xb0] sm:$0xff] %v8914
    %9043 = vst [vmem:[#allocation9 + $0xb8] sm:$0xff] %v8915
    %9044 = vst [vmem:[#allocation9 + $0xc0] sm:$0xff] %v8916
    %9045 = vst [vmem:[#allocation9 + $0xc8] sm:$0xff] %v8917
    %9046 = vst [vmem:[#allocation9 + $0xd0] sm:$0xff] %v8918
    %9047 = vst [vmem:[#allocation9 + $0xd8] sm:$0xff] %v8919
    %9048 = vst [vmem:[#allocation9 + $0xe0] sm:$0xff] %v8920
    %9049 = vst [vmem:[#allocation9 + $0xe8] sm:$0xff] %v8921
    %9050 = vst [vmem:[#allocation9 + $0xf0] sm:$0xff] %v8922
    %9051 = vst [vmem:[#allocation9 + $0xf8] sm:$0xff] %v8923
    %9052 = vst [vmem:[#allocation9 + $0x100] sm:$0xff] %v8924
    %9053 = vst [vmem:[#allocation9 + $0x108] sm:$0xff] %v8925
    %9054 = vst [vmem:[#allocation9 + $0x110] sm:$0xff] %v8926
    %9055 = vst [vmem:[#allocation9 + $0x118] sm:$0xff] %v8927
    %9056 = vst [vmem:[#allocation9 + $0x120] sm:$0xff] %v8928
    %9057 = vst [vmem:[#allocation9 + $0x128] sm:$0xff] %v8929
    %9058 = vst [vmem:[#allocation9 + $0x130] sm:$0xff] %v8930
    %9059 = vst [vmem:[#allocation9 + $0x138] sm:$0xff] %v8931
    %9060 = vst [vmem:[#allocation9 + $0x140] sm:$0xff] %v8932
    %9061 = vst [vmem:[#allocation9 + $0x148] sm:$0xff] %v8933
    %9062 = vst [vmem:[#allocation9 + $0x150] sm:$0xff] %v8934
    %9063 = vst [vmem:[#allocation9 + $0x158] sm:$0xff] %v8935
    %9064 = vst [vmem:[#allocation9 + $0x160] sm:$0xff] %v8936
    %9065 = vst [vmem:[#allocation9 + $0x168] sm:$0xff] %v8937
    %9066 = vst [vmem:[#allocation9 + $0x170] sm:$0xff] %v8938
    %9067 = vst [vmem:[#allocation9 + $0x178] sm:$0xff] %v8939
    %9068 = vst [vmem:[#allocation9 + $0x180] sm:$0xff] %v8940
    %9069 = vst [vmem:[#allocation9 + $0x188] sm:$0xff] %v8941
    %9070 = vst [vmem:[#allocation9 + $0x190] sm:$0xff] %v8942
    %9071 = vst [vmem:[#allocation9 + $0x198] sm:$0xff] %v8943
    %9072 = vst [vmem:[#allocation9 + $0x1a0] sm:$0xff] %v8944
    %9073 = vst [vmem:[#allocation9 + $0x1a8] sm:$0xff] %v8945
    %9074 = vst [vmem:[#allocation9 + $0x1b0] sm:$0xff] %v8946
    %9075 = vst [vmem:[#allocation9 + $0x1b8] sm:$0xff] %v8947
    %9076 = vst [vmem:[#allocation9 + $0x1c0] sm:$0xff] %v8948
    %9077 = vst [vmem:[#allocation9 + $0x1c8] sm:$0xff] %v8949
    %9078 = vst [vmem:[#allocation9 + $0x1d0] sm:$0xff] %v8950
    %9079 = vst [vmem:[#allocation9 + $0x1d8] sm:$0xff] %v8951
    %9080 = vst [vmem:[#allocation9 + $0x1e0] sm:$0xff] %v8952
    %9081 = vst [vmem:[#allocation9 + $0x1e8] sm:$0xff] %v8953
    %9082 = vst [vmem:[#allocation9 + $0x1f0] sm:$0xff] %v8954
    %9083 = vst [vmem:[#allocation9 + $0x1f8] sm:$0xff] %v8955
    // Predicated region
    $region42: #{tpu_custom_call.1} parent=1 // pred_check
      _
    $region43: #{tpu_custom_call.1} parent=1 // pred_check_branch
      %9085 = sbr.rel (0) target = $region45
    $region44: #{tpu_custom_call.1} parent=1 // pred_region
      %s9087 = ssub.s32 16384, 16384
      %9088 = vsyncadd [#allocation4], %s9087
      %s9089 = sshll.u32 [#allocation8], 4
      %s9090 = int_to_ptr.vmem [resolvable:$true] %s9089
      %9095 = dma.vmem_to_hbm [thread:$0]  %s9090, 16384, %s7, [#allocation4], 512, 512, 32
    $region45: #{tpu_custom_call.1} parent=1 // pred_fallthru
      _
    // Predicated region
    $region46: #{tpu_custom_call.1} parent=1 // pred_check
      _
    $region47: #{tpu_custom_call.1} parent=1 // pred_check_branch
      %9097 = sbr.rel (0) target = $region49
    $region48: #{tpu_custom_call.1} parent=1 // pred_region
      %s9099 = ssub.s32 8192, 8192
      %9100 = vsyncadd [#allocation10], %s9099
      %s9101 = sshll.u32 [#allocation9], 4
      %s9102 = int_to_ptr.vmem [resolvable:$true] %s9101
      %9107 = dma.vmem_to_hbm [thread:$0]  %s9102, 8192, %s8, [#allocation10], 256, 256, 16
    $region49: #{tpu_custom_call.1} parent=1 // pred_fallthru
      _
    // Predicated region
    $region50: #{tpu_custom_call.1} parent=1 // pred_check
      _
    $region51: #{tpu_custom_call.1} parent=1 // pred_check_branch
      %9109 = sbr.rel (0) target = $region53
    $region52: #{tpu_custom_call.1} parent=1 // pred_region
      %9110 = dma.done [#allocation4], 16384
    $region53: #{tpu_custom_call.1} parent=1 // pred_fallthru
      _
    // Predicated region
    $region54: #{tpu_custom_call.1} parent=1 // pred_check
      _
    $region55: #{tpu_custom_call.1} parent=1 // pred_check_branch
      %9112 = sbr.rel (0) target = $region57
    $region56: #{tpu_custom_call.1} parent=1 // pred_region
      %9113 = dma.done [#allocation10], 8192
    $region57: #{tpu_custom_call.1} parent=1 // pred_fallthru
      _
    %9114 = vsyncpa [#allocation3], 1
    %9115 = vsyncpa [#allocation6], 1
    %9116 = vsyncpa [#allocation4], 1
    %9117 = vsyncpa [#allocation10], 1

</llo_original>
